<compile_context>
chip_gen: v7x
topology: tpu7x:2x2x1
jax: 0.10.0
libtpu: 0.0.40
codegen_flags: <defaults>
</compile_context>

<pallas_src>
import functools
import math

import jax
import jax.numpy as jnp
from jax import lax
from jax.experimental import pallas as pl
from jax.experimental.pallas import tpu as pltpu


_MXU_DTYPE = jnp.bfloat16                    # MXU operand dtype (f32 accumulation everywhere)
_BN_SCALE = 1.0 / math.sqrt(1.0 + 1e-5)      # BatchNorm1d eval w/ default running stats
_VMEM_LIMIT = 32 * 1024 * 1024               # explicit scoped-VMEM cap, safe on v5e/v6e/v7x
_CHAIN_FUSE_LIMIT = 8 * 1024 * 1024          # budget for the single-block fused chain kernel


def _round_up(x, m):
    return (x + m - 1) // m * m


def _pad2(a, rows, cols, dtype=jnp.float32):
    a = jnp.asarray(a, dtype)
    pr, pc = rows - a.shape[0], cols - a.shape[1]
    if pr or pc:
        a = jnp.pad(a, ((0, pr), (0, pc)))
    return a


# ----------------------------------------------------------------------------
# Tiled matmul kernel (optional trans_a, fused bias / activation / BN scale)
# ----------------------------------------------------------------------------
def _mm_kernel(x_ref, w_ref, b_ref, o_ref, acc_ref, *, activation, scale, trans_a):
    k = pl.program_id(2)

    @pl.when(k == 0)
    def _():
        acc_ref[...] = jnp.zeros_like(acc_ref)

    if trans_a:
        acc_ref[...] += lax.dot_general(
            x_ref[...], w_ref[...],
            dimension_numbers=(((0,), (0,)), ((), ())),
            preferred_element_type=jnp.float32)
    else:
        acc_ref[...] += jnp.dot(x_ref[...], w_ref[...],
                                preferred_element_type=jnp.float32)

    @pl.when(k == pl.num_programs(2) - 1)
    def _():
        r = acc_ref[...] + b_ref[...]
        if activation == "relu":
            r = jnp.maximum(r, 0.0)
        elif activation == "tanh":
            r = jnp.tanh(r)
        if scale is not None:
            r = r * scale
        o_ref[...] = r


def pallas_matmul(x, w, bias=None, activation=None, scale=None, trans_a=False):
    """out = act(x @ w + b) * scale  (x.T @ w if trans_a).

    Tiled/gridded; bf16 MXU operands with f32 accumulation; all lane dims padded to 128.
    """
    x = jnp.asarray(x)
    w = jnp.asarray(w)
    if trans_a:
        K, M = x.shape
    else:
        M, K = x.shape
    K2, N = w.shape
    assert K == K2, (x.shape, w.shape, trans_a)

    tm = min(256, _round_up(M, 128 if trans_a else 16))
    tn = min(256, _round_up(N, 128))
    tk = min(512, _round_up(K, 128))
    Mp, Np, Kp = _round_up(M, tm), _round_up(N, tn), _round_up(K, tk)

    if trans_a:
        xp = _pad2(x, Kp, Mp).astype(_MXU_DTYPE)
        x_spec = pl.BlockSpec((tk, tm), lambda i, j, k: (k, i))
    else:
        xp = _pad2(x, Mp, Kp).astype(_MXU_DTYPE)
        x_spec = pl.BlockSpec((tm, tk), lambda i, j, k: (i, k))
    wp = _pad2(w, Kp, Np).astype(_MXU_DTYPE)
    b = jnp.zeros((N,), jnp.float32) if bias is None else jnp.asarray(bias, jnp.float32)
    bp = _pad2(b.reshape(1, N), 1, Np)

    kern = functools.partial(_mm_kernel, activation=activation, scale=scale,
                             trans_a=trans_a)
    out = pl.pallas_call(
        kern,
        out_shape=jax.ShapeDtypeStruct((Mp, Np), jnp.float32),
        grid=(Mp // tm, Np // tn, Kp // tk),
        in_specs=[x_spec,
                  pl.BlockSpec((tk, tn), lambda i, j, k: (k, j)),
                  pl.BlockSpec((1, tn), lambda i, j, k: (0, j))],
        out_specs=pl.BlockSpec((tm, tn), lambda i, j, k: (i, j)),
        scratch_shapes=[pltpu.VMEM((tm, tn), jnp.float32)],
        compiler_params=pltpu.CompilerParams(
            dimension_semantics=("parallel", "parallel", "arbitrary"),
            vmem_limit_bytes=_VMEM_LIMIT),
        cost_estimate=pl.CostEstimate(
            flops=2 * Mp * Np * Kp, transcendentals=0,
            bytes_accessed=2 * (Mp * Kp + Kp * Np) + 4 * Mp * Np),
    )(xp, wp, bp)
    return out[:M, :N]


# ----------------------------------------------------------------------------
# Fused chain-matmul kernel:  out = act((op(A) @ B) @ C + b) * scale
# Single grid point, all operands resident in VMEM.  Used for GCN layers
# (A_hat@X@W), adjacency pooling (S.T@A@S) and the cluster encoder ((A@X)@W).
# Falls back to two tiled matmuls when the padded footprint exceeds the budget.
# ----------------------------------------------------------------------------
def _chain_kernel(a_ref, b_ref, c_ref, bias_ref, o_ref, *, activation, scale, trans_a):
    if trans_a:
        ab = lax.dot_general(a_ref[...], b_ref[...],
                             dimension_numbers=(((0,), (0,)), ((), ())),
                             preferred_element_type=jnp.float32)
    else:
        ab = jnp.dot(a_ref[...], b_ref[...], preferred_element_type=jnp.float32)
    r = jnp.dot(ab.astype(c_ref.dtype), c_ref[...],
                preferred_element_type=jnp.float32)
    r = r + bias_ref[...]
    if activation == "relu":
        r = jnp.maximum(r, 0.0)
    elif activation == "tanh":
        r = jnp.tanh(r)
    if scale is not None:
        r = r * scale
    o_ref[...] = r


def pallas_chain_matmul(a, b, c, bias=None, activation=None, scale=None, trans_a=False):
    """out = act((a.T if trans_a else a) @ b @ c + bias) * scale."""
    a = jnp.asarray(a)
    b = jnp.asarray(b)
    c = jnp.asarray(c)
    if trans_a:
        K1, M = a.shape
    else:
        M, K1 = a.shape
    K1b, K2 = b.shape
    K2c, N = c.shape
    assert K1 == K1b and K2 == K2c, (a.shape, b.shape, c.shape, trans_a)

    Mp = _round_up(M, 128 if trans_a else 16)
    K1p = _round_up(K1, 128)
    K2p = _round_up(K2, 128)
    Np = _round_up(N, 128)

    # conservative footprint estimate incl. double buffering of inputs
    vmem_est = (2 * 2 * (Mp * K1p + K1p * K2p + K2p * Np)
                + 4 * (Mp * K2p + Mp * Np + Np))
    if vmem_est > _CHAIN_FUSE_LIMIT:
        # fallback: two tiled matmuls, association chosen by flop count
        left = M * K1 * K2 + M * K2 * N
        right = K1 * K2 * N + M * K1 * N
        if left <= right:
            tmp = pallas_matmul(a, b, trans_a=trans_a)
            return pallas_matmul(tmp, c, bias=bias, activation=activation, scale=scale)
        tmp = pallas_matmul(b, c)
        return pallas_matmul(a, tmp, bias=bias, activation=activation, scale=scale,
                             trans_a=trans_a)

    if trans_a:
        ap = _pad2(a, K1p, Mp).astype(_MXU_DTYPE)
    else:
        ap = _pad2(a, Mp, K1p).astype(_MXU_DTYPE)
    bp = _pad2(b, K1p, K2p).astype(_MXU_DTYPE)
    cp = _pad2(c, K2p, Np).astype(_MXU_DTYPE)
    bvec = jnp.zeros((N,), jnp.float32) if bias is None else jnp.asarray(bias, jnp.float32)
    biasp = _pad2(bvec.reshape(1, N), 1, Np)

    kern = functools.partial(_chain_kernel, activation=activation, scale=scale,
                             trans_a=trans_a)
    out = pl.pallas_call(
        kern,
        out_shape=jax.ShapeDtypeStruct((Mp, Np), jnp.float32),
        grid=(1,),
        in_specs=[
            pl.BlockSpec(ap.shape, lambda i: (0, 0)),
            pl.BlockSpec(bp.shape, lambda i: (0, 0)),
            pl.BlockSpec(cp.shape, lambda i: (0, 0)),
            pl.BlockSpec((1, Np), lambda i: (0, 0)),
        ],
        out_specs=pl.BlockSpec((Mp, Np), lambda i: (0, 0)),
        compiler_params=pltpu.CompilerParams(
            dimension_semantics=("arbitrary",),
            vmem_limit_bytes=_VMEM_LIMIT),
        cost_estimate=pl.CostEstimate(
            flops=2 * (Mp * K1p * K2p + Mp * K2p * Np), transcendentals=0,
            bytes_accessed=2 * (Mp * K1p + K1p * K2p + K2p * Np) + 4 * Mp * Np),
    )(ap, bp, cp, biasp)
    return out[:M, :N]


# ----------------------------------------------------------------------------
# Fused "concat -> Linear" kernel:  out = act(x1@w1 + x2@w2 + x3@w3 + b)
# (avoids materializing the concatenated activation in HBM; per-part K kept resident)
# ----------------------------------------------------------------------------
def _mm3_kernel(x1_ref, x2_ref, x3_ref, w1_ref, w2_ref, w3_ref, b_ref, o_ref, *,
                activation):
    acc = jnp.dot(x1_ref[...], w1_ref[...], preferred_element_type=jnp.float32)
    acc += jnp.dot(x2_ref[...], w2_ref[...], preferred_element_type=jnp.float32)
    acc += jnp.dot(x3_ref[...], w3_ref[...], preferred_element_type=jnp.float32)
    acc += b_ref[...]
    if activation == "relu":
        acc = jnp.maximum(acc, 0.0)
    elif activation == "tanh":
        acc = jnp.tanh(acc)
    o_ref[...] = acc


def pallas_fused_linear3(xs, ws, bias, activation=None):
    assert len(xs) == 3 and len(ws) == 3
    M = xs[0].shape[0]
    N = ws[0].shape[1]
    tm = min(256, _round_up(M, 16))
    tn = min(256, _round_up(N, 128))
    Mp, Np = _round_up(M, tm), _round_up(N, tn)

    xps, wps = [], []
    for xi, wi in zip(xs, ws):
        K = xi.shape[1]
        assert wi.shape == (K, N)
        Kp = _round_up(K, 128)
        xps.append(_pad2(xi, Mp, Kp).astype(_MXU_DTYPE))
        wps.append(_pad2(wi, Kp, Np).astype(_MXU_DTYPE))
    b = jnp.zeros((N,), jnp.float32) if bias is None else jnp.asarray(bias, jnp.float32)
    bp = _pad2(b.reshape(1, N), 1, Np)

    k1, k2, k3 = (xp.shape[1] for xp in xps)
    kern = functools.partial(_mm3_kernel, activation=activation)
    out = pl.pallas_call(
        kern,
        out_shape=jax.ShapeDtypeStruct((Mp, Np), jnp.float32),
        grid=(Mp // tm, Np // tn),
        in_specs=[
            pl.BlockSpec((tm, k1), lambda i, j: (i, 0)),
            pl.BlockSpec((tm, k2), lambda i, j: (i, 0)),
            pl.BlockSpec((tm, k3), lambda i, j: (i, 0)),
            pl.BlockSpec((k1, tn), lambda i, j: (0, j)),
            pl.BlockSpec((k2, tn), lambda i, j: (0, j)),
            pl.BlockSpec((k3, tn), lambda i, j: (0, j)),
            pl.BlockSpec((1, tn), lambda i, j: (0, j)),
        ],
        out_specs=pl.BlockSpec((tm, tn), lambda i, j: (i, j)),
        compiler_params=pltpu.CompilerParams(
            dimension_semantics=("parallel", "parallel"),
            vmem_limit_bytes=_VMEM_LIMIT),
    )(*xps, *wps, bp)
    return out[:M, :N]


# ----------------------------------------------------------------------------
# Fused two-layer LSTM (zero init state).  Layer-1 input projection is precomputed
# outside; gate columns are padded to 128-lane slots [i|f|g|o] so slices are lane-dense.
# Only h_n of each layer is produced (last step), no sequence is written to HBM.
# ----------------------------------------------------------------------------
def _lstm2_kernel(xg1_ref, whh1_ref, wih2_ref, whh2_ref, b2_ref,
                  hn1_ref, hn2_ref, h1, c1, h2, c2, *, Hp, mxu_dtype):
    t = pl.program_id(0)

    @pl.when(t == 0)
    def _():
        h1[...] = jnp.zeros_like(h1)
        c1[...] = jnp.zeros_like(c1)
        h2[...] = jnp.zeros_like(h2)
        c2[...] = jnp.zeros_like(c2)

    def cell(gates, c_prev):
        i = jax.nn.sigmoid(gates[:, 0 * Hp:1 * Hp])
        f = jax.nn.sigmoid(gates[:, 1 * Hp:2 * Hp])
        g = jnp.tanh(gates[:, 2 * Hp:3 * Hp])
        o = jax.nn.sigmoid(gates[:, 3 * Hp:4 * Hp])
        c_new = f * c_prev + i * g
        h_new = o * jnp.tanh(c_new)
        return h_new, c_new

    # layer 1: x@W_ih (+ biases) was hoisted out of the recurrence
    g1 = xg1_ref[0] + jnp.dot(h1[...].astype(mxu_dtype), whh1_ref[...],
                              preferred_element_type=jnp.float32)
    h1n, c1n = cell(g1, c1[...])
    h1[...] = h1n
    c1[...] = c1n

    # layer 2: consumes layer-1's hidden state of the same step (fused wavefront)
    g2 = (jnp.dot(h1n.astype(mxu_dtype), wih2_ref[...],
                  preferred_element_type=jnp.float32)
          + jnp.dot(h2[...].astype(mxu_dtype), whh2_ref[...],
                    preferred_element_type=jnp.float32)
          + b2_ref[...])
    h2n, c2n = cell(g2, c2[...])
    h2[...] = h2n
    c2[...] = c2n

    @pl.when(t == pl.num_programs(0) - 1)
    def _():
        hn1_ref[...] = h1n
        hn2_ref[...] = h2n


def _gate_pad_cols(w, H, Hp):
    """(D, 4H) -> (D, 4Hp): each gate's H real columns scattered into its 128-lane slot."""
    w = jnp.asarray(w, jnp.float32)
    D = w.shape[0]
    out = jnp.zeros((D, 4 * Hp), jnp.float32)
    for g in range(4):
        out = out.at[:, g * Hp:g * Hp + H].set(w[:, g * H:(g + 1) * H])
    return out


def _pad_rows(w, rp):
    pr = rp - w.shape[0]
    return jnp.pad(w, ((0, pr), (0, 0))) if pr else w


def run_lstm_stack(h_seq, p, nhid):
    """Two stacked single-layer LSTMs; returns (h_n layer1, h_n layer2), each (M, nhid)."""
    T, M, C = h_seq.shape
    H = nhid
    Hp = _round_up(H, 128)
    Mp = _round_up(M, 8)
    if Mp != M:
        h_seq = jnp.pad(h_seq, ((0, 0), (0, Mp - M), (0, 0)))

    wih1_p = _gate_pad_cols(p["rnn1_wih"], H, Hp)                       # (C, 4Hp)
    b1_p = _gate_pad_cols(p["rnn1_b"].reshape(1, -1), H, Hp).reshape(-1)
    whh1_p = _pad_rows(_gate_pad_cols(p["rnn1_whh"], H, Hp), Hp)        # (Hp, 4Hp)
    wih2_p = _pad_rows(_gate_pad_cols(p["rnn2_wih"], H, Hp), Hp)        # (Hp, 4Hp)
    whh2_p = _pad_rows(_gate_pad_cols(p["rnn2_whh"], H, Hp), Hp)        # (Hp, 4Hp)
    b2_p = _gate_pad_cols(p["rnn2_b"].reshape(1, -1), H, Hp)            # (1, 4Hp)

    # hoisted input projection for layer 1: one big lane-dense tiled matmul over all T
    xg1 = pallas_matmul(h_seq.reshape(T * Mp, C), wih1_p, bias=b1_p)
    xg1 = xg1.reshape(T, Mp, 4 * Hp)

    kern = functools.partial(_lstm2_kernel, Hp=Hp, mxu_dtype=_MXU_DTYPE)
    hn1, hn2 = pl.pallas_call(
        kern,
        out_shape=(jax.ShapeDtypeStruct((Mp, Hp), jnp.float32),
                   jax.ShapeDtypeStruct((Mp, Hp), jnp.float32)),
        grid=(T,),
        in_specs=[
            pl.BlockSpec((1, Mp, 4 * Hp), lambda t: (t, 0, 0)),
            pl.BlockSpec((Hp, 4 * Hp), lambda t: (0, 0)),
            pl.BlockSpec((Hp, 4 * Hp), lambda t: (0, 0)),
            pl.BlockSpec((Hp, 4 * Hp), lambda t: (0, 0)),
            pl.BlockSpec((1, 4 * Hp), lambda t: (0, 0)),
        ],
        out_specs=(pl.BlockSpec((Mp, Hp), lambda t: (0, 0)),
                   pl.BlockSpec((Mp, Hp), lambda t: (0, 0))),
        scratch_shapes=[pltpu.VMEM((Mp, Hp), jnp.float32),
                        pltpu.VMEM((Mp, Hp), jnp.float32),
                        pltpu.VMEM((Mp, Hp), jnp.float32),
                        pltpu.VMEM((Mp, Hp), jnp.float32)],
        compiler_params=pltpu.CompilerParams(
            dimension_semantics=("arbitrary",),
            vmem_limit_bytes=_VMEM_LIMIT),
    )(xg1, whh1_p.astype(_MXU_DTYPE), wih2_p.astype(_MXU_DTYPE),
      whh2_p.astype(_MXU_DTYPE), b2_p)
    return hn1[:M, :H], hn2[:M, :H]


# ----------------------------------------------------------------------------
# Plain-JAX glue (normalizations, gumbel noise, reshapes) — tiny / scalar-heavy ops
# ----------------------------------------------------------------------------
def gcn_norm_dense(adj):
    n = adj.shape[0]
    a = adj + jnp.eye(n, dtype=adj.dtype)
    deg = jnp.sum(a, axis=1)
    dinv = jnp.where(deg > 0, 1.0 / jnp.sqrt(deg), 0.0)
    return a * dinv[:, None] * dinv[None, :]


def l2_normalize_rows(x, eps=1e-12):
    n = jnp.sqrt(jnp.sum(x * x, axis=1, keepdims=True))
    return x / jnp.maximum(n, eps)


def gumbel_softmax_hard(key, logits, tau=1.0):
    g = jax.random.gumbel(key, logits.shape, logits.dtype)
    y = (logits + g) / tau
    idx = jnp.argmax(y, axis=1)
    return jax.nn.one_hot(idx, logits.shape[1], dtype=logits.dtype)


# ----------------------------------------------------------------------------
# Model forward
# ----------------------------------------------------------------------------
def mpnn_encoder(p, adj_hat, x, nfeat, nhid):
    # GCNConv -> ReLU -> BatchNorm(eval): each layer is ONE fused chain kernel
    # (A_hat @ X @ W + bias, ReLU, constant BN scale) when it fits VMEM.
    h = pallas_chain_matmul(adj_hat, x, p["conv1_w"], bias=p["conv1_b"],
                            activation="relu", scale=_BN_SCALE)
    h2 = pallas_chain_matmul(adj_hat, h, p["conv2_w"], bias=p["conv2_b"],
                             activation="relu", scale=_BN_SCALE)
    # fc1 over concat([x, h, h2]) as a sum of partial matmuls (no concat materialized)
    w = p["fc1_w"]
    out = pallas_fused_linear3(
        [x, h, h2],
        [w[:nfeat], w[nfeat:nfeat + nhid], w[nfeat + nhid:]],
        p["fc1_b"], activation="relu")
    out = pallas_matmul(out, p["fc2_w"], bias=p["fc2_b"], activation="relu")
    return out


def tmgnn_forward(params, adj_dense, x, key, *, window, n_nodes, nfeat, nhid,
                  num_clusters, use_norm=False):
    # x: (B, window, n_nodes, nfeat)
    skip = jnp.transpose(x.reshape(-1, window, n_nodes, nfeat), (0, 2, 1, 3))
    skip = skip.reshape(-1, window, nfeat)                 # (B*n_nodes, window, nfeat)
    xf = x.reshape(-1, nfeat)                              # (N, nfeat), N = B*window*n_nodes

    adj_hat = gcn_norm_dense(adj_dense)
    bottom_latent = mpnn_encoder(params["bottom"], adj_hat, xf, nfeat, nhid)

    all_latents = [bottom_latent]
    adj = adj_dense
    latent = bottom_latent
    product = None
    keys = jax.random.split(key, len(num_clusters))
    for level in range(len(num_clusters)):
        ml_w, ml_b = params["middle_linear"][level]
        me_w, me_b = params["middle_encoder"][level]
        logits = pallas_matmul(latent, ml_w, bias=ml_b)
        assign = gumbel_softmax_hard(keys[level], logits, tau=1.0)
        if level == 0:
            product = assign
        else:
            product = pallas_matmul(product, assign)
        # pooling: assign.T @ (.) via trans_a dot_general (no HBM transpose copies)
        xp = pallas_matmul(assign, latent, trans_a=True)
        xp = l2_normalize_rows(xp)
        # adj' = assign.T @ adj @ assign, fused into one kernel
        adj = pallas_chain_matmul(assign, adj, assign, trans_a=True)
        adj = adj / jnp.sum(adj)
        # latent' = tanh((adj @ xp) @ W + b), fused into one kernel
        latent = pallas_chain_matmul(adj, xp, me_w, bias=me_b, activation="tanh")
        all_latents.append(pallas_matmul(product, latent))

    if use_norm:
        all_latents = [a / jnp.linalg.norm(a) for a in all_latents]

    if len(all_latents) == 3:
        w = params["mix1_w"]
        h = pallas_fused_linear3(
            all_latents, [w[:nhid], w[nhid:2 * nhid], w[2 * nhid:]],
            params["mix1_b"], activation="relu")
    else:
        rep = jnp.concatenate(all_latents, axis=1)
        h = pallas_matmul(rep, params["mix1_w"], bias=params["mix1_b"], activation="relu")
    h = pallas_matmul(h, params["mix2_w"], bias=params["mix2_b"], activation="relu")

    C = h.shape[1]
    h = h.reshape(-1, window, n_nodes, C)
    h = jnp.transpose(h, (1, 0, 2, 3)).reshape(window, -1, C)   # (window, B*n_nodes, C)

    hn1, hn2 = run_lstm_stack(h, params, nhid)

    skip_flat = skip.reshape(skip.shape[0], -1)              # (B*n_nodes, window*nfeat)
    w = params["fc1_w"]
    out = pallas_fused_linear3(
        [hn1, hn2, skip_flat],
        [w[:nhid], w[nhid:2 * nhid], w[2 * nhid:]],
        params["fc1_b"], activation="relu")
    out = pallas_matmul(out, params["fc2_w"], bias=params["fc2_b"], activation="relu")
    return out.reshape(-1)


# ----------------------------------------------------------------------------
# Deterministic parameter init (shapes from TMGNN.__init__; stored as (in, out))
# ----------------------------------------------------------------------------
def _uniform(key, shape, fan_in):
    s = 1.0 / float(fan_in) ** 0.5
    return jax.random.uniform(key, shape, jnp.float32, -s, s)


def init_params(key, nfeat, nhid, nout, window, num_clusters):
    ks = iter(jax.random.split(key, 64))
    p = {}
    p["bottom"] = {
        "conv1_w": _uniform(next(ks), (nfeat, nhid), nfeat),
        "conv1_b": jnp.zeros((nhid,), jnp.float32),
        "conv2_w": _uniform(next(ks), (nhid, nhid), nhid),
        "conv2_b": jnp.zeros((nhid,), jnp.float32),
        "fc1_w": _uniform(next(ks), (nfeat + 2 * nhid, nhid), nfeat + 2 * nhid),
        "fc1_b": _uniform(next(ks), (nhid,), nfeat + 2 * nhid),
        "fc2_w": _uniform(next(ks), (nhid, nhid), nhid),
        "fc2_b": _uniform(next(ks), (nhid,), nhid),
    }
    p["middle_linear"] = []
    p["middle_encoder"] = []
    for size in num_clusters:
        p["middle_linear"].append((_uniform(next(ks), (nhid, size), nhid),
                                   _uniform(next(ks), (size,), nhid)))
        p["middle_encoder"].append((_uniform(next(ks), (nhid, nhid), nhid),
                                    _uniform(next(ks), (nhid,), nhid)))
    L = len(num_clusters) + 1
    p["mix1_w"] = _uniform(next(ks), (L * nhid, 512), L * nhid)
    p["mix1_b"] = _uniform(next(ks), (512,), L * nhid)
    p["mix2_w"] = _uniform(next(ks), (512, L * nhid), 512)
    p["mix2_b"] = _uniform(next(ks), (L * nhid,), 512)
    # LSTM weights pre-transposed: w_ih (in, 4H), w_hh (H, 4H); b = b_ih + b_hh
    p["rnn1_wih"] = _uniform(next(ks), (L * nhid, 4 * nhid), nhid)
    p["rnn1_whh"] = _uniform(next(ks), (nhid, 4 * nhid), nhid)
    p["rnn1_b"] = _uniform(next(ks), (4 * nhid,), nhid) + _uniform(next(ks), (4 * nhid,), nhid)
    p["rnn2_wih"] = _uniform(next(ks), (nhid, 4 * nhid), nhid)
    p["rnn2_whh"] = _uniform(next(ks), (nhid, 4 * nhid), nhid)
    p["rnn2_b"] = _uniform(next(ks), (4 * nhid,), nhid) + _uniform(next(ks), (4 * nhid,), nhid)
    p["fc1_w"] = _uniform(next(ks), (2 * nhid + window * nfeat, nhid), 2 * nhid + window * nfeat)
    p["fc1_b"] = _uniform(next(ks), (nhid,), 2 * nhid + window * nfeat)
    p["fc2_w"] = _uniform(next(ks), (nhid, nout), nhid)
    p["fc2_b"] = _uniform(next(ks), (nout,), nhid)
    return p


# ----------------------------------------------------------------------------
if __name__ == "__main__":
    nfeat, nhid, nout = 4, 16, 1
    window, n_nodes, B = 4, 8, 2
    num_clusters = (10, 5)
    N = B * window * n_nodes                                # total graph nodes = 64

    key = jax.random.PRNGKey(0)
    k_par, k_x, k_adj, k_gumbel = jax.random.split(key, 4)
    params = init_params(k_par, nfeat, nhid, nout, window, num_clusters)

    x = jax.random.normal(k_x, (B, window, n_nodes, nfeat), jnp.float32)

    # deterministic symmetric non-negative weighted adjacency over all N nodes (dense)
    a = jax.random.uniform(k_adj, (N, N), jnp.float32)
    adj = jnp.where(a > 0.8, a, 0.0)
    adj = 0.5 * (adj + adj.T)
    adj = adj * (1.0 - jnp.eye(N, dtype=jnp.float32))

    fwd = jax.jit(functools.partial(
        tmgnn_forward, window=window, n_nodes=n_nodes, nfeat=nfeat, nhid=nhid,
        num_clusters=num_clusters, use_norm=False))
    out = jax.block_until_ready(fwd(params, adj, x, k_gumbel))
    assert out.shape == (B * n_nodes,), out.shape
    assert bool(jnp.all(jnp.isfinite(out)))
    print("KERNEL_OK")
</pallas_src>

<mosaic_0001>
module attributes {stable_mosaic.version = 11 : i64} {
  func.func @_mm3_kernel(%arg0: i32, %arg1: i32, %arg2: memref<64x128xbf16, #tpu.memory_space<vmem>>, %arg3: memref<64x128xbf16, #tpu.memory_space<vmem>>, %arg4: memref<64x128xbf16, #tpu.memory_space<vmem>>, %arg5: memref<128x128xbf16, #tpu.memory_space<vmem>>, %arg6: memref<128x128xbf16, #tpu.memory_space<vmem>>, %arg7: memref<128x128xbf16, #tpu.memory_space<vmem>>, %arg8: memref<1x128xf32, #tpu.memory_space<vmem>>, %arg9: memref<64x128xf32, #tpu.memory_space<vmem>>) attributes {dimension_semantics = [#tpu.dimension_semantics<parallel>, #tpu.dimension_semantics<parallel>], iteration_bounds = array<i64: 1, 1>, scalar_prefetch = 0 : i64, scratch_operands = 0 : i64, tpu.core_type = #tpu.core_type<tc>, window_params = [{transform_indices = @transform_0, window_bounds = array<i64: 64, 128>}, {transform_indices = @transform_1, window_bounds = array<i64: 64, 128>}, {transform_indices = @transform_2, window_bounds = array<i64: 64, 128>}, {transform_indices = @transform_3, window_bounds = array<i64: 128, 128>}, {transform_indices = @transform_4, window_bounds = array<i64: 128, 128>}, {transform_indices = @transform_5, window_bounds = array<i64: 128, 128>}, {transform_indices = @transform_6, window_bounds = array<i64: 1, 128>}, {transform_indices = @transform_7, window_bounds = array<i64: 64, 128>}]} {
    %c0 = arith.constant 0 : index
    %c0_0 = arith.constant 0 : index
    %0 = vector.load %arg2[%c0, %c0_0] : memref<64x128xbf16, #tpu.memory_space<vmem>>, vector<64x128xbf16>
    %c0_1 = arith.constant 0 : index
    %c0_2 = arith.constant 0 : index
    %1 = vector.load %arg5[%c0_1, %c0_2] : memref<128x128xbf16, #tpu.memory_space<vmem>>, vector<128x128xbf16>
    %cst = arith.constant dense<0.000000e+00> : vector<64x128xf32>
    %2 = tpu.matmul %0, %1, %cst {dimension_numbers = #tpu.dot_dimension_numbers<[1], [0], [0], [1], [0, 0, 1, 1], [], []>} : vector<64x128xbf16>, vector<128x128xbf16>, vector<64x128xf32> -> vector<64x128xf32>
    %c0_3 = arith.constant 0 : index
    %c0_4 = arith.constant 0 : index
    %3 = vector.load %arg3[%c0_3, %c0_4] : memref<64x128xbf16, #tpu.memory_space<vmem>>, vector<64x128xbf16>
    %c0_5 = arith.constant 0 : index
    %c0_6 = arith.constant 0 : index
    %4 = vector.load %arg6[%c0_5, %c0_6] : memref<128x128xbf16, #tpu.memory_space<vmem>>, vector<128x128xbf16>
    %cst_7 = arith.constant dense<0.000000e+00> : vector<64x128xf32>
    %5 = tpu.matmul %3, %4, %cst_7 {dimension_numbers = #tpu.dot_dimension_numbers<[1], [0], [0], [1], [0, 0, 1, 1], [], []>} : vector<64x128xbf16>, vector<128x128xbf16>, vector<64x128xf32> -> vector<64x128xf32>
    %6 = arith.addf %2, %5 : vector<64x128xf32>
    %c0_8 = arith.constant 0 : index
    %c0_9 = arith.constant 0 : index
    %7 = vector.load %arg4[%c0_8, %c0_9] : memref<64x128xbf16, #tpu.memory_space<vmem>>, vector<64x128xbf16>
    %c0_10 = arith.constant 0 : index
    %c0_11 = arith.constant 0 : index
    %8 = vector.load %arg7[%c0_10, %c0_11] : memref<128x128xbf16, #tpu.memory_space<vmem>>, vector<128x128xbf16>
    %cst_12 = arith.constant dense<0.000000e+00> : vector<64x128xf32>
    %9 = tpu.matmul %7, %8, %cst_12 {dimension_numbers = #tpu.dot_dimension_numbers<[1], [0], [0], [1], [0, 0, 1, 1], [], []>} : vector<64x128xbf16>, vector<128x128xbf16>, vector<64x128xf32> -> vector<64x128xf32>
    %10 = arith.addf %6, %9 : vector<64x128xf32>
    %c0_13 = arith.constant 0 : index
    %c0_14 = arith.constant 0 : index
    %11 = vector.load %arg8[%c0_13, %c0_14] : memref<1x128xf32, #tpu.memory_space<vmem>>, vector<1x128xf32>
    %12 = vector.broadcast %11 : vector<1x128xf32> to vector<64x128xf32>
    %13 = arith.addf %10, %12 : vector<64x128xf32>
    %cst_15 = arith.constant 0.000000e+00 : f32
    %14 = vector.broadcast %cst_15 : f32 to vector<64x128xf32>
    %15 = arith.maximumf %13, %14 : vector<64x128xf32>
    %c0_16 = arith.constant 0 : index
    %c0_17 = arith.constant 0 : index
    %16 = vector.load %arg9[%c0_16, %c0_17] : memref<64x128xf32, #tpu.memory_space<vmem>>, vector<64x128xf32>
    tpu.vector_store %arg9[%c0_16, %c0_17], %15 {strides = array<i32>} : memref<64x128xf32, #tpu.memory_space<vmem>>, vector<64x128xf32>,
    return
  }
  func.func @transform_0(%arg0: i32, %arg1: i32) -> (i32, i32) {
    %c0_i32 = arith.constant 0 : i32
    %c0_i32_0 = arith.constant 0 : i32
    return %arg0, %c0_i32 : i32, i32
  }
  func.func @transform_1(%arg0: i32, %arg1: i32) -> (i32, i32) {
    %c0_i32 = arith.constant 0 : i32
    %c0_i32_0 = arith.constant 0 : i32
    return %arg0, %c0_i32 : i32, i32
  }
  func.func @transform_2(%arg0: i32, %arg1: i32) -> (i32, i32) {
    %c0_i32 = arith.constant 0 : i32
    %c0_i32_0 = arith.constant 0 : i32
    return %arg0, %c0_i32 : i32, i32
  }
  func.func @transform_3(%arg0: i32, %arg1: i32) -> (i32, i32) {
    %c0_i32 = arith.constant 0 : i32
    %c0_i32_0 = arith.constant 0 : i32
    return %c0_i32, %arg1 : i32, i32
  }
  func.func @transform_4(%arg0: i32, %arg1: i32) -> (i32, i32) {
    %c0_i32 = arith.constant 0 : i32
    %c0_i32_0 = arith.constant 0 : i32
    return %c0_i32, %arg1 : i32, i32
  }
  func.func @transform_5(%arg0: i32, %arg1: i32) -> (i32, i32) {
    %c0_i32 = arith.constant 0 : i32
    %c0_i32_0 = arith.constant 0 : i32
    return %c0_i32, %arg1 : i32, i32
  }
  func.func @transform_6(%arg0: i32, %arg1: i32) -> (i32, i32) {
    %c0_i32 = arith.constant 0 : i32
    %c0_i32_0 = arith.constant 0 : i32
    return %c0_i32, %arg1 : i32, i32
  }
  func.func @transform_7(%arg0: i32, %arg1: i32) -> (i32, i32) {
    %c0_i32 = arith.constant 0 : i32
    return %arg0, %arg1 : i32, i32
  }
}

module attributes {stable_mosaic.version = 11 : i64} {
  func.func @_chain_kernel(%arg0: i32, %arg1: memref<64x128xbf16, #tpu.memory_space<vmem>>, %arg2: memref<128x128xbf16, #tpu.memory_space<vmem>>, %arg3: memref<128x128xbf16, #tpu.memory_space<vmem>>, %arg4: memref<1x128xf32, #tpu.memory_space<vmem>>, %arg5: memref<64x128xf32, #tpu.memory_space<vmem>>) attributes {dimension_semantics = [#tpu.dimension_semantics<arbitrary>], iteration_bounds = array<i64: 1>, scalar_prefetch = 0 : i64, scratch_operands = 0 : i64, tpu.core_type = #tpu.core_type<tc>, window_params = [{pipeline_mode = #tpu.pipeline_mode<synchronous>, transform_indices = @transform_0, window_bounds = array<i64: 64, 128>}, {pipeline_mode = #tpu.pipeline_mode<synchronous>, transform_indices = @transform_1, window_bounds = array<i64: 128, 128>}, {pipeline_mode = #tpu.pipeline_mode<synchronous>, transform_indices = @transform_2, window_bounds = array<i64: 128, 128>}, {pipeline_mode = #tpu.pipeline_mode<synchronous>, transform_indices = @transform_3, window_bounds = array<i64: 1, 128>}, {pipeline_mode = #tpu.pipeline_mode<synchronous>, transform_indices = @transform_4, window_bounds = array<i64: 64, 128>}]} {
    %c0 = arith.constant 0 : index
    %c0_0 = arith.constant 0 : index
    %0 = vector.load %arg1[%c0, %c0_0] : memref<64x128xbf16, #tpu.memory_space<vmem>>, vector<64x128xbf16>
    %c0_1 = arith.constant 0 : index
    %c0_2 = arith.constant 0 : index
    %1 = vector.load %arg2[%c0_1, %c0_2] : memref<128x128xbf16, #tpu.memory_space<vmem>>, vector<128x128xbf16>
    %cst = arith.constant dense<0.000000e+00> : vector<64x128xf32>
    %2 = tpu.matmul %0, %1, %cst {dimension_numbers = #tpu.dot_dimension_numbers<[1], [0], [0], [1], [0, 0, 1, 1], [], []>} : vector<64x128xbf16>, vector<128x128xbf16>, vector<64x128xf32> -> vector<64x128xf32>
    %3 = arith.truncf %2 : vector<64x128xf32> to vector<64x128xbf16>
    %c0_3 = arith.constant 0 : index
    %c0_4 = arith.constant 0 : index
    %4 = vector.load %arg3[%c0_3, %c0_4] : memref<128x128xbf16, #tpu.memory_space<vmem>>, vector<128x128xbf16>
    %cst_5 = arith.constant dense<0.000000e+00> : vector<64x128xf32>
    %5 = tpu.matmul %3, %4, %cst_5 {dimension_numbers = #tpu.dot_dimension_numbers<[1], [0], [0], [1], [0, 0, 1, 1], [], []>} : vector<64x128xbf16>, vector<128x128xbf16>, vector<64x128xf32> -> vector<64x128xf32>
    %c0_6 = arith.constant 0 : index
    %c0_7 = arith.constant 0 : index
    %6 = vector.load %arg4[%c0_6, %c0_7] : memref<1x128xf32, #tpu.memory_space<vmem>>, vector<1x128xf32>
    %7 = vector.broadcast %6 : vector<1x128xf32> to vector<64x128xf32>
    %8 = arith.addf %5, %7 : vector<64x128xf32>
    %cst_8 = arith.constant 0.000000e+00 : f32
    %9 = vector.broadcast %cst_8 : f32 to vector<64x128xf32>
    %10 = arith.maximumf %8, %9 : vector<64x128xf32>
    %cst_9 = arith.constant 0.999994993 : f32
    %11 = vector.broadcast %cst_9 : f32 to vector<64x128xf32>
    %12 = arith.mulf %10, %11 : vector<64x128xf32>
    %c0_10 = arith.constant 0 : index
    %c0_11 = arith.constant 0 : index
    %13 = vector.load %arg5[%c0_10, %c0_11] : memref<64x128xf32, #tpu.memory_space<vmem>>, vector<64x128xf32>
    tpu.vector_store %arg5[%c0_10, %c0_11], %12 {strides = array<i32>} : memref<64x128xf32, #tpu.memory_space<vmem>>, vector<64x128xf32>,
    return
  }
  func.func @transform_0(%arg0: i32) -> (i32, i32) {
    %c0_i32 = arith.constant 0 : i32
    %c0_i32_0 = arith.constant 0 : i32
    %c0_i32_1 = arith.constant 0 : i32
    return %c0_i32, %c0_i32_0 : i32, i32
  }
  func.func @transform_1(%arg0: i32) -> (i32, i32) {
    %c0_i32 = arith.constant 0 : i32
    %c0_i32_0 = arith.constant 0 : i32
    %c0_i32_1 = arith.constant 0 : i32
    return %c0_i32, %c0_i32_0 : i32, i32
  }
  func.func @transform_2(%arg0: i32) -> (i32, i32) {
    %c0_i32 = arith.constant 0 : i32
    %c0_i32_0 = arith.constant 0 : i32
    %c0_i32_1 = arith.constant 0 : i32
    return %c0_i32, %c0_i32_0 : i32, i32
  }
  func.func @transform_3(%arg0: i32) -> (i32, i32) {
    %c0_i32 = arith.constant 0 : i32
    %c0_i32_0 = arith.constant 0 : i32
    %c0_i32_1 = arith.constant 0 : i32
    return %c0_i32, %c0_i32_0 : i32, i32
  }
  func.func @transform_4(%arg0: i32) -> (i32, i32) {
    %c0_i32 = arith.constant 0 : i32
    %c0_i32_0 = arith.constant 0 : i32
    %c0_i32_1 = arith.constant 0 : i32
    return %c0_i32, %c0_i32_0 : i32, i32
  }
}

module attributes {stable_mosaic.version = 11 : i64} {
  func.func @_mm_kernel(%arg0: i32, %arg1: i32, %arg2: i32, %arg3: memref<64x128xbf16, #tpu.memory_space<vmem>>, %arg4: memref<128x128xbf16, #tpu.memory_space<vmem>>, %arg5: memref<1x128xf32, #tpu.memory_space<vmem>>, %arg6: memref<64x128xf32, #tpu.memory_space<vmem>>, %arg7: memref<64x128xf32, #tpu.memory_space<vmem>>) attributes {dimension_semantics = [#tpu.dimension_semantics<parallel>, #tpu.dimension_semantics<parallel>, #tpu.dimension_semantics<arbitrary>], iteration_bounds = array<i64: 1, 1, 1>, scalar_prefetch = 0 : i64, scratch_operands = 1 : i64, tpu.core_type = #tpu.core_type<tc>, window_params = [{transform_indices = @transform_0, window_bounds = array<i64: 64, 128>}, {transform_indices = @transform_1, window_bounds = array<i64: 128, 128>}, {transform_indices = @transform_2, window_bounds = array<i64: 1, 128>}, {transform_indices = @transform_3, window_bounds = array<i64: 64, 128>}]} {
    %c0_i32 = arith.constant 0 : i32
    %0 = arith.cmpi eq, %arg2, %c0_i32 : i32
    %1 = arith.extui %0 : i1 to i32
    %c0_i32_0 = arith.constant 0 : i32
    %2 = arith.cmpi ne, %1, %c0_i32_0 : i32
    scf.if %2 {
      %cst_10 = arith.constant 0.000000e+00 : f32
      %12 = vector.broadcast %cst_10 : f32 to vector<64x128xf32>
      %c0_11 = arith.constant 0 : index
      %c0_12 = arith.constant 0 : index
      %13 = vector.load %arg7[%c0_11, %c0_12] : memref<64x128xf32, #tpu.memory_space<vmem>>, vector<64x128xf32>
      tpu.vector_store %arg7[%c0_11, %c0_12], %12 {strides = array<i32>} : memref<64x128xf32, #tpu.memory_space<vmem>>, vector<64x128xf32>,
    } else {
    }
    %c0 = arith.constant 0 : index
    %c0_1 = arith.constant 0 : index
    %3 = vector.load %arg7[%c0, %c0_1] : memref<64x128xf32, #tpu.memory_space<vmem>>, vector<64x128xf32>
    %c0_2 = arith.constant 0 : index
    %c0_3 = arith.constant 0 : index
    %4 = vector.load %arg3[%c0_2, %c0_3] : memref<64x128xbf16, #tpu.memory_space<vmem>>, vector<64x128xbf16>
    %c0_4 = arith.constant 0 : index
    %c0_5 = arith.constant 0 : index
    %5 = vector.load %arg4[%c0_4, %c0_5] : memref<128x128xbf16, #tpu.memory_space<vmem>>, vector<128x128xbf16>
    %cst = arith.constant dense<0.000000e+00> : vector<64x128xf32>
    %6 = tpu.matmul %4, %5, %cst {dimension_numbers = #tpu.dot_dimension_numbers<[1], [0], [0], [1], [0, 0, 1, 1], [], []>} : vector<64x128xbf16>, vector<128x128xbf16>, vector<64x128xf32> -> vector<64x128xf32>
    %7 = arith.addf %3, %6 : vector<64x128xf32>
    %c0_6 = arith.constant 0 : index
    %c0_7 = arith.constant 0 : index
    %8 = vector.load %arg7[%c0_6, %c0_7] : memref<64x128xf32, #tpu.memory_space<vmem>>, vector<64x128xf32>
    tpu.vector_store %arg7[%c0_6, %c0_7], %7 {strides = array<i32>} : memref<64x128xf32, #tpu.memory_space<vmem>>, vector<64x128xf32>,
    %c0_i32_8 = arith.constant 0 : i32
    %9 = arith.cmpi eq, %arg2, %c0_i32_8 : i32
    %10 = arith.extui %9 : i1 to i32
    %c0_i32_9 = arith.constant 0 : i32
    %11 = arith.cmpi ne, %10, %c0_i32_9 : i32
    scf.if %11 {
      %c0_10 = arith.constant 0 : index
      %c0_11 = arith.constant 0 : index
      %12 = vector.load %arg7[%c0_10, %c0_11] : memref<64x128xf32, #tpu.memory_space<vmem>>, vector<64x128xf32>
      %c0_12 = arith.constant 0 : index
      %c0_13 = arith.constant 0 : index
      %13 = vector.load %arg5[%c0_12, %c0_13] : memref<1x128xf32, #tpu.memory_space<vmem>>, vector<1x128xf32>
      %14 = vector.broadcast %13 : vector<1x128xf32> to vector<64x128xf32>
      %15 = arith.addf %12, %14 : vector<64x128xf32>
      %cst_14 = arith.constant 0.000000e+00 : f32
      %16 = vector.broadcast %cst_14 : f32 to vector<64x128xf32>
      %17 = arith.maximumf %15, %16 : vector<64x128xf32>
      %c0_15 = arith.constant 0 : index
      %c0_16 = arith.constant 0 : index
      %18 = vector.load %arg6[%c0_15, %c0_16] : memref<64x128xf32, #tpu.memory_space<vmem>>, vector<64x128xf32>
      tpu.vector_store %arg6[%c0_15, %c0_16], %17 {strides = array<i32>} : memref<64x128xf32, #tpu.memory_space<vmem>>, vector<64x128xf32>,
    } else {
    }
    return
  }
  func.func @transform_0(%arg0: i32, %arg1: i32, %arg2: i32) -> (i32, i32) {
    %c0_i32 = arith.constant 0 : i32
    return %arg0, %arg2 : i32, i32
  }
  func.func @transform_1(%arg0: i32, %arg1: i32, %arg2: i32) -> (i32, i32) {
    %c0_i32 = arith.constant 0 : i32
    return %arg2, %arg1 : i32, i32
  }
  func.func @transform_2(%arg0: i32, %arg1: i32, %arg2: i32) -> (i32, i32) {
    %c0_i32 = arith.constant 0 : i32
    %c0_i32_0 = arith.constant 0 : i32
    return %c0_i32, %arg1 : i32, i32
  }
  func.func @transform_3(%arg0: i32, %arg1: i32, %arg2: i32) -> (i32, i32) {
    %c0_i32 = arith.constant 0 : i32
    return %arg0, %arg1 : i32, i32
  }
}

module attributes {stable_mosaic.version = 11 : i64} {
  func.func @_mm_kernel(%arg0: i32, %arg1: i32, %arg2: i32, %arg3: memref<64x128xbf16, #tpu.memory_space<vmem>>, %arg4: memref<128x128xbf16, #tpu.memory_space<vmem>>, %arg5: memref<1x128xf32, #tpu.memory_space<vmem>>, %arg6: memref<64x128xf32, #tpu.memory_space<vmem>>, %arg7: memref<64x128xf32, #tpu.memory_space<vmem>>) attributes {dimension_semantics = [#tpu.dimension_semantics<parallel>, #tpu.dimension_semantics<parallel>, #tpu.dimension_semantics<arbitrary>], iteration_bounds = array<i64: 1, 1, 1>, scalar_prefetch = 0 : i64, scratch_operands = 1 : i64, tpu.core_type = #tpu.core_type<tc>, window_params = [{transform_indices = @transform_0, window_bounds = array<i64: 64, 128>}, {transform_indices = @transform_1, window_bounds = array<i64: 128, 128>}, {transform_indices = @transform_2, window_bounds = array<i64: 1, 128>}, {transform_indices = @transform_3, window_bounds = array<i64: 64, 128>}]} {
    %c0_i32 = arith.constant 0 : i32
    %0 = arith.cmpi eq, %arg2, %c0_i32 : i32
    %1 = arith.extui %0 : i1 to i32
    %c0_i32_0 = arith.constant 0 : i32
    %2 = arith.cmpi ne, %1, %c0_i32_0 : i32
    scf.if %2 {
      %cst_10 = arith.constant 0.000000e+00 : f32
      %12 = vector.broadcast %cst_10 : f32 to vector<64x128xf32>
      %c0_11 = arith.constant 0 : index
      %c0_12 = arith.constant 0 : index
      %13 = vector.load %arg7[%c0_11, %c0_12] : memref<64x128xf32, #tpu.memory_space<vmem>>, vector<64x128xf32>
      tpu.vector_store %arg7[%c0_11, %c0_12], %12 {strides = array<i32>} : memref<64x128xf32, #tpu.memory_space<vmem>>, vector<64x128xf32>,
    } else {
    }
    %c0 = arith.constant 0 : index
    %c0_1 = arith.constant 0 : index
    %3 = vector.load %arg7[%c0, %c0_1] : memref<64x128xf32, #tpu.memory_space<vmem>>, vector<64x128xf32>
    %c0_2 = arith.constant 0 : index
    %c0_3 = arith.constant 0 : index
    %4 = vector.load %arg3[%c0_2, %c0_3] : memref<64x128xbf16, #tpu.memory_space<vmem>>, vector<64x128xbf16>
    %c0_4 = arith.constant 0 : index
    %c0_5 = arith.constant 0 : index
    %5 = vector.load %arg4[%c0_4, %c0_5] : memref<128x128xbf16, #tpu.memory_space<vmem>>, vector<128x128xbf16>
    %cst = arith.constant dense<0.000000e+00> : vector<64x128xf32>
    %6 = tpu.matmul %4, %5, %cst {dimension_numbers = #tpu.dot_dimension_numbers<[1], [0], [0], [1], [0, 0, 1, 1], [], []>} : vector<64x128xbf16>, vector<128x128xbf16>, vector<64x128xf32> -> vector<64x128xf32>
    %7 = arith.addf %3, %6 : vector<64x128xf32>
    %c0_6 = arith.constant 0 : index
    %c0_7 = arith.constant 0 : index
    %8 = vector.load %arg7[%c0_6, %c0_7] : memref<64x128xf32, #tpu.memory_space<vmem>>, vector<64x128xf32>
    tpu.vector_store %arg7[%c0_6, %c0_7], %7 {strides = array<i32>} : memref<64x128xf32, #tpu.memory_space<vmem>>, vector<64x128xf32>,
    %c0_i32_8 = arith.constant 0 : i32
    %9 = arith.cmpi eq, %arg2, %c0_i32_8 : i32
    %10 = arith.extui %9 : i1 to i32
    %c0_i32_9 = arith.constant 0 : i32
    %11 = arith.cmpi ne, %10, %c0_i32_9 : i32
    scf.if %11 {
      %c0_10 = arith.constant 0 : index
      %c0_11 = arith.constant 0 : index
      %12 = vector.load %arg7[%c0_10, %c0_11] : memref<64x128xf32, #tpu.memory_space<vmem>>, vector<64x128xf32>
      %c0_12 = arith.constant 0 : index
      %c0_13 = arith.constant 0 : index
      %13 = vector.load %arg5[%c0_12, %c0_13] : memref<1x128xf32, #tpu.memory_space<vmem>>, vector<1x128xf32>
      %14 = vector.broadcast %13 : vector<1x128xf32> to vector<64x128xf32>
      %15 = arith.addf %12, %14 : vector<64x128xf32>
      %c0_14 = arith.constant 0 : index
      %c0_15 = arith.constant 0 : index
      %16 = vector.load %arg6[%c0_14, %c0_15] : memref<64x128xf32, #tpu.memory_space<vmem>>, vector<64x128xf32>
      tpu.vector_store %arg6[%c0_14, %c0_15], %15 {strides = array<i32>} : memref<64x128xf32, #tpu.memory_space<vmem>>, vector<64x128xf32>,
    } else {
    }
    return
  }
  func.func @transform_0(%arg0: i32, %arg1: i32, %arg2: i32) -> (i32, i32) {
    %c0_i32 = arith.constant 0 : i32
    return %arg0, %arg2 : i32, i32
  }
  func.func @transform_1(%arg0: i32, %arg1: i32, %arg2: i32) -> (i32, i32) {
    %c0_i32 = arith.constant 0 : i32
    return %arg2, %arg1 : i32, i32
  }
  func.func @transform_2(%arg0: i32, %arg1: i32, %arg2: i32) -> (i32, i32) {
    %c0_i32 = arith.constant 0 : i32
    %c0_i32_0 = arith.constant 0 : i32
    return %c0_i32, %arg1 : i32, i32
  }
  func.func @transform_3(%arg0: i32, %arg1: i32, %arg2: i32) -> (i32, i32) {
    %c0_i32 = arith.constant 0 : i32
    return %arg0, %arg1 : i32, i32
  }
}

module attributes {stable_mosaic.version = 11 : i64} {
  func.func @_chain_kernel(%arg0: i32, %arg1: memref<128x128xbf16, #tpu.memory_space<vmem>>, %arg2: memref<128x128xbf16, #tpu.memory_space<vmem>>, %arg3: memref<128x128xbf16, #tpu.memory_space<vmem>>, %arg4: memref<1x128xf32, #tpu.memory_space<vmem>>, %arg5: memref<128x128xf32, #tpu.memory_space<vmem>>) attributes {dimension_semantics = [#tpu.dimension_semantics<arbitrary>], iteration_bounds = array<i64: 1>, scalar_prefetch = 0 : i64, scratch_operands = 0 : i64, tpu.core_type = #tpu.core_type<tc>, window_params = [{pipeline_mode = #tpu.pipeline_mode<synchronous>, transform_indices = @transform_0, window_bounds = array<i64: 128, 128>}, {pipeline_mode = #tpu.pipeline_mode<synchronous>, transform_indices = @transform_1, window_bounds = array<i64: 128, 128>}, {pipeline_mode = #tpu.pipeline_mode<synchronous>, transform_indices = @transform_2, window_bounds = array<i64: 128, 128>}, {pipeline_mode = #tpu.pipeline_mode<synchronous>, transform_indices = @transform_3, window_bounds = array<i64: 1, 128>}, {pipeline_mode = #tpu.pipeline_mode<synchronous>, transform_indices = @transform_4, window_bounds = array<i64: 128, 128>}]} {
    %c0 = arith.constant 0 : index
    %c0_0 = arith.constant 0 : index
    %0 = vector.load %arg1[%c0, %c0_0] : memref<128x128xbf16, #tpu.memory_space<vmem>>, vector<128x128xbf16>
    %c0_1 = arith.constant 0 : index
    %c0_2 = arith.constant 0 : index
    %1 = vector.load %arg2[%c0_1, %c0_2] : memref<128x128xbf16, #tpu.memory_space<vmem>>, vector<128x128xbf16>
    %cst = arith.constant dense<0.000000e+00> : vector<128x128xf32>
    %2 = tpu.matmul %0, %1, %cst {dimension_numbers = #tpu.dot_dimension_numbers<[0], [0], [1], [1], [0, 1, 1, 1], [], []>} : vector<128x128xbf16>, vector<128x128xbf16>, vector<128x128xf32> -> vector<128x128xf32>
    %3 = arith.truncf %2 : vector<128x128xf32> to vector<128x128xbf16>
    %c0_3 = arith.constant 0 : index
    %c0_4 = arith.constant 0 : index
    %4 = vector.load %arg3[%c0_3, %c0_4] : memref<128x128xbf16, #tpu.memory_space<vmem>>, vector<128x128xbf16>
    %cst_5 = arith.constant dense<0.000000e+00> : vector<128x128xf32>
    %5 = tpu.matmul %3, %4, %cst_5 {dimension_numbers = #tpu.dot_dimension_numbers<[1], [0], [0], [1], [0, 0, 1, 1], [], []>} : vector<128x128xbf16>, vector<128x128xbf16>, vector<128x128xf32> -> vector<128x128xf32>
    %c0_6 = arith.constant 0 : index
    %c0_7 = arith.constant 0 : index
    %6 = vector.load %arg4[%c0_6, %c0_7] : memref<1x128xf32, #tpu.memory_space<vmem>>, vector<1x128xf32>
    %7 = vector.broadcast %6 : vector<1x128xf32> to vector<128x128xf32>
    %8 = arith.addf %5, %7 : vector<128x128xf32>
    %c0_8 = arith.constant 0 : index
    %c0_9 = arith.constant 0 : index
    %9 = vector.load %arg5[%c0_8, %c0_9] : memref<128x128xf32, #tpu.memory_space<vmem>>, vector<128x128xf32>
    tpu.vector_store %arg5[%c0_8, %c0_9], %8 {strides = array<i32>} : memref<128x128xf32, #tpu.memory_space<vmem>>, vector<128x128xf32>,
    return
  }
  func.func @transform_0(%arg0: i32) -> (i32, i32) {
    %c0_i32 = arith.constant 0 : i32
    %c0_i32_0 = arith.constant 0 : i32
    %c0_i32_1 = arith.constant 0 : i32
    return %c0_i32, %c0_i32_0 : i32, i32
  }
  func.func @transform_1(%arg0: i32) -> (i32, i32) {
    %c0_i32 = arith.constant 0 : i32
    %c0_i32_0 = arith.constant 0 : i32
    %c0_i32_1 = arith.constant 0 : i32
    return %c0_i32, %c0_i32_0 : i32, i32
  }
  func.func @transform_2(%arg0: i32) -> (i32, i32) {
    %c0_i32 = arith.constant 0 : i32
    %c0_i32_0 = arith.constant 0 : i32
    %c0_i32_1 = arith.constant 0 : i32
    return %c0_i32, %c0_i32_0 : i32, i32
  }
  func.func @transform_3(%arg0: i32) -> (i32, i32) {
    %c0_i32 = arith.constant 0 : i32
    %c0_i32_0 = arith.constant 0 : i32
    %c0_i32_1 = arith.constant 0 : i32
    return %c0_i32, %c0_i32_0 : i32, i32
  }
  func.func @transform_4(%arg0: i32) -> (i32, i32) {
    %c0_i32 = arith.constant 0 : i32
    %c0_i32_0 = arith.constant 0 : i32
    %c0_i32_1 = arith.constant 0 : i32
    return %c0_i32, %c0_i32_0 : i32, i32
  }
}

module attributes {stable_mosaic.version = 11 : i64} {
  func.func @_mm_kernel(%arg0: i32, %arg1: i32, %arg2: i32, %arg3: memref<128x128xbf16, #tpu.memory_space<vmem>>, %arg4: memref<128x128xbf16, #tpu.memory_space<vmem>>, %arg5: memref<1x128xf32, #tpu.memory_space<vmem>>, %arg6: memref<128x128xf32, #tpu.memory_space<vmem>>, %arg7: memref<128x128xf32, #tpu.memory_space<vmem>>) attributes {dimension_semantics = [#tpu.dimension_semantics<parallel>, #tpu.dimension_semantics<parallel>, #tpu.dimension_semantics<arbitrary>], iteration_bounds = array<i64: 1, 1, 1>, scalar_prefetch = 0 : i64, scratch_operands = 1 : i64, tpu.core_type = #tpu.core_type<tc>, window_params = [{transform_indices = @transform_0, window_bounds = array<i64: 128, 128>}, {transform_indices = @transform_1, window_bounds = array<i64: 128, 128>}, {transform_indices = @transform_2, window_bounds = array<i64: 1, 128>}, {transform_indices = @transform_3, window_bounds = array<i64: 128, 128>}]} {
    %c0_i32 = arith.constant 0 : i32
    %0 = arith.cmpi eq, %arg2, %c0_i32 : i32
    %1 = arith.extui %0 : i1 to i32
    %c0_i32_0 = arith.constant 0 : i32
    %2 = arith.cmpi ne, %1, %c0_i32_0 : i32
    scf.if %2 {
      %cst_10 = arith.constant 0.000000e+00 : f32
      %12 = vector.broadcast %cst_10 : f32 to vector<128x128xf32>
      %c0_11 = arith.constant 0 : index
      %c0_12 = arith.constant 0 : index
      %13 = vector.load %arg7[%c0_11, %c0_12] : memref<128x128xf32, #tpu.memory_space<vmem>>, vector<128x128xf32>
      tpu.vector_store %arg7[%c0_11, %c0_12], %12 {strides = array<i32>} : memref<128x128xf32, #tpu.memory_space<vmem>>, vector<128x128xf32>,
    } else {
    }
    %c0 = arith.constant 0 : index
    %c0_1 = arith.constant 0 : index
    %3 = vector.load %arg7[%c0, %c0_1] : memref<128x128xf32, #tpu.memory_space<vmem>>, vector<128x128xf32>
    %c0_2 = arith.constant 0 : index
    %c0_3 = arith.constant 0 : index
    %4 = vector.load %arg3[%c0_2, %c0_3] : memref<128x128xbf16, #tpu.memory_space<vmem>>, vector<128x128xbf16>
    %c0_4 = arith.constant 0 : index
    %c0_5 = arith.constant 0 : index
    %5 = vector.load %arg4[%c0_4, %c0_5] : memref<128x128xbf16, #tpu.memory_space<vmem>>, vector<128x128xbf16>
    %cst = arith.constant dense<0.000000e+00> : vector<128x128xf32>
    %6 = tpu.matmul %4, %5, %cst {dimension_numbers = #tpu.dot_dimension_numbers<[0], [0], [1], [1], [0, 1, 1, 1], [], []>} : vector<128x128xbf16>, vector<128x128xbf16>, vector<128x128xf32> -> vector<128x128xf32>
    %7 = arith.addf %3, %6 : vector<128x128xf32>
    %c0_6 = arith.constant 0 : index
    %c0_7 = arith.constant 0 : index
    %8 = vector.load %arg7[%c0_6, %c0_7] : memref<128x128xf32, #tpu.memory_space<vmem>>, vector<128x128xf32>
    tpu.vector_store %arg7[%c0_6, %c0_7], %7 {strides = array<i32>} : memref<128x128xf32, #tpu.memory_space<vmem>>, vector<128x128xf32>,
    %c0_i32_8 = arith.constant 0 : i32
    %9 = arith.cmpi eq, %arg2, %c0_i32_8 : i32
    %10 = arith.extui %9 : i1 to i32
    %c0_i32_9 = arith.constant 0 : i32
    %11 = arith.cmpi ne, %10, %c0_i32_9 : i32
    scf.if %11 {
      %c0_10 = arith.constant 0 : index
      %c0_11 = arith.constant 0 : index
      %12 = vector.load %arg7[%c0_10, %c0_11] : memref<128x128xf32, #tpu.memory_space<vmem>>, vector<128x128xf32>
      %c0_12 = arith.constant 0 : index
      %c0_13 = arith.constant 0 : index
      %13 = vector.load %arg5[%c0_12, %c0_13] : memref<1x128xf32, #tpu.memory_space<vmem>>, vector<1x128xf32>
      %14 = vector.broadcast %13 : vector<1x128xf32> to vector<128x128xf32>
      %15 = arith.addf %12, %14 : vector<128x128xf32>
      %c0_14 = arith.constant 0 : index
      %c0_15 = arith.constant 0 : index
      %16 = vector.load %arg6[%c0_14, %c0_15] : memref<128x128xf32, #tpu.memory_space<vmem>>, vector<128x128xf32>
      tpu.vector_store %arg6[%c0_14, %c0_15], %15 {strides = array<i32>} : memref<128x128xf32, #tpu.memory_space<vmem>>, vector<128x128xf32>,
    } else {
    }
    return
  }
  func.func @transform_0(%arg0: i32, %arg1: i32, %arg2: i32) -> (i32, i32) {
    %c0_i32 = arith.constant 0 : i32
    return %arg2, %arg0 : i32, i32
  }
  func.func @transform_1(%arg0: i32, %arg1: i32, %arg2: i32) -> (i32, i32) {
    %c0_i32 = arith.constant 0 : i32
    return %arg2, %arg1 : i32, i32
  }
  func.func @transform_2(%arg0: i32, %arg1: i32, %arg2: i32) -> (i32, i32) {
    %c0_i32 = arith.constant 0 : i32
    %c0_i32_0 = arith.constant 0 : i32
    return %c0_i32, %arg1 : i32, i32
  }
  func.func @transform_3(%arg0: i32, %arg1: i32, %arg2: i32) -> (i32, i32) {
    %c0_i32 = arith.constant 0 : i32
    return %arg0, %arg1 : i32, i32
  }
}

module attributes {stable_mosaic.version = 11 : i64} {
  func.func @_chain_kernel(%arg0: i32, %arg1: memref<16x128xbf16, #tpu.memory_space<vmem>>, %arg2: memref<128x128xbf16, #tpu.memory_space<vmem>>, %arg3: memref<128x128xbf16, #tpu.memory_space<vmem>>, %arg4: memref<1x128xf32, #tpu.memory_space<vmem>>, %arg5: memref<16x128xf32, #tpu.memory_space<vmem>>) attributes {dimension_semantics = [#tpu.dimension_semantics<arbitrary>], iteration_bounds = array<i64: 1>, scalar_prefetch = 0 : i64, scratch_operands = 0 : i64, tpu.core_type = #tpu.core_type<tc>, window_params = [{pipeline_mode = #tpu.pipeline_mode<synchronous>, transform_indices = @transform_0, window_bounds = array<i64: 16, 128>}, {pipeline_mode = #tpu.pipeline_mode<synchronous>, transform_indices = @transform_1, window_bounds = array<i64: 128, 128>}, {pipeline_mode = #tpu.pipeline_mode<synchronous>, transform_indices = @transform_2, window_bounds = array<i64: 128, 128>}, {pipeline_mode = #tpu.pipeline_mode<synchronous>, transform_indices = @transform_3, window_bounds = array<i64: 1, 128>}, {pipeline_mode = #tpu.pipeline_mode<synchronous>, transform_indices = @transform_4, window_bounds = array<i64: 16, 128>}]} {
    %c0 = arith.constant 0 : index
    %c0_0 = arith.constant 0 : index
    %0 = vector.load %arg1[%c0, %c0_0] : memref<16x128xbf16, #tpu.memory_space<vmem>>, vector<16x128xbf16>
    %c0_1 = arith.constant 0 : index
    %c0_2 = arith.constant 0 : index
    %1 = vector.load %arg2[%c0_1, %c0_2] : memref<128x128xbf16, #tpu.memory_space<vmem>>, vector<128x128xbf16>
    %cst = arith.constant dense<0.000000e+00> : vector<16x128xf32>
    %2 = tpu.matmul %0, %1, %cst {dimension_numbers = #tpu.dot_dimension_numbers<[1], [0], [0], [1], [0, 0, 1, 1], [], []>} : vector<16x128xbf16>, vector<128x128xbf16>, vector<16x128xf32> -> vector<16x128xf32>
    %3 = arith.truncf %2 : vector<16x128xf32> to vector<16x128xbf16>
    %c0_3 = arith.constant 0 : index
    %c0_4 = arith.constant 0 : index
    %4 = vector.load %arg3[%c0_3, %c0_4] : memref<128x128xbf16, #tpu.memory_space<vmem>>, vector<128x128xbf16>
    %cst_5 = arith.constant dense<0.000000e+00> : vector<16x128xf32>
    %5 = tpu.matmul %3, %4, %cst_5 {dimension_numbers = #tpu.dot_dimension_numbers<[1], [0], [0], [1], [0, 0, 1, 1], [], []>} : vector<16x128xbf16>, vector<128x128xbf16>, vector<16x128xf32> -> vector<16x128xf32>
    %c0_6 = arith.constant 0 : index
    %c0_7 = arith.constant 0 : index
    %6 = vector.load %arg4[%c0_6, %c0_7] : memref<1x128xf32, #tpu.memory_space<vmem>>, vector<1x128xf32>
    %7 = vector.broadcast %6 : vector<1x128xf32> to vector<16x128xf32>
    %8 = arith.addf %5, %7 : vector<16x128xf32>
    %9 = math.tanh %8 : vector<16x128xf32>
    %c0_8 = arith.constant 0 : index
    %c0_9 = arith.constant 0 : index
    %10 = vector.load %arg5[%c0_8, %c0_9] : memref<16x128xf32, #tpu.memory_space<vmem>>, vector<16x128xf32>
    tpu.vector_store %arg5[%c0_8, %c0_9], %9 {strides = array<i32>} : memref<16x128xf32, #tpu.memory_space<vmem>>, vector<16x128xf32>,
    return
  }
  func.func @transform_0(%arg0: i32) -> (i32, i32) {
    %c0_i32 = arith.constant 0 : i32
    %c0_i32_0 = arith.constant 0 : i32
    %c0_i32_1 = arith.constant 0 : i32
    return %c0_i32, %c0_i32_0 : i32, i32
  }
  func.func @transform_1(%arg0: i32) -> (i32, i32) {
    %c0_i32 = arith.constant 0 : i32
    %c0_i32_0 = arith.constant 0 : i32
    %c0_i32_1 = arith.constant 0 : i32
    return %c0_i32, %c0_i32_0 : i32, i32
  }
  func.func @transform_2(%arg0: i32) -> (i32, i32) {
    %c0_i32 = arith.constant 0 : i32
    %c0_i32_0 = arith.constant 0 : i32
    %c0_i32_1 = arith.constant 0 : i32
    return %c0_i32, %c0_i32_0 : i32, i32
  }
  func.func @transform_3(%arg0: i32) -> (i32, i32) {
    %c0_i32 = arith.constant 0 : i32
    %c0_i32_0 = arith.constant 0 : i32
    %c0_i32_1 = arith.constant 0 : i32
    return %c0_i32, %c0_i32_0 : i32, i32
  }
  func.func @transform_4(%arg0: i32) -> (i32, i32) {
    %c0_i32 = arith.constant 0 : i32
    %c0_i32_0 = arith.constant 0 : i32
    %c0_i32_1 = arith.constant 0 : i32
    return %c0_i32, %c0_i32_0 : i32, i32
  }
}

module attributes {stable_mosaic.version = 11 : i64} {
  func.func @_mm_kernel(%arg0: i32, %arg1: i32, %arg2: i32, %arg3: memref<16x128xbf16, #tpu.memory_space<vmem>>, %arg4: memref<128x128xbf16, #tpu.memory_space<vmem>>, %arg5: memref<1x128xf32, #tpu.memory_space<vmem>>, %arg6: memref<16x128xf32, #tpu.memory_space<vmem>>, %arg7: memref<16x128xf32, #tpu.memory_space<vmem>>) attributes {dimension_semantics = [#tpu.dimension_semantics<parallel>, #tpu.dimension_semantics<parallel>, #tpu.dimension_semantics<arbitrary>], iteration_bounds = array<i64: 1, 1, 1>, scalar_prefetch = 0 : i64, scratch_operands = 1 : i64, tpu.core_type = #tpu.core_type<tc>, window_params = [{transform_indices = @transform_0, window_bounds = array<i64: 16, 128>}, {transform_indices = @transform_1, window_bounds = array<i64: 128, 128>}, {transform_indices = @transform_2, window_bounds = array<i64: 1, 128>}, {transform_indices = @transform_3, window_bounds = array<i64: 16, 128>}]} {
    %c0_i32 = arith.constant 0 : i32
    %0 = arith.cmpi eq, %arg2, %c0_i32 : i32
    %1 = arith.extui %0 : i1 to i32
    %c0_i32_0 = arith.constant 0 : i32
    %2 = arith.cmpi ne, %1, %c0_i32_0 : i32
    scf.if %2 {
      %cst_10 = arith.constant 0.000000e+00 : f32
      %12 = vector.broadcast %cst_10 : f32 to vector<16x128xf32>
      %c0_11 = arith.constant 0 : index
      %c0_12 = arith.constant 0 : index
      %13 = vector.load %arg7[%c0_11, %c0_12] : memref<16x128xf32, #tpu.memory_space<vmem>>, vector<16x128xf32>
      tpu.vector_store %arg7[%c0_11, %c0_12], %12 {strides = array<i32>} : memref<16x128xf32, #tpu.memory_space<vmem>>, vector<16x128xf32>,
    } else {
    }
    %c0 = arith.constant 0 : index
    %c0_1 = arith.constant 0 : index
    %3 = vector.load %arg7[%c0, %c0_1] : memref<16x128xf32, #tpu.memory_space<vmem>>, vector<16x128xf32>
    %c0_2 = arith.constant 0 : index
    %c0_3 = arith.constant 0 : index
    %4 = vector.load %arg3[%c0_2, %c0_3] : memref<16x128xbf16, #tpu.memory_space<vmem>>, vector<16x128xbf16>
    %c0_4 = arith.constant 0 : index
    %c0_5 = arith.constant 0 : index
    %5 = vector.load %arg4[%c0_4, %c0_5] : memref<128x128xbf16, #tpu.memory_space<vmem>>, vector<128x128xbf16>
    %cst = arith.constant dense<0.000000e+00> : vector<16x128xf32>
    %6 = tpu.matmul %4, %5, %cst {dimension_numbers = #tpu.dot_dimension_numbers<[1], [0], [0], [1], [0, 0, 1, 1], [], []>} : vector<16x128xbf16>, vector<128x128xbf16>, vector<16x128xf32> -> vector<16x128xf32>
    %7 = arith.addf %3, %6 : vector<16x128xf32>
    %c0_6 = arith.constant 0 : index
    %c0_7 = arith.constant 0 : index
    %8 = vector.load %arg7[%c0_6, %c0_7] : memref<16x128xf32, #tpu.memory_space<vmem>>, vector<16x128xf32>
    tpu.vector_store %arg7[%c0_6, %c0_7], %7 {strides = array<i32>} : memref<16x128xf32, #tpu.memory_space<vmem>>, vector<16x128xf32>,
    %c0_i32_8 = arith.constant 0 : i32
    %9 = arith.cmpi eq, %arg2, %c0_i32_8 : i32
    %10 = arith.extui %9 : i1 to i32
    %c0_i32_9 = arith.constant 0 : i32
    %11 = arith.cmpi ne, %10, %c0_i32_9 : i32
    scf.if %11 {
      %c0_10 = arith.constant 0 : index
      %c0_11 = arith.constant 0 : index
      %12 = vector.load %arg7[%c0_10, %c0_11] : memref<16x128xf32, #tpu.memory_space<vmem>>, vector<16x128xf32>
      %c0_12 = arith.constant 0 : index
      %c0_13 = arith.constant 0 : index
      %13 = vector.load %arg5[%c0_12, %c0_13] : memref<1x128xf32, #tpu.memory_space<vmem>>, vector<1x128xf32>
      %14 = vector.broadcast %13 : vector<1x128xf32> to vector<16x128xf32>
      %15 = arith.addf %12, %14 : vector<16x128xf32>
      %c0_14 = arith.constant 0 : index
      %c0_15 = arith.constant 0 : index
      %16 = vector.load %arg6[%c0_14, %c0_15] : memref<16x128xf32, #tpu.memory_space<vmem>>, vector<16x128xf32>
      tpu.vector_store %arg6[%c0_14, %c0_15], %15 {strides = array<i32>} : memref<16x128xf32, #tpu.memory_space<vmem>>, vector<16x128xf32>,
    } else {
    }
    return
  }
  func.func @transform_0(%arg0: i32, %arg1: i32, %arg2: i32) -> (i32, i32) {
    %c0_i32 = arith.constant 0 : i32
    return %arg0, %arg2 : i32, i32
  }
  func.func @transform_1(%arg0: i32, %arg1: i32, %arg2: i32) -> (i32, i32) {
    %c0_i32 = arith.constant 0 : i32
    return %arg2, %arg1 : i32, i32
  }
  func.func @transform_2(%arg0: i32, %arg1: i32, %arg2: i32) -> (i32, i32) {
    %c0_i32 = arith.constant 0 : i32
    %c0_i32_0 = arith.constant 0 : i32
    return %c0_i32, %arg1 : i32, i32
  }
  func.func @transform_3(%arg0: i32, %arg1: i32, %arg2: i32) -> (i32, i32) {
    %c0_i32 = arith.constant 0 : i32
    return %arg0, %arg1 : i32, i32
  }
}

module attributes {stable_mosaic.version = 11 : i64} {
  func.func @_mm3_kernel(%arg0: i32, %arg1: i32, %arg2: memref<64x128xbf16, #tpu.memory_space<vmem>>, %arg3: memref<64x128xbf16, #tpu.memory_space<vmem>>, %arg4: memref<64x128xbf16, #tpu.memory_space<vmem>>, %arg5: memref<128x256xbf16, #tpu.memory_space<vmem>>, %arg6: memref<128x256xbf16, #tpu.memory_space<vmem>>, %arg7: memref<128x256xbf16, #tpu.memory_space<vmem>>, %arg8: memref<1x256xf32, #tpu.memory_space<vmem>>, %arg9: memref<64x256xf32, #tpu.memory_space<vmem>>) attributes {dimension_semantics = [#tpu.dimension_semantics<parallel>, #tpu.dimension_semantics<parallel>], iteration_bounds = array<i64: 1, 2>, scalar_prefetch = 0 : i64, scratch_operands = 0 : i64, tpu.core_type = #tpu.core_type<tc>, window_params = [{transform_indices = @transform_0, window_bounds = array<i64: 64, 128>}, {transform_indices = @transform_1, window_bounds = array<i64: 64, 128>}, {transform_indices = @transform_2, window_bounds = array<i64: 64, 128>}, {transform_indices = @transform_3, window_bounds = array<i64: 128, 256>}, {transform_indices = @transform_4, window_bounds = array<i64: 128, 256>}, {transform_indices = @transform_5, window_bounds = array<i64: 128, 256>}, {transform_indices = @transform_6, window_bounds = array<i64: 1, 256>}, {transform_indices = @transform_7, window_bounds = array<i64: 64, 256>}]} {
    %c0 = arith.constant 0 : index
    %c0_0 = arith.constant 0 : index
    %0 = vector.load %arg2[%c0, %c0_0] : memref<64x128xbf16, #tpu.memory_space<vmem>>, vector<64x128xbf16>
    %c0_1 = arith.constant 0 : index
    %c0_2 = arith.constant 0 : index
    %1 = vector.load %arg5[%c0_1, %c0_2] : memref<128x256xbf16, #tpu.memory_space<vmem>>, vector<128x256xbf16>
    %cst = arith.constant dense<0.000000e+00> : vector<64x256xf32>
    %2 = tpu.matmul %0, %1, %cst {dimension_numbers = #tpu.dot_dimension_numbers<[1], [0], [0], [1], [0, 0, 1, 1], [], []>} : vector<64x128xbf16>, vector<128x256xbf16>, vector<64x256xf32> -> vector<64x256xf32>
    %c0_3 = arith.constant 0 : index
    %c0_4 = arith.constant 0 : index
    %3 = vector.load %arg3[%c0_3, %c0_4] : memref<64x128xbf16, #tpu.memory_space<vmem>>, vector<64x128xbf16>
    %c0_5 = arith.constant 0 : index
    %c0_6 = arith.constant 0 : index
    %4 = vector.load %arg6[%c0_5, %c0_6] : memref<128x256xbf16, #tpu.memory_space<vmem>>, vector<128x256xbf16>
    %cst_7 = arith.constant dense<0.000000e+00> : vector<64x256xf32>
    %5 = tpu.matmul %3, %4, %cst_7 {dimension_numbers = #tpu.dot_dimension_numbers<[1], [0], [0], [1], [0, 0, 1, 1], [], []>} : vector<64x128xbf16>, vector<128x256xbf16>, vector<64x256xf32> -> vector<64x256xf32>
    %6 = arith.addf %2, %5 : vector<64x256xf32>
    %c0_8 = arith.constant 0 : index
    %c0_9 = arith.constant 0 : index
    %7 = vector.load %arg4[%c0_8, %c0_9] : memref<64x128xbf16, #tpu.memory_space<vmem>>, vector<64x128xbf16>
    %c0_10 = arith.constant 0 : index
    %c0_11 = arith.constant 0 : index
    %8 = vector.load %arg7[%c0_10, %c0_11] : memref<128x256xbf16, #tpu.memory_space<vmem>>, vector<128x256xbf16>
    %cst_12 = arith.constant dense<0.000000e+00> : vector<64x256xf32>
    %9 = tpu.matmul %7, %8, %cst_12 {dimension_numbers = #tpu.dot_dimension_numbers<[1], [0], [0], [1], [0, 0, 1, 1], [], []>} : vector<64x128xbf16>, vector<128x256xbf16>, vector<64x256xf32> -> vector<64x256xf32>
    %10 = arith.addf %6, %9 : vector<64x256xf32>
    %c0_13 = arith.constant 0 : index
    %c0_14 = arith.constant 0 : index
    %11 = vector.load %arg8[%c0_13, %c0_14] : memref<1x256xf32, #tpu.memory_space<vmem>>, vector<1x256xf32>
    %12 = vector.broadcast %11 : vector<1x256xf32> to vector<64x256xf32>
    %13 = arith.addf %10, %12 : vector<64x256xf32>
    %cst_15 = arith.constant 0.000000e+00 : f32
    %14 = vector.broadcast %cst_15 : f32 to vector<64x256xf32>
    %15 = arith.maximumf %13, %14 : vector<64x256xf32>
    %c0_16 = arith.constant 0 : index
    %c0_17 = arith.constant 0 : index
    %16 = vector.load %arg9[%c0_16, %c0_17] : memref<64x256xf32, #tpu.memory_space<vmem>>, vector<64x256xf32>
    tpu.vector_store %arg9[%c0_16, %c0_17], %15 {strides = array<i32>} : memref<64x256xf32, #tpu.memory_space<vmem>>, vector<64x256xf32>,
    return
  }
  func.func @transform_0(%arg0: i32, %arg1: i32) -> (i32, i32) {
    %c0_i32 = arith.constant 0 : i32
    %c0_i32_0 = arith.constant 0 : i32
    return %arg0, %c0_i32 : i32, i32
  }
  func.func @transform_1(%arg0: i32, %arg1: i32) -> (i32, i32) {
    %c0_i32 = arith.constant 0 : i32
    %c0_i32_0 = arith.constant 0 : i32
    return %arg0, %c0_i32 : i32, i32
  }
  func.func @transform_2(%arg0: i32, %arg1: i32) -> (i32, i32) {
    %c0_i32 = arith.constant 0 : i32
    %c0_i32_0 = arith.constant 0 : i32
    return %arg0, %c0_i32 : i32, i32
  }
  func.func @transform_3(%arg0: i32, %arg1: i32) -> (i32, i32) {
    %c0_i32 = arith.constant 0 : i32
    %c0_i32_0 = arith.constant 0 : i32
    return %c0_i32, %arg1 : i32, i32
  }
  func.func @transform_4(%arg0: i32, %arg1: i32) -> (i32, i32) {
    %c0_i32 = arith.constant 0 : i32
    %c0_i32_0 = arith.constant 0 : i32
    return %c0_i32, %arg1 : i32, i32
  }
  func.func @transform_5(%arg0: i32, %arg1: i32) -> (i32, i32) {
    %c0_i32 = arith.constant 0 : i32
    %c0_i32_0 = arith.constant 0 : i32
    return %c0_i32, %arg1 : i32, i32
  }
  func.func @transform_6(%arg0: i32, %arg1: i32) -> (i32, i32) {
    %c0_i32 = arith.constant 0 : i32
    %c0_i32_0 = arith.constant 0 : i32
    return %c0_i32, %arg1 : i32, i32
  }
  func.func @transform_7(%arg0: i32, %arg1: i32) -> (i32, i32) {
    %c0_i32 = arith.constant 0 : i32
    return %arg0, %arg1 : i32, i32
  }
}

module attributes {stable_mosaic.version = 11 : i64} {
  func.func @_mm_kernel(%arg0: i32, %arg1: i32, %arg2: i32, %arg3: memref<64x512xbf16, #tpu.memory_space<vmem>>, %arg4: memref<512x128xbf16, #tpu.memory_space<vmem>>, %arg5: memref<1x128xf32, #tpu.memory_space<vmem>>, %arg6: memref<64x128xf32, #tpu.memory_space<vmem>>, %arg7: memref<64x128xf32, #tpu.memory_space<vmem>>) attributes {dimension_semantics = [#tpu.dimension_semantics<parallel>, #tpu.dimension_semantics<parallel>, #tpu.dimension_semantics<arbitrary>], iteration_bounds = array<i64: 1, 1, 1>, scalar_prefetch = 0 : i64, scratch_operands = 1 : i64, tpu.core_type = #tpu.core_type<tc>, window_params = [{transform_indices = @transform_0, window_bounds = array<i64: 64, 512>}, {transform_indices = @transform_1, window_bounds = array<i64: 512, 128>}, {transform_indices = @transform_2, window_bounds = array<i64: 1, 128>}, {transform_indices = @transform_3, window_bounds = array<i64: 64, 128>}]} {
    %c0_i32 = arith.constant 0 : i32
    %0 = arith.cmpi eq, %arg2, %c0_i32 : i32
    %1 = arith.extui %0 : i1 to i32
    %c0_i32_0 = arith.constant 0 : i32
    %2 = arith.cmpi ne, %1, %c0_i32_0 : i32
    scf.if %2 {
      %cst_10 = arith.constant 0.000000e+00 : f32
      %12 = vector.broadcast %cst_10 : f32 to vector<64x128xf32>
      %c0_11 = arith.constant 0 : index
      %c0_12 = arith.constant 0 : index
      %13 = vector.load %arg7[%c0_11, %c0_12] : memref<64x128xf32, #tpu.memory_space<vmem>>, vector<64x128xf32>
      tpu.vector_store %arg7[%c0_11, %c0_12], %12 {strides = array<i32>} : memref<64x128xf32, #tpu.memory_space<vmem>>, vector<64x128xf32>,
    } else {
    }
    %c0 = arith.constant 0 : index
    %c0_1 = arith.constant 0 : index
    %3 = vector.load %arg7[%c0, %c0_1] : memref<64x128xf32, #tpu.memory_space<vmem>>, vector<64x128xf32>
    %c0_2 = arith.constant 0 : index
    %c0_3 = arith.constant 0 : index
    %4 = vector.load %arg3[%c0_2, %c0_3] : memref<64x512xbf16, #tpu.memory_space<vmem>>, vector<64x512xbf16>
    %c0_4 = arith.constant 0 : index
    %c0_5 = arith.constant 0 : index
    %5 = vector.load %arg4[%c0_4, %c0_5] : memref<512x128xbf16, #tpu.memory_space<vmem>>, vector<512x128xbf16>
    %cst = arith.constant dense<0.000000e+00> : vector<64x128xf32>
    %6 = tpu.matmul %4, %5, %cst {dimension_numbers = #tpu.dot_dimension_numbers<[1], [0], [0], [1], [0, 0, 1, 1], [], []>} : vector<64x512xbf16>, vector<512x128xbf16>, vector<64x128xf32> -> vector<64x128xf32>
    %7 = arith.addf %3, %6 : vector<64x128xf32>
    %c0_6 = arith.constant 0 : index
    %c0_7 = arith.constant 0 : index
    %8 = vector.load %arg7[%c0_6, %c0_7] : memref<64x128xf32, #tpu.memory_space<vmem>>, vector<64x128xf32>
    tpu.vector_store %arg7[%c0_6, %c0_7], %7 {strides = array<i32>} : memref<64x128xf32, #tpu.memory_space<vmem>>, vector<64x128xf32>,
    %c0_i32_8 = arith.constant 0 : i32
    %9 = arith.cmpi eq, %arg2, %c0_i32_8 : i32
    %10 = arith.extui %9 : i1 to i32
    %c0_i32_9 = arith.constant 0 : i32
    %11 = arith.cmpi ne, %10, %c0_i32_9 : i32
    scf.if %11 {
      %c0_10 = arith.constant 0 : index
      %c0_11 = arith.constant 0 : index
      %12 = vector.load %arg7[%c0_10, %c0_11] : memref<64x128xf32, #tpu.memory_space<vmem>>, vector<64x128xf32>
      %c0_12 = arith.constant 0 : index
      %c0_13 = arith.constant 0 : index
      %13 = vector.load %arg5[%c0_12, %c0_13] : memref<1x128xf32, #tpu.memory_space<vmem>>, vector<1x128xf32>
      %14 = vector.broadcast %13 : vector<1x128xf32> to vector<64x128xf32>
      %15 = arith.addf %12, %14 : vector<64x128xf32>
      %cst_14 = arith.constant 0.000000e+00 : f32
      %16 = vector.broadcast %cst_14 : f32 to vector<64x128xf32>
      %17 = arith.maximumf %15, %16 : vector<64x128xf32>
      %c0_15 = arith.constant 0 : index
      %c0_16 = arith.constant 0 : index
      %18 = vector.load %arg6[%c0_15, %c0_16] : memref<64x128xf32, #tpu.memory_space<vmem>>, vector<64x128xf32>
      tpu.vector_store %arg6[%c0_15, %c0_16], %17 {strides = array<i32>} : memref<64x128xf32, #tpu.memory_space<vmem>>, vector<64x128xf32>,
    } else {
    }
    return
  }
  func.func @transform_0(%arg0: i32, %arg1: i32, %arg2: i32) -> (i32, i32) {
    %c0_i32 = arith.constant 0 : i32
    return %arg0, %arg2 : i32, i32
  }
  func.func @transform_1(%arg0: i32, %arg1: i32, %arg2: i32) -> (i32, i32) {
    %c0_i32 = arith.constant 0 : i32
    return %arg2, %arg1 : i32, i32
  }
  func.func @transform_2(%arg0: i32, %arg1: i32, %arg2: i32) -> (i32, i32) {
    %c0_i32 = arith.constant 0 : i32
    %c0_i32_0 = arith.constant 0 : i32
    return %c0_i32, %arg1 : i32, i32
  }
  func.func @transform_3(%arg0: i32, %arg1: i32, %arg2: i32) -> (i32, i32) {
    %c0_i32 = arith.constant 0 : i32
    return %arg0, %arg1 : i32, i32
  }
}

module attributes {stable_mosaic.version = 11 : i64} {
  func.func @_mm_kernel(%arg0: i32, %arg1: i32, %arg2: i32, %arg3: memref<64x128xbf16, #tpu.memory_space<vmem>>, %arg4: memref<128x256xbf16, #tpu.memory_space<vmem>>, %arg5: memref<1x256xf32, #tpu.memory_space<vmem>>, %arg6: memref<64x256xf32, #tpu.memory_space<vmem>>, %arg7: memref<64x256xf32, #tpu.memory_space<vmem>>) attributes {dimension_semantics = [#tpu.dimension_semantics<parallel>, #tpu.dimension_semantics<parallel>, #tpu.dimension_semantics<arbitrary>], iteration_bounds = array<i64: 1, 2, 1>, scalar_prefetch = 0 : i64, scratch_operands = 1 : i64, tpu.core_type = #tpu.core_type<tc>, window_params = [{transform_indices = @transform_0, window_bounds = array<i64: 64, 128>}, {transform_indices = @transform_1, window_bounds = array<i64: 128, 256>}, {transform_indices = @transform_2, window_bounds = array<i64: 1, 256>}, {transform_indices = @transform_3, window_bounds = array<i64: 64, 256>}]} {
    %c0_i32 = arith.constant 0 : i32
    %0 = arith.cmpi eq, %arg2, %c0_i32 : i32
    %1 = arith.extui %0 : i1 to i32
    %c0_i32_0 = arith.constant 0 : i32
    %2 = arith.cmpi ne, %1, %c0_i32_0 : i32
    scf.if %2 {
      %cst_10 = arith.constant 0.000000e+00 : f32
      %12 = vector.broadcast %cst_10 : f32 to vector<64x256xf32>
      %c0_11 = arith.constant 0 : index
      %c0_12 = arith.constant 0 : index
      %13 = vector.load %arg7[%c0_11, %c0_12] : memref<64x256xf32, #tpu.memory_space<vmem>>, vector<64x256xf32>
      tpu.vector_store %arg7[%c0_11, %c0_12], %12 {strides = array<i32>} : memref<64x256xf32, #tpu.memory_space<vmem>>, vector<64x256xf32>,
    } else {
    }
    %c0 = arith.constant 0 : index
    %c0_1 = arith.constant 0 : index
    %3 = vector.load %arg7[%c0, %c0_1] : memref<64x256xf32, #tpu.memory_space<vmem>>, vector<64x256xf32>
    %c0_2 = arith.constant 0 : index
    %c0_3 = arith.constant 0 : index
    %4 = vector.load %arg3[%c0_2, %c0_3] : memref<64x128xbf16, #tpu.memory_space<vmem>>, vector<64x128xbf16>
    %c0_4 = arith.constant 0 : index
    %c0_5 = arith.constant 0 : index
    %5 = vector.load %arg4[%c0_4, %c0_5] : memref<128x256xbf16, #tpu.memory_space<vmem>>, vector<128x256xbf16>
    %cst = arith.constant dense<0.000000e+00> : vector<64x256xf32>
    %6 = tpu.matmul %4, %5, %cst {dimension_numbers = #tpu.dot_dimension_numbers<[1], [0], [0], [1], [0, 0, 1, 1], [], []>} : vector<64x128xbf16>, vector<128x256xbf16>, vector<64x256xf32> -> vector<64x256xf32>
    %7 = arith.addf %3, %6 : vector<64x256xf32>
    %c0_6 = arith.constant 0 : index
    %c0_7 = arith.constant 0 : index
    %8 = vector.load %arg7[%c0_6, %c0_7] : memref<64x256xf32, #tpu.memory_space<vmem>>, vector<64x256xf32>
    tpu.vector_store %arg7[%c0_6, %c0_7], %7 {strides = array<i32>} : memref<64x256xf32, #tpu.memory_space<vmem>>, vector<64x256xf32>,
    %c0_i32_8 = arith.constant 0 : i32
    %9 = arith.cmpi eq, %arg2, %c0_i32_8 : i32
    %10 = arith.extui %9 : i1 to i32
    %c0_i32_9 = arith.constant 0 : i32
    %11 = arith.cmpi ne, %10, %c0_i32_9 : i32
    scf.if %11 {
      %c0_10 = arith.constant 0 : index
      %c0_11 = arith.constant 0 : index
      %12 = vector.load %arg7[%c0_10, %c0_11] : memref<64x256xf32, #tpu.memory_space<vmem>>, vector<64x256xf32>
      %c0_12 = arith.constant 0 : index
      %c0_13 = arith.constant 0 : index
      %13 = vector.load %arg5[%c0_12, %c0_13] : memref<1x256xf32, #tpu.memory_space<vmem>>, vector<1x256xf32>
      %14 = vector.broadcast %13 : vector<1x256xf32> to vector<64x256xf32>
      %15 = arith.addf %12, %14 : vector<64x256xf32>
      %c0_14 = arith.constant 0 : index
      %c0_15 = arith.constant 0 : index
      %16 = vector.load %arg6[%c0_14, %c0_15] : memref<64x256xf32, #tpu.memory_space<vmem>>, vector<64x256xf32>
      tpu.vector_store %arg6[%c0_14, %c0_15], %15 {strides = array<i32>} : memref<64x256xf32, #tpu.memory_space<vmem>>, vector<64x256xf32>,
    } else {
    }
    return
  }
  func.func @transform_0(%arg0: i32, %arg1: i32, %arg2: i32) -> (i32, i32) {
    %c0_i32 = arith.constant 0 : i32
    return %arg0, %arg2 : i32, i32
  }
  func.func @transform_1(%arg0: i32, %arg1: i32, %arg2: i32) -> (i32, i32) {
    %c0_i32 = arith.constant 0 : i32
    return %arg2, %arg1 : i32, i32
  }
  func.func @transform_2(%arg0: i32, %arg1: i32, %arg2: i32) -> (i32, i32) {
    %c0_i32 = arith.constant 0 : i32
    %c0_i32_0 = arith.constant 0 : i32
    return %c0_i32, %arg1 : i32, i32
  }
  func.func @transform_3(%arg0: i32, %arg1: i32, %arg2: i32) -> (i32, i32) {
    %c0_i32 = arith.constant 0 : i32
    return %arg0, %arg1 : i32, i32
  }
}

module attributes {stable_mosaic.version = 11 : i64} {
  func.func @_lstm2_kernel(%arg0: i32, %arg1: memref<1x16x512xf32, #tpu.memory_space<vmem>>, %arg2: memref<128x512xbf16, #tpu.memory_space<vmem>>, %arg3: memref<128x512xbf16, #tpu.memory_space<vmem>>, %arg4: memref<128x512xbf16, #tpu.memory_space<vmem>>, %arg5: memref<1x512xf32, #tpu.memory_space<vmem>>, %arg6: memref<16x128xf32, #tpu.memory_space<vmem>>, %arg7: memref<16x128xf32, #tpu.memory_space<vmem>>, %arg8: memref<16x128xf32, #tpu.memory_space<vmem>>, %arg9: memref<16x128xf32, #tpu.memory_space<vmem>>, %arg10: memref<16x128xf32, #tpu.memory_space<vmem>>, %arg11: memref<16x128xf32, #tpu.memory_space<vmem>>) attributes {dimension_semantics = [#tpu.dimension_semantics<arbitrary>], iteration_bounds = array<i64: 4>, scalar_prefetch = 0 : i64, scratch_operands = 4 : i64, tpu.core_type = #tpu.core_type<tc>, window_params = [{transform_indices = @transform_0, window_bounds = array<i64: 1, 16, 512>}, {pipeline_mode = #tpu.pipeline_mode<synchronous>, transform_indices = @transform_1, window_bounds = array<i64: 128, 512>}, {pipeline_mode = #tpu.pipeline_mode<synchronous>, transform_indices = @transform_2, window_bounds = array<i64: 128, 512>}, {pipeline_mode = #tpu.pipeline_mode<synchronous>, transform_indices = @transform_3, window_bounds = array<i64: 128, 512>}, {pipeline_mode = #tpu.pipeline_mode<synchronous>, transform_indices = @transform_4, window_bounds = array<i64: 1, 512>}, {pipeline_mode = #tpu.pipeline_mode<synchronous>, transform_indices = @transform_5, window_bounds = array<i64: 16, 128>}, {pipeline_mode = #tpu.pipeline_mode<synchronous>, transform_indices = @transform_6, window_bounds = array<i64: 16, 128>}]} {
    %c0_i32 = arith.constant 0 : i32
    %0 = arith.cmpi eq, %arg0, %c0_i32 : i32
    %1 = arith.extui %0 : i1 to i32
    %c0_i32_0 = arith.constant 0 : i32
    %2 = arith.cmpi ne, %1, %c0_i32_0 : i32
    scf.if %2 {
      %cst_36 = arith.constant 0.000000e+00 : f32
      %80 = vector.broadcast %cst_36 : f32 to vector<16x128xf32>
      %c0_37 = arith.constant 0 : index
      %c0_38 = arith.constant 0 : index
      %81 = vector.load %arg8[%c0_37, %c0_38] : memref<16x128xf32, #tpu.memory_space<vmem>>, vector<16x128xf32>
      tpu.vector_store %arg8[%c0_37, %c0_38], %80 {strides = array<i32>} : memref<16x128xf32, #tpu.memory_space<vmem>>, vector<16x128xf32>,
      %cst_39 = arith.constant 0.000000e+00 : f32
      %82 = vector.broadcast %cst_39 : f32 to vector<16x128xf32>
      %c0_40 = arith.constant 0 : index
      %c0_41 = arith.constant 0 : index
      %83 = vector.load %arg9[%c0_40, %c0_41] : memref<16x128xf32, #tpu.memory_space<vmem>>, vector<16x128xf32>
      tpu.vector_store %arg9[%c0_40, %c0_41], %82 {strides = array<i32>} : memref<16x128xf32, #tpu.memory_space<vmem>>, vector<16x128xf32>,
      %cst_42 = arith.constant 0.000000e+00 : f32
      %84 = vector.broadcast %cst_42 : f32 to vector<16x128xf32>
      %c0_43 = arith.constant 0 : index
      %c0_44 = arith.constant 0 : index
      %85 = vector.load %arg10[%c0_43, %c0_44] : memref<16x128xf32, #tpu.memory_space<vmem>>, vector<16x128xf32>
      tpu.vector_store %arg10[%c0_43, %c0_44], %84 {strides = array<i32>} : memref<16x128xf32, #tpu.memory_space<vmem>>, vector<16x128xf32>,
      %cst_45 = arith.constant 0.000000e+00 : f32
      %86 = vector.broadcast %cst_45 : f32 to vector<16x128xf32>
      %c0_46 = arith.constant 0 : index
      %c0_47 = arith.constant 0 : index
      %87 = vector.load %arg11[%c0_46, %c0_47] : memref<16x128xf32, #tpu.memory_space<vmem>>, vector<16x128xf32>
      tpu.vector_store %arg11[%c0_46, %c0_47], %86 {strides = array<i32>} : memref<16x128xf32, #tpu.memory_space<vmem>>, vector<16x128xf32>,
    } else {
    }
    %c0 = arith.constant 0 : index
    %c0_1 = arith.constant 0 : index
    %c0_2 = arith.constant 0 : index
    %3 = vector.load %arg1[%c0, %c0_1, %c0_2] : memref<1x16x512xf32, #tpu.memory_space<vmem>>, vector<1x16x512xf32>
    %4 = vector.shape_cast %3 : vector<1x16x512xf32> to vector<16x512xf32>
    %c0_3 = arith.constant 0 : index
    %c0_4 = arith.constant 0 : index
    %5 = vector.load %arg8[%c0_3, %c0_4] : memref<16x128xf32, #tpu.memory_space<vmem>>, vector<16x128xf32>
    %6 = arith.truncf %5 : vector<16x128xf32> to vector<16x128xbf16>
    %c0_5 = arith.constant 0 : index
    %c0_6 = arith.constant 0 : index
    %7 = vector.load %arg2[%c0_5, %c0_6] : memref<128x512xbf16, #tpu.memory_space<vmem>>, vector<128x512xbf16>
    %cst = arith.constant dense<0.000000e+00> : vector<16x512xf32>
    %8 = tpu.matmul %6, %7, %cst {dimension_numbers = #tpu.dot_dimension_numbers<[1], [0], [0], [1], [0, 0, 1, 1], [], []>} : vector<16x128xbf16>, vector<128x512xbf16>, vector<16x512xf32> -> vector<16x512xf32>
    %9 = arith.addf %4, %8 : vector<16x512xf32>
    %c0_7 = arith.constant 0 : index
    %c0_8 = arith.constant 0 : index
    %10 = vector.load %arg9[%c0_7, %c0_8] : memref<16x128xf32, #tpu.memory_space<vmem>>, vector<16x128xf32>
    %11 = vector.extract_strided_slice %9 {offsets = [0, 0], sizes = [16, 128], strides = [1, 1]} : vector<16x512xf32> to vector<16x128xf32>
    %12 = arith.negf %11 : vector<16x128xf32>
    %13 = math.exp %12 : vector<16x128xf32>
    %cst_9 = arith.constant 1.000000e+00 : f32
    %14 = vector.broadcast %cst_9 : f32 to vector<16x128xf32>
    %15 = arith.addf %14, %13 : vector<16x128xf32>
    %16 = arith.divf %14, %15 : vector<16x128xf32>
    %17 = vector.extract_strided_slice %9 {offsets = [0, 128], sizes = [16, 128], strides = [1, 1]} : vector<16x512xf32> to vector<16x128xf32>
    %18 = arith.negf %17 : vector<16x128xf32>
    %19 = math.exp %18 : vector<16x128xf32>
    %cst_10 = arith.constant 1.000000e+00 : f32
    %20 = vector.broadcast %cst_10 : f32 to vector<16x128xf32>
    %21 = arith.addf %20, %19 : vector<16x128xf32>
    %22 = arith.divf %20, %21 : vector<16x128xf32>
    %23 = vector.extract_strided_slice %9 {offsets = [0, 256], sizes = [16, 128], strides = [1, 1]} : vector<16x512xf32> to vector<16x128xf32>
    %24 = math.tanh %23 : vector<16x128xf32>
    %25 = vector.extract_strided_slice %9 {offsets = [0, 384], sizes = [16, 128], strides = [1, 1]} : vector<16x512xf32> to vector<16x128xf32>
    %26 = arith.negf %25 : vector<16x128xf32>
    %27 = math.exp %26 : vector<16x128xf32>
    %cst_11 = arith.constant 1.000000e+00 : f32
    %28 = vector.broadcast %cst_11 : f32 to vector<16x128xf32>
    %29 = arith.addf %28, %27 : vector<16x128xf32>
    %30 = arith.divf %28, %29 : vector<16x128xf32>
    %31 = arith.mulf %22, %10 : vector<16x128xf32>
    %32 = arith.mulf %16, %24 : vector<16x128xf32>
    %33 = arith.addf %31, %32 : vector<16x128xf32>
    %34 = math.tanh %33 : vector<16x128xf32>
    %35 = arith.mulf %30, %34 : vector<16x128xf32>
    %c0_12 = arith.constant 0 : index
    %c0_13 = arith.constant 0 : index
    %36 = vector.load %arg8[%c0_12, %c0_13] : memref<16x128xf32, #tpu.memory_space<vmem>>, vector<16x128xf32>
    tpu.vector_store %arg8[%c0_12, %c0_13], %35 {strides = array<i32>} : memref<16x128xf32, #tpu.memory_space<vmem>>, vector<16x128xf32>,
    %c0_14 = arith.constant 0 : index
    %c0_15 = arith.constant 0 : index
    %37 = vector.load %arg9[%c0_14, %c0_15] : memref<16x128xf32, #tpu.memory_space<vmem>>, vector<16x128xf32>
    tpu.vector_store %arg9[%c0_14, %c0_15], %33 {strides = array<i32>} : memref<16x128xf32, #tpu.memory_space<vmem>>, vector<16x128xf32>,
    %38 = arith.truncf %35 : vector<16x128xf32> to vector<16x128xbf16>
    %c0_16 = arith.constant 0 : index
    %c0_17 = arith.constant 0 : index
    %39 = vector.load %arg3[%c0_16, %c0_17] : memref<128x512xbf16, #tpu.memory_space<vmem>>, vector<128x512xbf16>
    %cst_18 = arith.constant dense<0.000000e+00> : vector<16x512xf32>
    %40 = tpu.matmul %38, %39, %cst_18 {dimension_numbers = #tpu.dot_dimension_numbers<[1], [0], [0], [1], [0, 0, 1, 1], [], []>} : vector<16x128xbf16>, vector<128x512xbf16>, vector<16x512xf32> -> vector<16x512xf32>
    %c0_19 = arith.constant 0 : index
    %c0_20 = arith.constant 0 : index
    %41 = vector.load %arg10[%c0_19, %c0_20] : memref<16x128xf32, #tpu.memory_space<vmem>>, vector<16x128xf32>
    %42 = arith.truncf %41 : vector<16x128xf32> to vector<16x128xbf16>
    %c0_21 = arith.constant 0 : index
    %c0_22 = arith.constant 0 : index
    %43 = vector.load %arg4[%c0_21, %c0_22] : memref<128x512xbf16, #tpu.memory_space<vmem>>, vector<128x512xbf16>
    %cst_23 = arith.constant dense<0.000000e+00> : vector<16x512xf32>
    %44 = tpu.matmul %42, %43, %cst_23 {dimension_numbers = #tpu.dot_dimension_numbers<[1], [0], [0], [1], [0, 0, 1, 1], [], []>} : vector<16x128xbf16>, vector<128x512xbf16>, vector<16x512xf32> -> vector<16x512xf32>
    %45 = arith.addf %40, %44 : vector<16x512xf32>
    %c0_24 = arith.constant 0 : index
    %c0_25 = arith.constant 0 : index
    %46 = vector.load %arg5[%c0_24, %c0_25] : memref<1x512xf32, #tpu.memory_space<vmem>>, vector<1x512xf32>
    %47 = vector.broadcast %46 : vector<1x512xf32> to vector<16x512xf32>
    %48 = arith.addf %45, %47 : vector<16x512xf32>
    %c0_26 = arith.constant 0 : index
    %c0_27 = arith.constant 0 : index
    %49 = vector.load %arg11[%c0_26, %c0_27] : memref<16x128xf32, #tpu.memory_space<vmem>>, vector<16x128xf32>
    %50 = vector.extract_strided_slice %48 {offsets = [0, 0], sizes = [16, 128], strides = [1, 1]} : vector<16x512xf32> to vector<16x128xf32>
    %51 = arith.negf %50 : vector<16x128xf32>
    %52 = math.exp %51 : vector<16x128xf32>
    %cst_28 = arith.constant 1.000000e+00 : f32
    %53 = vector.broadcast %cst_28 : f32 to vector<16x128xf32>
    %54 = arith.addf %53, %52 : vector<16x128xf32>
    %55 = arith.divf %53, %54 : vector<16x128xf32>
    %56 = vector.extract_strided_slice %48 {offsets = [0, 128], sizes = [16, 128], strides = [1, 1]} : vector<16x512xf32> to vector<16x128xf32>
    %57 = arith.negf %56 : vector<16x128xf32>
    %58 = math.exp %57 : vector<16x128xf32>
    %cst_29 = arith.constant 1.000000e+00 : f32
    %59 = vector.broadcast %cst_29 : f32 to vector<16x128xf32>
    %60 = arith.addf %59, %58 : vector<16x128xf32>
    %61 = arith.divf %59, %60 : vector<16x128xf32>
    %62 = vector.extract_strided_slice %48 {offsets = [0, 256], sizes = [16, 128], strides = [1, 1]} : vector<16x512xf32> to vector<16x128xf32>
    %63 = math.tanh %62 : vector<16x128xf32>
    %64 = vector.extract_strided_slice %48 {offsets = [0, 384], sizes = [16, 128], strides = [1, 1]} : vector<16x512xf32> to vector<16x128xf32>
    %65 = arith.negf %64 : vector<16x128xf32>
    %66 = math.exp %65 : vector<16x128xf32>
    %cst_30 = arith.constant 1.000000e+00 : f32
    %67 = vector.broadcast %cst_30 : f32 to vector<16x128xf32>
    %68 = arith.addf %67, %66 : vector<16x128xf32>
    %69 = arith.divf %67, %68 : vector<16x128xf32>
    %70 = arith.mulf %61, %49 : vector<16x128xf32>
    %71 = arith.mulf %55, %63 : vector<16x128xf32>
    %72 = arith.addf %70, %71 : vector<16x128xf32>
    %73 = math.tanh %72 : vector<16x128xf32>
    %74 = arith.mulf %69, %73 : vector<16x128xf32>
    %c0_31 = arith.constant 0 : index
    %c0_32 = arith.constant 0 : index
    %75 = vector.load %arg10[%c0_31, %c0_32] : memref<16x128xf32, #tpu.memory_space<vmem>>, vector<16x128xf32>
    tpu.vector_store %arg10[%c0_31, %c0_32], %74 {strides = array<i32>} : memref<16x128xf32, #tpu.memory_space<vmem>>, vector<16x128xf32>,
    %c0_33 = arith.constant 0 : index
    %c0_34 = arith.constant 0 : index
    %76 = vector.load %arg11[%c0_33, %c0_34] : memref<16x128xf32, #tpu.memory_space<vmem>>, vector<16x128xf32>
    tpu.vector_store %arg11[%c0_33, %c0_34], %72 {strides = array<i32>} : memref<16x128xf32, #tpu.memory_space<vmem>>, vector<16x128xf32>,
    %c3_i32 = arith.constant 3 : i32
    %77 = arith.cmpi eq, %arg0, %c3_i32 : i32
    %78 = arith.extui %77 : i1 to i32
    %c0_i32_35 = arith.constant 0 : i32
    %79 = arith.cmpi ne, %78, %c0_i32_35 : i32
    scf.if %79 {
      %c0_36 = arith.constant 0 : index
      %c0_37 = arith.constant 0 : index
      %80 = vector.load %arg6[%c0_36, %c0_37] : memref<16x128xf32, #tpu.memory_space<vmem>>, vector<16x128xf32>
      tpu.vector_store %arg6[%c0_36, %c0_37], %35 {strides = array<i32>} : memref<16x128xf32, #tpu.memory_space<vmem>>, vector<16x128xf32>,
      %c0_38 = arith.constant 0 : index
      %c0_39 = arith.constant 0 : index
      %81 = vector.load %arg7[%c0_38, %c0_39] : memref<16x128xf32, #tpu.memory_space<vmem>>, vector<16x128xf32>
      tpu.vector_store %arg7[%c0_38, %c0_39], %74 {strides = array<i32>} : memref<16x128xf32, #tpu.memory_space<vmem>>, vector<16x128xf32>,
    } else {
    }
    return
  }
  func.func @transform_0(%arg0: i32) -> (i32, i32, i32) {
    %c0_i32 = arith.constant 0 : i32
    %c0_i32_0 = arith.constant 0 : i32
    %c0_i32_1 = arith.constant 0 : i32
    return %arg0, %c0_i32, %c0_i32_0 : i32, i32, i32
  }
  func.func @transform_1(%arg0: i32) -> (i32, i32) {
    %c0_i32 = arith.constant 0 : i32
    %c0_i32_0 = arith.constant 0 : i32
    %c0_i32_1 = arith.constant 0 : i32
    return %c0_i32, %c0_i32_0 : i32, i32
  }
  func.func @transform_2(%arg0: i32) -> (i32, i32) {
    %c0_i32 = arith.constant 0 : i32
    %c0_i32_0 = arith.constant 0 : i32
    %c0_i32_1 = arith.constant 0 : i32
    return %c0_i32, %c0_i32_0 : i32, i32
  }
  func.func @transform_3(%arg0: i32) -> (i32, i32) {
    %c0_i32 = arith.constant 0 : i32
    %c0_i32_0 = arith.constant 0 : i32
    %c0_i32_1 = arith.constant 0 : i32
    return %c0_i32, %c0_i32_0 : i32, i32
  }
  func.func @transform_4(%arg0: i32) -> (i32, i32) {
    %c0_i32 = arith.constant 0 : i32
    %c0_i32_0 = arith.constant 0 : i32
    %c0_i32_1 = arith.constant 0 : i32
    return %c0_i32, %c0_i32_0 : i32, i32
  }
  func.func @transform_5(%arg0: i32) -> (i32, i32) {
    %c0_i32 = arith.constant 0 : i32
    %c0_i32_0 = arith.constant 0 : i32
    %c0_i32_1 = arith.constant 0 : i32
    return %c0_i32, %c0_i32_0 : i32, i32
  }
  func.func @transform_6(%arg0: i32) -> (i32, i32) {
    %c0_i32 = arith.constant 0 : i32
    %c0_i32_0 = arith.constant 0 : i32
    %c0_i32_1 = arith.constant 0 : i32
    return %c0_i32, %c0_i32_0 : i32, i32
  }
}

module attributes {stable_mosaic.version = 11 : i64} {
  func.func @_mm3_kernel(%arg0: i32, %arg1: i32, %arg2: memref<16x128xbf16, #tpu.memory_space<vmem>>, %arg3: memref<16x128xbf16, #tpu.memory_space<vmem>>, %arg4: memref<16x128xbf16, #tpu.memory_space<vmem>>, %arg5: memref<128x128xbf16, #tpu.memory_space<vmem>>, %arg6: memref<128x128xbf16, #tpu.memory_space<vmem>>, %arg7: memref<128x128xbf16, #tpu.memory_space<vmem>>, %arg8: memref<1x128xf32, #tpu.memory_space<vmem>>, %arg9: memref<16x128xf32, #tpu.memory_space<vmem>>) attributes {dimension_semantics = [#tpu.dimension_semantics<parallel>, #tpu.dimension_semantics<parallel>], iteration_bounds = array<i64: 1, 1>, scalar_prefetch = 0 : i64, scratch_operands = 0 : i64, tpu.core_type = #tpu.core_type<tc>, window_params = [{transform_indices = @transform_0, window_bounds = array<i64: 16, 128>}, {transform_indices = @transform_1, window_bounds = array<i64: 16, 128>}, {transform_indices = @transform_2, window_bounds = array<i64: 16, 128>}, {transform_indices = @transform_3, window_bounds = array<i64: 128, 128>}, {transform_indices = @transform_4, window_bounds = array<i64: 128, 128>}, {transform_indices = @transform_5, window_bounds = array<i64: 128, 128>}, {transform_indices = @transform_6, window_bounds = array<i64: 1, 128>}, {transform_indices = @transform_7, window_bounds = array<i64: 16, 128>}]} {
    %c0 = arith.constant 0 : index
    %c0_0 = arith.constant 0 : index
    %0 = vector.load %arg2[%c0, %c0_0] : memref<16x128xbf16, #tpu.memory_space<vmem>>, vector<16x128xbf16>
    %c0_1 = arith.constant 0 : index
    %c0_2 = arith.constant 0 : index
    %1 = vector.load %arg5[%c0_1, %c0_2] : memref<128x128xbf16, #tpu.memory_space<vmem>>, vector<128x128xbf16>
    %cst = arith.constant dense<0.000000e+00> : vector<16x128xf32>
    %2 = tpu.matmul %0, %1, %cst {dimension_numbers = #tpu.dot_dimension_numbers<[1], [0], [0], [1], [0, 0, 1, 1], [], []>} : vector<16x128xbf16>, vector<128x128xbf16>, vector<16x128xf32> -> vector<16x128xf32>
    %c0_3 = arith.constant 0 : index
    %c0_4 = arith.constant 0 : index
    %3 = vector.load %arg3[%c0_3, %c0_4] : memref<16x128xbf16, #tpu.memory_space<vmem>>, vector<16x128xbf16>
    %c0_5 = arith.constant 0 : index
    %c0_6 = arith.constant 0 : index
    %4 = vector.load %arg6[%c0_5, %c0_6] : memref<128x128xbf16, #tpu.memory_space<vmem>>, vector<128x128xbf16>
    %cst_7 = arith.constant dense<0.000000e+00> : vector<16x128xf32>
    %5 = tpu.matmul %3, %4, %cst_7 {dimension_numbers = #tpu.dot_dimension_numbers<[1], [0], [0], [1], [0, 0, 1, 1], [], []>} : vector<16x128xbf16>, vector<128x128xbf16>, vector<16x128xf32> -> vector<16x128xf32>
    %6 = arith.addf %2, %5 : vector<16x128xf32>
    %c0_8 = arith.constant 0 : index
    %c0_9 = arith.constant 0 : index
    %7 = vector.load %arg4[%c0_8, %c0_9] : memref<16x128xbf16, #tpu.memory_space<vmem>>, vector<16x128xbf16>
    %c0_10 = arith.constant 0 : index
    %c0_11 = arith.constant 0 : index
    %8 = vector.load %arg7[%c0_10, %c0_11] : memref<128x128xbf16, #tpu.memory_space<vmem>>, vector<128x128xbf16>
    %cst_12 = arith.constant dense<0.000000e+00> : vector<16x128xf32>
    %9 = tpu.matmul %7, %8, %cst_12 {dimension_numbers = #tpu.dot_dimension_numbers<[1], [0], [0], [1], [0, 0, 1, 1], [], []>} : vector<16x128xbf16>, vector<128x128xbf16>, vector<16x128xf32> -> vector<16x128xf32>
    %10 = arith.addf %6, %9 : vector<16x128xf32>
    %c0_13 = arith.constant 0 : index
    %c0_14 = arith.constant 0 : index
    %11 = vector.load %arg8[%c0_13, %c0_14] : memref<1x128xf32, #tpu.memory_space<vmem>>, vector<1x128xf32>
    %12 = vector.broadcast %11 : vector<1x128xf32> to vector<16x128xf32>
    %13 = arith.addf %10, %12 : vector<16x128xf32>
    %cst_15 = arith.constant 0.000000e+00 : f32
    %14 = vector.broadcast %cst_15 : f32 to vector<16x128xf32>
    %15 = arith.maximumf %13, %14 : vector<16x128xf32>
    %c0_16 = arith.constant 0 : index
    %c0_17 = arith.constant 0 : index
    %16 = vector.load %arg9[%c0_16, %c0_17] : memref<16x128xf32, #tpu.memory_space<vmem>>, vector<16x128xf32>
    tpu.vector_store %arg9[%c0_16, %c0_17], %15 {strides = array<i32>} : memref<16x128xf32, #tpu.memory_space<vmem>>, vector<16x128xf32>,
    return
  }
  func.func @transform_0(%arg0: i32, %arg1: i32) -> (i32, i32) {
    %c0_i32 = arith.constant 0 : i32
    %c0_i32_0 = arith.constant 0 : i32
    return %arg0, %c0_i32 : i32, i32
  }
  func.func @transform_1(%arg0: i32, %arg1: i32) -> (i32, i32) {
    %c0_i32 = arith.constant 0 : i32
    %c0_i32_0 = arith.constant 0 : i32
    return %arg0, %c0_i32 : i32, i32
  }
  func.func @transform_2(%arg0: i32, %arg1: i32) -> (i32, i32) {
    %c0_i32 = arith.constant 0 : i32
    %c0_i32_0 = arith.constant 0 : i32
    return %arg0, %c0_i32 : i32, i32
  }
  func.func @transform_3(%arg0: i32, %arg1: i32) -> (i32, i32) {
    %c0_i32 = arith.constant 0 : i32
    %c0_i32_0 = arith.constant 0 : i32
    return %c0_i32, %arg1 : i32, i32
  }
  func.func @transform_4(%arg0: i32, %arg1: i32) -> (i32, i32) {
    %c0_i32 = arith.constant 0 : i32
    %c0_i32_0 = arith.constant 0 : i32
    return %c0_i32, %arg1 : i32, i32
  }
  func.func @transform_5(%arg0: i32, %arg1: i32) -> (i32, i32) {
    %c0_i32 = arith.constant 0 : i32
    %c0_i32_0 = arith.constant 0 : i32
    return %c0_i32, %arg1 : i32, i32
  }
  func.func @transform_6(%arg0: i32, %arg1: i32) -> (i32, i32) {
    %c0_i32 = arith.constant 0 : i32
    %c0_i32_0 = arith.constant 0 : i32
    return %c0_i32, %arg1 : i32, i32
  }
  func.func @transform_7(%arg0: i32, %arg1: i32) -> (i32, i32) {
    %c0_i32 = arith.constant 0 : i32
    return %arg0, %arg1 : i32, i32
  }
}

module attributes {stable_mosaic.version = 11 : i64} {
  func.func @_mm_kernel(%arg0: i32, %arg1: i32, %arg2: i32, %arg3: memref<16x128xbf16, #tpu.memory_space<vmem>>, %arg4: memref<128x128xbf16, #tpu.memory_space<vmem>>, %arg5: memref<1x128xf32, #tpu.memory_space<vmem>>, %arg6: memref<16x128xf32, #tpu.memory_space<vmem>>, %arg7: memref<16x128xf32, #tpu.memory_space<vmem>>) attributes {dimension_semantics = [#tpu.dimension_semantics<parallel>, #tpu.dimension_semantics<parallel>, #tpu.dimension_semantics<arbitrary>], iteration_bounds = array<i64: 1, 1, 1>, scalar_prefetch = 0 : i64, scratch_operands = 1 : i64, tpu.core_type = #tpu.core_type<tc>, window_params = [{transform_indices = @transform_0, window_bounds = array<i64: 16, 128>}, {transform_indices = @transform_1, window_bounds = array<i64: 128, 128>}, {transform_indices = @transform_2, window_bounds = array<i64: 1, 128>}, {transform_indices = @transform_3, window_bounds = array<i64: 16, 128>}]} {
    %c0_i32 = arith.constant 0 : i32
    %0 = arith.cmpi eq, %arg2, %c0_i32 : i32
    %1 = arith.extui %0 : i1 to i32
    %c0_i32_0 = arith.constant 0 : i32
    %2 = arith.cmpi ne, %1, %c0_i32_0 : i32
    scf.if %2 {
      %cst_10 = arith.constant 0.000000e+00 : f32
      %12 = vector.broadcast %cst_10 : f32 to vector<16x128xf32>
      %c0_11 = arith.constant 0 : index
      %c0_12 = arith.constant 0 : index
      %13 = vector.load %arg7[%c0_11, %c0_12] : memref<16x128xf32, #tpu.memory_space<vmem>>, vector<16x128xf32>
      tpu.vector_store %arg7[%c0_11, %c0_12], %12 {strides = array<i32>} : memref<16x128xf32, #tpu.memory_space<vmem>>, vector<16x128xf32>,
    } else {
    }
    %c0 = arith.constant 0 : index
    %c0_1 = arith.constant 0 : index
    %3 = vector.load %arg7[%c0, %c0_1] : memref<16x128xf32, #tpu.memory_space<vmem>>, vector<16x128xf32>
    %c0_2 = arith.constant 0 : index
    %c0_3 = arith.constant 0 : index
    %4 = vector.load %arg3[%c0_2, %c0_3] : memref<16x128xbf16, #tpu.memory_space<vmem>>, vector<16x128xbf16>
    %c0_4 = arith.constant 0 : index
    %c0_5 = arith.constant 0 : index
    %5 = vector.load %arg4[%c0_4, %c0_5] : memref<128x128xbf16, #tpu.memory_space<vmem>>, vector<128x128xbf16>
    %cst = arith.constant dense<0.000000e+00> : vector<16x128xf32>
    %6 = tpu.matmul %4, %5, %cst {dimension_numbers = #tpu.dot_dimension_numbers<[1], [0], [0], [1], [0, 0, 1, 1], [], []>} : vector<16x128xbf16>, vector<128x128xbf16>, vector<16x128xf32> -> vector<16x128xf32>
    %7 = arith.addf %3, %6 : vector<16x128xf32>
    %c0_6 = arith.constant 0 : index
    %c0_7 = arith.constant 0 : index
    %8 = vector.load %arg7[%c0_6, %c0_7] : memref<16x128xf32, #tpu.memory_space<vmem>>, vector<16x128xf32>
    tpu.vector_store %arg7[%c0_6, %c0_7], %7 {strides = array<i32>} : memref<16x128xf32, #tpu.memory_space<vmem>>, vector<16x128xf32>,
    %c0_i32_8 = arith.constant 0 : i32
    %9 = arith.cmpi eq, %arg2, %c0_i32_8 : i32
    %10 = arith.extui %9 : i1 to i32
    %c0_i32_9 = arith.constant 0 : i32
    %11 = arith.cmpi ne, %10, %c0_i32_9 : i32
    scf.if %11 {
      %c0_10 = arith.constant 0 : index
      %c0_11 = arith.constant 0 : index
      %12 = vector.load %arg7[%c0_10, %c0_11] : memref<16x128xf32, #tpu.memory_space<vmem>>, vector<16x128xf32>
      %c0_12 = arith.constant 0 : index
      %c0_13 = arith.constant 0 : index
      %13 = vector.load %arg5[%c0_12, %c0_13] : memref<1x128xf32, #tpu.memory_space<vmem>>, vector<1x128xf32>
      %14 = vector.broadcast %13 : vector<1x128xf32> to vector<16x128xf32>
      %15 = arith.addf %12, %14 : vector<16x128xf32>
      %cst_14 = arith.constant 0.000000e+00 : f32
      %16 = vector.broadcast %cst_14 : f32 to vector<16x128xf32>
      %17 = arith.maximumf %15, %16 : vector<16x128xf32>
      %c0_15 = arith.constant 0 : index
      %c0_16 = arith.constant 0 : index
      %18 = vector.load %arg6[%c0_15, %c0_16] : memref<16x128xf32, #tpu.memory_space<vmem>>, vector<16x128xf32>
      tpu.vector_store %arg6[%c0_15, %c0_16], %17 {strides = array<i32>} : memref<16x128xf32, #tpu.memory_space<vmem>>, vector<16x128xf32>,
    } else {
    }
    return
  }
  func.func @transform_0(%arg0: i32, %arg1: i32, %arg2: i32) -> (i32, i32) {
    %c0_i32 = arith.constant 0 : i32
    return %arg0, %arg2 : i32, i32
  }
  func.func @transform_1(%arg0: i32, %arg1: i32, %arg2: i32) -> (i32, i32) {
    %c0_i32 = arith.constant 0 : i32
    return %arg2, %arg1 : i32, i32
  }
  func.func @transform_2(%arg0: i32, %arg1: i32, %arg2: i32) -> (i32, i32) {
    %c0_i32 = arith.constant 0 : i32
    %c0_i32_0 = arith.constant 0 : i32
    return %c0_i32, %arg1 : i32, i32
  }
  func.func @transform_3(%arg0: i32, %arg1: i32, %arg2: i32) -> (i32, i32) {
    %c0_i32 = arith.constant 0 : i32
    return %arg0, %arg1 : i32, i32
  }
}

</mosaic_0001>

<llo_original>
// kernel: tmgnn_forward.25
$region0: #{tmgnn_forward.25}
  #allocation0 [shape = 'u32[]', space=smem, size = 0x4, offset = 0x4, fixed_abs, tag = 'smem constant byte address 0x4 - core index']
  #allocation1 [shape = 'u32[144,128]{1,0:T(1,128)}', space=vmem, size = 0x12000, scoped, tag = 'internal scratch']
  %s0 = inlined_call_operand.vmem [shape: bf16[64,128], index: 0, kind: input, shape index: {}]
  %s1 = inlined_call_operand.vmem [shape: bf16[64,128], index: 1, kind: input, shape index: {}]
  %s2 = inlined_call_operand.vmem [shape: bf16[64,128], index: 2, kind: input, shape index: {}]
  %s3 = inlined_call_operand.vmem [shape: bf16[128,128], index: 3, kind: input, shape index: {}]
  %s4 = inlined_call_operand.vmem [shape: bf16[128,128], index: 4, kind: input, shape index: {}]
  %s5 = inlined_call_operand.vmem [shape: bf16[128,128], index: 5, kind: input, shape index: {}]
  %s6 = inlined_call_operand.vmem [shape: f32[1,128], index: 6, kind: input, shape index: {}]
  %s7 = inlined_call_operand.vmem [shape: f32[64,128], index: 7, kind: output, shape index: {}]
  %s8 = sld [smem:[#allocation0]]
  $region38: #{tmgnn_forward.25} parent=0
    _
  %s10 = ssub.s32 1, %s8
  %s11 = scalar_select 0, %s10, %s8
  // Predicated region
  $region2: #{tmgnn_forward.25} parent=0 // pred_check
    _
  $region3: #{tmgnn_forward.25} parent=0 // pred_check_branch
    %13 = sbr.rel (0) target = $region5
  $region4: #{tmgnn_forward.25} parent=0 // pred_region
    _
  $region5: #{tmgnn_forward.25} parent=0 // pred_fallthru
    _
  // Predicated region
  $region6: #{tmgnn_forward.25} parent=0 // pred_check
    _
  $region7: #{tmgnn_forward.25} parent=0 // pred_check_branch
    %15 = sbr.rel (0) target = $region9
  $region8: #{tmgnn_forward.25} parent=0 // pred_region
    _
  $region9: #{tmgnn_forward.25} parent=0 // pred_fallthru
    _
  // Predicated region
  $region10: #{tmgnn_forward.25} parent=0 // pred_check
    _
  $region11: #{tmgnn_forward.25} parent=0 // pred_check_branch
    %17 = sbr.rel (0) target = $region13
  $region12: #{tmgnn_forward.25} parent=0 // pred_region
    _
  $region13: #{tmgnn_forward.25} parent=0 // pred_fallthru
    _
  // Predicated region
  $region14: #{tmgnn_forward.25} parent=0 // pred_check
    _
  $region15: #{tmgnn_forward.25} parent=0 // pred_check_branch
    %19 = sbr.rel (0) target = $region17
  $region16: #{tmgnn_forward.25} parent=0 // pred_region
    _
  $region17: #{tmgnn_forward.25} parent=0 // pred_fallthru
    _
  // Predicated region
  $region18: #{tmgnn_forward.25} parent=0 // pred_check
    _
  $region19: #{tmgnn_forward.25} parent=0 // pred_check_branch
    %21 = sbr.rel (0) target = $region21
  $region20: #{tmgnn_forward.25} parent=0 // pred_region
    _
  $region21: #{tmgnn_forward.25} parent=0 // pred_fallthru
    _
  // Predicated region
  $region22: #{tmgnn_forward.25} parent=0 // pred_check
    _
  $region23: #{tmgnn_forward.25} parent=0 // pred_check_branch
    %23 = sbr.rel (0) target = $region25
  $region24: #{tmgnn_forward.25} parent=0 // pred_region
    _
  $region25: #{tmgnn_forward.25} parent=0 // pred_fallthru
    _
  // Predicated region
  $region26: #{tmgnn_forward.25} parent=0 // pred_check
    _
  $region27: #{tmgnn_forward.25} parent=0 // pred_check_branch
    %25 = sbr.rel (0) target = $region29
  $region28: #{tmgnn_forward.25} parent=0 // pred_region
    _
  $region29: #{tmgnn_forward.25} parent=0 // pred_fallthru
    _
  %v27 = vld [vmem:[%s0] sm:$0xf]
  %v28 = vld [vmem:[%s0 + $0x4] sm:$0xf]
  %v29 = vld [vmem:[%s0 + $0x8] sm:$0xf]
  %v30 = vld [vmem:[%s0 + $0xc] sm:$0xf]
  %v31 = vld [vmem:[%s0 + $0x10] sm:$0xf]
  %v32 = vld [vmem:[%s0 + $0x14] sm:$0xf]
  %v33 = vld [vmem:[%s0 + $0x18] sm:$0xf]
  %v34 = vld [vmem:[%s0 + $0x1c] sm:$0xf]
  %v35 = vld [vmem:[%s3] sm:$0xf]
  %v36 = vld [vmem:[%s3 + $0x4] sm:$0xf]
  %v37 = vld [vmem:[%s3 + $0x8] sm:$0xf]
  %v38 = vld [vmem:[%s3 + $0xc] sm:$0xf]
  %v39 = vld [vmem:[%s3 + $0x10] sm:$0xf]
  %v40 = vld [vmem:[%s3 + $0x14] sm:$0xf]
  %v41 = vld [vmem:[%s3 + $0x18] sm:$0xf]
  %v42 = vld [vmem:[%s3 + $0x1c] sm:$0xf]
  %v43 = vld [vmem:[%s3 + $0x20] sm:$0xf]
  %v44 = vld [vmem:[%s3 + $0x24] sm:$0xf]
  %v45 = vld [vmem:[%s3 + $0x28] sm:$0xf]
  %v46 = vld [vmem:[%s3 + $0x2c] sm:$0xf]
  %v47 = vld [vmem:[%s3 + $0x30] sm:$0xf]
  %v48 = vld [vmem:[%s3 + $0x34] sm:$0xf]
  %v49 = vld [vmem:[%s3 + $0x38] sm:$0xf]
  %v50 = vld [vmem:[%s3 + $0x3c] sm:$0xf]
  %v51 = vld [vmem:[%s1] sm:$0xf]
  %v52 = vld [vmem:[%s1 + $0x4] sm:$0xf]
  %v53 = vld [vmem:[%s1 + $0x8] sm:$0xf]
  %v54 = vld [vmem:[%s1 + $0xc] sm:$0xf]
  %v55 = vld [vmem:[%s1 + $0x10] sm:$0xf]
  %v56 = vld [vmem:[%s1 + $0x14] sm:$0xf]
  %v57 = vld [vmem:[%s1 + $0x18] sm:$0xf]
  %v58 = vld [vmem:[%s1 + $0x1c] sm:$0xf]
  %v59 = vld [vmem:[%s4] sm:$0xf]
  %v60 = vld [vmem:[%s4 + $0x4] sm:$0xf]
  %v61 = vld [vmem:[%s4 + $0x8] sm:$0xf]
  %v62 = vld [vmem:[%s4 + $0xc] sm:$0xf]
  %v63 = vld [vmem:[%s4 + $0x10] sm:$0xf]
  %v64 = vld [vmem:[%s4 + $0x14] sm:$0xf]
  %v65 = vld [vmem:[%s4 + $0x18] sm:$0xf]
  %v66 = vld [vmem:[%s4 + $0x1c] sm:$0xf]
  %v67 = vld [vmem:[%s4 + $0x20] sm:$0xf]
  %v68 = vld [vmem:[%s4 + $0x24] sm:$0xf]
  %v69 = vld [vmem:[%s4 + $0x28] sm:$0xf]
  %v70 = vld [vmem:[%s4 + $0x2c] sm:$0xf]
  %v71 = vld [vmem:[%s4 + $0x30] sm:$0xf]
  %v72 = vld [vmem:[%s4 + $0x34] sm:$0xf]
  %v73 = vld [vmem:[%s4 + $0x38] sm:$0xf]
  %v74 = vld [vmem:[%s4 + $0x3c] sm:$0xf]
  %v83 = vunpack.c.l.b16 %v51
  %v84 = vunpack.c.l.b16 %v52
  %v85 = vunpack.c.l.b16 %v53
  %v86 = vunpack.c.l.b16 %v54
  %v87 = vunpack.c.l.b16 %v55
  %v88 = vunpack.c.l.b16 %v56
  %v89 = vunpack.c.l.b16 %v57
  %v90 = vunpack.c.l.b16 %v58
  %v91 = vpack.c.b16 %v84, %v83
  %v92 = vpack.c.b16 %v86, %v85
  %v93 = vpack.c.b16 %v88, %v87
  %v94 = vpack.c.b16 %v90, %v89
  %v115 = vunpack.c.l.b16 %v59
  %v116 = vunpack.c.l.b16 %v60
  %v117 = vunpack.c.l.b16 %v61
  %v118 = vunpack.c.l.b16 %v62
  %v119 = vunpack.c.l.b16 %v63
  %v120 = vunpack.c.l.b16 %v64
  %v121 = vunpack.c.l.b16 %v65
  %v122 = vunpack.c.l.b16 %v66
  %v123 = vunpack.c.l.b16 %v67
  %v124 = vunpack.c.l.b16 %v68
  %v125 = vunpack.c.l.b16 %v69
  %v126 = vunpack.c.l.b16 %v70
  %v127 = vunpack.c.l.b16 %v71
  %v128 = vunpack.c.l.b16 %v72
  %v129 = vunpack.c.l.b16 %v73
  %v130 = vunpack.c.l.b16 %v74
  %v131 = vpack.c.b16 %v116, %v115
  %v132 = vpack.c.b16 %v118, %v117
  %v133 = vpack.c.b16 %v120, %v119
  %v134 = vpack.c.b16 %v122, %v121
  %v135 = vpack.c.b16 %v124, %v123
  %v136 = vpack.c.b16 %v126, %v125
  %v137 = vpack.c.b16 %v128, %v127
  %v138 = vpack.c.b16 %v130, %v129
  %147 = vmatprep.subr.bf16.mxu0 0
  %148 = vmatpush1.bf16.msra.mxu0 %v131
  %149 = vmatprep.subr.bf16.mxu0 0
  %150 = vmatpush1.bf16.msra.mxu0 %v132
  %151 = vmatprep.subr.bf16.mxu0 0
  %152 = vmatpush1.bf16.msra.mxu0 %v133
  %153 = vmatprep.subr.bf16.mxu0 0
  %154 = vmatpush1.bf16.msra.mxu0 %v134
  %155 = vmatprep.subr.bf16.mxu0 0
  %156 = vmatpush1.bf16.msra.mxu0 %v135
  %157 = vmatprep.subr.bf16.mxu0 0
  %158 = vmatpush1.bf16.msra.mxu0 %v136
  %159 = vmatprep.subr.bf16.mxu0 0
  %160 = vmatpush1.bf16.msra.mxu0 %v137
  %161 = vmatprep.subr.bf16.mxu0 0
  %162 = vmatpush1.bf16.msra.mxu0 %v138
  %163 = vmatprep.subr.bf16.mxu0 0
  %164 = vmatpush1.bf16.msra.mxu0 0
  %165 = vmatprep.subr.bf16.mxu0 0
  %166 = vmatpush1.bf16.msra.mxu0 0
  %167 = vmatprep.subr.bf16.mxu0 0
  %168 = vmatpush1.bf16.msra.mxu0 0
  %169 = vmatprep.subr.bf16.mxu0 0
  %170 = vmatpush1.bf16.msra.mxu0 0
  %171 = vmatprep.subr.bf16.mxu0 0
  %172 = vmatpush1.bf16.msra.mxu0 0
  %173 = vmatprep.subr.bf16.mxu0 0
  %174 = vmatpush1.bf16.msra.mxu0 0
  %175 = vmatprep.subr.bf16.mxu0 0
  %176 = vmatpush1.bf16.msra.mxu0 0
  %177 = vmatprep.subr.bf16.mxu0 0
  %178 = vmatpush1.bf16.msra.mxu0 0
  %179 = vmatprep.mubr.bf16.mxu0 0
  %180 = vmatmul.mubr.bf16.gmra.mrb[0].mxu0 %v91
  %v181 = vpop.f32.mrb[0].mxu0
  %v182 = vadd.f32 0.0, %v181
  %v183 = vpop.f32.mrb[0].mxu0
  %v184 = vpop.f32.mrb[0].mxu0
  %v185 = vadd.f32 0.0, %v184
  %v186 = vpop.f32.mrb[0].mxu0
  %187 = vmatprep.mubr.bf16.mxu0 0
  %188 = vmatmul.mubr.bf16.gmra.mrb[0].mxu0 %v92
  %v189 = vpop.f32.mrb[0].mxu0
  %v190 = vadd.f32 0.0, %v189
  %v191 = vpop.f32.mrb[0].mxu0
  %v192 = vpop.f32.mrb[0].mxu0
  %v193 = vadd.f32 0.0, %v192
  %v194 = vpop.f32.mrb[0].mxu0
  %195 = vmatprep.mubr.bf16.mxu0 0
  %196 = vmatmul.mubr.bf16.gmra.mrb[0].mxu0 %v93
  %v197 = vpop.f32.mrb[0].mxu0
  %v198 = vadd.f32 0.0, %v197
  %v199 = vpop.f32.mrb[0].mxu0
  %v200 = vpop.f32.mrb[0].mxu0
  %v201 = vadd.f32 0.0, %v200
  %v202 = vpop.f32.mrb[0].mxu0
  %203 = vmatprep.mubr.bf16.mxu0 0
  %204 = vmatmul.mubr.bf16.gmra.mrb[0].mxu0 %v94
  %v205 = vpop.f32.mrb[0].mxu0
  %v206 = vadd.f32 0.0, %v205
  %v207 = vpop.f32.mrb[0].mxu0
  %v208 = vpop.f32.mrb[0].mxu0
  %v209 = vadd.f32 0.0, %v208
  %v210 = vpop.f32.mrb[0].mxu0
  %211 = vdwg.mxu0
  %v220 = vunpack.c.l.b16 %v27
  %v221 = vunpack.c.l.b16 %v28
  %v222 = vunpack.c.l.b16 %v29
  %v223 = vunpack.c.l.b16 %v30
  %v224 = vunpack.c.l.b16 %v31
  %v225 = vunpack.c.l.b16 %v32
  %v226 = vunpack.c.l.b16 %v33
  %v227 = vunpack.c.l.b16 %v34
  %v228 = vpack.c.b16 %v221, %v220
  %v229 = vpack.c.b16 %v223, %v222
  %v230 = vpack.c.b16 %v225, %v224
  %v231 = vpack.c.b16 %v227, %v226
  %v252 = vunpack.c.l.b16 %v35
  %v253 = vunpack.c.l.b16 %v36
  %v254 = vunpack.c.l.b16 %v37
  %v255 = vunpack.c.l.b16 %v38
  %v256 = vunpack.c.l.b16 %v39
  %v257 = vunpack.c.l.b16 %v40
  %v258 = vunpack.c.l.b16 %v41
  %v259 = vunpack.c.l.b16 %v42
  %v260 = vunpack.c.l.b16 %v43
  %v261 = vunpack.c.l.b16 %v44
  %v262 = vunpack.c.l.b16 %v45
  %v263 = vunpack.c.l.b16 %v46
  %v264 = vunpack.c.l.b16 %v47
  %v265 = vunpack.c.l.b16 %v48
  %v266 = vunpack.c.l.b16 %v49
  %v267 = vunpack.c.l.b16 %v50
  %v268 = vpack.c.b16 %v253, %v252
  %v269 = vpack.c.b16 %v255, %v254
  %v270 = vpack.c.b16 %v257, %v256
  %v271 = vpack.c.b16 %v259, %v258
  %v272 = vpack.c.b16 %v261, %v260
  %v273 = vpack.c.b16 %v263, %v262
  %v274 = vpack.c.b16 %v265, %v264
  %v275 = vpack.c.b16 %v267, %v266
  %284 = vmatprep.subr.bf16.mxu0 0
  %285 = vmatpush1.bf16.msra.mxu0 %v268
  %286 = vmatprep.subr.bf16.mxu0 0
  %287 = vmatpush1.bf16.msra.mxu0 %v269
  %288 = vmatprep.subr.bf16.mxu0 0
  %289 = vmatpush1.bf16.msra.mxu0 %v270
  %290 = vmatprep.subr.bf16.mxu0 0
  %291 = vmatpush1.bf16.msra.mxu0 %v271
  %292 = vmatprep.subr.bf16.mxu0 0
  %293 = vmatpush1.bf16.msra.mxu0 %v272
  %294 = vmatprep.subr.bf16.mxu0 0
  %295 = vmatpush1.bf16.msra.mxu0 %v273
  %296 = vmatprep.subr.bf16.mxu0 0
  %297 = vmatpush1.bf16.msra.mxu0 %v274
  %298 = vmatprep.subr.bf16.mxu0 0
  %299 = vmatpush1.bf16.msra.mxu0 %v275
  %300 = vmatprep.subr.bf16.mxu0 0
  %301 = vmatpush1.bf16.msra.mxu0 0
  %302 = vmatprep.subr.bf16.mxu0 0
  %303 = vmatpush1.bf16.msra.mxu0 0
  %304 = vmatprep.subr.bf16.mxu0 0
  %305 = vmatpush1.bf16.msra.mxu0 0
  %306 = vmatprep.subr.bf16.mxu0 0
  %307 = vmatpush1.bf16.msra.mxu0 0
  %308 = vmatprep.subr.bf16.mxu0 0
  %309 = vmatpush1.bf16.msra.mxu0 0
  %310 = vmatprep.subr.bf16.mxu0 0
  %311 = vmatpush1.bf16.msra.mxu0 0
  %312 = vmatprep.subr.bf16.mxu0 0
  %313 = vmatpush1.bf16.msra.mxu0 0
  %314 = vmatprep.subr.bf16.mxu0 0
  %315 = vmatpush1.bf16.msra.mxu0 0
  %316 = vmatprep.mubr.bf16.mxu0 0
  %317 = vmatmul.mubr.bf16.gmra.mrb[0].mxu0 %v228
  %v318 = vpop.f32.mrb[0].mxu0
  %v319 = vadd.f32 %v182, %v318
  %v320 = vpop.f32.mrb[0].mxu0
  %v321 = vpop.f32.mrb[0].mxu0
  %v322 = vadd.f32 %v185, %v321
  %v323 = vpop.f32.mrb[0].mxu0
  %324 = vmatprep.mubr.bf16.mxu0 0
  %325 = vmatmul.mubr.bf16.gmra.mrb[0].mxu0 %v229
  %v326 = vpop.f32.mrb[0].mxu0
  %v327 = vadd.f32 %v190, %v326
  %v328 = vpop.f32.mrb[0].mxu0
  %v329 = vpop.f32.mrb[0].mxu0
  %v330 = vadd.f32 %v193, %v329
  %v331 = vpop.f32.mrb[0].mxu0
  %332 = vmatprep.mubr.bf16.mxu0 0
  %333 = vmatmul.mubr.bf16.gmra.mrb[0].mxu0 %v230
  %v334 = vpop.f32.mrb[0].mxu0
  %v335 = vadd.f32 %v198, %v334
  %v336 = vpop.f32.mrb[0].mxu0
  %v337 = vpop.f32.mrb[0].mxu0
  %v338 = vadd.f32 %v201, %v337
  %v339 = vpop.f32.mrb[0].mxu0
  %340 = vmatprep.mubr.bf16.mxu0 0
  %341 = vmatmul.mubr.bf16.gmra.mrb[0].mxu0 %v231
  %v342 = vpop.f32.mrb[0].mxu0
  %v343 = vadd.f32 %v206, %v342
  %v344 = vpop.f32.mrb[0].mxu0
  %v345 = vpop.f32.mrb[0].mxu0
  %v346 = vadd.f32 %v209, %v345
  %v347 = vpop.f32.mrb[0].mxu0
  %348 = vdwg.mxu0
  %v349 = vld [vmem:[%s2] sm:$0xf]
  %v350 = vld [vmem:[%s2 + $0x4] sm:$0xf]
  %v351 = vld [vmem:[%s2 + $0x8] sm:$0xf]
  %v352 = vld [vmem:[%s2 + $0xc] sm:$0xf]
  %v353 = vld [vmem:[%s2 + $0x10] sm:$0xf]
  %v354 = vld [vmem:[%s2 + $0x14] sm:$0xf]
  %v355 = vld [vmem:[%s2 + $0x18] sm:$0xf]
  %v356 = vld [vmem:[%s2 + $0x1c] sm:$0xf]
  %v357 = vld [vmem:[%s5] sm:$0xf]
  %v358 = vld [vmem:[%s5 + $0x4] sm:$0xf]
  %v359 = vld [vmem:[%s5 + $0x8] sm:$0xf]
  %v360 = vld [vmem:[%s5 + $0xc] sm:$0xf]
  %v361 = vld [vmem:[%s5 + $0x10] sm:$0xf]
  %v362 = vld [vmem:[%s5 + $0x14] sm:$0xf]
  %v363 = vld [vmem:[%s5 + $0x18] sm:$0xf]
  %v364 = vld [vmem:[%s5 + $0x1c] sm:$0xf]
  %v365 = vld [vmem:[%s5 + $0x20] sm:$0xf]
  %v366 = vld [vmem:[%s5 + $0x24] sm:$0xf]
  %v367 = vld [vmem:[%s5 + $0x28] sm:$0xf]
  %v368 = vld [vmem:[%s5 + $0x2c] sm:$0xf]
  %v369 = vld [vmem:[%s5 + $0x30] sm:$0xf]
  %v370 = vld [vmem:[%s5 + $0x34] sm:$0xf]
  %v371 = vld [vmem:[%s5 + $0x38] sm:$0xf]
  %v372 = vld [vmem:[%s5 + $0x3c] sm:$0xf]
  %v381 = vunpack.c.l.b16 %v349
  %v382 = vunpack.c.l.b16 %v350
  %v383 = vunpack.c.l.b16 %v351
  %v384 = vunpack.c.l.b16 %v352
  %v385 = vunpack.c.l.b16 %v353
  %v386 = vunpack.c.l.b16 %v354
  %v387 = vunpack.c.l.b16 %v355
  %v388 = vunpack.c.l.b16 %v356
  %v389 = vpack.c.b16 %v382, %v381
  %v390 = vpack.c.b16 %v384, %v383
  %v391 = vpack.c.b16 %v386, %v385
  %v392 = vpack.c.b16 %v388, %v387
  %v413 = vunpack.c.l.b16 %v357
  %v414 = vunpack.c.l.b16 %v358
  %v415 = vunpack.c.l.b16 %v359
  %v416 = vunpack.c.l.b16 %v360
  %v417 = vunpack.c.l.b16 %v361
  %v418 = vunpack.c.l.b16 %v362
  %v419 = vunpack.c.l.b16 %v363
  %v420 = vunpack.c.l.b16 %v364
  %v421 = vunpack.c.l.b16 %v365
  %v422 = vunpack.c.l.b16 %v366
  %v423 = vunpack.c.l.b16 %v367
  %v424 = vunpack.c.l.b16 %v368
  %v425 = vunpack.c.l.b16 %v369
  %v426 = vunpack.c.l.b16 %v370
  %v427 = vunpack.c.l.b16 %v371
  %v428 = vunpack.c.l.b16 %v372
  %v429 = vpack.c.b16 %v414, %v413
  %v430 = vpack.c.b16 %v416, %v415
  %v431 = vpack.c.b16 %v418, %v417
  %v432 = vpack.c.b16 %v420, %v419
  %v433 = vpack.c.b16 %v422, %v421
  %v434 = vpack.c.b16 %v424, %v423
  %v435 = vpack.c.b16 %v426, %v425
  %v436 = vpack.c.b16 %v428, %v427
  %445 = vmatprep.subr.bf16.mxu0 0
  %446 = vmatpush1.bf16.msra.mxu0 %v429
  %447 = vmatprep.subr.bf16.mxu0 0
  %448 = vmatpush1.bf16.msra.mxu0 %v430
  %449 = vmatprep.subr.bf16.mxu0 0
  %450 = vmatpush1.bf16.msra.mxu0 %v431
  %451 = vmatprep.subr.bf16.mxu0 0
  %452 = vmatpush1.bf16.msra.mxu0 %v432
  %453 = vmatprep.subr.bf16.mxu0 0
  %454 = vmatpush1.bf16.msra.mxu0 %v433
  %455 = vmatprep.subr.bf16.mxu0 0
  %456 = vmatpush1.bf16.msra.mxu0 %v434
  %457 = vmatprep.subr.bf16.mxu0 0
  %458 = vmatpush1.bf16.msra.mxu0 %v435
  %459 = vmatprep.subr.bf16.mxu0 0
  %460 = vmatpush1.bf16.msra.mxu0 %v436
  %461 = vmatprep.subr.bf16.mxu0 0
  %462 = vmatpush1.bf16.msra.mxu0 0
  %463 = vmatprep.subr.bf16.mxu0 0
  %464 = vmatpush1.bf16.msra.mxu0 0
  %465 = vmatprep.subr.bf16.mxu0 0
  %466 = vmatpush1.bf16.msra.mxu0 0
  %467 = vmatprep.subr.bf16.mxu0 0
  %468 = vmatpush1.bf16.msra.mxu0 0
  %469 = vmatprep.subr.bf16.mxu0 0
  %470 = vmatpush1.bf16.msra.mxu0 0
  %471 = vmatprep.subr.bf16.mxu0 0
  %472 = vmatpush1.bf16.msra.mxu0 0
  %473 = vmatprep.subr.bf16.mxu0 0
  %474 = vmatpush1.bf16.msra.mxu0 0
  %475 = vmatprep.subr.bf16.mxu0 0
  %476 = vmatpush1.bf16.msra.mxu0 0
  %477 = vmatprep.mubr.bf16.mxu0 0
  %478 = vmatmul.mubr.bf16.gmra.mrb[0].mxu0 %v389
  %v479 = vpop.f32.mrb[0].mxu0
  %v480 = vadd.f32 0.0, %v479
  %v481 = vpop.f32.mrb[0].mxu0
  %v482 = vpop.f32.mrb[0].mxu0
  %v483 = vadd.f32 0.0, %v482
  %v484 = vpop.f32.mrb[0].mxu0
  %485 = vmatprep.mubr.bf16.mxu0 0
  %486 = vmatmul.mubr.bf16.gmra.mrb[0].mxu0 %v390
  %v487 = vpop.f32.mrb[0].mxu0
  %v488 = vadd.f32 0.0, %v487
  %v489 = vpop.f32.mrb[0].mxu0
  %v490 = vpop.f32.mrb[0].mxu0
  %v491 = vadd.f32 0.0, %v490
  %v492 = vpop.f32.mrb[0].mxu0
  %493 = vmatprep.mubr.bf16.mxu0 0
  %494 = vmatmul.mubr.bf16.gmra.mrb[0].mxu0 %v391
  %v495 = vpop.f32.mrb[0].mxu0
  %v496 = vadd.f32 0.0, %v495
  %v497 = vpop.f32.mrb[0].mxu0
  %v498 = vpop.f32.mrb[0].mxu0
  %v499 = vadd.f32 0.0, %v498
  %v500 = vpop.f32.mrb[0].mxu0
  %501 = vmatprep.mubr.bf16.mxu0 0
  %502 = vmatmul.mubr.bf16.gmra.mrb[0].mxu0 %v392
  %v503 = vpop.f32.mrb[0].mxu0
  %v504 = vadd.f32 0.0, %v503
  %v505 = vpop.f32.mrb[0].mxu0
  %v506 = vpop.f32.mrb[0].mxu0
  %v507 = vadd.f32 0.0, %v506
  %v508 = vpop.f32.mrb[0].mxu0
  %509 = vdwg.mxu0
  %v510 = vadd.f32 %v319, %v480
  %v511 = vadd.f32 %v322, %v483
  %v512 = vadd.f32 %v327, %v488
  %v513 = vadd.f32 %v330, %v491
  %v514 = vadd.f32 %v335, %v496
  %v515 = vadd.f32 %v338, %v499
  %v516 = vadd.f32 %v343, %v504
  %v517 = vadd.f32 %v346, %v507
  %v518 = vld [vmem:[%s6] sm:$0x1]
  %v520 = vlaneseq
  %v521 = vshrl.u32 %v520, 7
  %v522 = vsub.s32 0, %v521
  %v523 = vrot.slane %v518, %v522
  %v525 = vadd.f32 %v510, %v523
  %v526 = vadd.f32 %v511, %v523
  %v527 = vadd.f32 %v512, %v523
  %v528 = vadd.f32 %v513, %v523
  %v529 = vadd.f32 %v514, %v523
  %v530 = vadd.f32 %v515, %v523
  %v531 = vadd.f32 %v516, %v523
  %v532 = vadd.f32 %v517, %v523
  %v533 = vmax.f32 %v525, 0.0
  %v534 = vmax.f32 %v526, 0.0
  %v535 = vmax.f32 %v527, 0.0
  %v536 = vmax.f32 %v528, 0.0
  %v537 = vmax.f32 %v529, 0.0
  %v538 = vmax.f32 %v530, 0.0
  %v539 = vmax.f32 %v531, 0.0
  %v540 = vmax.f32 %v532, 0.0
  %541 = vst [vmem:[%s7] sm:$0xff] %v533
  %542 = vst [vmem:[%s7 + $0x8] sm:$0xff] %v534
  %543 = vst [vmem:[%s7 + $0x10] sm:$0xff] %v535
  %544 = vst [vmem:[%s7 + $0x18] sm:$0xff] %v536
  %545 = vst [vmem:[%s7 + $0x20] sm:$0xff] %v537
  %546 = vst [vmem:[%s7 + $0x28] sm:$0xff] %v538
  %547 = vst [vmem:[%s7 + $0x30] sm:$0xff] %v539
  %548 = vst [vmem:[%s7 + $0x38] sm:$0xff] %v540
  // Predicated region
  $region30: #{tmgnn_forward.25} parent=0 // pred_check
    _
  $region31: #{tmgnn_forward.25} parent=0 // pred_check_branch
    %550 = sbr.rel (0) target = $region33
  $region32: #{tmgnn_forward.25} parent=0 // pred_region
    _
  $region33: #{tmgnn_forward.25} parent=0 // pred_fallthru
    _
  // Predicated region
  $region34: #{tmgnn_forward.25} parent=0 // pred_check
    _
  $region35: #{tmgnn_forward.25} parent=0 // pred_check_branch
    %552 = sbr.rel (0) target = $region37
  $region36: #{tmgnn_forward.25} parent=0 // pred_region
    _
  $region37: #{tmgnn_forward.25} parent=0 // pred_fallthru
    _

// kernel: tmgnn_forward.26
$region0: #{tmgnn_forward.26}
  #allocation0 [shape = 'u32[]', space=smem, size = 0x4, offset = 0x4, fixed_abs, tag = 'smem constant byte address 0x4 - core index']
  #allocation1 [shape = 'u32[144,128]{1,0:T(1,128)}', space=vmem, size = 0x12000, scoped, tag = 'internal scratch']
  #allocation2 [shape = 'f32[64,128]{1,0:T(8,128)}', space=vmem, size = 0x8000, scoped, tag = 'scratch operand']
  %s0 = inlined_call_operand.vmem [shape: bf16[64,128], index: 0, kind: input, shape index: {}]
  %s1 = inlined_call_operand.vmem [shape: bf16[128,128], index: 1, kind: input, shape index: {}]
  %s2 = inlined_call_operand.vmem [shape: f32[1,128], index: 2, kind: input, shape index: {}]
  %s3 = inlined_call_operand.vmem [shape: f32[64,128], index: 3, kind: output, shape index: {}]
  %s4 = sld [smem:[#allocation0]]
  $region30: #{tmgnn_forward.26} parent=0
    _
  %s6 = ssub.s32 1, %s4
  %s7 = scalar_select 0, %s6, %s4
  // Predicated region
  $region2: #{tmgnn_forward.26} parent=0 // pred_check
    _
  $region3: #{tmgnn_forward.26} parent=0 // pred_check_branch
    %9 = sbr.rel (0) target = $region5
  $region4: #{tmgnn_forward.26} parent=0 // pred_region
    _
  $region5: #{tmgnn_forward.26} parent=0 // pred_fallthru
    _
  // Predicated region
  $region6: #{tmgnn_forward.26} parent=0 // pred_check
    _
  $region7: #{tmgnn_forward.26} parent=0 // pred_check_branch
    %11 = sbr.rel (0) target = $region9
  $region8: #{tmgnn_forward.26} parent=0 // pred_region
    _
  $region9: #{tmgnn_forward.26} parent=0 // pred_fallthru
    _
  // Predicated region
  $region10: #{tmgnn_forward.26} parent=0 // pred_check
    _
  $region11: #{tmgnn_forward.26} parent=0 // pred_check_branch
    %13 = sbr.rel (0) target = $region13
  $region12: #{tmgnn_forward.26} parent=0 // pred_region
    _
  $region13: #{tmgnn_forward.26} parent=0 // pred_fallthru
    _
  %p15 = scmp.eq.s32.totalorder 0, 0
  // Predicated region
  $region14: #{tmgnn_forward.26} parent=0 // pred_check
    %p16 = pneg %p15
  $region15: #{tmgnn_forward.26} parent=0 // pred_check_branch
    %18 = sbr.rel (%p16) target = $region17
  $region16: #{tmgnn_forward.26} parent=0 // pred_region
    %19 = vst [vmem:[#allocation2] sm:$0xff] 0.0
    %20 = vst [vmem:[#allocation2 + $0x8] sm:$0xff] 0.0
    %21 = vst [vmem:[#allocation2 + $0x10] sm:$0xff] 0.0
    %22 = vst [vmem:[#allocation2 + $0x18] sm:$0xff] 0.0
    %23 = vst [vmem:[#allocation2 + $0x20] sm:$0xff] 0.0
    %24 = vst [vmem:[#allocation2 + $0x28] sm:$0xff] 0.0
    %25 = vst [vmem:[#allocation2 + $0x30] sm:$0xff] 0.0
    %26 = vst [vmem:[#allocation2 + $0x38] sm:$0xff] 0.0
  $region17: #{tmgnn_forward.26} parent=0 // pred_fallthru
    _
  %v27 = vld [vmem:[#allocation2] sm:$0xff]
  %v28 = vld [vmem:[#allocation2 + $0x8] sm:$0xff]
  %v29 = vld [vmem:[#allocation2 + $0x10] sm:$0xff]
  %v30 = vld [vmem:[#allocation2 + $0x18] sm:$0xff]
  %v31 = vld [vmem:[#allocation2 + $0x20] sm:$0xff]
  %v32 = vld [vmem:[#allocation2 + $0x28] sm:$0xff]
  %v33 = vld [vmem:[#allocation2 + $0x30] sm:$0xff]
  %v34 = vld [vmem:[#allocation2 + $0x38] sm:$0xff]
  %v35 = vld [vmem:[%s0] sm:$0xf]
  %v36 = vld [vmem:[%s0 + $0x4] sm:$0xf]
  %v37 = vld [vmem:[%s0 + $0x8] sm:$0xf]
  %v38 = vld [vmem:[%s0 + $0xc] sm:$0xf]
  %v39 = vld [vmem:[%s0 + $0x10] sm:$0xf]
  %v40 = vld [vmem:[%s0 + $0x14] sm:$0xf]
  %v41 = vld [vmem:[%s0 + $0x18] sm:$0xf]
  %v42 = vld [vmem:[%s0 + $0x1c] sm:$0xf]
  %v43 = vld [vmem:[%s1] sm:$0xf]
  %v44 = vld [vmem:[%s1 + $0x4] sm:$0xf]
  %v45 = vld [vmem:[%s1 + $0x8] sm:$0xf]
  %v46 = vld [vmem:[%s1 + $0xc] sm:$0xf]
  %v47 = vld [vmem:[%s1 + $0x10] sm:$0xf]
  %v48 = vld [vmem:[%s1 + $0x14] sm:$0xf]
  %v49 = vld [vmem:[%s1 + $0x18] sm:$0xf]
  %v50 = vld [vmem:[%s1 + $0x1c] sm:$0xf]
  %v51 = vld [vmem:[%s1 + $0x20] sm:$0xf]
  %v52 = vld [vmem:[%s1 + $0x24] sm:$0xf]
  %v53 = vld [vmem:[%s1 + $0x28] sm:$0xf]
  %v54 = vld [vmem:[%s1 + $0x2c] sm:$0xf]
  %v55 = vld [vmem:[%s1 + $0x30] sm:$0xf]
  %v56 = vld [vmem:[%s1 + $0x34] sm:$0xf]
  %v57 = vld [vmem:[%s1 + $0x38] sm:$0xf]
  %v58 = vld [vmem:[%s1 + $0x3c] sm:$0xf]
  %v67 = vunpack.c.l.b16 %v35
  %v68 = vunpack.c.l.b16 %v36
  %v69 = vunpack.c.l.b16 %v37
  %v70 = vunpack.c.l.b16 %v38
  %v71 = vunpack.c.l.b16 %v39
  %v72 = vunpack.c.l.b16 %v40
  %v73 = vunpack.c.l.b16 %v41
  %v74 = vunpack.c.l.b16 %v42
  %v75 = vpack.c.b16 %v68, %v67
  %v76 = vpack.c.b16 %v70, %v69
  %v77 = vpack.c.b16 %v72, %v71
  %v78 = vpack.c.b16 %v74, %v73
  %v99 = vunpack.c.l.b16 %v43
  %v100 = vunpack.c.l.b16 %v44
  %v101 = vunpack.c.l.b16 %v45
  %v102 = vunpack.c.l.b16 %v46
  %v103 = vunpack.c.l.b16 %v47
  %v104 = vunpack.c.l.b16 %v48
  %v105 = vunpack.c.l.b16 %v49
  %v106 = vunpack.c.l.b16 %v50
  %v107 = vunpack.c.l.b16 %v51
  %v108 = vunpack.c.l.b16 %v52
  %v109 = vunpack.c.l.b16 %v53
  %v110 = vunpack.c.l.b16 %v54
  %v111 = vunpack.c.l.b16 %v55
  %v112 = vunpack.c.l.b16 %v56
  %v113 = vunpack.c.l.b16 %v57
  %v114 = vunpack.c.l.b16 %v58
  %v115 = vpack.c.b16 %v100, %v99
  %v116 = vpack.c.b16 %v102, %v101
  %v117 = vpack.c.b16 %v104, %v103
  %v118 = vpack.c.b16 %v106, %v105
  %v119 = vpack.c.b16 %v108, %v107
  %v120 = vpack.c.b16 %v110, %v109
  %v121 = vpack.c.b16 %v112, %v111
  %v122 = vpack.c.b16 %v114, %v113
  %131 = vmatprep.subr.bf16.mxu0 0
  %132 = vmatpush1.bf16.msra.mxu0 %v115
  %133 = vmatprep.subr.bf16.mxu0 0
  %134 = vmatpush1.bf16.msra.mxu0 %v116
  %135 = vmatprep.subr.bf16.mxu0 0
  %136 = vmatpush1.bf16.msra.mxu0 %v117
  %137 = vmatprep.subr.bf16.mxu0 0
  %138 = vmatpush1.bf16.msra.mxu0 %v118
  %139 = vmatprep.subr.bf16.mxu0 0
  %140 = vmatpush1.bf16.msra.mxu0 %v119
  %141 = vmatprep.subr.bf16.mxu0 0
  %142 = vmatpush1.bf16.msra.mxu0 %v120
  %143 = vmatprep.subr.bf16.mxu0 0
  %144 = vmatpush1.bf16.msra.mxu0 %v121
  %145 = vmatprep.subr.bf16.mxu0 0
  %146 = vmatpush1.bf16.msra.mxu0 %v122
  %147 = vmatprep.subr.bf16.mxu0 0
  %148 = vmatpush1.bf16.msra.mxu0 0
  %149 = vmatprep.subr.bf16.mxu0 0
  %150 = vmatpush1.bf16.msra.mxu0 0
  %151 = vmatprep.subr.bf16.mxu0 0
  %152 = vmatpush1.bf16.msra.mxu0 0
  %153 = vmatprep.subr.bf16.mxu0 0
  %154 = vmatpush1.bf16.msra.mxu0 0
  %155 = vmatprep.subr.bf16.mxu0 0
  %156 = vmatpush1.bf16.msra.mxu0 0
  %157 = vmatprep.subr.bf16.mxu0 0
  %158 = vmatpush1.bf16.msra.mxu0 0
  %159 = vmatprep.subr.bf16.mxu0 0
  %160 = vmatpush1.bf16.msra.mxu0 0
  %161 = vmatprep.subr.bf16.mxu0 0
  %162 = vmatpush1.bf16.msra.mxu0 0
  %163 = vmatprep.mubr.bf16.mxu0 0
  %164 = vmatmul.mubr.bf16.gmra.mrb[0].mxu0 %v75
  %v165 = vpop.f32.mrb[0].mxu0
  %v166 = vadd.f32 0.0, %v165
  %v167 = vpop.f32.mrb[0].mxu0
  %v168 = vpop.f32.mrb[0].mxu0
  %v169 = vadd.f32 0.0, %v168
  %v170 = vpop.f32.mrb[0].mxu0
  %171 = vmatprep.mubr.bf16.mxu0 0
  %172 = vmatmul.mubr.bf16.gmra.mrb[0].mxu0 %v76
  %v173 = vpop.f32.mrb[0].mxu0
  %v174 = vadd.f32 0.0, %v173
  %v175 = vpop.f32.mrb[0].mxu0
  %v176 = vpop.f32.mrb[0].mxu0
  %v177 = vadd.f32 0.0, %v176
  %v178 = vpop.f32.mrb[0].mxu0
  %179 = vmatprep.mubr.bf16.mxu0 0
  %180 = vmatmul.mubr.bf16.gmra.mrb[0].mxu0 %v77
  %v181 = vpop.f32.mrb[0].mxu0
  %v182 = vadd.f32 0.0, %v181
  %v183 = vpop.f32.mrb[0].mxu0
  %v184 = vpop.f32.mrb[0].mxu0
  %v185 = vadd.f32 0.0, %v184
  %v186 = vpop.f32.mrb[0].mxu0
  %187 = vmatprep.mubr.bf16.mxu0 0
  %188 = vmatmul.mubr.bf16.gmra.mrb[0].mxu0 %v78
  %v189 = vpop.f32.mrb[0].mxu0
  %v190 = vadd.f32 0.0, %v189
  %v191 = vpop.f32.mrb[0].mxu0
  %v192 = vpop.f32.mrb[0].mxu0
  %v193 = vadd.f32 0.0, %v192
  %v194 = vpop.f32.mrb[0].mxu0
  %195 = vdwg.mxu0
  %v196 = vadd.f32 %v27, %v166
  %v197 = vadd.f32 %v28, %v169
  %v198 = vadd.f32 %v29, %v174
  %v199 = vadd.f32 %v30, %v177
  %v200 = vadd.f32 %v31, %v182
  %v201 = vadd.f32 %v32, %v185
  %v202 = vadd.f32 %v33, %v190
  %v203 = vadd.f32 %v34, %v193
  %204 = vst [vmem:[#allocation2] sm:$0xff] %v196
  %205 = vst [vmem:[#allocation2 + $0x8] sm:$0xff] %v197
  %206 = vst [vmem:[#allocation2 + $0x10] sm:$0xff] %v198
  %207 = vst [vmem:[#allocation2 + $0x18] sm:$0xff] %v199
  %208 = vst [vmem:[#allocation2 + $0x20] sm:$0xff] %v200
  %209 = vst [vmem:[#allocation2 + $0x28] sm:$0xff] %v201
  %210 = vst [vmem:[#allocation2 + $0x30] sm:$0xff] %v202
  %211 = vst [vmem:[#allocation2 + $0x38] sm:$0xff] %v203
  // Predicated region
  $region18: #{tmgnn_forward.26} parent=0 // pred_check
    %p212 = pneg %p15
  $region19: #{tmgnn_forward.26} parent=0 // pred_check_branch
    %214 = sbr.rel (%p212) target = $region21
  $region20: #{tmgnn_forward.26} parent=0 // pred_region
    %v215 = vld [vmem:[#allocation2] sm:$0xff]
    %v216 = vld [vmem:[#allocation2 + $0x8] sm:$0xff]
    %v217 = vld [vmem:[#allocation2 + $0x10] sm:$0xff]
    %v218 = vld [vmem:[#allocation2 + $0x18] sm:$0xff]
    %v219 = vld [vmem:[#allocation2 + $0x20] sm:$0xff]
    %v220 = vld [vmem:[#allocation2 + $0x28] sm:$0xff]
    %v221 = vld [vmem:[#allocation2 + $0x30] sm:$0xff]
    %v222 = vld [vmem:[#allocation2 + $0x38] sm:$0xff]
    %v223 = vld [vmem:[%s2] sm:$0x1]
    %v225 = vlaneseq
    %v226 = vshrl.u32 %v225, 7
    %v227 = vsub.s32 0, %v226
    %v228 = vrot.slane %v223, %v227
    %v230 = vadd.f32 %v215, %v228
    %v231 = vadd.f32 %v216, %v228
    %v232 = vadd.f32 %v217, %v228
    %v233 = vadd.f32 %v218, %v228
    %v234 = vadd.f32 %v219, %v228
    %v235 = vadd.f32 %v220, %v228
    %v236 = vadd.f32 %v221, %v228
    %v237 = vadd.f32 %v222, %v228
    %v238 = vmax.f32 %v230, 0.0
    %v239 = vmax.f32 %v231, 0.0
    %v240 = vmax.f32 %v232, 0.0
    %v241 = vmax.f32 %v233, 0.0
    %v242 = vmax.f32 %v234, 0.0
    %v243 = vmax.f32 %v235, 0.0
    %v244 = vmax.f32 %v236, 0.0
    %v245 = vmax.f32 %v237, 0.0
    %246 = vst [vmem:[%s3] sm:$0xff] %v238
    %247 = vst [vmem:[%s3 + $0x8] sm:$0xff] %v239
    %248 = vst [vmem:[%s3 + $0x10] sm:$0xff] %v240
    %249 = vst [vmem:[%s3 + $0x18] sm:$0xff] %v241
    %250 = vst [vmem:[%s3 + $0x20] sm:$0xff] %v242
    %251 = vst [vmem:[%s3 + $0x28] sm:$0xff] %v243
    %252 = vst [vmem:[%s3 + $0x30] sm:$0xff] %v244
    %253 = vst [vmem:[%s3 + $0x38] sm:$0xff] %v245
  $region21: #{tmgnn_forward.26} parent=0 // pred_fallthru
    _
  // Predicated region
  $region22: #{tmgnn_forward.26} parent=0 // pred_check
    _
  $region23: #{tmgnn_forward.26} parent=0 // pred_check_branch
    %255 = sbr.rel (0) target = $region25
  $region24: #{tmgnn_forward.26} parent=0 // pred_region
    _
  $region25: #{tmgnn_forward.26} parent=0 // pred_fallthru
    _
  // Predicated region
  $region26: #{tmgnn_forward.26} parent=0 // pred_check
    _
  $region27: #{tmgnn_forward.26} parent=0 // pred_check_branch
    %257 = sbr.rel (0) target = $region29
  $region28: #{tmgnn_forward.26} parent=0 // pred_region
    _
  $region29: #{tmgnn_forward.26} parent=0 // pred_fallthru
    _

// kernel: tmgnn_forward.23
$region0: #{tmgnn_forward.23}
  #allocation0 [shape = 'u32[]', space=smem, size = 0x4, offset = 0x4, fixed_abs, tag = 'smem constant byte address 0x4 - core index']
  #allocation1 [shape = 'u32[144,128]{1,0:T(1,128)}', space=vmem, size = 0x12000, scoped, tag = 'internal scratch']
  %s0 = inlined_call_operand.vmem [shape: bf16[64,128], index: 0, kind: input, shape index: {}]
  %s1 = inlined_call_operand.vmem [shape: bf16[128,128], index: 1, kind: input, shape index: {}]
  %s2 = inlined_call_operand.vmem [shape: bf16[128,128], index: 2, kind: input, shape index: {}]
  %s3 = inlined_call_operand.vmem [shape: f32[1,128], index: 3, kind: input, shape index: {}]
  %s4 = inlined_call_operand.vmem [shape: f32[64,128], index: 4, kind: output, shape index: {}]
  %s5 = sld [smem:[#allocation0]]
  $region26: #{tmgnn_forward.23} parent=0
    _
  %s7 = ssub.s32 1, %s5
  %s8 = scalar_select 0, %s7, %s5
  // Predicated region
  $region2: #{tmgnn_forward.23} parent=0 // pred_check
    _
  $region3: #{tmgnn_forward.23} parent=0 // pred_check_branch
    %10 = sbr.rel (0) target = $region5
  $region4: #{tmgnn_forward.23} parent=0 // pred_region
    _
  $region5: #{tmgnn_forward.23} parent=0 // pred_fallthru
    _
  // Predicated region
  $region6: #{tmgnn_forward.23} parent=0 // pred_check
    _
  $region7: #{tmgnn_forward.23} parent=0 // pred_check_branch
    %12 = sbr.rel (0) target = $region9
  $region8: #{tmgnn_forward.23} parent=0 // pred_region
    _
  $region9: #{tmgnn_forward.23} parent=0 // pred_fallthru
    _
  // Predicated region
  $region10: #{tmgnn_forward.23} parent=0 // pred_check
    _
  $region11: #{tmgnn_forward.23} parent=0 // pred_check_branch
    %14 = sbr.rel (0) target = $region13
  $region12: #{tmgnn_forward.23} parent=0 // pred_region
    _
  $region13: #{tmgnn_forward.23} parent=0 // pred_fallthru
    _
  // Predicated region
  $region14: #{tmgnn_forward.23} parent=0 // pred_check
    _
  $region15: #{tmgnn_forward.23} parent=0 // pred_check_branch
    %16 = sbr.rel (0) target = $region17
  $region16: #{tmgnn_forward.23} parent=0 // pred_region
    _
  $region17: #{tmgnn_forward.23} parent=0 // pred_fallthru
    _
  %v18 = vld [vmem:[%s0] sm:$0xf]
  %v19 = vld [vmem:[%s0 + $0x4] sm:$0xf]
  %v20 = vld [vmem:[%s0 + $0x8] sm:$0xf]
  %v21 = vld [vmem:[%s0 + $0xc] sm:$0xf]
  %v22 = vld [vmem:[%s0 + $0x10] sm:$0xf]
  %v23 = vld [vmem:[%s0 + $0x14] sm:$0xf]
  %v24 = vld [vmem:[%s0 + $0x18] sm:$0xf]
  %v25 = vld [vmem:[%s0 + $0x1c] sm:$0xf]
  %v26 = vld [vmem:[%s1] sm:$0xf]
  %v27 = vld [vmem:[%s1 + $0x4] sm:$0xf]
  %v28 = vld [vmem:[%s1 + $0x8] sm:$0xf]
  %v29 = vld [vmem:[%s1 + $0xc] sm:$0xf]
  %v30 = vld [vmem:[%s1 + $0x10] sm:$0xf]
  %v31 = vld [vmem:[%s1 + $0x14] sm:$0xf]
  %v32 = vld [vmem:[%s1 + $0x18] sm:$0xf]
  %v33 = vld [vmem:[%s1 + $0x1c] sm:$0xf]
  %v34 = vld [vmem:[%s1 + $0x20] sm:$0xf]
  %v35 = vld [vmem:[%s1 + $0x24] sm:$0xf]
  %v36 = vld [vmem:[%s1 + $0x28] sm:$0xf]
  %v37 = vld [vmem:[%s1 + $0x2c] sm:$0xf]
  %v38 = vld [vmem:[%s1 + $0x30] sm:$0xf]
  %v39 = vld [vmem:[%s1 + $0x34] sm:$0xf]
  %v40 = vld [vmem:[%s1 + $0x38] sm:$0xf]
  %v41 = vld [vmem:[%s1 + $0x3c] sm:$0xf]
  %v50 = vunpack.c.l.b16 %v18
  %v51 = vunpack.c.l.b16 %v19
  %v52 = vunpack.c.l.b16 %v20
  %v53 = vunpack.c.l.b16 %v21
  %v54 = vunpack.c.l.b16 %v22
  %v55 = vunpack.c.l.b16 %v23
  %v56 = vunpack.c.l.b16 %v24
  %v57 = vunpack.c.l.b16 %v25
  %v58 = vpack.c.b16 %v51, %v50
  %v59 = vpack.c.b16 %v53, %v52
  %v60 = vpack.c.b16 %v55, %v54
  %v61 = vpack.c.b16 %v57, %v56
  %v82 = vunpack.c.l.b16 %v26
  %v83 = vunpack.c.l.b16 %v27
  %v84 = vunpack.c.l.b16 %v28
  %v85 = vunpack.c.l.b16 %v29
  %v86 = vunpack.c.l.b16 %v30
  %v87 = vunpack.c.l.b16 %v31
  %v88 = vunpack.c.l.b16 %v32
  %v89 = vunpack.c.l.b16 %v33
  %v90 = vunpack.c.l.b16 %v34
  %v91 = vunpack.c.l.b16 %v35
  %v92 = vunpack.c.l.b16 %v36
  %v93 = vunpack.c.l.b16 %v37
  %v94 = vunpack.c.l.b16 %v38
  %v95 = vunpack.c.l.b16 %v39
  %v96 = vunpack.c.l.b16 %v40
  %v97 = vunpack.c.l.b16 %v41
  %v98 = vpack.c.b16 %v83, %v82
  %v99 = vpack.c.b16 %v85, %v84
  %v100 = vpack.c.b16 %v87, %v86
  %v101 = vpack.c.b16 %v89, %v88
  %v102 = vpack.c.b16 %v91, %v90
  %v103 = vpack.c.b16 %v93, %v92
  %v104 = vpack.c.b16 %v95, %v94
  %v105 = vpack.c.b16 %v97, %v96
  %114 = vmatprep.subr.bf16.mxu0 0
  %115 = vmatpush1.bf16.msra.mxu0 %v98
  %116 = vmatprep.subr.bf16.mxu0 0
  %117 = vmatpush1.bf16.msra.mxu0 %v99
  %118 = vmatprep.subr.bf16.mxu0 0
  %119 = vmatpush1.bf16.msra.mxu0 %v100
  %120 = vmatprep.subr.bf16.mxu0 0
  %121 = vmatpush1.bf16.msra.mxu0 %v101
  %122 = vmatprep.subr.bf16.mxu0 0
  %123 = vmatpush1.bf16.msra.mxu0 %v102
  %124 = vmatprep.subr.bf16.mxu0 0
  %125 = vmatpush1.bf16.msra.mxu0 %v103
  %126 = vmatprep.subr.bf16.mxu0 0
  %127 = vmatpush1.bf16.msra.mxu0 %v104
  %128 = vmatprep.subr.bf16.mxu0 0
  %129 = vmatpush1.bf16.msra.mxu0 %v105
  %130 = vmatprep.subr.bf16.mxu0 0
  %131 = vmatpush1.bf16.msra.mxu0 0
  %132 = vmatprep.subr.bf16.mxu0 0
  %133 = vmatpush1.bf16.msra.mxu0 0
  %134 = vmatprep.subr.bf16.mxu0 0
  %135 = vmatpush1.bf16.msra.mxu0 0
  %136 = vmatprep.subr.bf16.mxu0 0
  %137 = vmatpush1.bf16.msra.mxu0 0
  %138 = vmatprep.subr.bf16.mxu0 0
  %139 = vmatpush1.bf16.msra.mxu0 0
  %140 = vmatprep.subr.bf16.mxu0 0
  %141 = vmatpush1.bf16.msra.mxu0 0
  %142 = vmatprep.subr.bf16.mxu0 0
  %143 = vmatpush1.bf16.msra.mxu0 0
  %144 = vmatprep.subr.bf16.mxu0 0
  %145 = vmatpush1.bf16.msra.mxu0 0
  %146 = vmatprep.mubr.bf16.mxu0 0
  %147 = vmatmul.mubr.bf16.gmra.mrb[0].mxu0 %v58
  %v148 = vpop.f32.mrb[0].mxu0
  %v149 = vadd.f32 0.0, %v148
  %v150 = vpop.f32.mrb[0].mxu0
  %v151 = vpop.f32.mrb[0].mxu0
  %v152 = vadd.f32 0.0, %v151
  %v153 = vpop.f32.mrb[0].mxu0
  %154 = vmatprep.mubr.bf16.mxu0 0
  %155 = vmatmul.mubr.bf16.gmra.mrb[0].mxu0 %v59
  %v156 = vpop.f32.mrb[0].mxu0
  %v157 = vadd.f32 0.0, %v156
  %v158 = vpop.f32.mrb[0].mxu0
  %v159 = vpop.f32.mrb[0].mxu0
  %v160 = vadd.f32 0.0, %v159
  %v161 = vpop.f32.mrb[0].mxu0
  %162 = vmatprep.mubr.bf16.mxu0 0
  %163 = vmatmul.mubr.bf16.gmra.mrb[0].mxu0 %v60
  %v164 = vpop.f32.mrb[0].mxu0
  %v165 = vadd.f32 0.0, %v164
  %v166 = vpop.f32.mrb[0].mxu0
  %v167 = vpop.f32.mrb[0].mxu0
  %v168 = vadd.f32 0.0, %v167
  %v169 = vpop.f32.mrb[0].mxu0
  %170 = vmatprep.mubr.bf16.mxu0 0
  %171 = vmatmul.mubr.bf16.gmra.mrb[0].mxu0 %v61
  %v172 = vpop.f32.mrb[0].mxu0
  %v173 = vadd.f32 0.0, %v172
  %v174 = vpop.f32.mrb[0].mxu0
  %v175 = vpop.f32.mrb[0].mxu0
  %v176 = vadd.f32 0.0, %v175
  %v177 = vpop.f32.mrb[0].mxu0
  %178 = vdwg.mxu0
  %v179 = vpack.c.bf16 %v152, %v149
  %v180 = vpack.c.bf16 %v160, %v157
  %v181 = vpack.c.bf16 %v168, %v165
  %v182 = vpack.c.bf16 %v176, %v173
  %v183 = vld [vmem:[%s2] sm:$0xf]
  %v184 = vld [vmem:[%s2 + $0x4] sm:$0xf]
  %v185 = vld [vmem:[%s2 + $0x8] sm:$0xf]
  %v186 = vld [vmem:[%s2 + $0xc] sm:$0xf]
  %v187 = vld [vmem:[%s2 + $0x10] sm:$0xf]
  %v188 = vld [vmem:[%s2 + $0x14] sm:$0xf]
  %v189 = vld [vmem:[%s2 + $0x18] sm:$0xf]
  %v190 = vld [vmem:[%s2 + $0x1c] sm:$0xf]
  %v191 = vld [vmem:[%s2 + $0x20] sm:$0xf]
  %v192 = vld [vmem:[%s2 + $0x24] sm:$0xf]
  %v193 = vld [vmem:[%s2 + $0x28] sm:$0xf]
  %v194 = vld [vmem:[%s2 + $0x2c] sm:$0xf]
  %v195 = vld [vmem:[%s2 + $0x30] sm:$0xf]
  %v196 = vld [vmem:[%s2 + $0x34] sm:$0xf]
  %v197 = vld [vmem:[%s2 + $0x38] sm:$0xf]
  %v198 = vld [vmem:[%s2 + $0x3c] sm:$0xf]
  %v199 = vld [vmem:[%s3] sm:$0x1]
  %v201 = vlaneseq
  %v202 = vshrl.u32 %v201, 7
  %v203 = vsub.s32 0, %v202
  %v204 = vrot.slane %v199, %v203
  %v222 = vunpack.c.l.b16 %v183
  %v223 = vunpack.c.l.b16 %v184
  %v224 = vunpack.c.l.b16 %v185
  %v225 = vunpack.c.l.b16 %v186
  %v226 = vunpack.c.l.b16 %v187
  %v227 = vunpack.c.l.b16 %v188
  %v228 = vunpack.c.l.b16 %v189
  %v229 = vunpack.c.l.b16 %v190
  %v230 = vunpack.c.l.b16 %v191
  %v231 = vunpack.c.l.b16 %v192
  %v232 = vunpack.c.l.b16 %v193
  %v233 = vunpack.c.l.b16 %v194
  %v234 = vunpack.c.l.b16 %v195
  %v235 = vunpack.c.l.b16 %v196
  %v236 = vunpack.c.l.b16 %v197
  %v237 = vunpack.c.l.b16 %v198
  %v238 = vpack.c.b16 %v223, %v222
  %v239 = vpack.c.b16 %v225, %v224
  %v240 = vpack.c.b16 %v227, %v226
  %v241 = vpack.c.b16 %v229, %v228
  %v242 = vpack.c.b16 %v231, %v230
  %v243 = vpack.c.b16 %v233, %v232
  %v244 = vpack.c.b16 %v235, %v234
  %v245 = vpack.c.b16 %v237, %v236
  %254 = vmatprep.subr.bf16.mxu0 0
  %255 = vmatpush1.bf16.msra.mxu0 %v238
  %256 = vmatprep.subr.bf16.mxu0 0
  %257 = vmatpush1.bf16.msra.mxu0 %v239
  %258 = vmatprep.subr.bf16.mxu0 0
  %259 = vmatpush1.bf16.msra.mxu0 %v240
  %260 = vmatprep.subr.bf16.mxu0 0
  %261 = vmatpush1.bf16.msra.mxu0 %v241
  %262 = vmatprep.subr.bf16.mxu0 0
  %263 = vmatpush1.bf16.msra.mxu0 %v242
  %264 = vmatprep.subr.bf16.mxu0 0
  %265 = vmatpush1.bf16.msra.mxu0 %v243
  %266 = vmatprep.subr.bf16.mxu0 0
  %267 = vmatpush1.bf16.msra.mxu0 %v244
  %268 = vmatprep.subr.bf16.mxu0 0
  %269 = vmatpush1.bf16.msra.mxu0 %v245
  %270 = vmatprep.subr.bf16.mxu0 0
  %271 = vmatpush1.bf16.msra.mxu0 0
  %272 = vmatprep.subr.bf16.mxu0 0
  %273 = vmatpush1.bf16.msra.mxu0 0
  %274 = vmatprep.subr.bf16.mxu0 0
  %275 = vmatpush1.bf16.msra.mxu0 0
  %276 = vmatprep.subr.bf16.mxu0 0
  %277 = vmatpush1.bf16.msra.mxu0 0
  %278 = vmatprep.subr.bf16.mxu0 0
  %279 = vmatpush1.bf16.msra.mxu0 0
  %280 = vmatprep.subr.bf16.mxu0 0
  %281 = vmatpush1.bf16.msra.mxu0 0
  %282 = vmatprep.subr.bf16.mxu0 0
  %283 = vmatpush1.bf16.msra.mxu0 0
  %284 = vmatprep.subr.bf16.mxu0 0
  %285 = vmatpush1.bf16.msra.mxu0 0
  %286 = vmatprep.mubr.bf16.mxu0 0
  %287 = vmatmul.mubr.bf16.gmra.mrb[0].mxu0 %v179
  %v288 = vpop.f32.mrb[0].mxu0
  %v289 = vadd.f32 %v204, %v288
  %v290 = vpop.f32.mrb[0].mxu0
  %v291 = vpop.f32.mrb[0].mxu0
  %v292 = vadd.f32 %v204, %v291
  %v293 = vpop.f32.mrb[0].mxu0
  %294 = vmatprep.mubr.bf16.mxu0 0
  %295 = vmatmul.mubr.bf16.gmra.mrb[0].mxu0 %v180
  %v296 = vpop.f32.mrb[0].mxu0
  %v297 = vadd.f32 %v204, %v296
  %v298 = vpop.f32.mrb[0].mxu0
  %v299 = vpop.f32.mrb[0].mxu0
  %v300 = vadd.f32 %v204, %v299
  %v301 = vpop.f32.mrb[0].mxu0
  %302 = vmatprep.mubr.bf16.mxu0 0
  %303 = vmatmul.mubr.bf16.gmra.mrb[0].mxu0 %v181
  %v304 = vpop.f32.mrb[0].mxu0
  %v305 = vadd.f32 %v204, %v304
  %v306 = vpop.f32.mrb[0].mxu0
  %v307 = vpop.f32.mrb[0].mxu0
  %v308 = vadd.f32 %v204, %v307
  %v309 = vpop.f32.mrb[0].mxu0
  %310 = vmatprep.mubr.bf16.mxu0 0
  %311 = vmatmul.mubr.bf16.gmra.mrb[0].mxu0 %v182
  %v312 = vpop.f32.mrb[0].mxu0
  %v313 = vadd.f32 %v204, %v312
  %v314 = vpop.f32.mrb[0].mxu0
  %v315 = vpop.f32.mrb[0].mxu0
  %v316 = vadd.f32 %v204, %v315
  %v317 = vpop.f32.mrb[0].mxu0
  %318 = vdwg.mxu0
  %v319 = vmax.f32 %v289, 0.0
  %v320 = vmax.f32 %v292, 0.0
  %v321 = vmax.f32 %v297, 0.0
  %v322 = vmax.f32 %v300, 0.0
  %v323 = vmax.f32 %v305, 0.0
  %v324 = vmax.f32 %v308, 0.0
  %v325 = vmax.f32 %v313, 0.0
  %v326 = vmax.f32 %v316, 0.0
  %v327 = vmul.f32 %v319, 0.999995
  %v328 = vmul.f32 %v320, 0.999995
  %v329 = vmul.f32 %v321, 0.999995
  %v330 = vmul.f32 %v322, 0.999995
  %v331 = vmul.f32 %v323, 0.999995
  %v332 = vmul.f32 %v324, 0.999995
  %v333 = vmul.f32 %v325, 0.999995
  %v334 = vmul.f32 %v326, 0.999995
  %335 = vst [vmem:[%s4] sm:$0xff] %v327
  %336 = vst [vmem:[%s4 + $0x8] sm:$0xff] %v328
  %337 = vst [vmem:[%s4 + $0x10] sm:$0xff] %v329
  %338 = vst [vmem:[%s4 + $0x18] sm:$0xff] %v330
  %339 = vst [vmem:[%s4 + $0x20] sm:$0xff] %v331
  %340 = vst [vmem:[%s4 + $0x28] sm:$0xff] %v332
  %341 = vst [vmem:[%s4 + $0x30] sm:$0xff] %v333
  %342 = vst [vmem:[%s4 + $0x38] sm:$0xff] %v334
  // Predicated region
  $region18: #{tmgnn_forward.23} parent=0 // pred_check
    _
  $region19: #{tmgnn_forward.23} parent=0 // pred_check_branch
    %344 = sbr.rel (0) target = $region21
  $region20: #{tmgnn_forward.23} parent=0 // pred_region
    _
  $region21: #{tmgnn_forward.23} parent=0 // pred_fallthru
    _
  // Predicated region
  $region22: #{tmgnn_forward.23} parent=0 // pred_check
    _
  $region23: #{tmgnn_forward.23} parent=0 // pred_check_branch
    %346 = sbr.rel (0) target = $region25
  $region24: #{tmgnn_forward.23} parent=0 // pred_region
    _
  $region25: #{tmgnn_forward.23} parent=0 // pred_fallthru
    _

// kernel: tmgnn_forward.27
$region0: #{tmgnn_forward.27}
  #allocation0 [shape = 'u32[]', space=smem, size = 0x4, offset = 0x4, fixed_abs, tag = 'smem constant byte address 0x4 - core index']
  #allocation1 [shape = 'u32[144,128]{1,0:T(1,128)}', space=vmem, size = 0x12000, scoped, tag = 'internal scratch']
  #allocation2 [shape = 'f32[64,128]{1,0:T(8,128)}', space=vmem, size = 0x8000, scoped, tag = 'scratch operand']
  %s0 = inlined_call_operand.vmem [shape: bf16[64,128], index: 0, kind: input, shape index: {}]
  %s1 = inlined_call_operand.vmem [shape: bf16[128,128], index: 1, kind: input, shape index: {}]
  %s2 = inlined_call_operand.vmem [shape: f32[1,128], index: 2, kind: input, shape index: {}]
  %s3 = inlined_call_operand.vmem [shape: f32[64,128], index: 3, kind: output, shape index: {}]
  %s4 = sld [smem:[#allocation0]]
  $region30: #{tmgnn_forward.27} parent=0
    _
  %s6 = ssub.s32 1, %s4
  %s7 = scalar_select 0, %s6, %s4
  // Predicated region
  $region2: #{tmgnn_forward.27} parent=0 // pred_check
    _
  $region3: #{tmgnn_forward.27} parent=0 // pred_check_branch
    %9 = sbr.rel (0) target = $region5
  $region4: #{tmgnn_forward.27} parent=0 // pred_region
    _
  $region5: #{tmgnn_forward.27} parent=0 // pred_fallthru
    _
  // Predicated region
  $region6: #{tmgnn_forward.27} parent=0 // pred_check
    _
  $region7: #{tmgnn_forward.27} parent=0 // pred_check_branch
    %11 = sbr.rel (0) target = $region9
  $region8: #{tmgnn_forward.27} parent=0 // pred_region
    _
  $region9: #{tmgnn_forward.27} parent=0 // pred_fallthru
    _
  // Predicated region
  $region10: #{tmgnn_forward.27} parent=0 // pred_check
    _
  $region11: #{tmgnn_forward.27} parent=0 // pred_check_branch
    %13 = sbr.rel (0) target = $region13
  $region12: #{tmgnn_forward.27} parent=0 // pred_region
    _
  $region13: #{tmgnn_forward.27} parent=0 // pred_fallthru
    _
  %p15 = scmp.eq.s32.totalorder 0, 0
  // Predicated region
  $region14: #{tmgnn_forward.27} parent=0 // pred_check
    %p16 = pneg %p15
  $region15: #{tmgnn_forward.27} parent=0 // pred_check_branch
    %18 = sbr.rel (%p16) target = $region17
  $region16: #{tmgnn_forward.27} parent=0 // pred_region
    %19 = vst [vmem:[#allocation2] sm:$0xff] 0.0
    %20 = vst [vmem:[#allocation2 + $0x8] sm:$0xff] 0.0
    %21 = vst [vmem:[#allocation2 + $0x10] sm:$0xff] 0.0
    %22 = vst [vmem:[#allocation2 + $0x18] sm:$0xff] 0.0
    %23 = vst [vmem:[#allocation2 + $0x20] sm:$0xff] 0.0
    %24 = vst [vmem:[#allocation2 + $0x28] sm:$0xff] 0.0
    %25 = vst [vmem:[#allocation2 + $0x30] sm:$0xff] 0.0
    %26 = vst [vmem:[#allocation2 + $0x38] sm:$0xff] 0.0
  $region17: #{tmgnn_forward.27} parent=0 // pred_fallthru
    _
  %v27 = vld [vmem:[#allocation2] sm:$0xff]
  %v28 = vld [vmem:[#allocation2 + $0x8] sm:$0xff]
  %v29 = vld [vmem:[#allocation2 + $0x10] sm:$0xff]
  %v30 = vld [vmem:[#allocation2 + $0x18] sm:$0xff]
  %v31 = vld [vmem:[#allocation2 + $0x20] sm:$0xff]
  %v32 = vld [vmem:[#allocation2 + $0x28] sm:$0xff]
  %v33 = vld [vmem:[#allocation2 + $0x30] sm:$0xff]
  %v34 = vld [vmem:[#allocation2 + $0x38] sm:$0xff]
  %v35 = vld [vmem:[%s0] sm:$0xf]
  %v36 = vld [vmem:[%s0 + $0x4] sm:$0xf]
  %v37 = vld [vmem:[%s0 + $0x8] sm:$0xf]
  %v38 = vld [vmem:[%s0 + $0xc] sm:$0xf]
  %v39 = vld [vmem:[%s0 + $0x10] sm:$0xf]
  %v40 = vld [vmem:[%s0 + $0x14] sm:$0xf]
  %v41 = vld [vmem:[%s0 + $0x18] sm:$0xf]
  %v42 = vld [vmem:[%s0 + $0x1c] sm:$0xf]
  %v43 = vld [vmem:[%s1] sm:$0xf]
  %v44 = vld [vmem:[%s1 + $0x4] sm:$0xf]
  %v45 = vld [vmem:[%s1 + $0x8] sm:$0xf]
  %v46 = vld [vmem:[%s1 + $0xc] sm:$0xf]
  %v47 = vld [vmem:[%s1 + $0x10] sm:$0xf]
  %v48 = vld [vmem:[%s1 + $0x14] sm:$0xf]
  %v49 = vld [vmem:[%s1 + $0x18] sm:$0xf]
  %v50 = vld [vmem:[%s1 + $0x1c] sm:$0xf]
  %v51 = vld [vmem:[%s1 + $0x20] sm:$0xf]
  %v52 = vld [vmem:[%s1 + $0x24] sm:$0xf]
  %v53 = vld [vmem:[%s1 + $0x28] sm:$0xf]
  %v54 = vld [vmem:[%s1 + $0x2c] sm:$0xf]
  %v55 = vld [vmem:[%s1 + $0x30] sm:$0xf]
  %v56 = vld [vmem:[%s1 + $0x34] sm:$0xf]
  %v57 = vld [vmem:[%s1 + $0x38] sm:$0xf]
  %v58 = vld [vmem:[%s1 + $0x3c] sm:$0xf]
  %v67 = vunpack.c.l.b16 %v35
  %v68 = vunpack.c.l.b16 %v36
  %v69 = vunpack.c.l.b16 %v37
  %v70 = vunpack.c.l.b16 %v38
  %v71 = vunpack.c.l.b16 %v39
  %v72 = vunpack.c.l.b16 %v40
  %v73 = vunpack.c.l.b16 %v41
  %v74 = vunpack.c.l.b16 %v42
  %v75 = vpack.c.b16 %v68, %v67
  %v76 = vpack.c.b16 %v70, %v69
  %v77 = vpack.c.b16 %v72, %v71
  %v78 = vpack.c.b16 %v74, %v73
  %v99 = vunpack.c.l.b16 %v43
  %v100 = vunpack.c.l.b16 %v44
  %v101 = vunpack.c.l.b16 %v45
  %v102 = vunpack.c.l.b16 %v46
  %v103 = vunpack.c.l.b16 %v47
  %v104 = vunpack.c.l.b16 %v48
  %v105 = vunpack.c.l.b16 %v49
  %v106 = vunpack.c.l.b16 %v50
  %v107 = vunpack.c.l.b16 %v51
  %v108 = vunpack.c.l.b16 %v52
  %v109 = vunpack.c.l.b16 %v53
  %v110 = vunpack.c.l.b16 %v54
  %v111 = vunpack.c.l.b16 %v55
  %v112 = vunpack.c.l.b16 %v56
  %v113 = vunpack.c.l.b16 %v57
  %v114 = vunpack.c.l.b16 %v58
  %v115 = vpack.c.b16 %v100, %v99
  %v116 = vpack.c.b16 %v102, %v101
  %v117 = vpack.c.b16 %v104, %v103
  %v118 = vpack.c.b16 %v106, %v105
  %v119 = vpack.c.b16 %v108, %v107
  %v120 = vpack.c.b16 %v110, %v109
  %v121 = vpack.c.b16 %v112, %v111
  %v122 = vpack.c.b16 %v114, %v113
  %131 = vmatprep.subr.bf16.mxu0 0
  %132 = vmatpush1.bf16.msra.mxu0 %v115
  %133 = vmatprep.subr.bf16.mxu0 0
  %134 = vmatpush1.bf16.msra.mxu0 %v116
  %135 = vmatprep.subr.bf16.mxu0 0
  %136 = vmatpush1.bf16.msra.mxu0 %v117
  %137 = vmatprep.subr.bf16.mxu0 0
  %138 = vmatpush1.bf16.msra.mxu0 %v118
  %139 = vmatprep.subr.bf16.mxu0 0
  %140 = vmatpush1.bf16.msra.mxu0 %v119
  %141 = vmatprep.subr.bf16.mxu0 0
  %142 = vmatpush1.bf16.msra.mxu0 %v120
  %143 = vmatprep.subr.bf16.mxu0 0
  %144 = vmatpush1.bf16.msra.mxu0 %v121
  %145 = vmatprep.subr.bf16.mxu0 0
  %146 = vmatpush1.bf16.msra.mxu0 %v122
  %147 = vmatprep.subr.bf16.mxu0 0
  %148 = vmatpush1.bf16.msra.mxu0 0
  %149 = vmatprep.subr.bf16.mxu0 0
  %150 = vmatpush1.bf16.msra.mxu0 0
  %151 = vmatprep.subr.bf16.mxu0 0
  %152 = vmatpush1.bf16.msra.mxu0 0
  %153 = vmatprep.subr.bf16.mxu0 0
  %154 = vmatpush1.bf16.msra.mxu0 0
  %155 = vmatprep.subr.bf16.mxu0 0
  %156 = vmatpush1.bf16.msra.mxu0 0
  %157 = vmatprep.subr.bf16.mxu0 0
  %158 = vmatpush1.bf16.msra.mxu0 0
  %159 = vmatprep.subr.bf16.mxu0 0
  %160 = vmatpush1.bf16.msra.mxu0 0
  %161 = vmatprep.subr.bf16.mxu0 0
  %162 = vmatpush1.bf16.msra.mxu0 0
  %163 = vmatprep.mubr.bf16.mxu0 0
  %164 = vmatmul.mubr.bf16.gmra.mrb[0].mxu0 %v75
  %v165 = vpop.f32.mrb[0].mxu0
  %v166 = vadd.f32 0.0, %v165
  %v167 = vpop.f32.mrb[0].mxu0
  %v168 = vpop.f32.mrb[0].mxu0
  %v169 = vadd.f32 0.0, %v168
  %v170 = vpop.f32.mrb[0].mxu0
  %171 = vmatprep.mubr.bf16.mxu0 0
  %172 = vmatmul.mubr.bf16.gmra.mrb[0].mxu0 %v76
  %v173 = vpop.f32.mrb[0].mxu0
  %v174 = vadd.f32 0.0, %v173
  %v175 = vpop.f32.mrb[0].mxu0
  %v176 = vpop.f32.mrb[0].mxu0
  %v177 = vadd.f32 0.0, %v176
  %v178 = vpop.f32.mrb[0].mxu0
  %179 = vmatprep.mubr.bf16.mxu0 0
  %180 = vmatmul.mubr.bf16.gmra.mrb[0].mxu0 %v77
  %v181 = vpop.f32.mrb[0].mxu0
  %v182 = vadd.f32 0.0, %v181
  %v183 = vpop.f32.mrb[0].mxu0
  %v184 = vpop.f32.mrb[0].mxu0
  %v185 = vadd.f32 0.0, %v184
  %v186 = vpop.f32.mrb[0].mxu0
  %187 = vmatprep.mubr.bf16.mxu0 0
  %188 = vmatmul.mubr.bf16.gmra.mrb[0].mxu0 %v78
  %v189 = vpop.f32.mrb[0].mxu0
  %v190 = vadd.f32 0.0, %v189
  %v191 = vpop.f32.mrb[0].mxu0
  %v192 = vpop.f32.mrb[0].mxu0
  %v193 = vadd.f32 0.0, %v192
  %v194 = vpop.f32.mrb[0].mxu0
  %195 = vdwg.mxu0
  %v196 = vadd.f32 %v27, %v166
  %v197 = vadd.f32 %v28, %v169
  %v198 = vadd.f32 %v29, %v174
  %v199 = vadd.f32 %v30, %v177
  %v200 = vadd.f32 %v31, %v182
  %v201 = vadd.f32 %v32, %v185
  %v202 = vadd.f32 %v33, %v190
  %v203 = vadd.f32 %v34, %v193
  %204 = vst [vmem:[#allocation2] sm:$0xff] %v196
  %205 = vst [vmem:[#allocation2 + $0x8] sm:$0xff] %v197
  %206 = vst [vmem:[#allocation2 + $0x10] sm:$0xff] %v198
  %207 = vst [vmem:[#allocation2 + $0x18] sm:$0xff] %v199
  %208 = vst [vmem:[#allocation2 + $0x20] sm:$0xff] %v200
  %209 = vst [vmem:[#allocation2 + $0x28] sm:$0xff] %v201
  %210 = vst [vmem:[#allocation2 + $0x30] sm:$0xff] %v202
  %211 = vst [vmem:[#allocation2 + $0x38] sm:$0xff] %v203
  // Predicated region
  $region18: #{tmgnn_forward.27} parent=0 // pred_check
    %p212 = pneg %p15
  $region19: #{tmgnn_forward.27} parent=0 // pred_check_branch
    %214 = sbr.rel (%p212) target = $region21
  $region20: #{tmgnn_forward.27} parent=0 // pred_region
    %v215 = vld [vmem:[#allocation2] sm:$0xff]
    %v216 = vld [vmem:[#allocation2 + $0x8] sm:$0xff]
    %v217 = vld [vmem:[#allocation2 + $0x10] sm:$0xff]
    %v218 = vld [vmem:[#allocation2 + $0x18] sm:$0xff]
    %v219 = vld [vmem:[#allocation2 + $0x20] sm:$0xff]
    %v220 = vld [vmem:[#allocation2 + $0x28] sm:$0xff]
    %v221 = vld [vmem:[#allocation2 + $0x30] sm:$0xff]
    %v222 = vld [vmem:[#allocation2 + $0x38] sm:$0xff]
    %v223 = vld [vmem:[%s2] sm:$0x1]
    %v225 = vlaneseq
    %v226 = vshrl.u32 %v225, 7
    %v227 = vsub.s32 0, %v226
    %v228 = vrot.slane %v223, %v227
    %v230 = vadd.f32 %v215, %v228
    %v231 = vadd.f32 %v216, %v228
    %v232 = vadd.f32 %v217, %v228
    %v233 = vadd.f32 %v218, %v228
    %v234 = vadd.f32 %v219, %v228
    %v235 = vadd.f32 %v220, %v228
    %v236 = vadd.f32 %v221, %v228
    %v237 = vadd.f32 %v222, %v228
    %238 = vst [vmem:[%s3] sm:$0xff] %v230
    %239 = vst [vmem:[%s3 + $0x8] sm:$0xff] %v231
    %240 = vst [vmem:[%s3 + $0x10] sm:$0xff] %v232
    %241 = vst [vmem:[%s3 + $0x18] sm:$0xff] %v233
    %242 = vst [vmem:[%s3 + $0x20] sm:$0xff] %v234
    %243 = vst [vmem:[%s3 + $0x28] sm:$0xff] %v235
    %244 = vst [vmem:[%s3 + $0x30] sm:$0xff] %v236
    %245 = vst [vmem:[%s3 + $0x38] sm:$0xff] %v237
  $region21: #{tmgnn_forward.27} parent=0 // pred_fallthru
    _
  // Predicated region
  $region22: #{tmgnn_forward.27} parent=0 // pred_check
    _
  $region23: #{tmgnn_forward.27} parent=0 // pred_check_branch
    %247 = sbr.rel (0) target = $region25
  $region24: #{tmgnn_forward.27} parent=0 // pred_region
    _
  $region25: #{tmgnn_forward.27} parent=0 // pred_fallthru
    _
  // Predicated region
  $region26: #{tmgnn_forward.27} parent=0 // pred_check
    _
  $region27: #{tmgnn_forward.27} parent=0 // pred_check_branch
    %249 = sbr.rel (0) target = $region29
  $region28: #{tmgnn_forward.27} parent=0 // pred_region
    _
  $region29: #{tmgnn_forward.27} parent=0 // pred_fallthru
    _

// kernel: tmgnn_forward.28
$region0: #{tmgnn_forward.28}
  #allocation0 [shape = 'u32[]', space=smem, size = 0x4, offset = 0x4, fixed_abs, tag = 'smem constant byte address 0x4 - core index']
  #allocation1 [shape = 'u32[144,128]{1,0:T(1,128)}', space=vmem, size = 0x12000, scoped, tag = 'internal scratch']
  %s0 = inlined_call_operand.vmem [shape: bf16[128,128], index: 0, kind: input, shape index: {}, may-alias: {0,2}]
  %s1 = inlined_call_operand.vmem [shape: bf16[128,128], index: 1, kind: input, shape index: {}]
  %s2 = inlined_call_operand.vmem [shape: bf16[128,128], index: 2, kind: input, shape index: {}, may-alias: {0,2}]
  %s3 = inlined_call_operand.vmem [shape: f32[1,128], index: 3, kind: input, shape index: {}]
  %s4 = inlined_call_operand.vmem [shape: f32[128,128], index: 4, kind: output, shape index: {}]
  %s5 = sld [smem:[#allocation0]]
  $region26: #{tmgnn_forward.28} parent=0
    _
  %s7 = ssub.s32 1, %s5
  %s8 = scalar_select 0, %s7, %s5
  // Predicated region
  $region2: #{tmgnn_forward.28} parent=0 // pred_check
    _
  $region3: #{tmgnn_forward.28} parent=0 // pred_check_branch
    %10 = sbr.rel (0) target = $region5
  $region4: #{tmgnn_forward.28} parent=0 // pred_region
    _
  $region5: #{tmgnn_forward.28} parent=0 // pred_fallthru
    _
  // Predicated region
  $region6: #{tmgnn_forward.28} parent=0 // pred_check
    _
  $region7: #{tmgnn_forward.28} parent=0 // pred_check_branch
    %12 = sbr.rel (0) target = $region9
  $region8: #{tmgnn_forward.28} parent=0 // pred_region
    _
  $region9: #{tmgnn_forward.28} parent=0 // pred_fallthru
    _
  // Predicated region
  $region10: #{tmgnn_forward.28} parent=0 // pred_check
    _
  $region11: #{tmgnn_forward.28} parent=0 // pred_check_branch
    %14 = sbr.rel (0) target = $region13
  $region12: #{tmgnn_forward.28} parent=0 // pred_region
    _
  $region13: #{tmgnn_forward.28} parent=0 // pred_fallthru
    _
  // Predicated region
  $region14: #{tmgnn_forward.28} parent=0 // pred_check
    _
  $region15: #{tmgnn_forward.28} parent=0 // pred_check_branch
    %16 = sbr.rel (0) target = $region17
  $region16: #{tmgnn_forward.28} parent=0 // pred_region
    _
  $region17: #{tmgnn_forward.28} parent=0 // pred_fallthru
    _
  %v18 = vld [vmem:[%s0] sm:$0xf]
  %v19 = vld [vmem:[%s0 + $0x4] sm:$0xf]
  %v20 = vld [vmem:[%s0 + $0x8] sm:$0xf]
  %v21 = vld [vmem:[%s0 + $0xc] sm:$0xf]
  %v22 = vld [vmem:[%s0 + $0x10] sm:$0xf]
  %v23 = vld [vmem:[%s0 + $0x14] sm:$0xf]
  %v24 = vld [vmem:[%s0 + $0x18] sm:$0xf]
  %v25 = vld [vmem:[%s0 + $0x1c] sm:$0xf]
  %v26 = vld [vmem:[%s0 + $0x20] sm:$0xf]
  %v27 = vld [vmem:[%s0 + $0x24] sm:$0xf]
  %v28 = vld [vmem:[%s0 + $0x28] sm:$0xf]
  %v29 = vld [vmem:[%s0 + $0x2c] sm:$0xf]
  %v30 = vld [vmem:[%s0 + $0x30] sm:$0xf]
  %v31 = vld [vmem:[%s0 + $0x34] sm:$0xf]
  %v32 = vld [vmem:[%s0 + $0x38] sm:$0xf]
  %v33 = vld [vmem:[%s0 + $0x3c] sm:$0xf]
  %v34 = vld [vmem:[%s1] sm:$0xf]
  %v35 = vld [vmem:[%s1 + $0x4] sm:$0xf]
  %v36 = vld [vmem:[%s1 + $0x8] sm:$0xf]
  %v37 = vld [vmem:[%s1 + $0xc] sm:$0xf]
  %v38 = vld [vmem:[%s1 + $0x10] sm:$0xf]
  %v39 = vld [vmem:[%s1 + $0x14] sm:$0xf]
  %v40 = vld [vmem:[%s1 + $0x18] sm:$0xf]
  %v41 = vld [vmem:[%s1 + $0x1c] sm:$0xf]
  %v42 = vld [vmem:[%s1 + $0x20] sm:$0xf]
  %v43 = vld [vmem:[%s1 + $0x24] sm:$0xf]
  %v44 = vld [vmem:[%s1 + $0x28] sm:$0xf]
  %v45 = vld [vmem:[%s1 + $0x2c] sm:$0xf]
  %v46 = vld [vmem:[%s1 + $0x30] sm:$0xf]
  %v47 = vld [vmem:[%s1 + $0x34] sm:$0xf]
  %v48 = vld [vmem:[%s1 + $0x38] sm:$0xf]
  %v49 = vld [vmem:[%s1 + $0x3c] sm:$0xf]
  %v66 = vunpack.c.l.b16 %v18
  %v67 = vunpack.c.l.b16 %v19
  %v68 = vunpack.c.l.b16 %v20
  %v69 = vunpack.c.l.b16 %v21
  %v70 = vunpack.c.l.b16 %v22
  %v71 = vunpack.c.l.b16 %v23
  %v72 = vunpack.c.l.b16 %v24
  %v73 = vunpack.c.l.b16 %v25
  %v74 = vunpack.c.l.b16 %v26
  %v75 = vunpack.c.l.b16 %v27
  %v76 = vunpack.c.l.b16 %v28
  %v77 = vunpack.c.l.b16 %v29
  %v78 = vunpack.c.l.b16 %v30
  %v79 = vunpack.c.l.b16 %v31
  %v80 = vunpack.c.l.b16 %v32
  %v81 = vunpack.c.l.b16 %v33
  %v82 = vpack.c.b16 %v67, %v66
  %v83 = vpack.c.b16 %v69, %v68
  %v84 = vpack.c.b16 %v71, %v70
  %v85 = vpack.c.b16 %v73, %v72
  %v86 = vpack.c.b16 %v75, %v74
  %v87 = vpack.c.b16 %v77, %v76
  %v88 = vpack.c.b16 %v79, %v78
  %v89 = vpack.c.b16 %v81, %v80
  %98 = vxpose.xlu0.c.b16.start [1/8] %v82, 128
  %99 = vxpose.xlu0.c.b16.cont [2/8] %v83, 128
  %100 = vxpose.xlu0.c.b16.cont [3/8] %v84, 128
  %101 = vxpose.xlu0.c.b16.cont [4/8] %v85, 128
  %102 = vxpose.xlu0.c.b16.cont [5/8] %v86, 128
  %103 = vxpose.xlu0.c.b16.cont [6/8] %v87, 128
  %104 = vxpose.xlu0.c.b16.cont [7/8] %v88, 128
  %105 = vxpose.xlu0.c.b16.end [8/8] %v89, 128
  %v106 = vpop.trf.xlu0
  %v107 = vpop.trf.xlu0
  %v108 = vpop.trf.xlu0
  %v109 = vpop.trf.xlu0
  %v110 = vpop.trf.xlu0
  %v111 = vpop.trf.xlu0
  %v112 = vpop.trf.xlu0
  %v113 = vpop.trf.xlu0
  %v130 = vunpack.c.l.b16 %v34
  %v131 = vunpack.c.l.b16 %v35
  %v132 = vunpack.c.l.b16 %v36
  %v133 = vunpack.c.l.b16 %v37
  %v134 = vunpack.c.l.b16 %v38
  %v135 = vunpack.c.l.b16 %v39
  %v136 = vunpack.c.l.b16 %v40
  %v137 = vunpack.c.l.b16 %v41
  %v138 = vunpack.c.l.b16 %v42
  %v139 = vunpack.c.l.b16 %v43
  %v140 = vunpack.c.l.b16 %v44
  %v141 = vunpack.c.l.b16 %v45
  %v142 = vunpack.c.l.b16 %v46
  %v143 = vunpack.c.l.b16 %v47
  %v144 = vunpack.c.l.b16 %v48
  %v145 = vunpack.c.l.b16 %v49
  %v146 = vpack.c.b16 %v131, %v130
  %v147 = vpack.c.b16 %v133, %v132
  %v148 = vpack.c.b16 %v135, %v134
  %v149 = vpack.c.b16 %v137, %v136
  %v150 = vpack.c.b16 %v139, %v138
  %v151 = vpack.c.b16 %v141, %v140
  %v152 = vpack.c.b16 %v143, %v142
  %v153 = vpack.c.b16 %v145, %v144
  %162 = vmatprep.subr.bf16.mxu0 0
  %163 = vmatpush1.bf16.msra.mxu0 %v146
  %164 = vmatprep.subr.bf16.mxu0 0
  %165 = vmatpush1.bf16.msra.mxu0 %v147
  %166 = vmatprep.subr.bf16.mxu0 0
  %167 = vmatpush1.bf16.msra.mxu0 %v148
  %168 = vmatprep.subr.bf16.mxu0 0
  %169 = vmatpush1.bf16.msra.mxu0 %v149
  %170 = vmatprep.subr.bf16.mxu0 0
  %171 = vmatpush1.bf16.msra.mxu0 %v150
  %172 = vmatprep.subr.bf16.mxu0 0
  %173 = vmatpush1.bf16.msra.mxu0 %v151
  %174 = vmatprep.subr.bf16.mxu0 0
  %175 = vmatpush1.bf16.msra.mxu0 %v152
  %176 = vmatprep.subr.bf16.mxu0 0
  %177 = vmatpush1.bf16.msra.mxu0 %v153
  %178 = vmatprep.subr.bf16.mxu0 0
  %179 = vmatpush1.bf16.msra.mxu0 0
  %180 = vmatprep.subr.bf16.mxu0 0
  %181 = vmatpush1.bf16.msra.mxu0 0
  %182 = vmatprep.subr.bf16.mxu0 0
  %183 = vmatpush1.bf16.msra.mxu0 0
  %184 = vmatprep.subr.bf16.mxu0 0
  %185 = vmatpush1.bf16.msra.mxu0 0
  %186 = vmatprep.subr.bf16.mxu0 0
  %187 = vmatpush1.bf16.msra.mxu0 0
  %188 = vmatprep.subr.bf16.mxu0 0
  %189 = vmatpush1.bf16.msra.mxu0 0
  %190 = vmatprep.subr.bf16.mxu0 0
  %191 = vmatpush1.bf16.msra.mxu0 0
  %192 = vmatprep.subr.bf16.mxu0 0
  %193 = vmatpush1.bf16.msra.mxu0 0
  %194 = vmatprep.mubr.bf16.mxu0 0
  %195 = vmatmul.mubr.bf16.gmra.mrb[0].mxu0 %v106
  %v196 = vpop.f32.mrb[0].mxu0
  %v197 = vadd.f32 0.0, %v196
  %v198 = vpop.f32.mrb[0].mxu0
  %v199 = vpop.f32.mrb[0].mxu0
  %v200 = vadd.f32 0.0, %v199
  %v201 = vpop.f32.mrb[0].mxu0
  %202 = vmatprep.mubr.bf16.mxu0 0
  %203 = vmatmul.mubr.bf16.gmra.mrb[0].mxu0 %v107
  %v204 = vpop.f32.mrb[0].mxu0
  %v205 = vadd.f32 0.0, %v204
  %v206 = vpop.f32.mrb[0].mxu0
  %v207 = vpop.f32.mrb[0].mxu0
  %v208 = vadd.f32 0.0, %v207
  %v209 = vpop.f32.mrb[0].mxu0
  %210 = vmatprep.mubr.bf16.mxu0 0
  %211 = vmatmul.mubr.bf16.gmra.mrb[0].mxu0 %v108
  %v212 = vpop.f32.mrb[0].mxu0
  %v213 = vadd.f32 0.0, %v212
  %v214 = vpop.f32.mrb[0].mxu0
  %v215 = vpop.f32.mrb[0].mxu0
  %v216 = vadd.f32 0.0, %v215
  %v217 = vpop.f32.mrb[0].mxu0
  %218 = vmatprep.mubr.bf16.mxu0 0
  %219 = vmatmul.mubr.bf16.gmra.mrb[0].mxu0 %v109
  %v220 = vpop.f32.mrb[0].mxu0
  %v221 = vadd.f32 0.0, %v220
  %v222 = vpop.f32.mrb[0].mxu0
  %v223 = vpop.f32.mrb[0].mxu0
  %v224 = vadd.f32 0.0, %v223
  %v225 = vpop.f32.mrb[0].mxu0
  %226 = vmatprep.mubr.bf16.mxu0 0
  %227 = vmatmul.mubr.bf16.gmra.mrb[0].mxu0 %v110
  %v228 = vpop.f32.mrb[0].mxu0
  %v229 = vadd.f32 0.0, %v228
  %v230 = vpop.f32.mrb[0].mxu0
  %v231 = vpop.f32.mrb[0].mxu0
  %v232 = vadd.f32 0.0, %v231
  %v233 = vpop.f32.mrb[0].mxu0
  %234 = vmatprep.mubr.bf16.mxu0 0
  %235 = vmatmul.mubr.bf16.gmra.mrb[0].mxu0 %v111
  %v236 = vpop.f32.mrb[0].mxu0
  %v237 = vadd.f32 0.0, %v236
  %v238 = vpop.f32.mrb[0].mxu0
  %v239 = vpop.f32.mrb[0].mxu0
  %v240 = vadd.f32 0.0, %v239
  %v241 = vpop.f32.mrb[0].mxu0
  %242 = vmatprep.mubr.bf16.mxu0 0
  %243 = vmatmul.mubr.bf16.gmra.mrb[0].mxu0 %v112
  %v244 = vpop.f32.mrb[0].mxu0
  %v245 = vadd.f32 0.0, %v244
  %v246 = vpop.f32.mrb[0].mxu0
  %v247 = vpop.f32.mrb[0].mxu0
  %v248 = vadd.f32 0.0, %v247
  %v249 = vpop.f32.mrb[0].mxu0
  %250 = vmatprep.mubr.bf16.mxu0 0
  %251 = vmatmul.mubr.bf16.gmra.mrb[0].mxu0 %v113
  %v252 = vpop.f32.mrb[0].mxu0
  %v253 = vadd.f32 0.0, %v252
  %v254 = vpop.f32.mrb[0].mxu0
  %v255 = vpop.f32.mrb[0].mxu0
  %v256 = vadd.f32 0.0, %v255
  %v257 = vpop.f32.mrb[0].mxu0
  %258 = vdwg.mxu0
  %v259 = vpack.c.bf16 %v200, %v197
  %v260 = vpack.c.bf16 %v208, %v205
  %v261 = vpack.c.bf16 %v216, %v213
  %v262 = vpack.c.bf16 %v224, %v221
  %v263 = vpack.c.bf16 %v232, %v229
  %v264 = vpack.c.bf16 %v240, %v237
  %v265 = vpack.c.bf16 %v248, %v245
  %v266 = vpack.c.bf16 %v256, %v253
  %v267 = vld [vmem:[%s2] sm:$0xf]
  %v268 = vld [vmem:[%s2 + $0x4] sm:$0xf]
  %v269 = vld [vmem:[%s2 + $0x8] sm:$0xf]
  %v270 = vld [vmem:[%s2 + $0xc] sm:$0xf]
  %v271 = vld [vmem:[%s2 + $0x10] sm:$0xf]
  %v272 = vld [vmem:[%s2 + $0x14] sm:$0xf]
  %v273 = vld [vmem:[%s2 + $0x18] sm:$0xf]
  %v274 = vld [vmem:[%s2 + $0x1c] sm:$0xf]
  %v275 = vld [vmem:[%s2 + $0x20] sm:$0xf]
  %v276 = vld [vmem:[%s2 + $0x24] sm:$0xf]
  %v277 = vld [vmem:[%s2 + $0x28] sm:$0xf]
  %v278 = vld [vmem:[%s2 + $0x2c] sm:$0xf]
  %v279 = vld [vmem:[%s2 + $0x30] sm:$0xf]
  %v280 = vld [vmem:[%s2 + $0x34] sm:$0xf]
  %v281 = vld [vmem:[%s2 + $0x38] sm:$0xf]
  %v282 = vld [vmem:[%s2 + $0x3c] sm:$0xf]
  %v283 = vld [vmem:[%s3] sm:$0x1]
  %v285 = vlaneseq
  %v286 = vshrl.u32 %v285, 7
  %v287 = vsub.s32 0, %v286
  %v288 = vrot.slane %v283, %v287
  %v306 = vunpack.c.l.b16 %v267
  %v307 = vunpack.c.l.b16 %v268
  %v308 = vunpack.c.l.b16 %v269
  %v309 = vunpack.c.l.b16 %v270
  %v310 = vunpack.c.l.b16 %v271
  %v311 = vunpack.c.l.b16 %v272
  %v312 = vunpack.c.l.b16 %v273
  %v313 = vunpack.c.l.b16 %v274
  %v314 = vunpack.c.l.b16 %v275
  %v315 = vunpack.c.l.b16 %v276
  %v316 = vunpack.c.l.b16 %v277
  %v317 = vunpack.c.l.b16 %v278
  %v318 = vunpack.c.l.b16 %v279
  %v319 = vunpack.c.l.b16 %v280
  %v320 = vunpack.c.l.b16 %v281
  %v321 = vunpack.c.l.b16 %v282
  %v322 = vpack.c.b16 %v307, %v306
  %v323 = vpack.c.b16 %v309, %v308
  %v324 = vpack.c.b16 %v311, %v310
  %v325 = vpack.c.b16 %v313, %v312
  %v326 = vpack.c.b16 %v315, %v314
  %v327 = vpack.c.b16 %v317, %v316
  %v328 = vpack.c.b16 %v319, %v318
  %v329 = vpack.c.b16 %v321, %v320
  %338 = vmatprep.subr.bf16.mxu0 0
  %339 = vmatpush1.bf16.msra.mxu0 %v322
  %340 = vmatprep.subr.bf16.mxu0 0
  %341 = vmatpush1.bf16.msra.mxu0 %v323
  %342 = vmatprep.subr.bf16.mxu0 0
  %343 = vmatpush1.bf16.msra.mxu0 %v324
  %344 = vmatprep.subr.bf16.mxu0 0
  %345 = vmatpush1.bf16.msra.mxu0 %v325
  %346 = vmatprep.subr.bf16.mxu0 0
  %347 = vmatpush1.bf16.msra.mxu0 %v326
  %348 = vmatprep.subr.bf16.mxu0 0
  %349 = vmatpush1.bf16.msra.mxu0 %v327
  %350 = vmatprep.subr.bf16.mxu0 0
  %351 = vmatpush1.bf16.msra.mxu0 %v328
  %352 = vmatprep.subr.bf16.mxu0 0
  %353 = vmatpush1.bf16.msra.mxu0 %v329
  %354 = vmatprep.subr.bf16.mxu0 0
  %355 = vmatpush1.bf16.msra.mxu0 0
  %356 = vmatprep.subr.bf16.mxu0 0
  %357 = vmatpush1.bf16.msra.mxu0 0
  %358 = vmatprep.subr.bf16.mxu0 0
  %359 = vmatpush1.bf16.msra.mxu0 0
  %360 = vmatprep.subr.bf16.mxu0 0
  %361 = vmatpush1.bf16.msra.mxu0 0
  %362 = vmatprep.subr.bf16.mxu0 0
  %363 = vmatpush1.bf16.msra.mxu0 0
  %364 = vmatprep.subr.bf16.mxu0 0
  %365 = vmatpush1.bf16.msra.mxu0 0
  %366 = vmatprep.subr.bf16.mxu0 0
  %367 = vmatpush1.bf16.msra.mxu0 0
  %368 = vmatprep.subr.bf16.mxu0 0
  %369 = vmatpush1.bf16.msra.mxu0 0
  %370 = vmatprep.mubr.bf16.mxu0 0
  %371 = vmatmul.mubr.bf16.gmra.mrb[0].mxu0 %v259
  %v372 = vpop.f32.mrb[0].mxu0
  %v373 = vadd.f32 %v288, %v372
  %v374 = vpop.f32.mrb[0].mxu0
  %v375 = vpop.f32.mrb[0].mxu0
  %v376 = vadd.f32 %v288, %v375
  %v377 = vpop.f32.mrb[0].mxu0
  %378 = vmatprep.mubr.bf16.mxu0 0
  %379 = vmatmul.mubr.bf16.gmra.mrb[0].mxu0 %v260
  %v380 = vpop.f32.mrb[0].mxu0
  %v381 = vadd.f32 %v288, %v380
  %v382 = vpop.f32.mrb[0].mxu0
  %v383 = vpop.f32.mrb[0].mxu0
  %v384 = vadd.f32 %v288, %v383
  %v385 = vpop.f32.mrb[0].mxu0
  %386 = vmatprep.mubr.bf16.mxu0 0
  %387 = vmatmul.mubr.bf16.gmra.mrb[0].mxu0 %v261
  %v388 = vpop.f32.mrb[0].mxu0
  %v389 = vadd.f32 %v288, %v388
  %v390 = vpop.f32.mrb[0].mxu0
  %v391 = vpop.f32.mrb[0].mxu0
  %v392 = vadd.f32 %v288, %v391
  %v393 = vpop.f32.mrb[0].mxu0
  %394 = vmatprep.mubr.bf16.mxu0 0
  %395 = vmatmul.mubr.bf16.gmra.mrb[0].mxu0 %v262
  %v396 = vpop.f32.mrb[0].mxu0
  %v397 = vadd.f32 %v288, %v396
  %v398 = vpop.f32.mrb[0].mxu0
  %v399 = vpop.f32.mrb[0].mxu0
  %v400 = vadd.f32 %v288, %v399
  %v401 = vpop.f32.mrb[0].mxu0
  %402 = vmatprep.mubr.bf16.mxu0 0
  %403 = vmatmul.mubr.bf16.gmra.mrb[0].mxu0 %v263
  %v404 = vpop.f32.mrb[0].mxu0
  %v405 = vadd.f32 %v288, %v404
  %v406 = vpop.f32.mrb[0].mxu0
  %v407 = vpop.f32.mrb[0].mxu0
  %v408 = vadd.f32 %v288, %v407
  %v409 = vpop.f32.mrb[0].mxu0
  %410 = vmatprep.mubr.bf16.mxu0 0
  %411 = vmatmul.mubr.bf16.gmra.mrb[0].mxu0 %v264
  %v412 = vpop.f32.mrb[0].mxu0
  %v413 = vadd.f32 %v288, %v412
  %v414 = vpop.f32.mrb[0].mxu0
  %v415 = vpop.f32.mrb[0].mxu0
  %v416 = vadd.f32 %v288, %v415
  %v417 = vpop.f32.mrb[0].mxu0
  %418 = vmatprep.mubr.bf16.mxu0 0
  %419 = vmatmul.mubr.bf16.gmra.mrb[0].mxu0 %v265
  %v420 = vpop.f32.mrb[0].mxu0
  %v421 = vadd.f32 %v288, %v420
  %v422 = vpop.f32.mrb[0].mxu0
  %v423 = vpop.f32.mrb[0].mxu0
  %v424 = vadd.f32 %v288, %v423
  %v425 = vpop.f32.mrb[0].mxu0
  %426 = vmatprep.mubr.bf16.mxu0 0
  %427 = vmatmul.mubr.bf16.gmra.mrb[0].mxu0 %v266
  %v428 = vpop.f32.mrb[0].mxu0
  %v429 = vadd.f32 %v288, %v428
  %v430 = vpop.f32.mrb[0].mxu0
  %v431 = vpop.f32.mrb[0].mxu0
  %v432 = vadd.f32 %v288, %v431
  %v433 = vpop.f32.mrb[0].mxu0
  %434 = vdwg.mxu0
  %435 = vst [vmem:[%s4] sm:$0xff] %v373
  %436 = vst [vmem:[%s4 + $0x8] sm:$0xff] %v376
  %437 = vst [vmem:[%s4 + $0x10] sm:$0xff] %v381
  %438 = vst [vmem:[%s4 + $0x18] sm:$0xff] %v384
  %439 = vst [vmem:[%s4 + $0x20] sm:$0xff] %v389
  %440 = vst [vmem:[%s4 + $0x28] sm:$0xff] %v392
  %441 = vst [vmem:[%s4 + $0x30] sm:$0xff] %v397
  %442 = vst [vmem:[%s4 + $0x38] sm:$0xff] %v400
  %443 = vst [vmem:[%s4 + $0x40] sm:$0xff] %v405
  %444 = vst [vmem:[%s4 + $0x48] sm:$0xff] %v408
  %445 = vst [vmem:[%s4 + $0x50] sm:$0xff] %v413
  %446 = vst [vmem:[%s4 + $0x58] sm:$0xff] %v416
  %447 = vst [vmem:[%s4 + $0x60] sm:$0xff] %v421
  %448 = vst [vmem:[%s4 + $0x68] sm:$0xff] %v424
  %449 = vst [vmem:[%s4 + $0x70] sm:$0xff] %v429
  %450 = vst [vmem:[%s4 + $0x78] sm:$0xff] %v432
  // Predicated region
  $region18: #{tmgnn_forward.28} parent=0 // pred_check
    _
  $region19: #{tmgnn_forward.28} parent=0 // pred_check_branch
    %452 = sbr.rel (0) target = $region21
  $region20: #{tmgnn_forward.28} parent=0 // pred_region
    _
  $region21: #{tmgnn_forward.28} parent=0 // pred_fallthru
    _
  // Predicated region
  $region22: #{tmgnn_forward.28} parent=0 // pred_check
    _
  $region23: #{tmgnn_forward.28} parent=0 // pred_check_branch
    %454 = sbr.rel (0) target = $region25
  $region24: #{tmgnn_forward.28} parent=0 // pred_region
    _
  $region25: #{tmgnn_forward.28} parent=0 // pred_fallthru
    _

// kernel: tmgnn_forward.29
$region0: #{tmgnn_forward.29}
  #allocation0 [shape = 'u32[]', space=smem, size = 0x4, offset = 0x4, fixed_abs, tag = 'smem constant byte address 0x4 - core index']
  #allocation1 [shape = 'u32[144,128]{1,0:T(1,128)}', space=vmem, size = 0x12000, scoped, tag = 'internal scratch']
  #allocation2 [shape = 'f32[128,128]{1,0:T(8,128)}', space=vmem, size = 0x10000, scoped, tag = 'scratch operand']
  %s0 = inlined_call_operand.vmem [shape: bf16[128,128], index: 0, kind: input, shape index: {}]
  %s1 = inlined_call_operand.vmem [shape: bf16[128,128], index: 1, kind: input, shape index: {}]
  %s2 = inlined_call_operand.vmem [shape: f32[1,128], index: 2, kind: input, shape index: {}]
  %s3 = inlined_call_operand.vmem [shape: f32[128,128], index: 3, kind: output, shape index: {}]
  %s4 = sld [smem:[#allocation0]]
  $region30: #{tmgnn_forward.29} parent=0
    _
  %s6 = ssub.s32 1, %s4
  %s7 = scalar_select 0, %s6, %s4
  // Predicated region
  $region2: #{tmgnn_forward.29} parent=0 // pred_check
    _
  $region3: #{tmgnn_forward.29} parent=0 // pred_check_branch
    %9 = sbr.rel (0) target = $region5
  $region4: #{tmgnn_forward.29} parent=0 // pred_region
    _
  $region5: #{tmgnn_forward.29} parent=0 // pred_fallthru
    _
  // Predicated region
  $region6: #{tmgnn_forward.29} parent=0 // pred_check
    _
  $region7: #{tmgnn_forward.29} parent=0 // pred_check_branch
    %11 = sbr.rel (0) target = $region9
  $region8: #{tmgnn_forward.29} parent=0 // pred_region
    _
  $region9: #{tmgnn_forward.29} parent=0 // pred_fallthru
    _
  // Predicated region
  $region10: #{tmgnn_forward.29} parent=0 // pred_check
    _
  $region11: #{tmgnn_forward.29} parent=0 // pred_check_branch
    %13 = sbr.rel (0) target = $region13
  $region12: #{tmgnn_forward.29} parent=0 // pred_region
    _
  $region13: #{tmgnn_forward.29} parent=0 // pred_fallthru
    _
  %p15 = scmp.eq.s32.totalorder 0, 0
  // Predicated region
  $region14: #{tmgnn_forward.29} parent=0 // pred_check
    %p16 = pneg %p15
  $region15: #{tmgnn_forward.29} parent=0 // pred_check_branch
    %18 = sbr.rel (%p16) target = $region17
  $region16: #{tmgnn_forward.29} parent=0 // pred_region
    %19 = vst [vmem:[#allocation2] sm:$0xff] 0.0
    %20 = vst [vmem:[#allocation2 + $0x8] sm:$0xff] 0.0
    %21 = vst [vmem:[#allocation2 + $0x10] sm:$0xff] 0.0
    %22 = vst [vmem:[#allocation2 + $0x18] sm:$0xff] 0.0
    %23 = vst [vmem:[#allocation2 + $0x20] sm:$0xff] 0.0
    %24 = vst [vmem:[#allocation2 + $0x28] sm:$0xff] 0.0
    %25 = vst [vmem:[#allocation2 + $0x30] sm:$0xff] 0.0
    %26 = vst [vmem:[#allocation2 + $0x38] sm:$0xff] 0.0
    %27 = vst [vmem:[#allocation2 + $0x40] sm:$0xff] 0.0
    %28 = vst [vmem:[#allocation2 + $0x48] sm:$0xff] 0.0
    %29 = vst [vmem:[#allocation2 + $0x50] sm:$0xff] 0.0
    %30 = vst [vmem:[#allocation2 + $0x58] sm:$0xff] 0.0
    %31 = vst [vmem:[#allocation2 + $0x60] sm:$0xff] 0.0
    %32 = vst [vmem:[#allocation2 + $0x68] sm:$0xff] 0.0
    %33 = vst [vmem:[#allocation2 + $0x70] sm:$0xff] 0.0
    %34 = vst [vmem:[#allocation2 + $0x78] sm:$0xff] 0.0
  $region17: #{tmgnn_forward.29} parent=0 // pred_fallthru
    _
  %v35 = vld [vmem:[#allocation2] sm:$0xff]
  %v36 = vld [vmem:[#allocation2 + $0x8] sm:$0xff]
  %v37 = vld [vmem:[#allocation2 + $0x10] sm:$0xff]
  %v38 = vld [vmem:[#allocation2 + $0x18] sm:$0xff]
  %v39 = vld [vmem:[#allocation2 + $0x20] sm:$0xff]
  %v40 = vld [vmem:[#allocation2 + $0x28] sm:$0xff]
  %v41 = vld [vmem:[#allocation2 + $0x30] sm:$0xff]
  %v42 = vld [vmem:[#allocation2 + $0x38] sm:$0xff]
  %v43 = vld [vmem:[#allocation2 + $0x40] sm:$0xff]
  %v44 = vld [vmem:[#allocation2 + $0x48] sm:$0xff]
  %v45 = vld [vmem:[#allocation2 + $0x50] sm:$0xff]
  %v46 = vld [vmem:[#allocation2 + $0x58] sm:$0xff]
  %v47 = vld [vmem:[#allocation2 + $0x60] sm:$0xff]
  %v48 = vld [vmem:[#allocation2 + $0x68] sm:$0xff]
  %v49 = vld [vmem:[#allocation2 + $0x70] sm:$0xff]
  %v50 = vld [vmem:[#allocation2 + $0x78] sm:$0xff]
  %v51 = vld [vmem:[%s0] sm:$0xf]
  %v52 = vld [vmem:[%s0 + $0x4] sm:$0xf]
  %v53 = vld [vmem:[%s0 + $0x8] sm:$0xf]
  %v54 = vld [vmem:[%s0 + $0xc] sm:$0xf]
  %v55 = vld [vmem:[%s0 + $0x10] sm:$0xf]
  %v56 = vld [vmem:[%s0 + $0x14] sm:$0xf]
  %v57 = vld [vmem:[%s0 + $0x18] sm:$0xf]
  %v58 = vld [vmem:[%s0 + $0x1c] sm:$0xf]
  %v59 = vld [vmem:[%s0 + $0x20] sm:$0xf]
  %v60 = vld [vmem:[%s0 + $0x24] sm:$0xf]
  %v61 = vld [vmem:[%s0 + $0x28] sm:$0xf]
  %v62 = vld [vmem:[%s0 + $0x2c] sm:$0xf]
  %v63 = vld [vmem:[%s0 + $0x30] sm:$0xf]
  %v64 = vld [vmem:[%s0 + $0x34] sm:$0xf]
  %v65 = vld [vmem:[%s0 + $0x38] sm:$0xf]
  %v66 = vld [vmem:[%s0 + $0x3c] sm:$0xf]
  %v67 = vld [vmem:[%s1] sm:$0xf]
  %v68 = vld [vmem:[%s1 + $0x4] sm:$0xf]
  %v69 = vld [vmem:[%s1 + $0x8] sm:$0xf]
  %v70 = vld [vmem:[%s1 + $0xc] sm:$0xf]
  %v71 = vld [vmem:[%s1 + $0x10] sm:$0xf]
  %v72 = vld [vmem:[%s1 + $0x14] sm:$0xf]
  %v73 = vld [vmem:[%s1 + $0x18] sm:$0xf]
  %v74 = vld [vmem:[%s1 + $0x1c] sm:$0xf]
  %v75 = vld [vmem:[%s1 + $0x20] sm:$0xf]
  %v76 = vld [vmem:[%s1 + $0x24] sm:$0xf]
  %v77 = vld [vmem:[%s1 + $0x28] sm:$0xf]
  %v78 = vld [vmem:[%s1 + $0x2c] sm:$0xf]
  %v79 = vld [vmem:[%s1 + $0x30] sm:$0xf]
  %v80 = vld [vmem:[%s1 + $0x34] sm:$0xf]
  %v81 = vld [vmem:[%s1 + $0x38] sm:$0xf]
  %v82 = vld [vmem:[%s1 + $0x3c] sm:$0xf]
  %v99 = vunpack.c.l.b16 %v51
  %v100 = vunpack.c.l.b16 %v52
  %v101 = vunpack.c.l.b16 %v53
  %v102 = vunpack.c.l.b16 %v54
  %v103 = vunpack.c.l.b16 %v55
  %v104 = vunpack.c.l.b16 %v56
  %v105 = vunpack.c.l.b16 %v57
  %v106 = vunpack.c.l.b16 %v58
  %v107 = vunpack.c.l.b16 %v59
  %v108 = vunpack.c.l.b16 %v60
  %v109 = vunpack.c.l.b16 %v61
  %v110 = vunpack.c.l.b16 %v62
  %v111 = vunpack.c.l.b16 %v63
  %v112 = vunpack.c.l.b16 %v64
  %v113 = vunpack.c.l.b16 %v65
  %v114 = vunpack.c.l.b16 %v66
  %v115 = vpack.c.b16 %v100, %v99
  %v116 = vpack.c.b16 %v102, %v101
  %v117 = vpack.c.b16 %v104, %v103
  %v118 = vpack.c.b16 %v106, %v105
  %v119 = vpack.c.b16 %v108, %v107
  %v120 = vpack.c.b16 %v110, %v109
  %v121 = vpack.c.b16 %v112, %v111
  %v122 = vpack.c.b16 %v114, %v113
  %131 = vxpose.xlu0.c.b16.start [1/8] %v115, 128
  %132 = vxpose.xlu0.c.b16.cont [2/8] %v116, 128
  %133 = vxpose.xlu0.c.b16.cont [3/8] %v117, 128
  %134 = vxpose.xlu0.c.b16.cont [4/8] %v118, 128
  %135 = vxpose.xlu0.c.b16.cont [5/8] %v119, 128
  %136 = vxpose.xlu0.c.b16.cont [6/8] %v120, 128
  %137 = vxpose.xlu0.c.b16.cont [7/8] %v121, 128
  %138 = vxpose.xlu0.c.b16.end [8/8] %v122, 128
  %v139 = vpop.trf.xlu0
  %v140 = vpop.trf.xlu0
  %v141 = vpop.trf.xlu0
  %v142 = vpop.trf.xlu0
  %v143 = vpop.trf.xlu0
  %v144 = vpop.trf.xlu0
  %v145 = vpop.trf.xlu0
  %v146 = vpop.trf.xlu0
  %v163 = vunpack.c.l.b16 %v67
  %v164 = vunpack.c.l.b16 %v68
  %v165 = vunpack.c.l.b16 %v69
  %v166 = vunpack.c.l.b16 %v70
  %v167 = vunpack.c.l.b16 %v71
  %v168 = vunpack.c.l.b16 %v72
  %v169 = vunpack.c.l.b16 %v73
  %v170 = vunpack.c.l.b16 %v74
  %v171 = vunpack.c.l.b16 %v75
  %v172 = vunpack.c.l.b16 %v76
  %v173 = vunpack.c.l.b16 %v77
  %v174 = vunpack.c.l.b16 %v78
  %v175 = vunpack.c.l.b16 %v79
  %v176 = vunpack.c.l.b16 %v80
  %v177 = vunpack.c.l.b16 %v81
  %v178 = vunpack.c.l.b16 %v82
  %v179 = vpack.c.b16 %v164, %v163
  %v180 = vpack.c.b16 %v166, %v165
  %v181 = vpack.c.b16 %v168, %v167
  %v182 = vpack.c.b16 %v170, %v169
  %v183 = vpack.c.b16 %v172, %v171
  %v184 = vpack.c.b16 %v174, %v173
  %v185 = vpack.c.b16 %v176, %v175
  %v186 = vpack.c.b16 %v178, %v177
  %195 = vmatprep.subr.bf16.mxu0 0
  %196 = vmatpush1.bf16.msra.mxu0 %v179
  %197 = vmatprep.subr.bf16.mxu0 0
  %198 = vmatpush1.bf16.msra.mxu0 %v180
  %199 = vmatprep.subr.bf16.mxu0 0
  %200 = vmatpush1.bf16.msra.mxu0 %v181
  %201 = vmatprep.subr.bf16.mxu0 0
  %202 = vmatpush1.bf16.msra.mxu0 %v182
  %203 = vmatprep.subr.bf16.mxu0 0
  %204 = vmatpush1.bf16.msra.mxu0 %v183
  %205 = vmatprep.subr.bf16.mxu0 0
  %206 = vmatpush1.bf16.msra.mxu0 %v184
  %207 = vmatprep.subr.bf16.mxu0 0
  %208 = vmatpush1.bf16.msra.mxu0 %v185
  %209 = vmatprep.subr.bf16.mxu0 0
  %210 = vmatpush1.bf16.msra.mxu0 %v186
  %211 = vmatprep.subr.bf16.mxu0 0
  %212 = vmatpush1.bf16.msra.mxu0 0
  %213 = vmatprep.subr.bf16.mxu0 0
  %214 = vmatpush1.bf16.msra.mxu0 0
  %215 = vmatprep.subr.bf16.mxu0 0
  %216 = vmatpush1.bf16.msra.mxu0 0
  %217 = vmatprep.subr.bf16.mxu0 0
  %218 = vmatpush1.bf16.msra.mxu0 0
  %219 = vmatprep.subr.bf16.mxu0 0
  %220 = vmatpush1.bf16.msra.mxu0 0
  %221 = vmatprep.subr.bf16.mxu0 0
  %222 = vmatpush1.bf16.msra.mxu0 0
  %223 = vmatprep.subr.bf16.mxu0 0
  %224 = vmatpush1.bf16.msra.mxu0 0
  %225 = vmatprep.subr.bf16.mxu0 0
  %226 = vmatpush1.bf16.msra.mxu0 0
  %227 = vmatprep.mubr.bf16.mxu0 0
  %228 = vmatmul.mubr.bf16.gmra.mrb[0].mxu0 %v139
  %v229 = vpop.f32.mrb[0].mxu0
  %v230 = vadd.f32 0.0, %v229
  %v231 = vpop.f32.mrb[0].mxu0
  %v232 = vpop.f32.mrb[0].mxu0
  %v233 = vadd.f32 0.0, %v232
  %v234 = vpop.f32.mrb[0].mxu0
  %235 = vmatprep.mubr.bf16.mxu0 0
  %236 = vmatmul.mubr.bf16.gmra.mrb[0].mxu0 %v140
  %v237 = vpop.f32.mrb[0].mxu0
  %v238 = vadd.f32 0.0, %v237
  %v239 = vpop.f32.mrb[0].mxu0
  %v240 = vpop.f32.mrb[0].mxu0
  %v241 = vadd.f32 0.0, %v240
  %v242 = vpop.f32.mrb[0].mxu0
  %243 = vmatprep.mubr.bf16.mxu0 0
  %244 = vmatmul.mubr.bf16.gmra.mrb[0].mxu0 %v141
  %v245 = vpop.f32.mrb[0].mxu0
  %v246 = vadd.f32 0.0, %v245
  %v247 = vpop.f32.mrb[0].mxu0
  %v248 = vpop.f32.mrb[0].mxu0
  %v249 = vadd.f32 0.0, %v248
  %v250 = vpop.f32.mrb[0].mxu0
  %251 = vmatprep.mubr.bf16.mxu0 0
  %252 = vmatmul.mubr.bf16.gmra.mrb[0].mxu0 %v142
  %v253 = vpop.f32.mrb[0].mxu0
  %v254 = vadd.f32 0.0, %v253
  %v255 = vpop.f32.mrb[0].mxu0
  %v256 = vpop.f32.mrb[0].mxu0
  %v257 = vadd.f32 0.0, %v256
  %v258 = vpop.f32.mrb[0].mxu0
  %259 = vmatprep.mubr.bf16.mxu0 0
  %260 = vmatmul.mubr.bf16.gmra.mrb[0].mxu0 %v143
  %v261 = vpop.f32.mrb[0].mxu0
  %v262 = vadd.f32 0.0, %v261
  %v263 = vpop.f32.mrb[0].mxu0
  %v264 = vpop.f32.mrb[0].mxu0
  %v265 = vadd.f32 0.0, %v264
  %v266 = vpop.f32.mrb[0].mxu0
  %267 = vmatprep.mubr.bf16.mxu0 0
  %268 = vmatmul.mubr.bf16.gmra.mrb[0].mxu0 %v144
  %v269 = vpop.f32.mrb[0].mxu0
  %v270 = vadd.f32 0.0, %v269
  %v271 = vpop.f32.mrb[0].mxu0
  %v272 = vpop.f32.mrb[0].mxu0
  %v273 = vadd.f32 0.0, %v272
  %v274 = vpop.f32.mrb[0].mxu0
  %275 = vmatprep.mubr.bf16.mxu0 0
  %276 = vmatmul.mubr.bf16.gmra.mrb[0].mxu0 %v145
  %v277 = vpop.f32.mrb[0].mxu0
  %v278 = vadd.f32 0.0, %v277
  %v279 = vpop.f32.mrb[0].mxu0
  %v280 = vpop.f32.mrb[0].mxu0
  %v281 = vadd.f32 0.0, %v280
  %v282 = vpop.f32.mrb[0].mxu0
  %283 = vmatprep.mubr.bf16.mxu0 0
  %284 = vmatmul.mubr.bf16.gmra.mrb[0].mxu0 %v146
  %v285 = vpop.f32.mrb[0].mxu0
  %v286 = vadd.f32 0.0, %v285
  %v287 = vpop.f32.mrb[0].mxu0
  %v288 = vpop.f32.mrb[0].mxu0
  %v289 = vadd.f32 0.0, %v288
  %v290 = vpop.f32.mrb[0].mxu0
  %291 = vdwg.mxu0
  %v292 = vadd.f32 %v35, %v230
  %v293 = vadd.f32 %v36, %v233
  %v294 = vadd.f32 %v37, %v238
  %v295 = vadd.f32 %v38, %v241
  %v296 = vadd.f32 %v39, %v246
  %v297 = vadd.f32 %v40, %v249
  %v298 = vadd.f32 %v41, %v254
  %v299 = vadd.f32 %v42, %v257
  %v300 = vadd.f32 %v43, %v262
  %v301 = vadd.f32 %v44, %v265
  %v302 = vadd.f32 %v45, %v270
  %v303 = vadd.f32 %v46, %v273
  %v304 = vadd.f32 %v47, %v278
  %v305 = vadd.f32 %v48, %v281
  %v306 = vadd.f32 %v49, %v286
  %v307 = vadd.f32 %v50, %v289
  %308 = vst [vmem:[#allocation2] sm:$0xff] %v292
  %309 = vst [vmem:[#allocation2 + $0x8] sm:$0xff] %v293
  %310 = vst [vmem:[#allocation2 + $0x10] sm:$0xff] %v294
  %311 = vst [vmem:[#allocation2 + $0x18] sm:$0xff] %v295
  %312 = vst [vmem:[#allocation2 + $0x20] sm:$0xff] %v296
  %313 = vst [vmem:[#allocation2 + $0x28] sm:$0xff] %v297
  %314 = vst [vmem:[#allocation2 + $0x30] sm:$0xff] %v298
  %315 = vst [vmem:[#allocation2 + $0x38] sm:$0xff] %v299
  %316 = vst [vmem:[#allocation2 + $0x40] sm:$0xff] %v300
  %317 = vst [vmem:[#allocation2 + $0x48] sm:$0xff] %v301
  %318 = vst [vmem:[#allocation2 + $0x50] sm:$0xff] %v302
  %319 = vst [vmem:[#allocation2 + $0x58] sm:$0xff] %v303
  %320 = vst [vmem:[#allocation2 + $0x60] sm:$0xff] %v304
  %321 = vst [vmem:[#allocation2 + $0x68] sm:$0xff] %v305
  %322 = vst [vmem:[#allocation2 + $0x70] sm:$0xff] %v306
  %323 = vst [vmem:[#allocation2 + $0x78] sm:$0xff] %v307
  // Predicated region
  $region18: #{tmgnn_forward.29} parent=0 // pred_check
    %p324 = pneg %p15
  $region19: #{tmgnn_forward.29} parent=0 // pred_check_branch
    %326 = sbr.rel (%p324) target = $region21
  $region20: #{tmgnn_forward.29} parent=0 // pred_region
    %v327 = vld [vmem:[#allocation2] sm:$0xff]
    %v328 = vld [vmem:[#allocation2 + $0x8] sm:$0xff]
    %v329 = vld [vmem:[#allocation2 + $0x10] sm:$0xff]
    %v330 = vld [vmem:[#allocation2 + $0x18] sm:$0xff]
    %v331 = vld [vmem:[#allocation2 + $0x20] sm:$0xff]
    %v332 = vld [vmem:[#allocation2 + $0x28] sm:$0xff]
    %v333 = vld [vmem:[#allocation2 + $0x30] sm:$0xff]
    %v334 = vld [vmem:[#allocation2 + $0x38] sm:$0xff]
    %v335 = vld [vmem:[#allocation2 + $0x40] sm:$0xff]
    %v336 = vld [vmem:[#allocation2 + $0x48] sm:$0xff]
    %v337 = vld [vmem:[#allocation2 + $0x50] sm:$0xff]
    %v338 = vld [vmem:[#allocation2 + $0x58] sm:$0xff]
    %v339 = vld [vmem:[#allocation2 + $0x60] sm:$0xff]
    %v340 = vld [vmem:[#allocation2 + $0x68] sm:$0xff]
    %v341 = vld [vmem:[#allocation2 + $0x70] sm:$0xff]
    %v342 = vld [vmem:[#allocation2 + $0x78] sm:$0xff]
    %v343 = vld [vmem:[%s2] sm:$0x1]
    %v345 = vlaneseq
    %v346 = vshrl.u32 %v345, 7
    %v347 = vsub.s32 0, %v346
    %v348 = vrot.slane %v343, %v347
    %v350 = vadd.f32 %v327, %v348
    %v351 = vadd.f32 %v328, %v348
    %v352 = vadd.f32 %v329, %v348
    %v353 = vadd.f32 %v330, %v348
    %v354 = vadd.f32 %v331, %v348
    %v355 = vadd.f32 %v332, %v348
    %v356 = vadd.f32 %v333, %v348
    %v357 = vadd.f32 %v334, %v348
    %v358 = vadd.f32 %v335, %v348
    %v359 = vadd.f32 %v336, %v348
    %v360 = vadd.f32 %v337, %v348
    %v361 = vadd.f32 %v338, %v348
    %v362 = vadd.f32 %v339, %v348
    %v363 = vadd.f32 %v340, %v348
    %v364 = vadd.f32 %v341, %v348
    %v365 = vadd.f32 %v342, %v348
    %366 = vst [vmem:[%s3] sm:$0xff] %v350
    %367 = vst [vmem:[%s3 + $0x8] sm:$0xff] %v351
    %368 = vst [vmem:[%s3 + $0x10] sm:$0xff] %v352
    %369 = vst [vmem:[%s3 + $0x18] sm:$0xff] %v353
    %370 = vst [vmem:[%s3 + $0x20] sm:$0xff] %v354
    %371 = vst [vmem:[%s3 + $0x28] sm:$0xff] %v355
    %372 = vst [vmem:[%s3 + $0x30] sm:$0xff] %v356
    %373 = vst [vmem:[%s3 + $0x38] sm:$0xff] %v357
    %374 = vst [vmem:[%s3 + $0x40] sm:$0xff] %v358
    %375 = vst [vmem:[%s3 + $0x48] sm:$0xff] %v359
    %376 = vst [vmem:[%s3 + $0x50] sm:$0xff] %v360
    %377 = vst [vmem:[%s3 + $0x58] sm:$0xff] %v361
    %378 = vst [vmem:[%s3 + $0x60] sm:$0xff] %v362
    %379 = vst [vmem:[%s3 + $0x68] sm:$0xff] %v363
    %380 = vst [vmem:[%s3 + $0x70] sm:$0xff] %v364
    %381 = vst [vmem:[%s3 + $0x78] sm:$0xff] %v365
  $region21: #{tmgnn_forward.29} parent=0 // pred_fallthru
    _
  // Predicated region
  $region22: #{tmgnn_forward.29} parent=0 // pred_check
    _
  $region23: #{tmgnn_forward.29} parent=0 // pred_check_branch
    %383 = sbr.rel (0) target = $region25
  $region24: #{tmgnn_forward.29} parent=0 // pred_region
    _
  $region25: #{tmgnn_forward.29} parent=0 // pred_fallthru
    _
  // Predicated region
  $region26: #{tmgnn_forward.29} parent=0 // pred_check
    _
  $region27: #{tmgnn_forward.29} parent=0 // pred_check_branch
    %385 = sbr.rel (0) target = $region29
  $region28: #{tmgnn_forward.29} parent=0 // pred_region
    _
  $region29: #{tmgnn_forward.29} parent=0 // pred_fallthru
    _

// kernel: tmgnn_forward.30
$region0: #{tmgnn_forward.30}
  #allocation0 [shape = 'u32[]', space=smem, size = 0x4, offset = 0x4, fixed_abs, tag = 'smem constant byte address 0x4 - core index']
  #allocation1 [shape = 'u32[144,128]{1,0:T(1,128)}', space=vmem, size = 0x12000, scoped, tag = 'internal scratch']
  %s0 = inlined_call_operand.vmem [shape: bf16[16,128], index: 0, kind: input, shape index: {}]
  %s1 = inlined_call_operand.vmem [shape: bf16[128,128], index: 1, kind: input, shape index: {}]
  %s2 = inlined_call_operand.vmem [shape: bf16[128,128], index: 2, kind: input, shape index: {}]
  %s3 = inlined_call_operand.vmem [shape: f32[1,128], index: 3, kind: input, shape index: {}]
  %s4 = inlined_call_operand.vmem [shape: f32[16,128], index: 4, kind: output, shape index: {}]
  %s5 = sld [smem:[#allocation0]]
  $region26: #{tmgnn_forward.30} parent=0
    _
  %s7 = ssub.s32 1, %s5
  %s8 = scalar_select 0, %s7, %s5
  // Predicated region
  $region2: #{tmgnn_forward.30} parent=0 // pred_check
    _
  $region3: #{tmgnn_forward.30} parent=0 // pred_check_branch
    %10 = sbr.rel (0) target = $region5
  $region4: #{tmgnn_forward.30} parent=0 // pred_region
    _
  $region5: #{tmgnn_forward.30} parent=0 // pred_fallthru
    _
  // Predicated region
  $region6: #{tmgnn_forward.30} parent=0 // pred_check
    _
  $region7: #{tmgnn_forward.30} parent=0 // pred_check_branch
    %12 = sbr.rel (0) target = $region9
  $region8: #{tmgnn_forward.30} parent=0 // pred_region
    _
  $region9: #{tmgnn_forward.30} parent=0 // pred_fallthru
    _
  // Predicated region
  $region10: #{tmgnn_forward.30} parent=0 // pred_check
    _
  $region11: #{tmgnn_forward.30} parent=0 // pred_check_branch
    %14 = sbr.rel (0) target = $region13
  $region12: #{tmgnn_forward.30} parent=0 // pred_region
    _
  $region13: #{tmgnn_forward.30} parent=0 // pred_fallthru
    _
  // Predicated region
  $region14: #{tmgnn_forward.30} parent=0 // pred_check
    _
  $region15: #{tmgnn_forward.30} parent=0 // pred_check_branch
    %16 = sbr.rel (0) target = $region17
  $region16: #{tmgnn_forward.30} parent=0 // pred_region
    _
  $region17: #{tmgnn_forward.30} parent=0 // pred_fallthru
    _
  %v18 = vld [vmem:[%s0] sm:$0xf]
  %v19 = vld [vmem:[%s0 + $0x4] sm:$0xf]
  %v20 = vld [vmem:[%s1] sm:$0xf]
  %v21 = vld [vmem:[%s1 + $0x4] sm:$0xf]
  %v22 = vld [vmem:[%s1 + $0x8] sm:$0xf]
  %v23 = vld [vmem:[%s1 + $0xc] sm:$0xf]
  %v24 = vld [vmem:[%s1 + $0x10] sm:$0xf]
  %v25 = vld [vmem:[%s1 + $0x14] sm:$0xf]
  %v26 = vld [vmem:[%s1 + $0x18] sm:$0xf]
  %v27 = vld [vmem:[%s1 + $0x1c] sm:$0xf]
  %v28 = vld [vmem:[%s1 + $0x20] sm:$0xf]
  %v29 = vld [vmem:[%s1 + $0x24] sm:$0xf]
  %v30 = vld [vmem:[%s1 + $0x28] sm:$0xf]
  %v31 = vld [vmem:[%s1 + $0x2c] sm:$0xf]
  %v32 = vld [vmem:[%s1 + $0x30] sm:$0xf]
  %v33 = vld [vmem:[%s1 + $0x34] sm:$0xf]
  %v34 = vld [vmem:[%s1 + $0x38] sm:$0xf]
  %v35 = vld [vmem:[%s1 + $0x3c] sm:$0xf]
  %v38 = vunpack.c.l.b16 %v18
  %v39 = vunpack.c.l.b16 %v19
  %v40 = vpack.c.b16 %v39, %v38
  %v58 = vunpack.c.l.b16 %v20
  %v59 = vunpack.c.l.b16 %v21
  %v60 = vunpack.c.l.b16 %v22
  %v61 = vunpack.c.l.b16 %v23
  %v62 = vunpack.c.l.b16 %v24
  %v63 = vunpack.c.l.b16 %v25
  %v64 = vunpack.c.l.b16 %v26
  %v65 = vunpack.c.l.b16 %v27
  %v66 = vunpack.c.l.b16 %v28
  %v67 = vunpack.c.l.b16 %v29
  %v68 = vunpack.c.l.b16 %v30
  %v69 = vunpack.c.l.b16 %v31
  %v70 = vunpack.c.l.b16 %v32
  %v71 = vunpack.c.l.b16 %v33
  %v72 = vunpack.c.l.b16 %v34
  %v73 = vunpack.c.l.b16 %v35
  %v74 = vpack.c.b16 %v59, %v58
  %v75 = vpack.c.b16 %v61, %v60
  %v76 = vpack.c.b16 %v63, %v62
  %v77 = vpack.c.b16 %v65, %v64
  %v78 = vpack.c.b16 %v67, %v66
  %v79 = vpack.c.b16 %v69, %v68
  %v80 = vpack.c.b16 %v71, %v70
  %v81 = vpack.c.b16 %v73, %v72
  %90 = vmatprep.subr.bf16.mxu0 0
  %91 = vmatpush1.bf16.msra.mxu0 %v74
  %92 = vmatprep.subr.bf16.mxu0 0
  %93 = vmatpush1.bf16.msra.mxu0 %v75
  %94 = vmatprep.subr.bf16.mxu0 0
  %95 = vmatpush1.bf16.msra.mxu0 %v76
  %96 = vmatprep.subr.bf16.mxu0 0
  %97 = vmatpush1.bf16.msra.mxu0 %v77
  %98 = vmatprep.subr.bf16.mxu0 0
  %99 = vmatpush1.bf16.msra.mxu0 %v78
  %100 = vmatprep.subr.bf16.mxu0 0
  %101 = vmatpush1.bf16.msra.mxu0 %v79
  %102 = vmatprep.subr.bf16.mxu0 0
  %103 = vmatpush1.bf16.msra.mxu0 %v80
  %104 = vmatprep.subr.bf16.mxu0 0
  %105 = vmatpush1.bf16.msra.mxu0 %v81
  %106 = vmatprep.subr.bf16.mxu0 0
  %107 = vmatpush1.bf16.msra.mxu0 0
  %108 = vmatprep.subr.bf16.mxu0 0
  %109 = vmatpush1.bf16.msra.mxu0 0
  %110 = vmatprep.subr.bf16.mxu0 0
  %111 = vmatpush1.bf16.msra.mxu0 0
  %112 = vmatprep.subr.bf16.mxu0 0
  %113 = vmatpush1.bf16.msra.mxu0 0
  %114 = vmatprep.subr.bf16.mxu0 0
  %115 = vmatpush1.bf16.msra.mxu0 0
  %116 = vmatprep.subr.bf16.mxu0 0
  %117 = vmatpush1.bf16.msra.mxu0 0
  %118 = vmatprep.subr.bf16.mxu0 0
  %119 = vmatpush1.bf16.msra.mxu0 0
  %120 = vmatprep.subr.bf16.mxu0 0
  %121 = vmatpush1.bf16.msra.mxu0 0
  %122 = vmatprep.mubr.bf16.mxu0 0
  %123 = vmatmul.mubr.bf16.gmra.mrb[0].mxu0 %v40
  %v124 = vpop.f32.mrb[0].mxu0
  %v125 = vadd.f32 0.0, %v124
  %v126 = vpop.f32.mrb[0].mxu0
  %v127 = vpop.f32.mrb[0].mxu0
  %v128 = vadd.f32 0.0, %v127
  %v129 = vpop.f32.mrb[0].mxu0
  %130 = vdwg.mxu0
  %v131 = vpack.c.bf16 %v128, %v125
  %v132 = vld [vmem:[%s2] sm:$0xf]
  %v133 = vld [vmem:[%s2 + $0x4] sm:$0xf]
  %v134 = vld [vmem:[%s2 + $0x8] sm:$0xf]
  %v135 = vld [vmem:[%s2 + $0xc] sm:$0xf]
  %v136 = vld [vmem:[%s2 + $0x10] sm:$0xf]
  %v137 = vld [vmem:[%s2 + $0x14] sm:$0xf]
  %v138 = vld [vmem:[%s2 + $0x18] sm:$0xf]
  %v139 = vld [vmem:[%s2 + $0x1c] sm:$0xf]
  %v140 = vld [vmem:[%s2 + $0x20] sm:$0xf]
  %v141 = vld [vmem:[%s2 + $0x24] sm:$0xf]
  %v142 = vld [vmem:[%s2 + $0x28] sm:$0xf]
  %v143 = vld [vmem:[%s2 + $0x2c] sm:$0xf]
  %v144 = vld [vmem:[%s2 + $0x30] sm:$0xf]
  %v145 = vld [vmem:[%s2 + $0x34] sm:$0xf]
  %v146 = vld [vmem:[%s2 + $0x38] sm:$0xf]
  %v147 = vld [vmem:[%s2 + $0x3c] sm:$0xf]
  %v148 = vld [vmem:[%s3] sm:$0x1]
  %v150 = vlaneseq
  %v151 = vshrl.u32 %v150, 7
  %v152 = vsub.s32 0, %v151
  %v153 = vrot.slane %v148, %v152
  %v171 = vunpack.c.l.b16 %v132
  %v172 = vunpack.c.l.b16 %v133
  %v173 = vunpack.c.l.b16 %v134
  %v174 = vunpack.c.l.b16 %v135
  %v175 = vunpack.c.l.b16 %v136
  %v176 = vunpack.c.l.b16 %v137
  %v177 = vunpack.c.l.b16 %v138
  %v178 = vunpack.c.l.b16 %v139
  %v179 = vunpack.c.l.b16 %v140
  %v180 = vunpack.c.l.b16 %v141
  %v181 = vunpack.c.l.b16 %v142
  %v182 = vunpack.c.l.b16 %v143
  %v183 = vunpack.c.l.b16 %v144
  %v184 = vunpack.c.l.b16 %v145
  %v185 = vunpack.c.l.b16 %v146
  %v186 = vunpack.c.l.b16 %v147
  %v187 = vpack.c.b16 %v172, %v171
  %v188 = vpack.c.b16 %v174, %v173
  %v189 = vpack.c.b16 %v176, %v175
  %v190 = vpack.c.b16 %v178, %v177
  %v191 = vpack.c.b16 %v180, %v179
  %v192 = vpack.c.b16 %v182, %v181
  %v193 = vpack.c.b16 %v184, %v183
  %v194 = vpack.c.b16 %v186, %v185
  %203 = vmatprep.subr.bf16.mxu0 0
  %204 = vmatpush1.bf16.msra.mxu0 %v187
  %205 = vmatprep.subr.bf16.mxu0 0
  %206 = vmatpush1.bf16.msra.mxu0 %v188
  %207 = vmatprep.subr.bf16.mxu0 0
  %208 = vmatpush1.bf16.msra.mxu0 %v189
  %209 = vmatprep.subr.bf16.mxu0 0
  %210 = vmatpush1.bf16.msra.mxu0 %v190
  %211 = vmatprep.subr.bf16.mxu0 0
  %212 = vmatpush1.bf16.msra.mxu0 %v191
  %213 = vmatprep.subr.bf16.mxu0 0
  %214 = vmatpush1.bf16.msra.mxu0 %v192
  %215 = vmatprep.subr.bf16.mxu0 0
  %216 = vmatpush1.bf16.msra.mxu0 %v193
  %217 = vmatprep.subr.bf16.mxu0 0
  %218 = vmatpush1.bf16.msra.mxu0 %v194
  %219 = vmatprep.subr.bf16.mxu0 0
  %220 = vmatpush1.bf16.msra.mxu0 0
  %221 = vmatprep.subr.bf16.mxu0 0
  %222 = vmatpush1.bf16.msra.mxu0 0
  %223 = vmatprep.subr.bf16.mxu0 0
  %224 = vmatpush1.bf16.msra.mxu0 0
  %225 = vmatprep.subr.bf16.mxu0 0
  %226 = vmatpush1.bf16.msra.mxu0 0
  %227 = vmatprep.subr.bf16.mxu0 0
  %228 = vmatpush1.bf16.msra.mxu0 0
  %229 = vmatprep.subr.bf16.mxu0 0
  %230 = vmatpush1.bf16.msra.mxu0 0
  %231 = vmatprep.subr.bf16.mxu0 0
  %232 = vmatpush1.bf16.msra.mxu0 0
  %233 = vmatprep.subr.bf16.mxu0 0
  %234 = vmatpush1.bf16.msra.mxu0 0
  %235 = vmatprep.mubr.bf16.mxu0 0
  %236 = vmatmul.mubr.bf16.gmra.mrb[0].mxu0 %v131
  %v237 = vpop.f32.mrb[0].mxu0
  %v238 = vadd.f32 %v153, %v237
  %v239 = vpop.f32.mrb[0].mxu0
  %v240 = vpop.f32.mrb[0].mxu0
  %v241 = vadd.f32 %v153, %v240
  %v242 = vpop.f32.mrb[0].mxu0
  %243 = vdwg.mxu0
  %v244 = vtanh.pop %v238
  %v245 = vtanh.pop %v241
  %246 = vst [vmem:[%s4] sm:$0xff] %v244
  %247 = vst [vmem:[%s4 + $0x8] sm:$0xff] %v245
  // Predicated region
  $region18: #{tmgnn_forward.30} parent=0 // pred_check
    _
  $region19: #{tmgnn_forward.30} parent=0 // pred_check_branch
    %249 = sbr.rel (0) target = $region21
  $region20: #{tmgnn_forward.30} parent=0 // pred_region
    _
  $region21: #{tmgnn_forward.30} parent=0 // pred_fallthru
    _
  // Predicated region
  $region22: #{tmgnn_forward.30} parent=0 // pred_check
    _
  $region23: #{tmgnn_forward.30} parent=0 // pred_check_branch
    %251 = sbr.rel (0) target = $region25
  $region24: #{tmgnn_forward.30} parent=0 // pred_region
    _
  $region25: #{tmgnn_forward.30} parent=0 // pred_fallthru
    _

// kernel: tmgnn_forward.32
$region0: #{tmgnn_forward.32}
  #allocation0 [shape = 'u32[]', space=smem, size = 0x4, offset = 0x4, fixed_abs, tag = 'smem constant byte address 0x4 - core index']
  #allocation1 [shape = 'u32[144,128]{1,0:T(1,128)}', space=vmem, size = 0x12000, scoped, tag = 'internal scratch']
  #allocation2 [shape = 'f32[16,128]{1,0:T(8,128)}', space=vmem, size = 0x2000, scoped, tag = 'scratch operand']
  %s0 = inlined_call_operand.vmem [shape: bf16[16,128], index: 0, kind: input, shape index: {}]
  %s1 = inlined_call_operand.vmem [shape: bf16[128,128], index: 1, kind: input, shape index: {}]
  %s2 = inlined_call_operand.vmem [shape: f32[1,128], index: 2, kind: input, shape index: {}]
  %s3 = inlined_call_operand.vmem [shape: f32[16,128], index: 3, kind: output, shape index: {}]
  %s4 = sld [smem:[#allocation0]]
  $region30: #{tmgnn_forward.32} parent=0
    _
  %s6 = ssub.s32 1, %s4
  %s7 = scalar_select 0, %s6, %s4
  // Predicated region
  $region2: #{tmgnn_forward.32} parent=0 // pred_check
    _
  $region3: #{tmgnn_forward.32} parent=0 // pred_check_branch
    %9 = sbr.rel (0) target = $region5
  $region4: #{tmgnn_forward.32} parent=0 // pred_region
    _
  $region5: #{tmgnn_forward.32} parent=0 // pred_fallthru
    _
  // Predicated region
  $region6: #{tmgnn_forward.32} parent=0 // pred_check
    _
  $region7: #{tmgnn_forward.32} parent=0 // pred_check_branch
    %11 = sbr.rel (0) target = $region9
  $region8: #{tmgnn_forward.32} parent=0 // pred_region
    _
  $region9: #{tmgnn_forward.32} parent=0 // pred_fallthru
    _
  // Predicated region
  $region10: #{tmgnn_forward.32} parent=0 // pred_check
    _
  $region11: #{tmgnn_forward.32} parent=0 // pred_check_branch
    %13 = sbr.rel (0) target = $region13
  $region12: #{tmgnn_forward.32} parent=0 // pred_region
    _
  $region13: #{tmgnn_forward.32} parent=0 // pred_fallthru
    _
  %p15 = scmp.eq.s32.totalorder 0, 0
  // Predicated region
  $region14: #{tmgnn_forward.32} parent=0 // pred_check
    %p16 = pneg %p15
  $region15: #{tmgnn_forward.32} parent=0 // pred_check_branch
    %18 = sbr.rel (%p16) target = $region17
  $region16: #{tmgnn_forward.32} parent=0 // pred_region
    %19 = vst [vmem:[#allocation2] sm:$0xff] 0.0
    %20 = vst [vmem:[#allocation2 + $0x8] sm:$0xff] 0.0
  $region17: #{tmgnn_forward.32} parent=0 // pred_fallthru
    _
  %v21 = vld [vmem:[#allocation2] sm:$0xff]
  %v22 = vld [vmem:[#allocation2 + $0x8] sm:$0xff]
  %v23 = vld [vmem:[%s0] sm:$0xf]
  %v24 = vld [vmem:[%s0 + $0x4] sm:$0xf]
  %v25 = vld [vmem:[%s1] sm:$0xf]
  %v26 = vld [vmem:[%s1 + $0x4] sm:$0xf]
  %v27 = vld [vmem:[%s1 + $0x8] sm:$0xf]
  %v28 = vld [vmem:[%s1 + $0xc] sm:$0xf]
  %v29 = vld [vmem:[%s1 + $0x10] sm:$0xf]
  %v30 = vld [vmem:[%s1 + $0x14] sm:$0xf]
  %v31 = vld [vmem:[%s1 + $0x18] sm:$0xf]
  %v32 = vld [vmem:[%s1 + $0x1c] sm:$0xf]
  %v33 = vld [vmem:[%s1 + $0x20] sm:$0xf]
  %v34 = vld [vmem:[%s1 + $0x24] sm:$0xf]
  %v35 = vld [vmem:[%s1 + $0x28] sm:$0xf]
  %v36 = vld [vmem:[%s1 + $0x2c] sm:$0xf]
  %v37 = vld [vmem:[%s1 + $0x30] sm:$0xf]
  %v38 = vld [vmem:[%s1 + $0x34] sm:$0xf]
  %v39 = vld [vmem:[%s1 + $0x38] sm:$0xf]
  %v40 = vld [vmem:[%s1 + $0x3c] sm:$0xf]
  %v43 = vunpack.c.l.b16 %v23
  %v44 = vunpack.c.l.b16 %v24
  %v45 = vpack.c.b16 %v44, %v43
  %v63 = vunpack.c.l.b16 %v25
  %v64 = vunpack.c.l.b16 %v26
  %v65 = vunpack.c.l.b16 %v27
  %v66 = vunpack.c.l.b16 %v28
  %v67 = vunpack.c.l.b16 %v29
  %v68 = vunpack.c.l.b16 %v30
  %v69 = vunpack.c.l.b16 %v31
  %v70 = vunpack.c.l.b16 %v32
  %v71 = vunpack.c.l.b16 %v33
  %v72 = vunpack.c.l.b16 %v34
  %v73 = vunpack.c.l.b16 %v35
  %v74 = vunpack.c.l.b16 %v36
  %v75 = vunpack.c.l.b16 %v37
  %v76 = vunpack.c.l.b16 %v38
  %v77 = vunpack.c.l.b16 %v39
  %v78 = vunpack.c.l.b16 %v40
  %v79 = vpack.c.b16 %v64, %v63
  %v80 = vpack.c.b16 %v66, %v65
  %v81 = vpack.c.b16 %v68, %v67
  %v82 = vpack.c.b16 %v70, %v69
  %v83 = vpack.c.b16 %v72, %v71
  %v84 = vpack.c.b16 %v74, %v73
  %v85 = vpack.c.b16 %v76, %v75
  %v86 = vpack.c.b16 %v78, %v77
  %95 = vmatprep.subr.bf16.mxu0 0
  %96 = vmatpush1.bf16.msra.mxu0 %v79
  %97 = vmatprep.subr.bf16.mxu0 0
  %98 = vmatpush1.bf16.msra.mxu0 %v80
  %99 = vmatprep.subr.bf16.mxu0 0
  %100 = vmatpush1.bf16.msra.mxu0 %v81
  %101 = vmatprep.subr.bf16.mxu0 0
  %102 = vmatpush1.bf16.msra.mxu0 %v82
  %103 = vmatprep.subr.bf16.mxu0 0
  %104 = vmatpush1.bf16.msra.mxu0 %v83
  %105 = vmatprep.subr.bf16.mxu0 0
  %106 = vmatpush1.bf16.msra.mxu0 %v84
  %107 = vmatprep.subr.bf16.mxu0 0
  %108 = vmatpush1.bf16.msra.mxu0 %v85
  %109 = vmatprep.subr.bf16.mxu0 0
  %110 = vmatpush1.bf16.msra.mxu0 %v86
  %111 = vmatprep.subr.bf16.mxu0 0
  %112 = vmatpush1.bf16.msra.mxu0 0
  %113 = vmatprep.subr.bf16.mxu0 0
  %114 = vmatpush1.bf16.msra.mxu0 0
  %115 = vmatprep.subr.bf16.mxu0 0
  %116 = vmatpush1.bf16.msra.mxu0 0
  %117 = vmatprep.subr.bf16.mxu0 0
  %118 = vmatpush1.bf16.msra.mxu0 0
  %119 = vmatprep.subr.bf16.mxu0 0
  %120 = vmatpush1.bf16.msra.mxu0 0
  %121 = vmatprep.subr.bf16.mxu0 0
  %122 = vmatpush1.bf16.msra.mxu0 0
  %123 = vmatprep.subr.bf16.mxu0 0
  %124 = vmatpush1.bf16.msra.mxu0 0
  %125 = vmatprep.subr.bf16.mxu0 0
  %126 = vmatpush1.bf16.msra.mxu0 0
  %127 = vmatprep.mubr.bf16.mxu0 0
  %128 = vmatmul.mubr.bf16.gmra.mrb[0].mxu0 %v45
  %v129 = vpop.f32.mrb[0].mxu0
  %v130 = vadd.f32 0.0, %v129
  %v131 = vpop.f32.mrb[0].mxu0
  %v132 = vpop.f32.mrb[0].mxu0
  %v133 = vadd.f32 0.0, %v132
  %v134 = vpop.f32.mrb[0].mxu0
  %135 = vdwg.mxu0
  %v136 = vadd.f32 %v21, %v130
  %v137 = vadd.f32 %v22, %v133
  %138 = vst [vmem:[#allocation2] sm:$0xff] %v136
  %139 = vst [vmem:[#allocation2 + $0x8] sm:$0xff] %v137
  // Predicated region
  $region18: #{tmgnn_forward.32} parent=0 // pred_check
    %p140 = pneg %p15
  $region19: #{tmgnn_forward.32} parent=0 // pred_check_branch
    %142 = sbr.rel (%p140) target = $region21
  $region20: #{tmgnn_forward.32} parent=0 // pred_region
    %v143 = vld [vmem:[#allocation2] sm:$0xff]
    %v144 = vld [vmem:[#allocation2 + $0x8] sm:$0xff]
    %v145 = vld [vmem:[%s2] sm:$0x1]
    %v147 = vlaneseq
    %v148 = vshrl.u32 %v147, 7
    %v149 = vsub.s32 0, %v148
    %v150 = vrot.slane %v145, %v149
    %v152 = vadd.f32 %v143, %v150
    %v153 = vadd.f32 %v144, %v150
    %154 = vst [vmem:[%s3] sm:$0xff] %v152
    %155 = vst [vmem:[%s3 + $0x8] sm:$0xff] %v153
  $region21: #{tmgnn_forward.32} parent=0 // pred_fallthru
    _
  // Predicated region
  $region22: #{tmgnn_forward.32} parent=0 // pred_check
    _
  $region23: #{tmgnn_forward.32} parent=0 // pred_check_branch
    %157 = sbr.rel (0) target = $region25
  $region24: #{tmgnn_forward.32} parent=0 // pred_region
    _
  $region25: #{tmgnn_forward.32} parent=0 // pred_fallthru
    _
  // Predicated region
  $region26: #{tmgnn_forward.32} parent=0 // pred_check
    _
  $region27: #{tmgnn_forward.32} parent=0 // pred_check_branch
    %159 = sbr.rel (0) target = $region29
  $region28: #{tmgnn_forward.32} parent=0 // pred_region
    _
  $region29: #{tmgnn_forward.32} parent=0 // pred_fallthru
    _

// kernel: tmgnn_forward.38
$region0: #{tmgnn_forward.38}
  #allocation0 [shape = 'u32[]', space=smem, size = 0x4, offset = 0x4, fixed_abs, tag = 'smem constant byte address 0x4 - core index']
  #allocation1 [shape = 'u32[144,128]{1,0:T(1,128)}', space=vmem, size = 0x12000, scoped, tag = 'internal scratch']
  %s0 = inlined_call_operand.vmem [shape: bf16[64,128], index: 0, kind: input, shape index: {}]
  %s1 = inlined_call_operand.vmem [shape: bf16[64,128], index: 1, kind: input, shape index: {}]
  %s2 = inlined_call_operand.vmem [shape: bf16[64,128], index: 2, kind: input, shape index: {}]
  %s3 = inlined_call_operand.vmem [shape: bf16[128,512], index: 3, kind: input, shape index: {}]
  %s4 = inlined_call_operand.vmem [shape: bf16[128,512], index: 4, kind: input, shape index: {}]
  %s5 = inlined_call_operand.vmem [shape: bf16[128,512], index: 5, kind: input, shape index: {}]
  %s6 = inlined_call_operand.vmem [shape: f32[1,512], index: 6, kind: input, shape index: {}]
  %s7 = inlined_call_operand.vmem [shape: f32[64,512], index: 7, kind: output, shape index: {}]
  %s8 = sld [smem:[#allocation0]]
  $region194: #{tmgnn_forward.38} parent=0
    _
  %s10 = ssub.s32 1, %s8
  %s11 = scalar_select 0, %s10, %s8
  $region1: #{tmgnn_forward.38} parent=0
    #allocation2 [shape = 'u8[131072]{0}', space=vmem, size = 0x20000, scoped, tag = 'input window, operand 3']
    #allocation3 [shape = 'u8[131072]{0}', space=vmem, size = 0x20000, scoped, tag = 'input window, operand 4']
    #allocation4 [shape = 'u8[131072]{0}', space=vmem, size = 0x20000, scoped, tag = 'input window, operand 5']
    #allocation5 [shape = 'u8[131072]{0}', space=vmem, size = 0x20000, scoped, tag = 'output window, operand 0']
    loop: start=0, step=1, limit=4
    $region2: #{tmgnn_forward.38} parent=1 // loop_pre_header
      _
    $region3: #{tmgnn_forward.38} parent=1 // loop_header
      %s13 = sphi 0, %s17
      %p14 = scmp.ge.s32.totalorder %s13, 4
      %s20 = sphi 0, %s32
      %s21 = sphi 0, %s28
      %s22 = sphi 0, %s20
      %s23 = sphi 0, %s21
      %s24 = sphi 0, %s22
      %s25 = sphi 0, %s23
      %s35 = sphi 0, %s37
      %s38 = sphi 0, %s35
      %s39 = sphi 0, %s38
      %s55 = sphi 0, %s39
      %s61 = sphi 0, %s63
      %s64 = sphi 0, %s61
      %s65 = sphi 0, %s64
      %s81 = sphi 0, %s65
      %s87 = sphi 0, %s89
      %s90 = sphi 0, %s87
      %s91 = sphi 0, %s90
      %s107 = sphi 0, %s91
      %s113 = sphi 0, %s115
      %s116 = sphi 0, %s113
      %s117 = sphi 0, %s116
      %s133 = sphi 0, %s117
      %s139 = sphi 0, %s141
      %s142 = sphi 0, %s139
      %s143 = sphi 0, %s142
      %s159 = sphi 0, %s143
      %s165 = sphi 0, %s167
      %s168 = sphi 0, %s165
      %s169 = sphi 0, %s168
      %s185 = sphi 0, %s169
      %s191 = sphi 0, %s193
      %s194 = sphi 0, %s191
      %s195 = sphi 0, %s194
      %s211 = sphi 0, %s195
      %s219 = sphi 0, %s221
      %s222 = sphi 0, %s219
      %s223 = sphi 0, %s222
      %s239 = sphi 0, %s223
    $region4: #{tmgnn_forward.38} parent=1 // loop_header_branch
      %16 = sbr.rel (%p14) target = $region8
    $region5: #{tmgnn_forward.38} parent=1 // loop_body
      %s18 = ssub.s32 %s13, 1
      %s19 = ssub.s32 %s13, 2
      %s26 = sadd.s32 1, %s21
      %p27 = scmp.ge.s32.totalorder %s26, 2
      %s28 = scalar_select %p27, 0, %s26
      %s29 = sadd.s32 1, %s20
      %s30 = scalar_select %p27, %s29, %s20
      %p31 = scmp.ge.s32.totalorder %s30, 1
      %s32 = scalar_select %p31, 0, %s30
      %s33 = ssub.s32 %s20, %s32
      %p34 = scmp.eq.s32.totalorder %s33, 0
      %s36 = sadd.s32 %s35, 1
      %s37 = scalar_select %p34, %s35, %s36
      %p40 = pneg %p34
      %p41 = scmp.eq.s32.totalorder %s13, 1
      %p42 = por %p40, %p41
      %p43 = scmp.ne.s32.totalorder %s35, %s38
      %p44 = scmp.eq.s32.totalorder %s13, 0
      %p45 = por %p43, %p44
      %p46 = scmp.ne.s32.totalorder %s35, %s38
      %p47 = scmp.eq.s32.totalorder %s18, 1
      %p48 = por %p46, %p47
      %p49 = scmp.ne.s32.totalorder %s38, %s39
      %p50 = scmp.eq.s32.totalorder %s18, 0
      %p51 = por %p49, %p50
      %p52 = scmp.ne.s32.totalorder %s38, %s39
      %p53 = scmp.eq.s32.totalorder %s19, 1
      %p54 = por %p52, %p53
      %p56 = scmp.ne.s32.totalorder %s39, %s55
      %p57 = scmp.eq.s32.totalorder %s19, 0
      %p58 = por %p56, %p57
      %s59 = ssub.s32 %s20, %s32
      %p60 = scmp.eq.s32.totalorder %s59, 0
      %s62 = sadd.s32 %s61, 1
      %s63 = scalar_select %p60, %s61, %s62
      %p66 = pneg %p60
      %p67 = scmp.eq.s32.totalorder %s13, 1
      %p68 = por %p66, %p67
      %p69 = scmp.ne.s32.totalorder %s61, %s64
      %p70 = scmp.eq.s32.totalorder %s13, 0
      %p71 = por %p69, %p70
      %p72 = scmp.ne.s32.totalorder %s61, %s64
      %p73 = scmp.eq.s32.totalorder %s18, 1
      %p74 = por %p72, %p73
      %p75 = scmp.ne.s32.totalorder %s64, %s65
      %p76 = scmp.eq.s32.totalorder %s18, 0
      %p77 = por %p75, %p76
      %p78 = scmp.ne.s32.totalorder %s64, %s65
      %p79 = scmp.eq.s32.totalorder %s19, 1
      %p80 = por %p78, %p79
      %p82 = scmp.ne.s32.totalorder %s65, %s81
      %p83 = scmp.eq.s32.totalorder %s19, 0
      %p84 = por %p82, %p83
      %s85 = ssub.s32 %s20, %s32
      %p86 = scmp.eq.s32.totalorder %s85, 0
      %s88 = sadd.s32 %s87, 1
      %s89 = scalar_select %p86, %s87, %s88
      %p92 = pneg %p86
      %p93 = scmp.eq.s32.totalorder %s13, 1
      %p94 = por %p92, %p93
      %p95 = scmp.ne.s32.totalorder %s87, %s90
      %p96 = scmp.eq.s32.totalorder %s13, 0
      %p97 = por %p95, %p96
      %p98 = scmp.ne.s32.totalorder %s87, %s90
      %p99 = scmp.eq.s32.totalorder %s18, 1
      %p100 = por %p98, %p99
      %p101 = scmp.ne.s32.totalorder %s90, %s91
      %p102 = scmp.eq.s32.totalorder %s18, 0
      %p103 = por %p101, %p102
      %p104 = scmp.ne.s32.totalorder %s90, %s91
      %p105 = scmp.eq.s32.totalorder %s19, 1
      %p106 = por %p104, %p105
      %p108 = scmp.ne.s32.totalorder %s91, %s107
      %p109 = scmp.eq.s32.totalorder %s19, 0
      %p110 = por %p108, %p109
      %s111 = ssub.s32 %s21, %s28
      %p112 = scmp.eq.s32.totalorder %s111, 0
      %s114 = sadd.s32 %s113, 1
      %s115 = scalar_select %p112, %s113, %s114
      %p118 = pneg %p112
      %p119 = scmp.eq.s32.totalorder %s13, 1
      %p120 = por %p118, %p119
      %p121 = scmp.ne.s32.totalorder %s113, %s116
      %p122 = scmp.eq.s32.totalorder %s13, 0
      %p123 = por %p121, %p122
      %p124 = scmp.ne.s32.totalorder %s113, %s116
      %p125 = scmp.eq.s32.totalorder %s18, 1
      %p126 = por %p124, %p125
      %p127 = scmp.ne.s32.totalorder %s116, %s117
      %p128 = scmp.eq.s32.totalorder %s18, 0
      %p129 = por %p127, %p128
      %p130 = scmp.ne.s32.totalorder %s116, %s117
      %p131 = scmp.eq.s32.totalorder %s19, 1
      %p132 = por %p130, %p131
      %p134 = scmp.ne.s32.totalorder %s117, %s133
      %p135 = scmp.eq.s32.totalorder %s19, 0
      %p136 = por %p134, %p135
      %s137 = ssub.s32 %s21, %s28
      %p138 = scmp.eq.s32.totalorder %s137, 0
      %s140 = sadd.s32 %s139, 1
      %s141 = scalar_select %p138, %s139, %s140
      %p144 = pneg %p138
      %p145 = scmp.eq.s32.totalorder %s13, 1
      %p146 = por %p144, %p145
      %p147 = scmp.ne.s32.totalorder %s139, %s142
      %p148 = scmp.eq.s32.totalorder %s13, 0
      %p149 = por %p147, %p148
      %p150 = scmp.ne.s32.totalorder %s139, %s142
      %p151 = scmp.eq.s32.totalorder %s18, 1
      %p152 = por %p150, %p151
      %p153 = scmp.ne.s32.totalorder %s142, %s143
      %p154 = scmp.eq.s32.totalorder %s18, 0
      %p155 = por %p153, %p154
      %p156 = scmp.ne.s32.totalorder %s142, %s143
      %p157 = scmp.eq.s32.totalorder %s19, 1
      %p158 = por %p156, %p157
      %p160 = scmp.ne.s32.totalorder %s143, %s159
      %p161 = scmp.eq.s32.totalorder %s19, 0
      %p162 = por %p160, %p161
      %s163 = ssub.s32 %s21, %s28
      %p164 = scmp.eq.s32.totalorder %s163, 0
      %s166 = sadd.s32 %s165, 1
      %s167 = scalar_select %p164, %s165, %s166
      %p170 = pneg %p164
      %p171 = scmp.eq.s32.totalorder %s13, 1
      %p172 = por %p170, %p171
      %p173 = scmp.ne.s32.totalorder %s165, %s168
      %p174 = scmp.eq.s32.totalorder %s13, 0
      %p175 = por %p173, %p174
      %p176 = scmp.ne.s32.totalorder %s165, %s168
      %p177 = scmp.eq.s32.totalorder %s18, 1
      %p178 = por %p176, %p177
      %p179 = scmp.ne.s32.totalorder %s168, %s169
      %p180 = scmp.eq.s32.totalorder %s18, 0
      %p181 = por %p179, %p180
      %p182 = scmp.ne.s32.totalorder %s168, %s169
      %p183 = scmp.eq.s32.totalorder %s19, 1
      %p184 = por %p182, %p183
      %p186 = scmp.ne.s32.totalorder %s169, %s185
      %p187 = scmp.eq.s32.totalorder %s19, 0
      %p188 = por %p186, %p187
      %s189 = ssub.s32 %s21, %s28
      %p190 = scmp.eq.s32.totalorder %s189, 0
      %s192 = sadd.s32 %s191, 1
      %s193 = scalar_select %p190, %s191, %s192
      %p196 = pneg %p190
      %p197 = scmp.eq.s32.totalorder %s13, 1
      %p198 = por %p196, %p197
      %p199 = scmp.ne.s32.totalorder %s191, %s194
      %p200 = scmp.eq.s32.totalorder %s13, 0
      %p201 = por %p199, %p200
      %p202 = scmp.ne.s32.totalorder %s191, %s194
      %p203 = scmp.eq.s32.totalorder %s18, 1
      %p204 = por %p202, %p203
      %p205 = scmp.ne.s32.totalorder %s194, %s195
      %p206 = scmp.eq.s32.totalorder %s18, 0
      %p207 = por %p205, %p206
      %p208 = scmp.ne.s32.totalorder %s194, %s195
      %p209 = scmp.eq.s32.totalorder %s19, 1
      %p210 = por %p208, %p209
      %p212 = scmp.ne.s32.totalorder %s195, %s211
      %p213 = scmp.eq.s32.totalorder %s19, 0
      %p214 = por %p212, %p213
      %s215 = ssub.s32 %s20, %s32
      %s216 = ssub.s32 %s21, %s28
      %s217 = sor.u32 %s215, %s216
      %p218 = scmp.eq.s32.totalorder %s217, 0
      %s220 = sadd.s32 %s219, 1
      %s221 = scalar_select %p218, %s219, %s220
      %p224 = pneg %p218
      %p225 = scmp.eq.s32.totalorder %s13, 1
      %p226 = por %p224, %p225
      %p227 = scmp.ne.s32.totalorder %s219, %s222
      %p228 = scmp.eq.s32.totalorder %s13, 0
      %p229 = por %p227, %p228
      %p230 = scmp.ne.s32.totalorder %s219, %s222
      %p231 = scmp.eq.s32.totalorder %s18, 1
      %p232 = por %p230, %p231
      %p233 = scmp.ne.s32.totalorder %s222, %s223
      %p234 = scmp.eq.s32.totalorder %s18, 0
      %p235 = por %p233, %p234
      %p236 = scmp.ne.s32.totalorder %s222, %s223
      %p237 = scmp.eq.s32.totalorder %s19, 1
      %p238 = por %p236, %p237
      %p240 = scmp.ne.s32.totalorder %s223, %s239
      %p241 = scmp.eq.s32.totalorder %s19, 0
      %p242 = por %p240, %p241
      %p243 = scmp.le.s32.totalorder 1, %s13
      %p244 = scmp.lt.s32.totalorder %s13, 3
      %p245 = pnand %p243, %p244
      %p246 = pneg %p245
      // Predicated region
      $region9: #{tmgnn_forward.38} parent=5 // pred_check
        _
      $region10: #{tmgnn_forward.38} parent=5 // pred_check_branch
        %248 = sbr.rel (%p245) target = $region12
      $region11: #{tmgnn_forward.38} parent=5 // pred_region
        %s249 = ssub.s32 %s13, 1
        // Predicated region
        $region13: #{tmgnn_forward.38} parent=11 // pred_check
          %p250 = pneg %p51
        $region14: #{tmgnn_forward.38} parent=11 // pred_check_branch
          %252 = sbr.rel (%p250) target = $region16
        $region15: #{tmgnn_forward.38} parent=11 // pred_region
          %s253 = smul.u32 8, %s22
          %p254 = scmp.lt.s32.totalorder %s253, 7
          %s255 = scalar_select %p254, %s253, 7
          %s256 = smul.addr %s255, 4
          %s257 = scalar_lea.vmem %s0, %s256
          %s258 = smul.u32 8, %s22
        $region16: #{tmgnn_forward.38} parent=11 // pred_fallthru
          _
        // Predicated region
        $region17: #{tmgnn_forward.38} parent=11 // pred_check
          %p259 = pneg %p77
        $region18: #{tmgnn_forward.38} parent=11 // pred_check_branch
          %261 = sbr.rel (%p259) target = $region20
        $region19: #{tmgnn_forward.38} parent=11 // pred_region
          %s262 = smul.u32 8, %s22
          %p263 = scmp.lt.s32.totalorder %s262, 7
          %s264 = scalar_select %p263, %s262, 7
          %s265 = smul.addr %s264, 4
          %s266 = scalar_lea.vmem %s1, %s265
          %s267 = smul.u32 8, %s22
        $region20: #{tmgnn_forward.38} parent=11 // pred_fallthru
          _
        // Predicated region
        $region21: #{tmgnn_forward.38} parent=11 // pred_check
          %p268 = pneg %p103
        $region22: #{tmgnn_forward.38} parent=11 // pred_check_branch
          %270 = sbr.rel (%p268) target = $region24
        $region23: #{tmgnn_forward.38} parent=11 // pred_region
          %s271 = smul.u32 8, %s22
          %p272 = scmp.lt.s32.totalorder %s271, 7
          %s273 = scalar_select %p272, %s271, 7
          %s274 = smul.addr %s273, 4
          %s275 = scalar_lea.vmem %s2, %s274
          %s276 = smul.u32 8, %s22
        $region24: #{tmgnn_forward.38} parent=11 // pred_fallthru
          _
      $region12: #{tmgnn_forward.38} parent=5 // pred_fallthru
        _
      %p277 = scmp.lt.s32.totalorder %s13, 2
      // Predicated region
      $region25: #{tmgnn_forward.38} parent=5 // pred_check
        %p278 = pneg %p277
      $region26: #{tmgnn_forward.38} parent=5 // pred_check_branch
        %280 = sbr.rel (%p278) target = $region28
      $region27: #{tmgnn_forward.38} parent=5 // pred_region
        // Predicated region
        $region29: #{tmgnn_forward.38} parent=27 // pred_check
          %p281 = pneg %p123
        $region30: #{tmgnn_forward.38} parent=27 // pred_check_branch
          %283 = sbr.rel (%p281) target = $region32
        $region31: #{tmgnn_forward.38} parent=27 // pred_region
          %s284 = sand.u32 %s113, 1
          %s285 = sand.u32 %s113, 1
          %s286 = smul.addr %s285, 128
          %s287 = scalar_lea.vmem [#allocation2], %s286
          %s288 = smul.u32 2, %s21
          %s289 = smul.addr %s288, 4
          %s290 = scalar_lea.vmem %s3, %s289
          // Predicated region
          $region33: #{tmgnn_forward.38} parent=31 // pred_check
            _
          $region34: #{tmgnn_forward.38} parent=31 // pred_check_branch
            %292 = sbr.rel (0) target = $region36
          $region35: #{tmgnn_forward.38} parent=31 // pred_region
            // Predicated region
            $region37: #{tmgnn_forward.38} parent=35 // pred_check
              _
            $region38: #{tmgnn_forward.38} parent=35 // pred_check_branch
              %294 = sbr.rel (0) target = $region40
            $region39: #{tmgnn_forward.38} parent=35 // pred_region
              // Predicated region
              $region52: #{tmgnn_forward.38} parent=39 // pred_check
                _
              $region53: #{tmgnn_forward.38} parent=39 // pred_check_branch
                %339 = sbr.rel (0) target = $region55
              $region54: #{tmgnn_forward.38} parent=39 // pred_region
                loop: start=0, step=1, limit=1
                $region56: #{tmgnn_forward.38} parent=54 // loop_pre_header
                  _
                $region57: #{tmgnn_forward.38} parent=54 // loop_header
                  %s341 = sphi 0, %s345
                  %p342 = scmp.ge.s32.totalorder %s341, 1
                  %s346 = sphi %s290, %s290
                  %s347 = sphi %s287, %s287
                $region58: #{tmgnn_forward.38} parent=54 // loop_header_branch
                  %344 = sbr.rel (%p342) target = $region62
                $region59: #{tmgnn_forward.38} parent=54 // loop_body
                  %v348 = vld [vmem:[%s346] sm:$0xff]
                  %349 = vst [vmem:[%s347] sm:$0xff] %v348
                  %v350 = vld [vmem:[%s346 + $0x10] sm:$0xff]
                  %351 = vst [vmem:[%s347 + $0x8] sm:$0xff] %v350
                  %v352 = vld [vmem:[%s346 + $0x20] sm:$0xff]
                  %353 = vst [vmem:[%s347 + $0x10] sm:$0xff] %v352
                  %v354 = vld [vmem:[%s346 + $0x30] sm:$0xff]
                  %355 = vst [vmem:[%s347 + $0x18] sm:$0xff] %v354
                  %v356 = vld [vmem:[%s346 + $0x40] sm:$0xff]
                  %357 = vst [vmem:[%s347 + $0x20] sm:$0xff] %v356
                  %v358 = vld [vmem:[%s346 + $0x50] sm:$0xff]
                  %359 = vst [vmem:[%s347 + $0x28] sm:$0xff] %v358
                  %v360 = vld [vmem:[%s346 + $0x60] sm:$0xff]
                  %361 = vst [vmem:[%s347 + $0x30] sm:$0xff] %v360
                  %v362 = vld [vmem:[%s346 + $0x70] sm:$0xff]
                  %363 = vst [vmem:[%s347 + $0x38] sm:$0xff] %v362
                  %v364 = vld [vmem:[%s346 + $0x80] sm:$0xff]
                  %365 = vst [vmem:[%s347 + $0x40] sm:$0xff] %v364
                  %v366 = vld [vmem:[%s346 + $0x90] sm:$0xff]
                  %367 = vst [vmem:[%s347 + $0x48] sm:$0xff] %v366
                  %v368 = vld [vmem:[%s346 + $0xa0] sm:$0xff]
                  %369 = vst [vmem:[%s347 + $0x50] sm:$0xff] %v368
                  %v370 = vld [vmem:[%s346 + $0xb0] sm:$0xff]
                  %371 = vst [vmem:[%s347 + $0x58] sm:$0xff] %v370
                  %v372 = vld [vmem:[%s346 + $0xc0] sm:$0xff]
                  %373 = vst [vmem:[%s347 + $0x60] sm:$0xff] %v372
                  %v374 = vld [vmem:[%s346 + $0xd0] sm:$0xff]
                  %375 = vst [vmem:[%s347 + $0x68] sm:$0xff] %v374
                  %v376 = vld [vmem:[%s346 + $0xe0] sm:$0xff]
                  %377 = vst [vmem:[%s347 + $0x70] sm:$0xff] %v376
                  %v378 = vld [vmem:[%s346 + $0xf0] sm:$0xff]
                  %379 = vst [vmem:[%s347 + $0x78] sm:$0xff] %v378
                $region60: #{tmgnn_forward.38} parent=54 // loop_footer
                  %s345 = sadd.s32 1, %s341
                $region61: #{tmgnn_forward.38} parent=54 // loop_footer_branch
                  %340 = sbr.rel target = $region57
                $region62: #{tmgnn_forward.38} parent=54 // loop_exit
                  _
              $region55: #{tmgnn_forward.38} parent=39 // pred_fallthru
                _
              // Predicated region
              $region63: #{tmgnn_forward.38} parent=39 // pred_check
                _
              $region64: #{tmgnn_forward.38} parent=39 // pred_check_branch
                %381 = sbr.rel target = $region66
              $region65: #{tmgnn_forward.38} parent=39 // pred_region
                _
              $region66: #{tmgnn_forward.38} parent=39 // pred_fallthru
                _
            $region40: #{tmgnn_forward.38} parent=35 // pred_fallthru
              _
            // Predicated region
            $region41: #{tmgnn_forward.38} parent=35 // pred_check
              _
            $region42: #{tmgnn_forward.38} parent=35 // pred_check_branch
              %296 = sbr.rel target = $region44
            $region43: #{tmgnn_forward.38} parent=35 // pred_region
              loop: start=0, step=1, limit=1
              $region45: #{tmgnn_forward.38} parent=43 // loop_pre_header
                _
              $region46: #{tmgnn_forward.38} parent=43 // loop_header
                %s299 = sphi 0, %s303
                %p300 = scmp.ge.s32.totalorder %s299, 1
                %s304 = sphi %s290, %s290
                %s305 = sphi %s287, %s287
              $region47: #{tmgnn_forward.38} parent=43 // loop_header_branch
                %302 = sbr.rel (%p300) target = $region51
              $region48: #{tmgnn_forward.38} parent=43 // loop_body
                %v306 = vld [vmem:[%s304] sm:$0xff]
                %307 = vst [vmem:[%s305] sm:$0xff] %v306
                %v308 = vld [vmem:[%s304 + $0x10] sm:$0xff]
                %309 = vst [vmem:[%s305 + $0x8] sm:$0xff] %v308
                %v310 = vld [vmem:[%s304 + $0x20] sm:$0xff]
                %311 = vst [vmem:[%s305 + $0x10] sm:$0xff] %v310
                %v312 = vld [vmem:[%s304 + $0x30] sm:$0xff]
                %313 = vst [vmem:[%s305 + $0x18] sm:$0xff] %v312
                %v314 = vld [vmem:[%s304 + $0x40] sm:$0xff]
                %315 = vst [vmem:[%s305 + $0x20] sm:$0xff] %v314
                %v316 = vld [vmem:[%s304 + $0x50] sm:$0xff]
                %317 = vst [vmem:[%s305 + $0x28] sm:$0xff] %v316
                %v318 = vld [vmem:[%s304 + $0x60] sm:$0xff]
                %319 = vst [vmem:[%s305 + $0x30] sm:$0xff] %v318
                %v320 = vld [vmem:[%s304 + $0x70] sm:$0xff]
                %321 = vst [vmem:[%s305 + $0x38] sm:$0xff] %v320
                %v322 = vld [vmem:[%s304 + $0x80] sm:$0xff]
                %323 = vst [vmem:[%s305 + $0x40] sm:$0xff] %v322
                %v324 = vld [vmem:[%s304 + $0x90] sm:$0xff]
                %325 = vst [vmem:[%s305 + $0x48] sm:$0xff] %v324
                %v326 = vld [vmem:[%s304 + $0xa0] sm:$0xff]
                %327 = vst [vmem:[%s305 + $0x50] sm:$0xff] %v326
                %v328 = vld [vmem:[%s304 + $0xb0] sm:$0xff]
                %329 = vst [vmem:[%s305 + $0x58] sm:$0xff] %v328
                %v330 = vld [vmem:[%s304 + $0xc0] sm:$0xff]
                %331 = vst [vmem:[%s305 + $0x60] sm:$0xff] %v330
                %v332 = vld [vmem:[%s304 + $0xd0] sm:$0xff]
                %333 = vst [vmem:[%s305 + $0x68] sm:$0xff] %v332
                %v334 = vld [vmem:[%s304 + $0xe0] sm:$0xff]
                %335 = vst [vmem:[%s305 + $0x70] sm:$0xff] %v334
                %v336 = vld [vmem:[%s304 + $0xf0] sm:$0xff]
                %337 = vst [vmem:[%s305 + $0x78] sm:$0xff] %v336
              $region49: #{tmgnn_forward.38} parent=43 // loop_footer
                %s303 = sadd.s32 1, %s299
              $region50: #{tmgnn_forward.38} parent=43 // loop_footer_branch
                %298 = sbr.rel target = $region46
              $region51: #{tmgnn_forward.38} parent=43 // loop_exit
                _
            $region44: #{tmgnn_forward.38} parent=35 // pred_fallthru
              _
          $region36: #{tmgnn_forward.38} parent=31 // pred_fallthru
            _
          %382 = vnop
        $region32: #{tmgnn_forward.38} parent=27 // pred_fallthru
          _
        // Predicated region
        $region67: #{tmgnn_forward.38} parent=27 // pred_check
          %p383 = pneg %p149
        $region68: #{tmgnn_forward.38} parent=27 // pred_check_branch
          %385 = sbr.rel (%p383) target = $region70
        $region69: #{tmgnn_forward.38} parent=27 // pred_region
          %s386 = sand.u32 %s139, 1
          %s387 = sand.u32 %s139, 1
          %s388 = smul.addr %s387, 128
          %s389 = scalar_lea.vmem [#allocation3], %s388
          %s390 = smul.u32 2, %s21
          %s391 = smul.addr %s390, 4
          %s392 = scalar_lea.vmem %s4, %s391
          // Predicated region
          $region71: #{tmgnn_forward.38} parent=69 // pred_check
            _
          $region72: #{tmgnn_forward.38} parent=69 // pred_check_branch
            %394 = sbr.rel (0) target = $region74
          $region73: #{tmgnn_forward.38} parent=69 // pred_region
            // Predicated region
            $region75: #{tmgnn_forward.38} parent=73 // pred_check
              _
            $region76: #{tmgnn_forward.38} parent=73 // pred_check_branch
              %396 = sbr.rel (0) target = $region78
            $region77: #{tmgnn_forward.38} parent=73 // pred_region
              // Predicated region
              $region90: #{tmgnn_forward.38} parent=77 // pred_check
                _
              $region91: #{tmgnn_forward.38} parent=77 // pred_check_branch
                %441 = sbr.rel (0) target = $region93
              $region92: #{tmgnn_forward.38} parent=77 // pred_region
                loop: start=0, step=1, limit=1
                $region94: #{tmgnn_forward.38} parent=92 // loop_pre_header
                  _
                $region95: #{tmgnn_forward.38} parent=92 // loop_header
                  %s443 = sphi 0, %s447
                  %p444 = scmp.ge.s32.totalorder %s443, 1
                  %s448 = sphi %s392, %s392
                  %s449 = sphi %s389, %s389
                $region96: #{tmgnn_forward.38} parent=92 // loop_header_branch
                  %446 = sbr.rel (%p444) target = $region100
                $region97: #{tmgnn_forward.38} parent=92 // loop_body
                  %v450 = vld [vmem:[%s448] sm:$0xff]
                  %451 = vst [vmem:[%s449] sm:$0xff] %v450
                  %v452 = vld [vmem:[%s448 + $0x10] sm:$0xff]
                  %453 = vst [vmem:[%s449 + $0x8] sm:$0xff] %v452
                  %v454 = vld [vmem:[%s448 + $0x20] sm:$0xff]
                  %455 = vst [vmem:[%s449 + $0x10] sm:$0xff] %v454
                  %v456 = vld [vmem:[%s448 + $0x30] sm:$0xff]
                  %457 = vst [vmem:[%s449 + $0x18] sm:$0xff] %v456
                  %v458 = vld [vmem:[%s448 + $0x40] sm:$0xff]
                  %459 = vst [vmem:[%s449 + $0x20] sm:$0xff] %v458
                  %v460 = vld [vmem:[%s448 + $0x50] sm:$0xff]
                  %461 = vst [vmem:[%s449 + $0x28] sm:$0xff] %v460
                  %v462 = vld [vmem:[%s448 + $0x60] sm:$0xff]
                  %463 = vst [vmem:[%s449 + $0x30] sm:$0xff] %v462
                  %v464 = vld [vmem:[%s448 + $0x70] sm:$0xff]
                  %465 = vst [vmem:[%s449 + $0x38] sm:$0xff] %v464
                  %v466 = vld [vmem:[%s448 + $0x80] sm:$0xff]
                  %467 = vst [vmem:[%s449 + $0x40] sm:$0xff] %v466
                  %v468 = vld [vmem:[%s448 + $0x90] sm:$0xff]
                  %469 = vst [vmem:[%s449 + $0x48] sm:$0xff] %v468
                  %v470 = vld [vmem:[%s448 + $0xa0] sm:$0xff]
                  %471 = vst [vmem:[%s449 + $0x50] sm:$0xff] %v470
                  %v472 = vld [vmem:[%s448 + $0xb0] sm:$0xff]
                  %473 = vst [vmem:[%s449 + $0x58] sm:$0xff] %v472
                  %v474 = vld [vmem:[%s448 + $0xc0] sm:$0xff]
                  %475 = vst [vmem:[%s449 + $0x60] sm:$0xff] %v474
                  %v476 = vld [vmem:[%s448 + $0xd0] sm:$0xff]
                  %477 = vst [vmem:[%s449 + $0x68] sm:$0xff] %v476
                  %v478 = vld [vmem:[%s448 + $0xe0] sm:$0xff]
                  %479 = vst [vmem:[%s449 + $0x70] sm:$0xff] %v478
                  %v480 = vld [vmem:[%s448 + $0xf0] sm:$0xff]
                  %481 = vst [vmem:[%s449 + $0x78] sm:$0xff] %v480
                $region98: #{tmgnn_forward.38} parent=92 // loop_footer
                  %s447 = sadd.s32 1, %s443
                $region99: #{tmgnn_forward.38} parent=92 // loop_footer_branch
                  %442 = sbr.rel target = $region95
                $region100: #{tmgnn_forward.38} parent=92 // loop_exit
                  _
              $region93: #{tmgnn_forward.38} parent=77 // pred_fallthru
                _
              // Predicated region
              $region101: #{tmgnn_forward.38} parent=77 // pred_check
                _
              $region102: #{tmgnn_forward.38} parent=77 // pred_check_branch
                %483 = sbr.rel target = $region104
              $region103: #{tmgnn_forward.38} parent=77 // pred_region
                _
              $region104: #{tmgnn_forward.38} parent=77 // pred_fallthru
                _
            $region78: #{tmgnn_forward.38} parent=73 // pred_fallthru
              _
            // Predicated region
            $region79: #{tmgnn_forward.38} parent=73 // pred_check
              _
            $region80: #{tmgnn_forward.38} parent=73 // pred_check_branch
              %398 = sbr.rel target = $region82
            $region81: #{tmgnn_forward.38} parent=73 // pred_region
              loop: start=0, step=1, limit=1
              $region83: #{tmgnn_forward.38} parent=81 // loop_pre_header
                _
              $region84: #{tmgnn_forward.38} parent=81 // loop_header
                %s401 = sphi 0, %s405
                %p402 = scmp.ge.s32.totalorder %s401, 1
                %s406 = sphi %s392, %s392
                %s407 = sphi %s389, %s389
              $region85: #{tmgnn_forward.38} parent=81 // loop_header_branch
                %404 = sbr.rel (%p402) target = $region89
              $region86: #{tmgnn_forward.38} parent=81 // loop_body
                %v408 = vld [vmem:[%s406] sm:$0xff]
                %409 = vst [vmem:[%s407] sm:$0xff] %v408
                %v410 = vld [vmem:[%s406 + $0x10] sm:$0xff]
                %411 = vst [vmem:[%s407 + $0x8] sm:$0xff] %v410
                %v412 = vld [vmem:[%s406 + $0x20] sm:$0xff]
                %413 = vst [vmem:[%s407 + $0x10] sm:$0xff] %v412
                %v414 = vld [vmem:[%s406 + $0x30] sm:$0xff]
                %415 = vst [vmem:[%s407 + $0x18] sm:$0xff] %v414
                %v416 = vld [vmem:[%s406 + $0x40] sm:$0xff]
                %417 = vst [vmem:[%s407 + $0x20] sm:$0xff] %v416
                %v418 = vld [vmem:[%s406 + $0x50] sm:$0xff]
                %419 = vst [vmem:[%s407 + $0x28] sm:$0xff] %v418
                %v420 = vld [vmem:[%s406 + $0x60] sm:$0xff]
                %421 = vst [vmem:[%s407 + $0x30] sm:$0xff] %v420
                %v422 = vld [vmem:[%s406 + $0x70] sm:$0xff]
                %423 = vst [vmem:[%s407 + $0x38] sm:$0xff] %v422
                %v424 = vld [vmem:[%s406 + $0x80] sm:$0xff]
                %425 = vst [vmem:[%s407 + $0x40] sm:$0xff] %v424
                %v426 = vld [vmem:[%s406 + $0x90] sm:$0xff]
                %427 = vst [vmem:[%s407 + $0x48] sm:$0xff] %v426
                %v428 = vld [vmem:[%s406 + $0xa0] sm:$0xff]
                %429 = vst [vmem:[%s407 + $0x50] sm:$0xff] %v428
                %v430 = vld [vmem:[%s406 + $0xb0] sm:$0xff]
                %431 = vst [vmem:[%s407 + $0x58] sm:$0xff] %v430
                %v432 = vld [vmem:[%s406 + $0xc0] sm:$0xff]
                %433 = vst [vmem:[%s407 + $0x60] sm:$0xff] %v432
                %v434 = vld [vmem:[%s406 + $0xd0] sm:$0xff]
                %435 = vst [vmem:[%s407 + $0x68] sm:$0xff] %v434
                %v436 = vld [vmem:[%s406 + $0xe0] sm:$0xff]
                %437 = vst [vmem:[%s407 + $0x70] sm:$0xff] %v436
                %v438 = vld [vmem:[%s406 + $0xf0] sm:$0xff]
                %439 = vst [vmem:[%s407 + $0x78] sm:$0xff] %v438
              $region87: #{tmgnn_forward.38} parent=81 // loop_footer
                %s405 = sadd.s32 1, %s401
              $region88: #{tmgnn_forward.38} parent=81 // loop_footer_branch
                %400 = sbr.rel target = $region84
              $region89: #{tmgnn_forward.38} parent=81 // loop_exit
                _
            $region82: #{tmgnn_forward.38} parent=73 // pred_fallthru
              _
          $region74: #{tmgnn_forward.38} parent=69 // pred_fallthru
            _
          %484 = vnop
        $region70: #{tmgnn_forward.38} parent=27 // pred_fallthru
          _
        // Predicated region
        $region105: #{tmgnn_forward.38} parent=27 // pred_check
          %p485 = pneg %p175
        $region106: #{tmgnn_forward.38} parent=27 // pred_check_branch
          %487 = sbr.rel (%p485) target = $region108
        $region107: #{tmgnn_forward.38} parent=27 // pred_region
          %s488 = sand.u32 %s165, 1
          %s489 = sand.u32 %s165, 1
          %s490 = smul.addr %s489, 128
          %s491 = scalar_lea.vmem [#allocation4], %s490
          %s492 = smul.u32 2, %s21
          %s493 = smul.addr %s492, 4
          %s494 = scalar_lea.vmem %s5, %s493
          // Predicated region
          $region109: #{tmgnn_forward.38} parent=107 // pred_check
            _
          $region110: #{tmgnn_forward.38} parent=107 // pred_check_branch
            %496 = sbr.rel (0) target = $region112
          $region111: #{tmgnn_forward.38} parent=107 // pred_region
            // Predicated region
            $region113: #{tmgnn_forward.38} parent=111 // pred_check
              _
            $region114: #{tmgnn_forward.38} parent=111 // pred_check_branch
              %498 = sbr.rel (0) target = $region116
            $region115: #{tmgnn_forward.38} parent=111 // pred_region
              // Predicated region
              $region128: #{tmgnn_forward.38} parent=115 // pred_check
                _
              $region129: #{tmgnn_forward.38} parent=115 // pred_check_branch
                %543 = sbr.rel (0) target = $region131
              $region130: #{tmgnn_forward.38} parent=115 // pred_region
                loop: start=0, step=1, limit=1
                $region132: #{tmgnn_forward.38} parent=130 // loop_pre_header
                  _
                $region133: #{tmgnn_forward.38} parent=130 // loop_header
                  %s545 = sphi 0, %s549
                  %p546 = scmp.ge.s32.totalorder %s545, 1
                  %s550 = sphi %s494, %s494
                  %s551 = sphi %s491, %s491
                $region134: #{tmgnn_forward.38} parent=130 // loop_header_branch
                  %548 = sbr.rel (%p546) target = $region138
                $region135: #{tmgnn_forward.38} parent=130 // loop_body
                  %v552 = vld [vmem:[%s550] sm:$0xff]
                  %553 = vst [vmem:[%s551] sm:$0xff] %v552
                  %v554 = vld [vmem:[%s550 + $0x10] sm:$0xff]
                  %555 = vst [vmem:[%s551 + $0x8] sm:$0xff] %v554
                  %v556 = vld [vmem:[%s550 + $0x20] sm:$0xff]
                  %557 = vst [vmem:[%s551 + $0x10] sm:$0xff] %v556
                  %v558 = vld [vmem:[%s550 + $0x30] sm:$0xff]
                  %559 = vst [vmem:[%s551 + $0x18] sm:$0xff] %v558
                  %v560 = vld [vmem:[%s550 + $0x40] sm:$0xff]
                  %561 = vst [vmem:[%s551 + $0x20] sm:$0xff] %v560
                  %v562 = vld [vmem:[%s550 + $0x50] sm:$0xff]
                  %563 = vst [vmem:[%s551 + $0x28] sm:$0xff] %v562
                  %v564 = vld [vmem:[%s550 + $0x60] sm:$0xff]
                  %565 = vst [vmem:[%s551 + $0x30] sm:$0xff] %v564
                  %v566 = vld [vmem:[%s550 + $0x70] sm:$0xff]
                  %567 = vst [vmem:[%s551 + $0x38] sm:$0xff] %v566
                  %v568 = vld [vmem:[%s550 + $0x80] sm:$0xff]
                  %569 = vst [vmem:[%s551 + $0x40] sm:$0xff] %v568
                  %v570 = vld [vmem:[%s550 + $0x90] sm:$0xff]
                  %571 = vst [vmem:[%s551 + $0x48] sm:$0xff] %v570
                  %v572 = vld [vmem:[%s550 + $0xa0] sm:$0xff]
                  %573 = vst [vmem:[%s551 + $0x50] sm:$0xff] %v572
                  %v574 = vld [vmem:[%s550 + $0xb0] sm:$0xff]
                  %575 = vst [vmem:[%s551 + $0x58] sm:$0xff] %v574
                  %v576 = vld [vmem:[%s550 + $0xc0] sm:$0xff]
                  %577 = vst [vmem:[%s551 + $0x60] sm:$0xff] %v576
                  %v578 = vld [vmem:[%s550 + $0xd0] sm:$0xff]
                  %579 = vst [vmem:[%s551 + $0x68] sm:$0xff] %v578
                  %v580 = vld [vmem:[%s550 + $0xe0] sm:$0xff]
                  %581 = vst [vmem:[%s551 + $0x70] sm:$0xff] %v580
                  %v582 = vld [vmem:[%s550 + $0xf0] sm:$0xff]
                  %583 = vst [vmem:[%s551 + $0x78] sm:$0xff] %v582
                $region136: #{tmgnn_forward.38} parent=130 // loop_footer
                  %s549 = sadd.s32 1, %s545
                $region137: #{tmgnn_forward.38} parent=130 // loop_footer_branch
                  %544 = sbr.rel target = $region133
                $region138: #{tmgnn_forward.38} parent=130 // loop_exit
                  _
              $region131: #{tmgnn_forward.38} parent=115 // pred_fallthru
                _
              // Predicated region
              $region139: #{tmgnn_forward.38} parent=115 // pred_check
                _
              $region140: #{tmgnn_forward.38} parent=115 // pred_check_branch
                %585 = sbr.rel target = $region142
              $region141: #{tmgnn_forward.38} parent=115 // pred_region
                _
              $region142: #{tmgnn_forward.38} parent=115 // pred_fallthru
                _
            $region116: #{tmgnn_forward.38} parent=111 // pred_fallthru
              _
            // Predicated region
            $region117: #{tmgnn_forward.38} parent=111 // pred_check
              _
            $region118: #{tmgnn_forward.38} parent=111 // pred_check_branch
              %500 = sbr.rel target = $region120
            $region119: #{tmgnn_forward.38} parent=111 // pred_region
              loop: start=0, step=1, limit=1
              $region121: #{tmgnn_forward.38} parent=119 // loop_pre_header
                _
              $region122: #{tmgnn_forward.38} parent=119 // loop_header
                %s503 = sphi 0, %s507
                %p504 = scmp.ge.s32.totalorder %s503, 1
                %s508 = sphi %s494, %s494
                %s509 = sphi %s491, %s491
              $region123: #{tmgnn_forward.38} parent=119 // loop_header_branch
                %506 = sbr.rel (%p504) target = $region127
              $region124: #{tmgnn_forward.38} parent=119 // loop_body
                %v510 = vld [vmem:[%s508] sm:$0xff]
                %511 = vst [vmem:[%s509] sm:$0xff] %v510
                %v512 = vld [vmem:[%s508 + $0x10] sm:$0xff]
                %513 = vst [vmem:[%s509 + $0x8] sm:$0xff] %v512
                %v514 = vld [vmem:[%s508 + $0x20] sm:$0xff]
                %515 = vst [vmem:[%s509 + $0x10] sm:$0xff] %v514
                %v516 = vld [vmem:[%s508 + $0x30] sm:$0xff]
                %517 = vst [vmem:[%s509 + $0x18] sm:$0xff] %v516
                %v518 = vld [vmem:[%s508 + $0x40] sm:$0xff]
                %519 = vst [vmem:[%s509 + $0x20] sm:$0xff] %v518
                %v520 = vld [vmem:[%s508 + $0x50] sm:$0xff]
                %521 = vst [vmem:[%s509 + $0x28] sm:$0xff] %v520
                %v522 = vld [vmem:[%s508 + $0x60] sm:$0xff]
                %523 = vst [vmem:[%s509 + $0x30] sm:$0xff] %v522
                %v524 = vld [vmem:[%s508 + $0x70] sm:$0xff]
                %525 = vst [vmem:[%s509 + $0x38] sm:$0xff] %v524
                %v526 = vld [vmem:[%s508 + $0x80] sm:$0xff]
                %527 = vst [vmem:[%s509 + $0x40] sm:$0xff] %v526
                %v528 = vld [vmem:[%s508 + $0x90] sm:$0xff]
                %529 = vst [vmem:[%s509 + $0x48] sm:$0xff] %v528
                %v530 = vld [vmem:[%s508 + $0xa0] sm:$0xff]
                %531 = vst [vmem:[%s509 + $0x50] sm:$0xff] %v530
                %v532 = vld [vmem:[%s508 + $0xb0] sm:$0xff]
                %533 = vst [vmem:[%s509 + $0x58] sm:$0xff] %v532
                %v534 = vld [vmem:[%s508 + $0xc0] sm:$0xff]
                %535 = vst [vmem:[%s509 + $0x60] sm:$0xff] %v534
                %v536 = vld [vmem:[%s508 + $0xd0] sm:$0xff]
                %537 = vst [vmem:[%s509 + $0x68] sm:$0xff] %v536
                %v538 = vld [vmem:[%s508 + $0xe0] sm:$0xff]
                %539 = vst [vmem:[%s509 + $0x70] sm:$0xff] %v538
                %v540 = vld [vmem:[%s508 + $0xf0] sm:$0xff]
                %541 = vst [vmem:[%s509 + $0x78] sm:$0xff] %v540
              $region125: #{tmgnn_forward.38} parent=119 // loop_footer
                %s507 = sadd.s32 1, %s503
              $region126: #{tmgnn_forward.38} parent=119 // loop_footer_branch
                %502 = sbr.rel target = $region122
              $region127: #{tmgnn_forward.38} parent=119 // loop_exit
                _
            $region120: #{tmgnn_forward.38} parent=111 // pred_fallthru
              _
          $region112: #{tmgnn_forward.38} parent=107 // pred_fallthru
            _
          %586 = vnop
        $region108: #{tmgnn_forward.38} parent=27 // pred_fallthru
          _
        // Predicated region
        $region143: #{tmgnn_forward.38} parent=27 // pred_check
          %p587 = pneg %p201
        $region144: #{tmgnn_forward.38} parent=27 // pred_check_branch
          %589 = sbr.rel (%p587) target = $region146
        $region145: #{tmgnn_forward.38} parent=27 // pred_region
          %s590 = smul.u32 2, %s21
          %p591 = scmp.lt.s32.totalorder %s590, 3
          %s592 = scalar_select %p591, %s590, 3
          %s593 = scalar_lea.vmem %s6, %s592
          %s594 = smul.u32 2, %s21
        $region146: #{tmgnn_forward.38} parent=27 // pred_fallthru
          _
      $region28: #{tmgnn_forward.38} parent=5 // pred_fallthru
        _
      %p595 = scmp.le.s32.totalorder 1, %s13
      %p596 = scmp.lt.s32.totalorder %s13, 3
      %p597 = pnand %p595, %p596
      %p598 = pneg %p597
      // Predicated region
      $region147: #{tmgnn_forward.38} parent=5 // pred_check
        _
      $region148: #{tmgnn_forward.38} parent=5 // pred_check_branch
        %600 = sbr.rel (%p597) target = $region150
      $region149: #{tmgnn_forward.38} parent=5 // pred_region
        %s601 = ssub.s32 %s13, 1
        %s602 = sand.u32 %s116, 1
        %s603 = sand.u32 %s116, 1
        %s604 = smul.addr %s603, 128
        %s605 = scalar_lea.vmem [#allocation2], %s604
        // Predicated region
        $region151: #{tmgnn_forward.38} parent=149 // pred_check
          %p606 = pneg %p129
        $region152: #{tmgnn_forward.38} parent=149 // pred_check_branch
          %608 = sbr.rel (%p606) target = $region154
        $region153: #{tmgnn_forward.38} parent=149 // pred_region
          _
        $region154: #{tmgnn_forward.38} parent=149 // pred_fallthru
          _
        %s609 = sand.u32 %s142, 1
        %s610 = sand.u32 %s142, 1
        %s611 = smul.addr %s610, 128
        %s612 = scalar_lea.vmem [#allocation3], %s611
        // Predicated region
        $region155: #{tmgnn_forward.38} parent=149 // pred_check
          %p613 = pneg %p155
        $region156: #{tmgnn_forward.38} parent=149 // pred_check_branch
          %615 = sbr.rel (%p613) target = $region158
        $region157: #{tmgnn_forward.38} parent=149 // pred_region
          _
        $region158: #{tmgnn_forward.38} parent=149 // pred_fallthru
          _
        %s616 = sand.u32 %s168, 1
        %s617 = sand.u32 %s168, 1
        %s618 = smul.addr %s617, 128
        %s619 = scalar_lea.vmem [#allocation4], %s618
        // Predicated region
        $region159: #{tmgnn_forward.38} parent=149 // pred_check
          %p620 = pneg %p181
        $region160: #{tmgnn_forward.38} parent=149 // pred_check_branch
          %622 = sbr.rel (%p620) target = $region162
        $region161: #{tmgnn_forward.38} parent=149 // pred_region
          _
        $region162: #{tmgnn_forward.38} parent=149 // pred_fallthru
          _
        %s623 = smul.u32 8, %s22
        %p624 = scmp.lt.s32.totalorder %s623, 7
        %s625 = scalar_select %p624, %s623, 7
        %s626 = smul.addr %s625, 4
        %s627 = scalar_lea.vmem %s0, %s626
        %p628 = pneg %p51
        %p629 = pneg %p48
        %s630 = smul.u32 8, %s22
        %p631 = scmp.lt.s32.totalorder %s630, 7
        %s632 = scalar_select %p631, %s630, 7
        %s633 = smul.addr %s632, 4
        %s634 = scalar_lea.vmem %s1, %s633
        %p635 = pneg %p77
        %p636 = pneg %p74
        %s637 = smul.u32 8, %s22
        %p638 = scmp.lt.s32.totalorder %s637, 7
        %s639 = scalar_select %p638, %s637, 7
        %s640 = smul.addr %s639, 4
        %s641 = scalar_lea.vmem %s2, %s640
        %p642 = pneg %p103
        %p643 = pneg %p100
        %s644 = sand.u32 %s116, 1
        %s645 = sand.u32 %s116, 1
        %s646 = smul.addr %s645, 128
        %s647 = scalar_lea.vmem [#allocation2], %s646
        %p648 = pneg %p129
        %p649 = pneg %p126
        %s650 = sand.u32 %s142, 1
        %s651 = sand.u32 %s142, 1
        %s652 = smul.addr %s651, 128
        %s653 = scalar_lea.vmem [#allocation3], %s652
        %p654 = pneg %p155
        %p655 = pneg %p152
        %s656 = sand.u32 %s168, 1
        %s657 = sand.u32 %s168, 1
        %s658 = smul.addr %s657, 128
        %s659 = scalar_lea.vmem [#allocation4], %s658
        %p660 = pneg %p181
        %p661 = pneg %p178
        %s662 = smul.u32 2, %s23
        %p663 = scmp.lt.s32.totalorder %s662, 3
        %s664 = scalar_select %p663, %s662, 3
        %s665 = scalar_lea.vmem %s6, %s664
        %p666 = pneg %p207
        %p667 = pneg %p204
        %p668 = pneg %p235
        %p669 = pneg %p232
        %s670 = sand.u32 %s222, 1
        %s671 = sand.u32 %s222, 1
        %s672 = smul.addr %s671, 128
        %s673 = scalar_lea.vmem [#allocation5], %s672
        %s674 = smul.u32 8, %s22
        %p675 = scmp.lt.s32.totalorder %s674, 7
        %s676 = scalar_select %p675, %s674, 7
        %s677 = smul.addr %s676, 4
        %s678 = scalar_lea.vmem %s0, %s677
        %s679 = smul.u32 8, %s22
        %s680 = smul.u32 8, %s22
        %p681 = scmp.lt.s32.totalorder %s680, 7
        %s682 = scalar_select %p681, %s680, 7
        %s683 = smul.addr %s682, 4
        %s684 = scalar_lea.vmem %s1, %s683
        %s685 = smul.u32 8, %s22
        %s686 = smul.u32 8, %s22
        %p687 = scmp.lt.s32.totalorder %s686, 7
        %s688 = scalar_select %p687, %s686, 7
        %s689 = smul.addr %s688, 4
        %s690 = scalar_lea.vmem %s2, %s689
        %s691 = smul.u32 8, %s22
        %s692 = smul.u32 2, %s23
        %s693 = smul.u32 2, %s23
        %s694 = smul.u32 2, %s23
        %s695 = smul.u32 2, %s23
        %p696 = scmp.lt.s32.totalorder %s695, 3
        %s697 = scalar_select %p696, %s695, 3
        %s698 = scalar_lea.vmem %s6, %s697
        %s699 = smul.u32 2, %s23
        %s700 = smul.u32 8, %s22
        %s701 = smul.u32 2, %s23
        %v703 = vld [vmem:[%s678] sm:$0xf]
        %v704 = vld [vmem:[%s678 + $0x4] sm:$0xf]
        %v705 = vld [vmem:[%s678 + $0x8] sm:$0xf]
        %v706 = vld [vmem:[%s678 + $0xc] sm:$0xf]
        %v707 = vld [vmem:[%s678 + $0x10] sm:$0xf]
        %v708 = vld [vmem:[%s678 + $0x14] sm:$0xf]
        %v709 = vld [vmem:[%s678 + $0x18] sm:$0xf]
        %v710 = vld [vmem:[%s678 + $0x1c] sm:$0xf]
        %v711 = vld [vmem:[%s605] sm:$0xff]
        %v712 = vld [vmem:[%s605 + $0x8] sm:$0xff]
        %v713 = vld [vmem:[%s605 + $0x10] sm:$0xff]
        %v714 = vld [vmem:[%s605 + $0x18] sm:$0xff]
        %v715 = vld [vmem:[%s605 + $0x20] sm:$0xff]
        %v716 = vld [vmem:[%s605 + $0x28] sm:$0xff]
        %v717 = vld [vmem:[%s605 + $0x30] sm:$0xff]
        %v718 = vld [vmem:[%s605 + $0x38] sm:$0xff]
        %v719 = vld [vmem:[%s605 + $0x40] sm:$0xff]
        %v720 = vld [vmem:[%s605 + $0x48] sm:$0xff]
        %v721 = vld [vmem:[%s605 + $0x50] sm:$0xff]
        %v722 = vld [vmem:[%s605 + $0x58] sm:$0xff]
        %v723 = vld [vmem:[%s605 + $0x60] sm:$0xff]
        %v724 = vld [vmem:[%s605 + $0x68] sm:$0xff]
        %v725 = vld [vmem:[%s605 + $0x70] sm:$0xff]
        %v726 = vld [vmem:[%s605 + $0x78] sm:$0xff]
        %v727 = vld [vmem:[%s684] sm:$0xf]
        %v728 = vld [vmem:[%s684 + $0x4] sm:$0xf]
        %v729 = vld [vmem:[%s684 + $0x8] sm:$0xf]
        %v730 = vld [vmem:[%s684 + $0xc] sm:$0xf]
        %v731 = vld [vmem:[%s684 + $0x10] sm:$0xf]
        %v732 = vld [vmem:[%s684 + $0x14] sm:$0xf]
        %v733 = vld [vmem:[%s684 + $0x18] sm:$0xf]
        %v734 = vld [vmem:[%s684 + $0x1c] sm:$0xf]
        %v735 = vld [vmem:[%s612] sm:$0xff]
        %v736 = vld [vmem:[%s612 + $0x8] sm:$0xff]
        %v737 = vld [vmem:[%s612 + $0x10] sm:$0xff]
        %v738 = vld [vmem:[%s612 + $0x18] sm:$0xff]
        %v739 = vld [vmem:[%s612 + $0x20] sm:$0xff]
        %v740 = vld [vmem:[%s612 + $0x28] sm:$0xff]
        %v741 = vld [vmem:[%s612 + $0x30] sm:$0xff]
        %v742 = vld [vmem:[%s612 + $0x38] sm:$0xff]
        %v743 = vld [vmem:[%s612 + $0x40] sm:$0xff]
        %v744 = vld [vmem:[%s612 + $0x48] sm:$0xff]
        %v745 = vld [vmem:[%s612 + $0x50] sm:$0xff]
        %v746 = vld [vmem:[%s612 + $0x58] sm:$0xff]
        %v747 = vld [vmem:[%s612 + $0x60] sm:$0xff]
        %v748 = vld [vmem:[%s612 + $0x68] sm:$0xff]
        %v749 = vld [vmem:[%s612 + $0x70] sm:$0xff]
        %v750 = vld [vmem:[%s612 + $0x78] sm:$0xff]
        %v759 = vunpack.c.l.b16 %v727
        %v760 = vunpack.c.l.b16 %v728
        %v761 = vunpack.c.l.b16 %v729
        %v762 = vunpack.c.l.b16 %v730
        %v763 = vunpack.c.l.b16 %v731
        %v764 = vunpack.c.l.b16 %v732
        %v765 = vunpack.c.l.b16 %v733
        %v766 = vunpack.c.l.b16 %v734
        %v767 = vpack.c.b16 %v760, %v759
        %v768 = vpack.c.b16 %v762, %v761
        %v769 = vpack.c.b16 %v764, %v763
        %v770 = vpack.c.b16 %v766, %v765
        %v791 = vunpack.c.l.b16 %v735
        %v792 = vunpack.c.h.b16 %v735
        %v793 = vunpack.c.l.b16 %v736
        %v794 = vunpack.c.h.b16 %v736
        %v795 = vunpack.c.l.b16 %v737
        %v796 = vunpack.c.h.b16 %v737
        %v797 = vunpack.c.l.b16 %v738
        %v798 = vunpack.c.h.b16 %v738
        %v799 = vunpack.c.l.b16 %v739
        %v800 = vunpack.c.h.b16 %v739
        %v801 = vunpack.c.l.b16 %v740
        %v802 = vunpack.c.h.b16 %v740
        %v803 = vunpack.c.l.b16 %v741
        %v804 = vunpack.c.h.b16 %v741
        %v805 = vunpack.c.l.b16 %v742
        %v806 = vunpack.c.h.b16 %v742
        %v807 = vunpack.c.l.b16 %v743
        %v808 = vunpack.c.h.b16 %v743
        %v809 = vunpack.c.l.b16 %v744
        %v810 = vunpack.c.h.b16 %v744
        %v811 = vunpack.c.l.b16 %v745
        %v812 = vunpack.c.h.b16 %v745
        %v813 = vunpack.c.l.b16 %v746
        %v814 = vunpack.c.h.b16 %v746
        %v815 = vunpack.c.l.b16 %v747
        %v816 = vunpack.c.h.b16 %v747
        %v817 = vunpack.c.l.b16 %v748
        %v818 = vunpack.c.h.b16 %v748
        %v819 = vunpack.c.l.b16 %v749
        %v820 = vunpack.c.h.b16 %v749
        %v821 = vunpack.c.l.b16 %v750
        %v822 = vunpack.c.h.b16 %v750
        %v823 = vpack.c.b16 %v793, %v791
        %v824 = vpack.c.b16 %v794, %v792
        %v825 = vpack.c.b16 %v797, %v795
        %v826 = vpack.c.b16 %v798, %v796
        %v827 = vpack.c.b16 %v801, %v799
        %v828 = vpack.c.b16 %v802, %v800
        %v829 = vpack.c.b16 %v805, %v803
        %v830 = vpack.c.b16 %v806, %v804
        %v831 = vpack.c.b16 %v809, %v807
        %v832 = vpack.c.b16 %v810, %v808
        %v833 = vpack.c.b16 %v813, %v811
        %v834 = vpack.c.b16 %v814, %v812
        %v835 = vpack.c.b16 %v817, %v815
        %v836 = vpack.c.b16 %v818, %v816
        %v837 = vpack.c.b16 %v821, %v819
        %v838 = vpack.c.b16 %v822, %v820
        %855 = vmatprep.subr.bf16.mxu0 %v824
        %856 = vmatpush1.bf16.msra.mxu0 %v823
        %857 = vmatprep.subr.bf16.mxu0 %v826
        %858 = vmatpush1.bf16.msra.mxu0 %v825
        %859 = vmatprep.subr.bf16.mxu0 %v828
        %860 = vmatpush1.bf16.msra.mxu0 %v827
        %861 = vmatprep.subr.bf16.mxu0 %v830
        %862 = vmatpush1.bf16.msra.mxu0 %v829
        %863 = vmatprep.subr.bf16.mxu0 %v832
        %864 = vmatpush1.bf16.msra.mxu0 %v831
        %865 = vmatprep.subr.bf16.mxu0 %v834
        %866 = vmatpush1.bf16.msra.mxu0 %v833
        %867 = vmatprep.subr.bf16.mxu0 %v836
        %868 = vmatpush1.bf16.msra.mxu0 %v835
        %869 = vmatprep.subr.bf16.mxu0 %v838
        %870 = vmatpush1.bf16.msra.mxu0 %v837
        %871 = vmatprep.subr.bf16.mxu0 0
        %872 = vmatpush1.bf16.msra.mxu0 0
        %873 = vmatprep.subr.bf16.mxu0 0
        %874 = vmatpush1.bf16.msra.mxu0 0
        %875 = vmatprep.subr.bf16.mxu0 0
        %876 = vmatpush1.bf16.msra.mxu0 0
        %877 = vmatprep.subr.bf16.mxu0 0
        %878 = vmatpush1.bf16.msra.mxu0 0
        %879 = vmatprep.subr.bf16.mxu0 0
        %880 = vmatpush1.bf16.msra.mxu0 0
        %881 = vmatprep.subr.bf16.mxu0 0
        %882 = vmatpush1.bf16.msra.mxu0 0
        %883 = vmatprep.subr.bf16.mxu0 0
        %884 = vmatpush1.bf16.msra.mxu0 0
        %885 = vmatprep.subr.bf16.mxu0 0
        %886 = vmatpush1.bf16.msra.mxu0 0
        %887 = vmatprep.mubr.bf16.mxu0 0
        %888 = vmatmul.mubr.bf16.gmra.mrb[0].mxu0 %v767
        %v889 = vpop.f32.mrb[0].mxu0
        %v890 = vadd.f32 0.0, %v889
        %v891 = vpop.f32.mrb[0].mxu0
        %v892 = vadd.f32 0.0, %v891
        %v893 = vpop.f32.mrb[0].mxu0
        %v894 = vadd.f32 0.0, %v893
        %v895 = vpop.f32.mrb[0].mxu0
        %v896 = vadd.f32 0.0, %v895
        %897 = vmatprep.mubr.bf16.mxu0 0
        %898 = vmatmul.mubr.bf16.gmra.mrb[0].mxu0 %v768
        %v899 = vpop.f32.mrb[0].mxu0
        %v900 = vadd.f32 0.0, %v899
        %v901 = vpop.f32.mrb[0].mxu0
        %v902 = vadd.f32 0.0, %v901
        %v903 = vpop.f32.mrb[0].mxu0
        %v904 = vadd.f32 0.0, %v903
        %v905 = vpop.f32.mrb[0].mxu0
        %v906 = vadd.f32 0.0, %v905
        %907 = vmatprep.mubr.bf16.mxu0 0
        %908 = vmatmul.mubr.bf16.gmra.mrb[0].mxu0 %v769
        %v909 = vpop.f32.mrb[0].mxu0
        %v910 = vadd.f32 0.0, %v909
        %v911 = vpop.f32.mrb[0].mxu0
        %v912 = vadd.f32 0.0, %v911
        %v913 = vpop.f32.mrb[0].mxu0
        %v914 = vadd.f32 0.0, %v913
        %v915 = vpop.f32.mrb[0].mxu0
        %v916 = vadd.f32 0.0, %v915
        %917 = vmatprep.mubr.bf16.mxu0 0
        %918 = vmatmul.mubr.bf16.gmra.mrb[0].mxu0 %v770
        %v919 = vpop.f32.mrb[0].mxu0
        %v920 = vadd.f32 0.0, %v919
        %v921 = vpop.f32.mrb[0].mxu0
        %v922 = vadd.f32 0.0, %v921
        %v923 = vpop.f32.mrb[0].mxu0
        %v924 = vadd.f32 0.0, %v923
        %v925 = vpop.f32.mrb[0].mxu0
        %v926 = vadd.f32 0.0, %v925
        %927 = vdwg.mxu0
        %v936 = vunpack.c.l.b16 %v703
        %v937 = vunpack.c.l.b16 %v704
        %v938 = vunpack.c.l.b16 %v705
        %v939 = vunpack.c.l.b16 %v706
        %v940 = vunpack.c.l.b16 %v707
        %v941 = vunpack.c.l.b16 %v708
        %v942 = vunpack.c.l.b16 %v709
        %v943 = vunpack.c.l.b16 %v710
        %v944 = vpack.c.b16 %v937, %v936
        %v945 = vpack.c.b16 %v939, %v938
        %v946 = vpack.c.b16 %v941, %v940
        %v947 = vpack.c.b16 %v943, %v942
        %v968 = vunpack.c.l.b16 %v711
        %v969 = vunpack.c.h.b16 %v711
        %v970 = vunpack.c.l.b16 %v712
        %v971 = vunpack.c.h.b16 %v712
        %v972 = vunpack.c.l.b16 %v713
        %v973 = vunpack.c.h.b16 %v713
        %v974 = vunpack.c.l.b16 %v714
        %v975 = vunpack.c.h.b16 %v714
        %v976 = vunpack.c.l.b16 %v715
        %v977 = vunpack.c.h.b16 %v715
        %v978 = vunpack.c.l.b16 %v716
        %v979 = vunpack.c.h.b16 %v716
        %v980 = vunpack.c.l.b16 %v717
        %v981 = vunpack.c.h.b16 %v717
        %v982 = vunpack.c.l.b16 %v718
        %v983 = vunpack.c.h.b16 %v718
        %v984 = vunpack.c.l.b16 %v719
        %v985 = vunpack.c.h.b16 %v719
        %v986 = vunpack.c.l.b16 %v720
        %v987 = vunpack.c.h.b16 %v720
        %v988 = vunpack.c.l.b16 %v721
        %v989 = vunpack.c.h.b16 %v721
        %v990 = vunpack.c.l.b16 %v722
        %v991 = vunpack.c.h.b16 %v722
        %v992 = vunpack.c.l.b16 %v723
        %v993 = vunpack.c.h.b16 %v723
        %v994 = vunpack.c.l.b16 %v724
        %v995 = vunpack.c.h.b16 %v724
        %v996 = vunpack.c.l.b16 %v725
        %v997 = vunpack.c.h.b16 %v725
        %v998 = vunpack.c.l.b16 %v726
        %v999 = vunpack.c.h.b16 %v726
        %v1000 = vpack.c.b16 %v970, %v968
        %v1001 = vpack.c.b16 %v971, %v969
        %v1002 = vpack.c.b16 %v974, %v972
        %v1003 = vpack.c.b16 %v975, %v973
        %v1004 = vpack.c.b16 %v978, %v976
        %v1005 = vpack.c.b16 %v979, %v977
        %v1006 = vpack.c.b16 %v982, %v980
        %v1007 = vpack.c.b16 %v983, %v981
        %v1008 = vpack.c.b16 %v986, %v984
        %v1009 = vpack.c.b16 %v987, %v985
        %v1010 = vpack.c.b16 %v990, %v988
        %v1011 = vpack.c.b16 %v991, %v989
        %v1012 = vpack.c.b16 %v994, %v992
        %v1013 = vpack.c.b16 %v995, %v993
        %v1014 = vpack.c.b16 %v998, %v996
        %v1015 = vpack.c.b16 %v999, %v997
        %1032 = vmatprep.subr.bf16.mxu0 %v1001
        %1033 = vmatpush1.bf16.msra.mxu0 %v1000
        %1034 = vmatprep.subr.bf16.mxu0 %v1003
        %1035 = vmatpush1.bf16.msra.mxu0 %v1002
        %1036 = vmatprep.subr.bf16.mxu0 %v1005
        %1037 = vmatpush1.bf16.msra.mxu0 %v1004
        %1038 = vmatprep.subr.bf16.mxu0 %v1007
        %1039 = vmatpush1.bf16.msra.mxu0 %v1006
        %1040 = vmatprep.subr.bf16.mxu0 %v1009
        %1041 = vmatpush1.bf16.msra.mxu0 %v1008
        %1042 = vmatprep.subr.bf16.mxu0 %v1011
        %1043 = vmatpush1.bf16.msra.mxu0 %v1010
        %1044 = vmatprep.subr.bf16.mxu0 %v1013
        %1045 = vmatpush1.bf16.msra.mxu0 %v1012
        %1046 = vmatprep.subr.bf16.mxu0 %v1015
        %1047 = vmatpush1.bf16.msra.mxu0 %v1014
        %1048 = vmatprep.subr.bf16.mxu0 0
        %1049 = vmatpush1.bf16.msra.mxu0 0
        %1050 = vmatprep.subr.bf16.mxu0 0
        %1051 = vmatpush1.bf16.msra.mxu0 0
        %1052 = vmatprep.subr.bf16.mxu0 0
        %1053 = vmatpush1.bf16.msra.mxu0 0
        %1054 = vmatprep.subr.bf16.mxu0 0
        %1055 = vmatpush1.bf16.msra.mxu0 0
        %1056 = vmatprep.subr.bf16.mxu0 0
        %1057 = vmatpush1.bf16.msra.mxu0 0
        %1058 = vmatprep.subr.bf16.mxu0 0
        %1059 = vmatpush1.bf16.msra.mxu0 0
        %1060 = vmatprep.subr.bf16.mxu0 0
        %1061 = vmatpush1.bf16.msra.mxu0 0
        %1062 = vmatprep.subr.bf16.mxu0 0
        %1063 = vmatpush1.bf16.msra.mxu0 0
        %1064 = vmatprep.mubr.bf16.mxu0 0
        %1065 = vmatmul.mubr.bf16.gmra.mrb[0].mxu0 %v944
        %v1066 = vpop.f32.mrb[0].mxu0
        %v1067 = vadd.f32 %v890, %v1066
        %v1068 = vpop.f32.mrb[0].mxu0
        %v1069 = vadd.f32 %v892, %v1068
        %v1070 = vpop.f32.mrb[0].mxu0
        %v1071 = vadd.f32 %v894, %v1070
        %v1072 = vpop.f32.mrb[0].mxu0
        %v1073 = vadd.f32 %v896, %v1072
        %1074 = vmatprep.mubr.bf16.mxu0 0
        %1075 = vmatmul.mubr.bf16.gmra.mrb[0].mxu0 %v945
        %v1076 = vpop.f32.mrb[0].mxu0
        %v1077 = vadd.f32 %v900, %v1076
        %v1078 = vpop.f32.mrb[0].mxu0
        %v1079 = vadd.f32 %v902, %v1078
        %v1080 = vpop.f32.mrb[0].mxu0
        %v1081 = vadd.f32 %v904, %v1080
        %v1082 = vpop.f32.mrb[0].mxu0
        %v1083 = vadd.f32 %v906, %v1082
        %1084 = vmatprep.mubr.bf16.mxu0 0
        %1085 = vmatmul.mubr.bf16.gmra.mrb[0].mxu0 %v946
        %v1086 = vpop.f32.mrb[0].mxu0
        %v1087 = vadd.f32 %v910, %v1086
        %v1088 = vpop.f32.mrb[0].mxu0
        %v1089 = vadd.f32 %v912, %v1088
        %v1090 = vpop.f32.mrb[0].mxu0
        %v1091 = vadd.f32 %v914, %v1090
        %v1092 = vpop.f32.mrb[0].mxu0
        %v1093 = vadd.f32 %v916, %v1092
        %1094 = vmatprep.mubr.bf16.mxu0 0
        %1095 = vmatmul.mubr.bf16.gmra.mrb[0].mxu0 %v947
        %v1096 = vpop.f32.mrb[0].mxu0
        %v1097 = vadd.f32 %v920, %v1096
        %v1098 = vpop.f32.mrb[0].mxu0
        %v1099 = vadd.f32 %v922, %v1098
        %v1100 = vpop.f32.mrb[0].mxu0
        %v1101 = vadd.f32 %v924, %v1100
        %v1102 = vpop.f32.mrb[0].mxu0
        %v1103 = vadd.f32 %v926, %v1102
        %1104 = vdwg.mxu0
        %v1105 = vld [vmem:[%s690] sm:$0xf]
        %v1106 = vld [vmem:[%s690 + $0x4] sm:$0xf]
        %v1107 = vld [vmem:[%s690 + $0x8] sm:$0xf]
        %v1108 = vld [vmem:[%s690 + $0xc] sm:$0xf]
        %v1109 = vld [vmem:[%s690 + $0x10] sm:$0xf]
        %v1110 = vld [vmem:[%s690 + $0x14] sm:$0xf]
        %v1111 = vld [vmem:[%s690 + $0x18] sm:$0xf]
        %v1112 = vld [vmem:[%s690 + $0x1c] sm:$0xf]
        %v1113 = vld [vmem:[%s619] sm:$0xff]
        %v1114 = vld [vmem:[%s619 + $0x8] sm:$0xff]
        %v1115 = vld [vmem:[%s619 + $0x10] sm:$0xff]
        %v1116 = vld [vmem:[%s619 + $0x18] sm:$0xff]
        %v1117 = vld [vmem:[%s619 + $0x20] sm:$0xff]
        %v1118 = vld [vmem:[%s619 + $0x28] sm:$0xff]
        %v1119 = vld [vmem:[%s619 + $0x30] sm:$0xff]
        %v1120 = vld [vmem:[%s619 + $0x38] sm:$0xff]
        %v1121 = vld [vmem:[%s619 + $0x40] sm:$0xff]
        %v1122 = vld [vmem:[%s619 + $0x48] sm:$0xff]
        %v1123 = vld [vmem:[%s619 + $0x50] sm:$0xff]
        %v1124 = vld [vmem:[%s619 + $0x58] sm:$0xff]
        %v1125 = vld [vmem:[%s619 + $0x60] sm:$0xff]
        %v1126 = vld [vmem:[%s619 + $0x68] sm:$0xff]
        %v1127 = vld [vmem:[%s619 + $0x70] sm:$0xff]
        %v1128 = vld [vmem:[%s619 + $0x78] sm:$0xff]
        %v1137 = vunpack.c.l.b16 %v1105
        %v1138 = vunpack.c.l.b16 %v1106
        %v1139 = vunpack.c.l.b16 %v1107
        %v1140 = vunpack.c.l.b16 %v1108
        %v1141 = vunpack.c.l.b16 %v1109
        %v1142 = vunpack.c.l.b16 %v1110
        %v1143 = vunpack.c.l.b16 %v1111
        %v1144 = vunpack.c.l.b16 %v1112
        %v1145 = vpack.c.b16 %v1138, %v1137
        %v1146 = vpack.c.b16 %v1140, %v1139
        %v1147 = vpack.c.b16 %v1142, %v1141
        %v1148 = vpack.c.b16 %v1144, %v1143
        %v1169 = vunpack.c.l.b16 %v1113
        %v1170 = vunpack.c.h.b16 %v1113
        %v1171 = vunpack.c.l.b16 %v1114
        %v1172 = vunpack.c.h.b16 %v1114
        %v1173 = vunpack.c.l.b16 %v1115
        %v1174 = vunpack.c.h.b16 %v1115
        %v1175 = vunpack.c.l.b16 %v1116
        %v1176 = vunpack.c.h.b16 %v1116
        %v1177 = vunpack.c.l.b16 %v1117
        %v1178 = vunpack.c.h.b16 %v1117
        %v1179 = vunpack.c.l.b16 %v1118
        %v1180 = vunpack.c.h.b16 %v1118
        %v1181 = vunpack.c.l.b16 %v1119
        %v1182 = vunpack.c.h.b16 %v1119
        %v1183 = vunpack.c.l.b16 %v1120
        %v1184 = vunpack.c.h.b16 %v1120
        %v1185 = vunpack.c.l.b16 %v1121
        %v1186 = vunpack.c.h.b16 %v1121
        %v1187 = vunpack.c.l.b16 %v1122
        %v1188 = vunpack.c.h.b16 %v1122
        %v1189 = vunpack.c.l.b16 %v1123
        %v1190 = vunpack.c.h.b16 %v1123
        %v1191 = vunpack.c.l.b16 %v1124
        %v1192 = vunpack.c.h.b16 %v1124
        %v1193 = vunpack.c.l.b16 %v1125
        %v1194 = vunpack.c.h.b16 %v1125
        %v1195 = vunpack.c.l.b16 %v1126
        %v1196 = vunpack.c.h.b16 %v1126
        %v1197 = vunpack.c.l.b16 %v1127
        %v1198 = vunpack.c.h.b16 %v1127
        %v1199 = vunpack.c.l.b16 %v1128
        %v1200 = vunpack.c.h.b16 %v1128
        %v1201 = vpack.c.b16 %v1171, %v1169
        %v1202 = vpack.c.b16 %v1172, %v1170
        %v1203 = vpack.c.b16 %v1175, %v1173
        %v1204 = vpack.c.b16 %v1176, %v1174
        %v1205 = vpack.c.b16 %v1179, %v1177
        %v1206 = vpack.c.b16 %v1180, %v1178
        %v1207 = vpack.c.b16 %v1183, %v1181
        %v1208 = vpack.c.b16 %v1184, %v1182
        %v1209 = vpack.c.b16 %v1187, %v1185
        %v1210 = vpack.c.b16 %v1188, %v1186
        %v1211 = vpack.c.b16 %v1191, %v1189
        %v1212 = vpack.c.b16 %v1192, %v1190
        %v1213 = vpack.c.b16 %v1195, %v1193
        %v1214 = vpack.c.b16 %v1196, %v1194
        %v1215 = vpack.c.b16 %v1199, %v1197
        %v1216 = vpack.c.b16 %v1200, %v1198
        %1233 = vmatprep.subr.bf16.mxu0 %v1202
        %1234 = vmatpush1.bf16.msra.mxu0 %v1201
        %1235 = vmatprep.subr.bf16.mxu0 %v1204
        %1236 = vmatpush1.bf16.msra.mxu0 %v1203
        %1237 = vmatprep.subr.bf16.mxu0 %v1206
        %1238 = vmatpush1.bf16.msra.mxu0 %v1205
        %1239 = vmatprep.subr.bf16.mxu0 %v1208
        %1240 = vmatpush1.bf16.msra.mxu0 %v1207
        %1241 = vmatprep.subr.bf16.mxu0 %v1210
        %1242 = vmatpush1.bf16.msra.mxu0 %v1209
        %1243 = vmatprep.subr.bf16.mxu0 %v1212
        %1244 = vmatpush1.bf16.msra.mxu0 %v1211
        %1245 = vmatprep.subr.bf16.mxu0 %v1214
        %1246 = vmatpush1.bf16.msra.mxu0 %v1213
        %1247 = vmatprep.subr.bf16.mxu0 %v1216
        %1248 = vmatpush1.bf16.msra.mxu0 %v1215
        %1249 = vmatprep.subr.bf16.mxu0 0
        %1250 = vmatpush1.bf16.msra.mxu0 0
        %1251 = vmatprep.subr.bf16.mxu0 0
        %1252 = vmatpush1.bf16.msra.mxu0 0
        %1253 = vmatprep.subr.bf16.mxu0 0
        %1254 = vmatpush1.bf16.msra.mxu0 0
        %1255 = vmatprep.subr.bf16.mxu0 0
        %1256 = vmatpush1.bf16.msra.mxu0 0
        %1257 = vmatprep.subr.bf16.mxu0 0
        %1258 = vmatpush1.bf16.msra.mxu0 0
        %1259 = vmatprep.subr.bf16.mxu0 0
        %1260 = vmatpush1.bf16.msra.mxu0 0
        %1261 = vmatprep.subr.bf16.mxu0 0
        %1262 = vmatpush1.bf16.msra.mxu0 0
        %1263 = vmatprep.subr.bf16.mxu0 0
        %1264 = vmatpush1.bf16.msra.mxu0 0
        %1265 = vmatprep.mubr.bf16.mxu0 0
        %1266 = vmatmul.mubr.bf16.gmra.mrb[0].mxu0 %v1145
        %v1267 = vpop.f32.mrb[0].mxu0
        %v1268 = vadd.f32 0.0, %v1267
        %v1269 = vpop.f32.mrb[0].mxu0
        %v1270 = vadd.f32 0.0, %v1269
        %v1271 = vpop.f32.mrb[0].mxu0
        %v1272 = vadd.f32 0.0, %v1271
        %v1273 = vpop.f32.mrb[0].mxu0
        %v1274 = vadd.f32 0.0, %v1273
        %1275 = vmatprep.mubr.bf16.mxu0 0
        %1276 = vmatmul.mubr.bf16.gmra.mrb[0].mxu0 %v1146
        %v1277 = vpop.f32.mrb[0].mxu0
        %v1278 = vadd.f32 0.0, %v1277
        %v1279 = vpop.f32.mrb[0].mxu0
        %v1280 = vadd.f32 0.0, %v1279
        %v1281 = vpop.f32.mrb[0].mxu0
        %v1282 = vadd.f32 0.0, %v1281
        %v1283 = vpop.f32.mrb[0].mxu0
        %v1284 = vadd.f32 0.0, %v1283
        %1285 = vmatprep.mubr.bf16.mxu0 0
        %1286 = vmatmul.mubr.bf16.gmra.mrb[0].mxu0 %v1147
        %v1287 = vpop.f32.mrb[0].mxu0
        %v1288 = vadd.f32 0.0, %v1287
        %v1289 = vpop.f32.mrb[0].mxu0
        %v1290 = vadd.f32 0.0, %v1289
        %v1291 = vpop.f32.mrb[0].mxu0
        %v1292 = vadd.f32 0.0, %v1291
        %v1293 = vpop.f32.mrb[0].mxu0
        %v1294 = vadd.f32 0.0, %v1293
        %1295 = vmatprep.mubr.bf16.mxu0 0
        %1296 = vmatmul.mubr.bf16.gmra.mrb[0].mxu0 %v1148
        %v1297 = vpop.f32.mrb[0].mxu0
        %v1298 = vadd.f32 0.0, %v1297
        %v1299 = vpop.f32.mrb[0].mxu0
        %v1300 = vadd.f32 0.0, %v1299
        %v1301 = vpop.f32.mrb[0].mxu0
        %v1302 = vadd.f32 0.0, %v1301
        %v1303 = vpop.f32.mrb[0].mxu0
        %v1304 = vadd.f32 0.0, %v1303
        %1305 = vdwg.mxu0
        %v1306 = vadd.f32 %v1067, %v1268
        %v1307 = vadd.f32 %v1069, %v1270
        %v1308 = vadd.f32 %v1071, %v1272
        %v1309 = vadd.f32 %v1073, %v1274
        %v1310 = vadd.f32 %v1077, %v1278
        %v1311 = vadd.f32 %v1079, %v1280
        %v1312 = vadd.f32 %v1081, %v1282
        %v1313 = vadd.f32 %v1083, %v1284
        %v1314 = vadd.f32 %v1087, %v1288
        %v1315 = vadd.f32 %v1089, %v1290
        %v1316 = vadd.f32 %v1091, %v1292
        %v1317 = vadd.f32 %v1093, %v1294
        %v1318 = vadd.f32 %v1097, %v1298
        %v1319 = vadd.f32 %v1099, %v1300
        %v1320 = vadd.f32 %v1101, %v1302
        %v1321 = vadd.f32 %v1103, %v1304
        %v1322 = vld [vmem:[%s698] sm:$0x3]
        %v1324 = vlaneseq
        %v1325 = vshrl.u32 %v1324, 7
        %v1326 = vsub.s32 0, %v1325
        %v1327 = vrot.slane %v1322, %v1326
        %v1328 = vlaneseq
        %v1329 = vshrl.u32 %v1328, 7
        %v1330 = vsub.s32 1, %v1329
        %v1331 = vrot.slane %v1322, %v1330
        %v1334 = vadd.f32 %v1306, %v1327
        %v1335 = vadd.f32 %v1307, %v1331
        %v1336 = vadd.f32 %v1308, %v1327
        %v1337 = vadd.f32 %v1309, %v1331
        %v1338 = vadd.f32 %v1310, %v1327
        %v1339 = vadd.f32 %v1311, %v1331
        %v1340 = vadd.f32 %v1312, %v1327
        %v1341 = vadd.f32 %v1313, %v1331
        %v1342 = vadd.f32 %v1314, %v1327
        %v1343 = vadd.f32 %v1315, %v1331
        %v1344 = vadd.f32 %v1316, %v1327
        %v1345 = vadd.f32 %v1317, %v1331
        %v1346 = vadd.f32 %v1318, %v1327
        %v1347 = vadd.f32 %v1319, %v1331
        %v1348 = vadd.f32 %v1320, %v1327
        %v1349 = vadd.f32 %v1321, %v1331
        %v1350 = vmax.f32 %v1334, 0.0
        %v1351 = vmax.f32 %v1335, 0.0
        %v1352 = vmax.f32 %v1336, 0.0
        %v1353 = vmax.f32 %v1337, 0.0
        %v1354 = vmax.f32 %v1338, 0.0
        %v1355 = vmax.f32 %v1339, 0.0
        %v1356 = vmax.f32 %v1340, 0.0
        %v1357 = vmax.f32 %v1341, 0.0
        %v1358 = vmax.f32 %v1342, 0.0
        %v1359 = vmax.f32 %v1343, 0.0
        %v1360 = vmax.f32 %v1344, 0.0
        %v1361 = vmax.f32 %v1345, 0.0
        %v1362 = vmax.f32 %v1346, 0.0
        %v1363 = vmax.f32 %v1347, 0.0
        %v1364 = vmax.f32 %v1348, 0.0
        %v1365 = vmax.f32 %v1349, 0.0
        %1366 = vst [vmem:[%s673] sm:$0xff] %v1350
        %1367 = vst [vmem:[%s673 + $0x8] sm:$0xff] %v1351
        %1368 = vst [vmem:[%s673 + $0x10] sm:$0xff] %v1352
        %1369 = vst [vmem:[%s673 + $0x18] sm:$0xff] %v1353
        %1370 = vst [vmem:[%s673 + $0x20] sm:$0xff] %v1354
        %1371 = vst [vmem:[%s673 + $0x28] sm:$0xff] %v1355
        %1372 = vst [vmem:[%s673 + $0x30] sm:$0xff] %v1356
        %1373 = vst [vmem:[%s673 + $0x38] sm:$0xff] %v1357
        %1374 = vst [vmem:[%s673 + $0x40] sm:$0xff] %v1358
        %1375 = vst [vmem:[%s673 + $0x48] sm:$0xff] %v1359
        %1376 = vst [vmem:[%s673 + $0x50] sm:$0xff] %v1360
        %1377 = vst [vmem:[%s673 + $0x58] sm:$0xff] %v1361
        %1378 = vst [vmem:[%s673 + $0x60] sm:$0xff] %v1362
        %1379 = vst [vmem:[%s673 + $0x68] sm:$0xff] %v1363
        %1380 = vst [vmem:[%s673 + $0x70] sm:$0xff] %v1364
        %1381 = vst [vmem:[%s673 + $0x78] sm:$0xff] %v1365
        %s1382 = sand.u32 %s222, 1
        %s1383 = sand.u32 %s222, 1
        %s1384 = smul.addr %s1383, 128
        %s1385 = scalar_lea.vmem [#allocation5], %s1384
        // Predicated region
        $region163: #{tmgnn_forward.38} parent=149 // pred_check
          %p1386 = pneg %p232
        $region164: #{tmgnn_forward.38} parent=149 // pred_check_branch
          %1388 = sbr.rel (%p1386) target = $region166
        $region165: #{tmgnn_forward.38} parent=149 // pred_region
          %s1389 = smul.u32 8, %s22
          %s1390 = smul.u32 2, %s23
          %s1391 = smul.addr %s1389, 4
          %s1392 = sadd.s32 %s1390, %s1391
          %s1393 = smul.addr %s1392, 8
          %s1394 = scalar_lea.vmem %s7, %s1393
          // Predicated region
          $region167: #{tmgnn_forward.38} parent=165 // pred_check
            _
          $region168: #{tmgnn_forward.38} parent=165 // pred_check_branch
            %1396 = sbr.rel (0) target = $region170
          $region169: #{tmgnn_forward.38} parent=165 // pred_region
            // Predicated region
            $region171: #{tmgnn_forward.38} parent=169 // pred_check
              _
            $region172: #{tmgnn_forward.38} parent=169 // pred_check_branch
              %1398 = sbr.rel (0) target = $region174
            $region173: #{tmgnn_forward.38} parent=169 // pred_region
              loop: start=0, step=1, limit=1
              $region175: #{tmgnn_forward.38} parent=173 // loop_pre_header
                _
              $region176: #{tmgnn_forward.38} parent=173 // loop_header
                %s1400 = sphi 0, %s1404
                %p1401 = scmp.ge.s32.totalorder %s1400, 1
                %s1405 = sphi %s1385, %s1385
                %s1406 = sphi %s1394, %s1394
              $region177: #{tmgnn_forward.38} parent=173 // loop_header_branch
                %1403 = sbr.rel (%p1401) target = $region181
              $region178: #{tmgnn_forward.38} parent=173 // loop_body
                %v1407 = vld [vmem:[%s1405] sm:$0xff]
                %1408 = vst [vmem:[%s1406] sm:$0xff] %v1407
                %v1409 = vld [vmem:[%s1405 + $0x8] sm:$0xff]
                %1410 = vst [vmem:[%s1406 + $0x8] sm:$0xff] %v1409
                %v1411 = vld [vmem:[%s1405 + $0x10] sm:$0xff]
                %1412 = vst [vmem:[%s1406 + $0x20] sm:$0xff] %v1411
                %v1413 = vld [vmem:[%s1405 + $0x18] sm:$0xff]
                %1414 = vst [vmem:[%s1406 + $0x28] sm:$0xff] %v1413
                %v1415 = vld [vmem:[%s1405 + $0x20] sm:$0xff]
                %1416 = vst [vmem:[%s1406 + $0x40] sm:$0xff] %v1415
                %v1417 = vld [vmem:[%s1405 + $0x28] sm:$0xff]
                %1418 = vst [vmem:[%s1406 + $0x48] sm:$0xff] %v1417
                %v1419 = vld [vmem:[%s1405 + $0x30] sm:$0xff]
                %1420 = vst [vmem:[%s1406 + $0x60] sm:$0xff] %v1419
                %v1421 = vld [vmem:[%s1405 + $0x38] sm:$0xff]
                %1422 = vst [vmem:[%s1406 + $0x68] sm:$0xff] %v1421
                %v1423 = vld [vmem:[%s1405 + $0x40] sm:$0xff]
                %1424 = vst [vmem:[%s1406 + $0x80] sm:$0xff] %v1423
                %v1425 = vld [vmem:[%s1405 + $0x48] sm:$0xff]
                %1426 = vst [vmem:[%s1406 + $0x88] sm:$0xff] %v1425
                %v1427 = vld [vmem:[%s1405 + $0x50] sm:$0xff]
                %1428 = vst [vmem:[%s1406 + $0xa0] sm:$0xff] %v1427
                %v1429 = vld [vmem:[%s1405 + $0x58] sm:$0xff]
                %1430 = vst [vmem:[%s1406 + $0xa8] sm:$0xff] %v1429
                %v1431 = vld [vmem:[%s1405 + $0x60] sm:$0xff]
                %1432 = vst [vmem:[%s1406 + $0xc0] sm:$0xff] %v1431
                %v1433 = vld [vmem:[%s1405 + $0x68] sm:$0xff]
                %1434 = vst [vmem:[%s1406 + $0xc8] sm:$0xff] %v1433
                %v1435 = vld [vmem:[%s1405 + $0x70] sm:$0xff]
                %1436 = vst [vmem:[%s1406 + $0xe0] sm:$0xff] %v1435
                %v1437 = vld [vmem:[%s1405 + $0x78] sm:$0xff]
                %1438 = vst [vmem:[%s1406 + $0xe8] sm:$0xff] %v1437
              $region179: #{tmgnn_forward.38} parent=173 // loop_footer
                %s1404 = sadd.s32 1, %s1400
              $region180: #{tmgnn_forward.38} parent=173 // loop_footer_branch
                %1399 = sbr.rel target = $region176
              $region181: #{tmgnn_forward.38} parent=173 // loop_exit
                _
            $region174: #{tmgnn_forward.38} parent=169 // pred_fallthru
              _
            // Predicated region
            $region182: #{tmgnn_forward.38} parent=169 // pred_check
              _
            $region183: #{tmgnn_forward.38} parent=169 // pred_check_branch
              %1440 = sbr.rel target = $region185
            $region184: #{tmgnn_forward.38} parent=169 // pred_region
              _
            $region185: #{tmgnn_forward.38} parent=169 // pred_fallthru
              _
          $region170: #{tmgnn_forward.38} parent=165 // pred_fallthru
            _
          %1441 = vnop
        $region166: #{tmgnn_forward.38} parent=149 // pred_fallthru
          _
      $region150: #{tmgnn_forward.38} parent=5 // pred_fallthru
        _
      %p1442 = scmp.le.s32.totalorder 2, %s13
      // Predicated region
      $region186: #{tmgnn_forward.38} parent=5 // pred_check
        %p1443 = pneg %p1442
      $region187: #{tmgnn_forward.38} parent=5 // pred_check_branch
        %1445 = sbr.rel (%p1443) target = $region189
      $region188: #{tmgnn_forward.38} parent=5 // pred_region
        %s1446 = ssub.s32 %s13, 2
        // Predicated region
        $region190: #{tmgnn_forward.38} parent=188 // pred_check
          %p1447 = pneg %p238
        $region191: #{tmgnn_forward.38} parent=188 // pred_check_branch
          %1449 = sbr.rel (%p1447) target = $region193
        $region192: #{tmgnn_forward.38} parent=188 // pred_region
          %s1450 = sand.u32 %s223, 1
          %s1451 = sand.u32 %s223, 1
          %s1452 = smul.addr %s1451, 128
          %s1453 = scalar_lea.vmem [#allocation5], %s1452
        $region193: #{tmgnn_forward.38} parent=188 // pred_fallthru
          _
      $region189: #{tmgnn_forward.38} parent=5 // pred_fallthru
        _
    $region6: #{tmgnn_forward.38} parent=1 // loop_footer
      %s17 = sadd.s32 1, %s13
    $region7: #{tmgnn_forward.38} parent=1 // loop_footer_branch
      %12 = sbr.rel target = $region3
    $region8: #{tmgnn_forward.38} parent=1 // loop_exit
      _

// kernel: tmgnn_forward.39
$region0: #{tmgnn_forward.39}
  #allocation0 [shape = 'u32[]', space=smem, size = 0x4, offset = 0x4, fixed_abs, tag = 'smem constant byte address 0x4 - core index']
  #allocation1 [shape = 'u32[144,128]{1,0:T(1,128)}', space=vmem, size = 0x12000, scoped, tag = 'internal scratch']
  #allocation2 [shape = 'f32[64,128]{1,0:T(8,128)}', space=vmem, size = 0x8000, scoped, tag = 'scratch operand']
  %s0 = inlined_call_operand.vmem [shape: bf16[64,512], index: 0, kind: input, shape index: {}]
  %s1 = inlined_call_operand.vmem [shape: bf16[512,128], index: 1, kind: input, shape index: {}]
  %s2 = inlined_call_operand.vmem [shape: f32[1,128], index: 2, kind: input, shape index: {}]
  %s3 = inlined_call_operand.vmem [shape: f32[64,128], index: 3, kind: output, shape index: {}]
  %s4 = sld [smem:[#allocation0]]
  $region30: #{tmgnn_forward.39} parent=0
    _
  %s6 = ssub.s32 1, %s4
  %s7 = scalar_select 0, %s6, %s4
  // Predicated region
  $region2: #{tmgnn_forward.39} parent=0 // pred_check
    _
  $region3: #{tmgnn_forward.39} parent=0 // pred_check_branch
    %9 = sbr.rel (0) target = $region5
  $region4: #{tmgnn_forward.39} parent=0 // pred_region
    _
  $region5: #{tmgnn_forward.39} parent=0 // pred_fallthru
    _
  // Predicated region
  $region6: #{tmgnn_forward.39} parent=0 // pred_check
    _
  $region7: #{tmgnn_forward.39} parent=0 // pred_check_branch
    %11 = sbr.rel (0) target = $region9
  $region8: #{tmgnn_forward.39} parent=0 // pred_region
    _
  $region9: #{tmgnn_forward.39} parent=0 // pred_fallthru
    _
  // Predicated region
  $region10: #{tmgnn_forward.39} parent=0 // pred_check
    _
  $region11: #{tmgnn_forward.39} parent=0 // pred_check_branch
    %13 = sbr.rel (0) target = $region13
  $region12: #{tmgnn_forward.39} parent=0 // pred_region
    _
  $region13: #{tmgnn_forward.39} parent=0 // pred_fallthru
    _
  %p15 = scmp.eq.s32.totalorder 0, 0
  // Predicated region
  $region14: #{tmgnn_forward.39} parent=0 // pred_check
    %p16 = pneg %p15
  $region15: #{tmgnn_forward.39} parent=0 // pred_check_branch
    %18 = sbr.rel (%p16) target = $region17
  $region16: #{tmgnn_forward.39} parent=0 // pred_region
    %19 = vst [vmem:[#allocation2] sm:$0xff] 0.0
    %20 = vst [vmem:[#allocation2 + $0x8] sm:$0xff] 0.0
    %21 = vst [vmem:[#allocation2 + $0x10] sm:$0xff] 0.0
    %22 = vst [vmem:[#allocation2 + $0x18] sm:$0xff] 0.0
    %23 = vst [vmem:[#allocation2 + $0x20] sm:$0xff] 0.0
    %24 = vst [vmem:[#allocation2 + $0x28] sm:$0xff] 0.0
    %25 = vst [vmem:[#allocation2 + $0x30] sm:$0xff] 0.0
    %26 = vst [vmem:[#allocation2 + $0x38] sm:$0xff] 0.0
  $region17: #{tmgnn_forward.39} parent=0 // pred_fallthru
    _
  %v27 = vld [vmem:[#allocation2] sm:$0xff]
  %v28 = vld [vmem:[#allocation2 + $0x8] sm:$0xff]
  %v29 = vld [vmem:[#allocation2 + $0x10] sm:$0xff]
  %v30 = vld [vmem:[#allocation2 + $0x18] sm:$0xff]
  %v31 = vld [vmem:[#allocation2 + $0x20] sm:$0xff]
  %v32 = vld [vmem:[#allocation2 + $0x28] sm:$0xff]
  %v33 = vld [vmem:[#allocation2 + $0x30] sm:$0xff]
  %v34 = vld [vmem:[#allocation2 + $0x38] sm:$0xff]
  %v35 = vld [vmem:[%s0] sm:$0xff]
  %v36 = vld [vmem:[%s0 + $0x8] sm:$0xff]
  %v37 = vld [vmem:[%s0 + $0x10] sm:$0xff]
  %v38 = vld [vmem:[%s0 + $0x18] sm:$0xff]
  %v39 = vld [vmem:[%s0 + $0x20] sm:$0xff]
  %v40 = vld [vmem:[%s0 + $0x28] sm:$0xff]
  %v41 = vld [vmem:[%s0 + $0x30] sm:$0xff]
  %v42 = vld [vmem:[%s0 + $0x38] sm:$0xff]
  %v43 = vld [vmem:[%s0 + $0x40] sm:$0xff]
  %v44 = vld [vmem:[%s0 + $0x48] sm:$0xff]
  %v45 = vld [vmem:[%s0 + $0x50] sm:$0xff]
  %v46 = vld [vmem:[%s0 + $0x58] sm:$0xff]
  %v47 = vld [vmem:[%s0 + $0x60] sm:$0xff]
  %v48 = vld [vmem:[%s0 + $0x68] sm:$0xff]
  %v49 = vld [vmem:[%s0 + $0x70] sm:$0xff]
  %v50 = vld [vmem:[%s0 + $0x78] sm:$0xff]
  %v51 = vld [vmem:[%s1] sm:$0xf]
  %v52 = vld [vmem:[%s1 + $0x4] sm:$0xf]
  %v53 = vld [vmem:[%s1 + $0x8] sm:$0xf]
  %v54 = vld [vmem:[%s1 + $0xc] sm:$0xf]
  %v55 = vld [vmem:[%s1 + $0x10] sm:$0xf]
  %v56 = vld [vmem:[%s1 + $0x14] sm:$0xf]
  %v57 = vld [vmem:[%s1 + $0x18] sm:$0xf]
  %v58 = vld [vmem:[%s1 + $0x1c] sm:$0xf]
  %v59 = vld [vmem:[%s1 + $0x20] sm:$0xf]
  %v60 = vld [vmem:[%s1 + $0x24] sm:$0xf]
  %v61 = vld [vmem:[%s1 + $0x28] sm:$0xf]
  %v62 = vld [vmem:[%s1 + $0x2c] sm:$0xf]
  %v63 = vld [vmem:[%s1 + $0x30] sm:$0xf]
  %v64 = vld [vmem:[%s1 + $0x34] sm:$0xf]
  %v65 = vld [vmem:[%s1 + $0x38] sm:$0xf]
  %v66 = vld [vmem:[%s1 + $0x3c] sm:$0xf]
  %v67 = vld [vmem:[%s1 + $0x40] sm:$0xf]
  %v68 = vld [vmem:[%s1 + $0x44] sm:$0xf]
  %v69 = vld [vmem:[%s1 + $0x48] sm:$0xf]
  %v70 = vld [vmem:[%s1 + $0x4c] sm:$0xf]
  %v71 = vld [vmem:[%s1 + $0x50] sm:$0xf]
  %v72 = vld [vmem:[%s1 + $0x54] sm:$0xf]
  %v73 = vld [vmem:[%s1 + $0x58] sm:$0xf]
  %v74 = vld [vmem:[%s1 + $0x5c] sm:$0xf]
  %v75 = vld [vmem:[%s1 + $0x60] sm:$0xf]
  %v76 = vld [vmem:[%s1 + $0x64] sm:$0xf]
  %v77 = vld [vmem:[%s1 + $0x68] sm:$0xf]
  %v78 = vld [vmem:[%s1 + $0x6c] sm:$0xf]
  %v79 = vld [vmem:[%s1 + $0x70] sm:$0xf]
  %v80 = vld [vmem:[%s1 + $0x74] sm:$0xf]
  %v81 = vld [vmem:[%s1 + $0x78] sm:$0xf]
  %v82 = vld [vmem:[%s1 + $0x7c] sm:$0xf]
  %v83 = vld [vmem:[%s1 + $0x80] sm:$0xf]
  %v84 = vld [vmem:[%s1 + $0x84] sm:$0xf]
  %v85 = vld [vmem:[%s1 + $0x88] sm:$0xf]
  %v86 = vld [vmem:[%s1 + $0x8c] sm:$0xf]
  %v87 = vld [vmem:[%s1 + $0x90] sm:$0xf]
  %v88 = vld [vmem:[%s1 + $0x94] sm:$0xf]
  %v89 = vld [vmem:[%s1 + $0x98] sm:$0xf]
  %v90 = vld [vmem:[%s1 + $0x9c] sm:$0xf]
  %v91 = vld [vmem:[%s1 + $0xa0] sm:$0xf]
  %v92 = vld [vmem:[%s1 + $0xa4] sm:$0xf]
  %v93 = vld [vmem:[%s1 + $0xa8] sm:$0xf]
  %v94 = vld [vmem:[%s1 + $0xac] sm:$0xf]
  %v95 = vld [vmem:[%s1 + $0xb0] sm:$0xf]
  %v96 = vld [vmem:[%s1 + $0xb4] sm:$0xf]
  %v97 = vld [vmem:[%s1 + $0xb8] sm:$0xf]
  %v98 = vld [vmem:[%s1 + $0xbc] sm:$0xf]
  %v99 = vld [vmem:[%s1 + $0xc0] sm:$0xf]
  %v100 = vld [vmem:[%s1 + $0xc4] sm:$0xf]
  %v101 = vld [vmem:[%s1 + $0xc8] sm:$0xf]
  %v102 = vld [vmem:[%s1 + $0xcc] sm:$0xf]
  %v103 = vld [vmem:[%s1 + $0xd0] sm:$0xf]
  %v104 = vld [vmem:[%s1 + $0xd4] sm:$0xf]
  %v105 = vld [vmem:[%s1 + $0xd8] sm:$0xf]
  %v106 = vld [vmem:[%s1 + $0xdc] sm:$0xf]
  %v107 = vld [vmem:[%s1 + $0xe0] sm:$0xf]
  %v108 = vld [vmem:[%s1 + $0xe4] sm:$0xf]
  %v109 = vld [vmem:[%s1 + $0xe8] sm:$0xf]
  %v110 = vld [vmem:[%s1 + $0xec] sm:$0xf]
  %v111 = vld [vmem:[%s1 + $0xf0] sm:$0xf]
  %v112 = vld [vmem:[%s1 + $0xf4] sm:$0xf]
  %v113 = vld [vmem:[%s1 + $0xf8] sm:$0xf]
  %v114 = vld [vmem:[%s1 + $0xfc] sm:$0xf]
  %v131 = vunpack.c.l.b16 %v35
  %v132 = vunpack.c.h.b16 %v35
  %v133 = vunpack.c.l.b16 %v36
  %v134 = vunpack.c.h.b16 %v36
  %v135 = vunpack.c.l.b16 %v37
  %v136 = vunpack.c.h.b16 %v37
  %v137 = vunpack.c.l.b16 %v38
  %v138 = vunpack.c.h.b16 %v38
  %v139 = vunpack.c.l.b16 %v39
  %v140 = vunpack.c.h.b16 %v39
  %v141 = vunpack.c.l.b16 %v40
  %v142 = vunpack.c.h.b16 %v40
  %v143 = vunpack.c.l.b16 %v41
  %v144 = vunpack.c.h.b16 %v41
  %v145 = vunpack.c.l.b16 %v42
  %v146 = vunpack.c.h.b16 %v42
  %v147 = vunpack.c.l.b16 %v43
  %v148 = vunpack.c.h.b16 %v43
  %v149 = vunpack.c.l.b16 %v44
  %v150 = vunpack.c.h.b16 %v44
  %v151 = vunpack.c.l.b16 %v45
  %v152 = vunpack.c.h.b16 %v45
  %v153 = vunpack.c.l.b16 %v46
  %v154 = vunpack.c.h.b16 %v46
  %v155 = vunpack.c.l.b16 %v47
  %v156 = vunpack.c.h.b16 %v47
  %v157 = vunpack.c.l.b16 %v48
  %v158 = vunpack.c.h.b16 %v48
  %v159 = vunpack.c.l.b16 %v49
  %v160 = vunpack.c.h.b16 %v49
  %v161 = vunpack.c.l.b16 %v50
  %v162 = vunpack.c.h.b16 %v50
  %v163 = vpack.c.b16 %v135, %v131
  %v164 = vpack.c.b16 %v136, %v132
  %v165 = vpack.c.b16 %v137, %v133
  %v166 = vpack.c.b16 %v138, %v134
  %v167 = vpack.c.b16 %v143, %v139
  %v168 = vpack.c.b16 %v144, %v140
  %v169 = vpack.c.b16 %v145, %v141
  %v170 = vpack.c.b16 %v146, %v142
  %v171 = vpack.c.b16 %v151, %v147
  %v172 = vpack.c.b16 %v152, %v148
  %v173 = vpack.c.b16 %v153, %v149
  %v174 = vpack.c.b16 %v154, %v150
  %v175 = vpack.c.b16 %v159, %v155
  %v176 = vpack.c.b16 %v160, %v156
  %v177 = vpack.c.b16 %v161, %v157
  %v178 = vpack.c.b16 %v162, %v158
  %v259 = vunpack.c.l.b16 %v51
  %v260 = vunpack.c.l.b16 %v52
  %v261 = vunpack.c.l.b16 %v53
  %v262 = vunpack.c.l.b16 %v54
  %v263 = vunpack.c.l.b16 %v55
  %v264 = vunpack.c.l.b16 %v56
  %v265 = vunpack.c.l.b16 %v57
  %v266 = vunpack.c.l.b16 %v58
  %v267 = vunpack.c.l.b16 %v59
  %v268 = vunpack.c.l.b16 %v60
  %v269 = vunpack.c.l.b16 %v61
  %v270 = vunpack.c.l.b16 %v62
  %v271 = vunpack.c.l.b16 %v63
  %v272 = vunpack.c.l.b16 %v64
  %v273 = vunpack.c.l.b16 %v65
  %v274 = vunpack.c.l.b16 %v66
  %v275 = vunpack.c.l.b16 %v67
  %v276 = vunpack.c.l.b16 %v68
  %v277 = vunpack.c.l.b16 %v69
  %v278 = vunpack.c.l.b16 %v70
  %v279 = vunpack.c.l.b16 %v71
  %v280 = vunpack.c.l.b16 %v72
  %v281 = vunpack.c.l.b16 %v73
  %v282 = vunpack.c.l.b16 %v74
  %v283 = vunpack.c.l.b16 %v75
  %v284 = vunpack.c.l.b16 %v76
  %v285 = vunpack.c.l.b16 %v77
  %v286 = vunpack.c.l.b16 %v78
  %v287 = vunpack.c.l.b16 %v79
  %v288 = vunpack.c.l.b16 %v80
  %v289 = vunpack.c.l.b16 %v81
  %v290 = vunpack.c.l.b16 %v82
  %v291 = vunpack.c.l.b16 %v83
  %v292 = vunpack.c.l.b16 %v84
  %v293 = vunpack.c.l.b16 %v85
  %v294 = vunpack.c.l.b16 %v86
  %v295 = vunpack.c.l.b16 %v87
  %v296 = vunpack.c.l.b16 %v88
  %v297 = vunpack.c.l.b16 %v89
  %v298 = vunpack.c.l.b16 %v90
  %v299 = vunpack.c.l.b16 %v91
  %v300 = vunpack.c.l.b16 %v92
  %v301 = vunpack.c.l.b16 %v93
  %v302 = vunpack.c.l.b16 %v94
  %v303 = vunpack.c.l.b16 %v95
  %v304 = vunpack.c.l.b16 %v96
  %v305 = vunpack.c.l.b16 %v97
  %v306 = vunpack.c.l.b16 %v98
  %v307 = vunpack.c.l.b16 %v99
  %v308 = vunpack.c.l.b16 %v100
  %v309 = vunpack.c.l.b16 %v101
  %v310 = vunpack.c.l.b16 %v102
  %v311 = vunpack.c.l.b16 %v103
  %v312 = vunpack.c.l.b16 %v104
  %v313 = vunpack.c.l.b16 %v105
  %v314 = vunpack.c.l.b16 %v106
  %v315 = vunpack.c.l.b16 %v107
  %v316 = vunpack.c.l.b16 %v108
  %v317 = vunpack.c.l.b16 %v109
  %v318 = vunpack.c.l.b16 %v110
  %v319 = vunpack.c.l.b16 %v111
  %v320 = vunpack.c.l.b16 %v112
  %v321 = vunpack.c.l.b16 %v113
  %v322 = vunpack.c.l.b16 %v114
  %v323 = vpack.c.b16 %v260, %v259
  %v324 = vpack.c.b16 %v262, %v261
  %v325 = vpack.c.b16 %v264, %v263
  %v326 = vpack.c.b16 %v266, %v265
  %v327 = vpack.c.b16 %v268, %v267
  %v328 = vpack.c.b16 %v270, %v269
  %v329 = vpack.c.b16 %v272, %v271
  %v330 = vpack.c.b16 %v274, %v273
  %v331 = vpack.c.b16 %v276, %v275
  %v332 = vpack.c.b16 %v278, %v277
  %v333 = vpack.c.b16 %v280, %v279
  %v334 = vpack.c.b16 %v282, %v281
  %v335 = vpack.c.b16 %v284, %v283
  %v336 = vpack.c.b16 %v286, %v285
  %v337 = vpack.c.b16 %v288, %v287
  %v338 = vpack.c.b16 %v290, %v289
  %v339 = vpack.c.b16 %v292, %v291
  %v340 = vpack.c.b16 %v294, %v293
  %v341 = vpack.c.b16 %v296, %v295
  %v342 = vpack.c.b16 %v298, %v297
  %v343 = vpack.c.b16 %v300, %v299
  %v344 = vpack.c.b16 %v302, %v301
  %v345 = vpack.c.b16 %v304, %v303
  %v346 = vpack.c.b16 %v306, %v305
  %v347 = vpack.c.b16 %v308, %v307
  %v348 = vpack.c.b16 %v310, %v309
  %v349 = vpack.c.b16 %v312, %v311
  %v350 = vpack.c.b16 %v314, %v313
  %v351 = vpack.c.b16 %v316, %v315
  %v352 = vpack.c.b16 %v318, %v317
  %v353 = vpack.c.b16 %v320, %v319
  %v354 = vpack.c.b16 %v322, %v321
  %387 = vmatprep.subr.bf16.mxu0 0
  %388 = vmatpush1.bf16.msra.mxu0 %v323
  %389 = vmatprep.subr.bf16.mxu0 0
  %390 = vmatpush1.bf16.msra.mxu0 %v324
  %391 = vmatprep.subr.bf16.mxu0 0
  %392 = vmatpush1.bf16.msra.mxu0 %v325
  %393 = vmatprep.subr.bf16.mxu0 0
  %394 = vmatpush1.bf16.msra.mxu0 %v326
  %395 = vmatprep.subr.bf16.mxu0 0
  %396 = vmatpush1.bf16.msra.mxu0 %v327
  %397 = vmatprep.subr.bf16.mxu0 0
  %398 = vmatpush1.bf16.msra.mxu0 %v328
  %399 = vmatprep.subr.bf16.mxu0 0
  %400 = vmatpush1.bf16.msra.mxu0 %v329
  %401 = vmatprep.subr.bf16.mxu0 0
  %402 = vmatpush1.bf16.msra.mxu0 %v330
  %403 = vmatprep.subr.bf16.mxu0 0
  %404 = vmatpush1.bf16.msra.mxu0 %v331
  %405 = vmatprep.subr.bf16.mxu0 0
  %406 = vmatpush1.bf16.msra.mxu0 %v332
  %407 = vmatprep.subr.bf16.mxu0 0
  %408 = vmatpush1.bf16.msra.mxu0 %v333
  %409 = vmatprep.subr.bf16.mxu0 0
  %410 = vmatpush1.bf16.msra.mxu0 %v334
  %411 = vmatprep.subr.bf16.mxu0 0
  %412 = vmatpush1.bf16.msra.mxu0 %v335
  %413 = vmatprep.subr.bf16.mxu0 0
  %414 = vmatpush1.bf16.msra.mxu0 %v336
  %415 = vmatprep.subr.bf16.mxu0 0
  %416 = vmatpush1.bf16.msra.mxu0 %v337
  %417 = vmatprep.subr.bf16.mxu0 0
  %418 = vmatpush1.bf16.msra.mxu0 %v338
  %419 = vmatprep.mubr.bf16.mxu0 %v164
  %420 = vmatmul.mubr.bf16.gmra.mrb[0].mxu0 %v163
  %v421 = vpop.f32.mrb[0].mxu0
  %v422 = vadd.f32 0.0, %v421
  %v423 = vpop.f32.mrb[0].mxu0
  %v424 = vpop.f32.mrb[0].mxu0
  %v425 = vadd.f32 0.0, %v424
  %v426 = vpop.f32.mrb[0].mxu0
  %427 = vmatprep.mubr.bf16.mxu0 %v168
  %428 = vmatmul.mubr.bf16.gmra.mrb[0].mxu0 %v167
  %v429 = vpop.f32.mrb[0].mxu0
  %v430 = vadd.f32 0.0, %v429
  %v431 = vpop.f32.mrb[0].mxu0
  %v432 = vpop.f32.mrb[0].mxu0
  %v433 = vadd.f32 0.0, %v432
  %v434 = vpop.f32.mrb[0].mxu0
  %435 = vmatprep.mubr.bf16.mxu0 %v172
  %436 = vmatmul.mubr.bf16.gmra.mrb[0].mxu0 %v171
  %v437 = vpop.f32.mrb[0].mxu0
  %v438 = vadd.f32 0.0, %v437
  %v439 = vpop.f32.mrb[0].mxu0
  %v440 = vpop.f32.mrb[0].mxu0
  %v441 = vadd.f32 0.0, %v440
  %v442 = vpop.f32.mrb[0].mxu0
  %443 = vmatprep.mubr.bf16.mxu0 %v176
  %444 = vmatmul.mubr.bf16.gmra.mrb[0].mxu0 %v175
  %v445 = vpop.f32.mrb[0].mxu0
  %v446 = vadd.f32 0.0, %v445
  %v447 = vpop.f32.mrb[0].mxu0
  %v448 = vpop.f32.mrb[0].mxu0
  %v449 = vadd.f32 0.0, %v448
  %v450 = vpop.f32.mrb[0].mxu0
  %451 = vdwg.mxu0
  %452 = vmatprep.subr.bf16.mxu0 0
  %453 = vmatpush1.bf16.msra.mxu0 %v339
  %454 = vmatprep.subr.bf16.mxu0 0
  %455 = vmatpush1.bf16.msra.mxu0 %v340
  %456 = vmatprep.subr.bf16.mxu0 0
  %457 = vmatpush1.bf16.msra.mxu0 %v341
  %458 = vmatprep.subr.bf16.mxu0 0
  %459 = vmatpush1.bf16.msra.mxu0 %v342
  %460 = vmatprep.subr.bf16.mxu0 0
  %461 = vmatpush1.bf16.msra.mxu0 %v343
  %462 = vmatprep.subr.bf16.mxu0 0
  %463 = vmatpush1.bf16.msra.mxu0 %v344
  %464 = vmatprep.subr.bf16.mxu0 0
  %465 = vmatpush1.bf16.msra.mxu0 %v345
  %466 = vmatprep.subr.bf16.mxu0 0
  %467 = vmatpush1.bf16.msra.mxu0 %v346
  %468 = vmatprep.subr.bf16.mxu0 0
  %469 = vmatpush1.bf16.msra.mxu0 %v347
  %470 = vmatprep.subr.bf16.mxu0 0
  %471 = vmatpush1.bf16.msra.mxu0 %v348
  %472 = vmatprep.subr.bf16.mxu0 0
  %473 = vmatpush1.bf16.msra.mxu0 %v349
  %474 = vmatprep.subr.bf16.mxu0 0
  %475 = vmatpush1.bf16.msra.mxu0 %v350
  %476 = vmatprep.subr.bf16.mxu0 0
  %477 = vmatpush1.bf16.msra.mxu0 %v351
  %478 = vmatprep.subr.bf16.mxu0 0
  %479 = vmatpush1.bf16.msra.mxu0 %v352
  %480 = vmatprep.subr.bf16.mxu0 0
  %481 = vmatpush1.bf16.msra.mxu0 %v353
  %482 = vmatprep.subr.bf16.mxu0 0
  %483 = vmatpush1.bf16.msra.mxu0 %v354
  %484 = vmatprep.mubr.bf16.mxu0 %v166
  %485 = vmatmul.mubr.bf16.gmra.mrb[0].mxu0 %v165
  %v486 = vpop.f32.mrb[0].mxu0
  %v487 = vadd.f32 %v422, %v486
  %v488 = vpop.f32.mrb[0].mxu0
  %v489 = vpop.f32.mrb[0].mxu0
  %v490 = vadd.f32 %v425, %v489
  %v491 = vpop.f32.mrb[0].mxu0
  %492 = vmatprep.mubr.bf16.mxu0 %v170
  %493 = vmatmul.mubr.bf16.gmra.mrb[0].mxu0 %v169
  %v494 = vpop.f32.mrb[0].mxu0
  %v495 = vadd.f32 %v430, %v494
  %v496 = vpop.f32.mrb[0].mxu0
  %v497 = vpop.f32.mrb[0].mxu0
  %v498 = vadd.f32 %v433, %v497
  %v499 = vpop.f32.mrb[0].mxu0
  %500 = vmatprep.mubr.bf16.mxu0 %v174
  %501 = vmatmul.mubr.bf16.gmra.mrb[0].mxu0 %v173
  %v502 = vpop.f32.mrb[0].mxu0
  %v503 = vadd.f32 %v438, %v502
  %v504 = vpop.f32.mrb[0].mxu0
  %v505 = vpop.f32.mrb[0].mxu0
  %v506 = vadd.f32 %v441, %v505
  %v507 = vpop.f32.mrb[0].mxu0
  %508 = vmatprep.mubr.bf16.mxu0 %v178
  %509 = vmatmul.mubr.bf16.gmra.mrb[0].mxu0 %v177
  %v510 = vpop.f32.mrb[0].mxu0
  %v511 = vadd.f32 %v446, %v510
  %v512 = vpop.f32.mrb[0].mxu0
  %v513 = vpop.f32.mrb[0].mxu0
  %v514 = vadd.f32 %v449, %v513
  %v515 = vpop.f32.mrb[0].mxu0
  %516 = vdwg.mxu0
  %v517 = vadd.f32 %v27, %v487
  %v518 = vadd.f32 %v28, %v490
  %v519 = vadd.f32 %v29, %v495
  %v520 = vadd.f32 %v30, %v498
  %v521 = vadd.f32 %v31, %v503
  %v522 = vadd.f32 %v32, %v506
  %v523 = vadd.f32 %v33, %v511
  %v524 = vadd.f32 %v34, %v514
  %525 = vst [vmem:[#allocation2] sm:$0xff] %v517
  %526 = vst [vmem:[#allocation2 + $0x8] sm:$0xff] %v518
  %527 = vst [vmem:[#allocation2 + $0x10] sm:$0xff] %v519
  %528 = vst [vmem:[#allocation2 + $0x18] sm:$0xff] %v520
  %529 = vst [vmem:[#allocation2 + $0x20] sm:$0xff] %v521
  %530 = vst [vmem:[#allocation2 + $0x28] sm:$0xff] %v522
  %531 = vst [vmem:[#allocation2 + $0x30] sm:$0xff] %v523
  %532 = vst [vmem:[#allocation2 + $0x38] sm:$0xff] %v524
  // Predicated region
  $region18: #{tmgnn_forward.39} parent=0 // pred_check
    %p533 = pneg %p15
  $region19: #{tmgnn_forward.39} parent=0 // pred_check_branch
    %535 = sbr.rel (%p533) target = $region21
  $region20: #{tmgnn_forward.39} parent=0 // pred_region
    %v536 = vld [vmem:[#allocation2] sm:$0xff]
    %v537 = vld [vmem:[#allocation2 + $0x8] sm:$0xff]
    %v538 = vld [vmem:[#allocation2 + $0x10] sm:$0xff]
    %v539 = vld [vmem:[#allocation2 + $0x18] sm:$0xff]
    %v540 = vld [vmem:[#allocation2 + $0x20] sm:$0xff]
    %v541 = vld [vmem:[#allocation2 + $0x28] sm:$0xff]
    %v542 = vld [vmem:[#allocation2 + $0x30] sm:$0xff]
    %v543 = vld [vmem:[#allocation2 + $0x38] sm:$0xff]
    %v544 = vld [vmem:[%s2] sm:$0x1]
    %v546 = vlaneseq
    %v547 = vshrl.u32 %v546, 7
    %v548 = vsub.s32 0, %v547
    %v549 = vrot.slane %v544, %v548
    %v551 = vadd.f32 %v536, %v549
    %v552 = vadd.f32 %v537, %v549
    %v553 = vadd.f32 %v538, %v549
    %v554 = vadd.f32 %v539, %v549
    %v555 = vadd.f32 %v540, %v549
    %v556 = vadd.f32 %v541, %v549
    %v557 = vadd.f32 %v542, %v549
    %v558 = vadd.f32 %v543, %v549
    %v559 = vmax.f32 %v551, 0.0
    %v560 = vmax.f32 %v552, 0.0
    %v561 = vmax.f32 %v553, 0.0
    %v562 = vmax.f32 %v554, 0.0
    %v563 = vmax.f32 %v555, 0.0
    %v564 = vmax.f32 %v556, 0.0
    %v565 = vmax.f32 %v557, 0.0
    %v566 = vmax.f32 %v558, 0.0
    %567 = vst [vmem:[%s3] sm:$0xff] %v559
    %568 = vst [vmem:[%s3 + $0x8] sm:$0xff] %v560
    %569 = vst [vmem:[%s3 + $0x10] sm:$0xff] %v561
    %570 = vst [vmem:[%s3 + $0x18] sm:$0xff] %v562
    %571 = vst [vmem:[%s3 + $0x20] sm:$0xff] %v563
    %572 = vst [vmem:[%s3 + $0x28] sm:$0xff] %v564
    %573 = vst [vmem:[%s3 + $0x30] sm:$0xff] %v565
    %574 = vst [vmem:[%s3 + $0x38] sm:$0xff] %v566
  $region21: #{tmgnn_forward.39} parent=0 // pred_fallthru
    _
  // Predicated region
  $region22: #{tmgnn_forward.39} parent=0 // pred_check
    _
  $region23: #{tmgnn_forward.39} parent=0 // pred_check_branch
    %576 = sbr.rel (0) target = $region25
  $region24: #{tmgnn_forward.39} parent=0 // pred_region
    _
  $region25: #{tmgnn_forward.39} parent=0 // pred_fallthru
    _
  // Predicated region
  $region26: #{tmgnn_forward.39} parent=0 // pred_check
    _
  $region27: #{tmgnn_forward.39} parent=0 // pred_check_branch
    %578 = sbr.rel (0) target = $region29
  $region28: #{tmgnn_forward.39} parent=0 // pred_region
    _
  $region29: #{tmgnn_forward.39} parent=0 // pred_fallthru
    _

// kernel: tmgnn_forward.40
$region0: #{tmgnn_forward.40}
  #allocation0 [shape = 'u32[]', space=smem, size = 0x4, offset = 0x4, fixed_abs, tag = 'smem constant byte address 0x4 - core index']
  #allocation1 [shape = 'u32[144,128]{1,0:T(1,128)}', space=vmem, size = 0x12000, scoped, tag = 'internal scratch']
  #allocation2 [shape = 'f32[64,256]{1,0:T(8,128)}', space=vmem, size = 0x10000, scoped, tag = 'scratch operand']
  %s0 = inlined_call_operand.vmem [shape: bf16[64,128], index: 0, kind: input, shape index: {}]
  %s1 = inlined_call_operand.vmem [shape: bf16[128,512], index: 1, kind: input, shape index: {}]
  %s2 = inlined_call_operand.vmem [shape: f32[1,512], index: 2, kind: input, shape index: {}]
  %s3 = inlined_call_operand.vmem [shape: f32[64,512], index: 3, kind: output, shape index: {}]
  %s4 = sld [smem:[#allocation0]]
  $region110: #{tmgnn_forward.40} parent=0
    _
  %s6 = ssub.s32 1, %s4
  %s7 = scalar_select 0, %s6, %s4
  $region1: #{tmgnn_forward.40} parent=0
    #allocation3 [shape = 'u8[131072]{0}', space=vmem, size = 0x20000, scoped, tag = 'input window, operand 1']
    #allocation4 [shape = 'u8[131072]{0}', space=vmem, size = 0x20000, scoped, tag = 'output window, operand 0']
    loop: start=0, step=1, limit=4
    $region2: #{tmgnn_forward.40} parent=1 // loop_pre_header
      _
    $region3: #{tmgnn_forward.40} parent=1 // loop_header
      %s9 = sphi 0, %s13
      %p10 = scmp.ge.s32.totalorder %s9, 4
      %s16 = sphi 0, %s35
      %s17 = sphi 0, %s31
      %s18 = sphi 0, %s27
      %s19 = sphi 0, %s16
      %s20 = sphi 0, %s17
      %s21 = sphi 0, %s18
      %s22 = sphi 0, %s19
      %s23 = sphi 0, %s20
      %s24 = sphi 0, %s21
      %s40 = sphi 0, %s42
      %s43 = sphi 0, %s40
      %s44 = sphi 0, %s43
      %s60 = sphi 0, %s44
      %s68 = sphi 0, %s70
      %s71 = sphi 0, %s68
      %s72 = sphi 0, %s71
      %s88 = sphi 0, %s72
      %s94 = sphi 0, %s96
      %s97 = sphi 0, %s94
      %s98 = sphi 0, %s97
      %s114 = sphi 0, %s98
      %s122 = sphi 0, %s124
      %s125 = sphi 0, %s122
      %s126 = sphi 0, %s125
      %s142 = sphi 0, %s126
    $region4: #{tmgnn_forward.40} parent=1 // loop_header_branch
      %12 = sbr.rel (%p10) target = $region8
    $region5: #{tmgnn_forward.40} parent=1 // loop_body
      %s14 = ssub.s32 %s9, 1
      %s15 = ssub.s32 %s9, 2
      %s25 = sadd.s32 1, %s18
      %p26 = scmp.ge.s32.totalorder %s25, 1
      %s27 = scalar_select %p26, 0, %s25
      %s28 = sadd.s32 1, %s17
      %s29 = scalar_select %p26, %s28, %s17
      %p30 = scmp.ge.s32.totalorder %s29, 2
      %s31 = scalar_select %p30, 0, %s29
      %s32 = sadd.s32 1, %s16
      %s33 = scalar_select %p30, %s32, %s16
      %p34 = scmp.ge.s32.totalorder %s33, 1
      %s35 = scalar_select %p34, 0, %s33
      %s36 = ssub.s32 %s16, %s35
      %s37 = ssub.s32 %s18, %s27
      %s38 = sor.u32 %s36, %s37
      %p39 = scmp.eq.s32.totalorder %s38, 0
      %s41 = sadd.s32 %s40, 1
      %s42 = scalar_select %p39, %s40, %s41
      %p45 = pneg %p39
      %p46 = scmp.eq.s32.totalorder %s9, 1
      %p47 = por %p45, %p46
      %p48 = scmp.ne.s32.totalorder %s40, %s43
      %p49 = scmp.eq.s32.totalorder %s9, 0
      %p50 = por %p48, %p49
      %p51 = scmp.ne.s32.totalorder %s40, %s43
      %p52 = scmp.eq.s32.totalorder %s14, 1
      %p53 = por %p51, %p52
      %p54 = scmp.ne.s32.totalorder %s43, %s44
      %p55 = scmp.eq.s32.totalorder %s14, 0
      %p56 = por %p54, %p55
      %p57 = scmp.ne.s32.totalorder %s43, %s44
      %p58 = scmp.eq.s32.totalorder %s15, 1
      %p59 = por %p57, %p58
      %p61 = scmp.ne.s32.totalorder %s44, %s60
      %p62 = scmp.eq.s32.totalorder %s15, 0
      %p63 = por %p61, %p62
      %s64 = ssub.s32 %s18, %s27
      %s65 = ssub.s32 %s17, %s31
      %s66 = sor.u32 %s64, %s65
      %p67 = scmp.eq.s32.totalorder %s66, 0
      %s69 = sadd.s32 %s68, 1
      %s70 = scalar_select %p67, %s68, %s69
      %p73 = pneg %p67
      %p74 = scmp.eq.s32.totalorder %s9, 1
      %p75 = por %p73, %p74
      %p76 = scmp.ne.s32.totalorder %s68, %s71
      %p77 = scmp.eq.s32.totalorder %s9, 0
      %p78 = por %p76, %p77
      %p79 = scmp.ne.s32.totalorder %s68, %s71
      %p80 = scmp.eq.s32.totalorder %s14, 1
      %p81 = por %p79, %p80
      %p82 = scmp.ne.s32.totalorder %s71, %s72
      %p83 = scmp.eq.s32.totalorder %s14, 0
      %p84 = por %p82, %p83
      %p85 = scmp.ne.s32.totalorder %s71, %s72
      %p86 = scmp.eq.s32.totalorder %s15, 1
      %p87 = por %p85, %p86
      %p89 = scmp.ne.s32.totalorder %s72, %s88
      %p90 = scmp.eq.s32.totalorder %s15, 0
      %p91 = por %p89, %p90
      %s92 = ssub.s32 %s17, %s31
      %p93 = scmp.eq.s32.totalorder %s92, 0
      %s95 = sadd.s32 %s94, 1
      %s96 = scalar_select %p93, %s94, %s95
      %p99 = pneg %p93
      %p100 = scmp.eq.s32.totalorder %s9, 1
      %p101 = por %p99, %p100
      %p102 = scmp.ne.s32.totalorder %s94, %s97
      %p103 = scmp.eq.s32.totalorder %s9, 0
      %p104 = por %p102, %p103
      %p105 = scmp.ne.s32.totalorder %s94, %s97
      %p106 = scmp.eq.s32.totalorder %s14, 1
      %p107 = por %p105, %p106
      %p108 = scmp.ne.s32.totalorder %s97, %s98
      %p109 = scmp.eq.s32.totalorder %s14, 0
      %p110 = por %p108, %p109
      %p111 = scmp.ne.s32.totalorder %s97, %s98
      %p112 = scmp.eq.s32.totalorder %s15, 1
      %p113 = por %p111, %p112
      %p115 = scmp.ne.s32.totalorder %s98, %s114
      %p116 = scmp.eq.s32.totalorder %s15, 0
      %p117 = por %p115, %p116
      %s118 = ssub.s32 %s16, %s35
      %s119 = ssub.s32 %s17, %s31
      %s120 = sor.u32 %s118, %s119
      %p121 = scmp.eq.s32.totalorder %s120, 0
      %s123 = sadd.s32 %s122, 1
      %s124 = scalar_select %p121, %s122, %s123
      %p127 = pneg %p121
      %p128 = scmp.eq.s32.totalorder %s9, 1
      %p129 = por %p127, %p128
      %p130 = scmp.ne.s32.totalorder %s122, %s125
      %p131 = scmp.eq.s32.totalorder %s9, 0
      %p132 = por %p130, %p131
      %p133 = scmp.ne.s32.totalorder %s122, %s125
      %p134 = scmp.eq.s32.totalorder %s14, 1
      %p135 = por %p133, %p134
      %p136 = scmp.ne.s32.totalorder %s125, %s126
      %p137 = scmp.eq.s32.totalorder %s14, 0
      %p138 = por %p136, %p137
      %p139 = scmp.ne.s32.totalorder %s125, %s126
      %p140 = scmp.eq.s32.totalorder %s15, 1
      %p141 = por %p139, %p140
      %p143 = scmp.ne.s32.totalorder %s126, %s142
      %p144 = scmp.eq.s32.totalorder %s15, 0
      %p145 = por %p143, %p144
      %p146 = scmp.le.s32.totalorder 1, %s9
      %p147 = scmp.lt.s32.totalorder %s9, 3
      %p148 = pnand %p146, %p147
      %p149 = pneg %p148
      // Predicated region
      $region9: #{tmgnn_forward.40} parent=5 // pred_check
        _
      $region10: #{tmgnn_forward.40} parent=5 // pred_check_branch
        %151 = sbr.rel (%p148) target = $region12
      $region11: #{tmgnn_forward.40} parent=5 // pred_region
        %s152 = ssub.s32 %s9, 1
        // Predicated region
        $region13: #{tmgnn_forward.40} parent=11 // pred_check
          %p153 = pneg %p56
        $region14: #{tmgnn_forward.40} parent=11 // pred_check_branch
          %155 = sbr.rel (%p153) target = $region16
        $region15: #{tmgnn_forward.40} parent=11 // pred_region
          %s156 = smul.u32 8, %s19
          %p157 = scmp.lt.s32.totalorder %s156, 7
          %s158 = scalar_select %p157, %s156, 7
          %p159 = scmp.lt.s32.totalorder %s21, 0
          %s160 = scalar_select %p159, %s21, 0
          %s161 = sadd.s32 %s160, %s158
          %s162 = smul.addr %s161, 4
          %s163 = scalar_lea.vmem %s0, %s162
          %s164 = smul.u32 8, %s19
        $region16: #{tmgnn_forward.40} parent=11 // pred_fallthru
          _
      $region12: #{tmgnn_forward.40} parent=5 // pred_fallthru
        _
      %p165 = scmp.lt.s32.totalorder %s9, 2
      // Predicated region
      $region17: #{tmgnn_forward.40} parent=5 // pred_check
        %p166 = pneg %p165
      $region18: #{tmgnn_forward.40} parent=5 // pred_check_branch
        %168 = sbr.rel (%p166) target = $region20
      $region19: #{tmgnn_forward.40} parent=5 // pred_region
        // Predicated region
        $region21: #{tmgnn_forward.40} parent=19 // pred_check
          %p169 = pneg %p78
        $region22: #{tmgnn_forward.40} parent=19 // pred_check_branch
          %171 = sbr.rel (%p169) target = $region24
        $region23: #{tmgnn_forward.40} parent=19 // pred_region
          %s172 = sand.u32 %s68, 1
          %s173 = sand.u32 %s68, 1
          %s174 = smul.addr %s173, 128
          %s175 = scalar_lea.vmem [#allocation3], %s174
          %s176 = smul.u32 16, %s18
          %s177 = smul.u32 2, %s17
          %s178 = smul.addr %s176, 4
          %s179 = sadd.s32 %s177, %s178
          %s180 = smul.addr %s179, 4
          %s181 = scalar_lea.vmem %s1, %s180
          // Predicated region
          $region25: #{tmgnn_forward.40} parent=23 // pred_check
            _
          $region26: #{tmgnn_forward.40} parent=23 // pred_check_branch
            %183 = sbr.rel (0) target = $region28
          $region27: #{tmgnn_forward.40} parent=23 // pred_region
            // Predicated region
            $region29: #{tmgnn_forward.40} parent=27 // pred_check
              _
            $region30: #{tmgnn_forward.40} parent=27 // pred_check_branch
              %185 = sbr.rel (0) target = $region32
            $region31: #{tmgnn_forward.40} parent=27 // pred_region
              // Predicated region
              $region44: #{tmgnn_forward.40} parent=31 // pred_check
                _
              $region45: #{tmgnn_forward.40} parent=31 // pred_check_branch
                %230 = sbr.rel (0) target = $region47
              $region46: #{tmgnn_forward.40} parent=31 // pred_region
                loop: start=0, step=1, limit=1
                $region48: #{tmgnn_forward.40} parent=46 // loop_pre_header
                  _
                $region49: #{tmgnn_forward.40} parent=46 // loop_header
                  %s232 = sphi 0, %s236
                  %p233 = scmp.ge.s32.totalorder %s232, 1
                  %s237 = sphi %s181, %s181
                  %s238 = sphi %s175, %s175
                $region50: #{tmgnn_forward.40} parent=46 // loop_header_branch
                  %235 = sbr.rel (%p233) target = $region54
                $region51: #{tmgnn_forward.40} parent=46 // loop_body
                  %v239 = vld [vmem:[%s237] sm:$0xff]
                  %240 = vst [vmem:[%s238] sm:$0xff] %v239
                  %v241 = vld [vmem:[%s237 + $0x10] sm:$0xff]
                  %242 = vst [vmem:[%s238 + $0x8] sm:$0xff] %v241
                  %v243 = vld [vmem:[%s237 + $0x20] sm:$0xff]
                  %244 = vst [vmem:[%s238 + $0x10] sm:$0xff] %v243
                  %v245 = vld [vmem:[%s237 + $0x30] sm:$0xff]
                  %246 = vst [vmem:[%s238 + $0x18] sm:$0xff] %v245
                  %v247 = vld [vmem:[%s237 + $0x40] sm:$0xff]
                  %248 = vst [vmem:[%s238 + $0x20] sm:$0xff] %v247
                  %v249 = vld [vmem:[%s237 + $0x50] sm:$0xff]
                  %250 = vst [vmem:[%s238 + $0x28] sm:$0xff] %v249
                  %v251 = vld [vmem:[%s237 + $0x60] sm:$0xff]
                  %252 = vst [vmem:[%s238 + $0x30] sm:$0xff] %v251
                  %v253 = vld [vmem:[%s237 + $0x70] sm:$0xff]
                  %254 = vst [vmem:[%s238 + $0x38] sm:$0xff] %v253
                  %v255 = vld [vmem:[%s237 + $0x80] sm:$0xff]
                  %256 = vst [vmem:[%s238 + $0x40] sm:$0xff] %v255
                  %v257 = vld [vmem:[%s237 + $0x90] sm:$0xff]
                  %258 = vst [vmem:[%s238 + $0x48] sm:$0xff] %v257
                  %v259 = vld [vmem:[%s237 + $0xa0] sm:$0xff]
                  %260 = vst [vmem:[%s238 + $0x50] sm:$0xff] %v259
                  %v261 = vld [vmem:[%s237 + $0xb0] sm:$0xff]
                  %262 = vst [vmem:[%s238 + $0x58] sm:$0xff] %v261
                  %v263 = vld [vmem:[%s237 + $0xc0] sm:$0xff]
                  %264 = vst [vmem:[%s238 + $0x60] sm:$0xff] %v263
                  %v265 = vld [vmem:[%s237 + $0xd0] sm:$0xff]
                  %266 = vst [vmem:[%s238 + $0x68] sm:$0xff] %v265
                  %v267 = vld [vmem:[%s237 + $0xe0] sm:$0xff]
                  %268 = vst [vmem:[%s238 + $0x70] sm:$0xff] %v267
                  %v269 = vld [vmem:[%s237 + $0xf0] sm:$0xff]
                  %270 = vst [vmem:[%s238 + $0x78] sm:$0xff] %v269
                $region52: #{tmgnn_forward.40} parent=46 // loop_footer
                  %s236 = sadd.s32 1, %s232
                $region53: #{tmgnn_forward.40} parent=46 // loop_footer_branch
                  %231 = sbr.rel target = $region49
                $region54: #{tmgnn_forward.40} parent=46 // loop_exit
                  _
              $region47: #{tmgnn_forward.40} parent=31 // pred_fallthru
                _
              // Predicated region
              $region55: #{tmgnn_forward.40} parent=31 // pred_check
                _
              $region56: #{tmgnn_forward.40} parent=31 // pred_check_branch
                %272 = sbr.rel target = $region58
              $region57: #{tmgnn_forward.40} parent=31 // pred_region
                _
              $region58: #{tmgnn_forward.40} parent=31 // pred_fallthru
                _
            $region32: #{tmgnn_forward.40} parent=27 // pred_fallthru
              _
            // Predicated region
            $region33: #{tmgnn_forward.40} parent=27 // pred_check
              _
            $region34: #{tmgnn_forward.40} parent=27 // pred_check_branch
              %187 = sbr.rel target = $region36
            $region35: #{tmgnn_forward.40} parent=27 // pred_region
              loop: start=0, step=1, limit=1
              $region37: #{tmgnn_forward.40} parent=35 // loop_pre_header
                _
              $region38: #{tmgnn_forward.40} parent=35 // loop_header
                %s190 = sphi 0, %s194
                %p191 = scmp.ge.s32.totalorder %s190, 1
                %s195 = sphi %s181, %s181
                %s196 = sphi %s175, %s175
              $region39: #{tmgnn_forward.40} parent=35 // loop_header_branch
                %193 = sbr.rel (%p191) target = $region43
              $region40: #{tmgnn_forward.40} parent=35 // loop_body
                %v197 = vld [vmem:[%s195] sm:$0xff]
                %198 = vst [vmem:[%s196] sm:$0xff] %v197
                %v199 = vld [vmem:[%s195 + $0x10] sm:$0xff]
                %200 = vst [vmem:[%s196 + $0x8] sm:$0xff] %v199
                %v201 = vld [vmem:[%s195 + $0x20] sm:$0xff]
                %202 = vst [vmem:[%s196 + $0x10] sm:$0xff] %v201
                %v203 = vld [vmem:[%s195 + $0x30] sm:$0xff]
                %204 = vst [vmem:[%s196 + $0x18] sm:$0xff] %v203
                %v205 = vld [vmem:[%s195 + $0x40] sm:$0xff]
                %206 = vst [vmem:[%s196 + $0x20] sm:$0xff] %v205
                %v207 = vld [vmem:[%s195 + $0x50] sm:$0xff]
                %208 = vst [vmem:[%s196 + $0x28] sm:$0xff] %v207
                %v209 = vld [vmem:[%s195 + $0x60] sm:$0xff]
                %210 = vst [vmem:[%s196 + $0x30] sm:$0xff] %v209
                %v211 = vld [vmem:[%s195 + $0x70] sm:$0xff]
                %212 = vst [vmem:[%s196 + $0x38] sm:$0xff] %v211
                %v213 = vld [vmem:[%s195 + $0x80] sm:$0xff]
                %214 = vst [vmem:[%s196 + $0x40] sm:$0xff] %v213
                %v215 = vld [vmem:[%s195 + $0x90] sm:$0xff]
                %216 = vst [vmem:[%s196 + $0x48] sm:$0xff] %v215
                %v217 = vld [vmem:[%s195 + $0xa0] sm:$0xff]
                %218 = vst [vmem:[%s196 + $0x50] sm:$0xff] %v217
                %v219 = vld [vmem:[%s195 + $0xb0] sm:$0xff]
                %220 = vst [vmem:[%s196 + $0x58] sm:$0xff] %v219
                %v221 = vld [vmem:[%s195 + $0xc0] sm:$0xff]
                %222 = vst [vmem:[%s196 + $0x60] sm:$0xff] %v221
                %v223 = vld [vmem:[%s195 + $0xd0] sm:$0xff]
                %224 = vst [vmem:[%s196 + $0x68] sm:$0xff] %v223
                %v225 = vld [vmem:[%s195 + $0xe0] sm:$0xff]
                %226 = vst [vmem:[%s196 + $0x70] sm:$0xff] %v225
                %v227 = vld [vmem:[%s195 + $0xf0] sm:$0xff]
                %228 = vst [vmem:[%s196 + $0x78] sm:$0xff] %v227
              $region41: #{tmgnn_forward.40} parent=35 // loop_footer
                %s194 = sadd.s32 1, %s190
              $region42: #{tmgnn_forward.40} parent=35 // loop_footer_branch
                %189 = sbr.rel target = $region38
              $region43: #{tmgnn_forward.40} parent=35 // loop_exit
                _
            $region36: #{tmgnn_forward.40} parent=27 // pred_fallthru
              _
          $region28: #{tmgnn_forward.40} parent=23 // pred_fallthru
            _
          %273 = vnop
        $region24: #{tmgnn_forward.40} parent=19 // pred_fallthru
          _
        // Predicated region
        $region59: #{tmgnn_forward.40} parent=19 // pred_check
          %p274 = pneg %p104
        $region60: #{tmgnn_forward.40} parent=19 // pred_check_branch
          %276 = sbr.rel (%p274) target = $region62
        $region61: #{tmgnn_forward.40} parent=19 // pred_region
          %s277 = smul.u32 2, %s17
          %p278 = scmp.lt.s32.totalorder %s277, 3
          %s279 = scalar_select %p278, %s277, 3
          %s280 = scalar_lea.vmem %s2, %s279
          %s281 = smul.u32 2, %s17
        $region62: #{tmgnn_forward.40} parent=19 // pred_fallthru
          _
      $region20: #{tmgnn_forward.40} parent=5 // pred_fallthru
        _
      %p282 = scmp.le.s32.totalorder 1, %s9
      %p283 = scmp.lt.s32.totalorder %s9, 3
      %p284 = pnand %p282, %p283
      %p285 = pneg %p284
      // Predicated region
      $region63: #{tmgnn_forward.40} parent=5 // pred_check
        _
      $region64: #{tmgnn_forward.40} parent=5 // pred_check_branch
        %287 = sbr.rel (%p284) target = $region66
      $region65: #{tmgnn_forward.40} parent=5 // pred_region
        %s288 = ssub.s32 %s9, 1
        %s289 = sand.u32 %s71, 1
        %s290 = sand.u32 %s71, 1
        %s291 = smul.addr %s290, 128
        %s292 = scalar_lea.vmem [#allocation3], %s291
        // Predicated region
        $region67: #{tmgnn_forward.40} parent=65 // pred_check
          %p293 = pneg %p84
        $region68: #{tmgnn_forward.40} parent=65 // pred_check_branch
          %295 = sbr.rel (%p293) target = $region70
        $region69: #{tmgnn_forward.40} parent=65 // pred_region
          _
        $region70: #{tmgnn_forward.40} parent=65 // pred_fallthru
          _
        %s296 = smul.u32 8, %s19
        %p297 = scmp.lt.s32.totalorder %s296, 7
        %s298 = scalar_select %p297, %s296, 7
        %p299 = scmp.lt.s32.totalorder %s21, 0
        %s300 = scalar_select %p299, %s21, 0
        %s301 = sadd.s32 %s300, %s298
        %s302 = smul.addr %s301, 4
        %s303 = scalar_lea.vmem %s0, %s302
        %p304 = pneg %p56
        %p305 = pneg %p53
        %s306 = sand.u32 %s71, 1
        %s307 = sand.u32 %s71, 1
        %s308 = smul.addr %s307, 128
        %s309 = scalar_lea.vmem [#allocation3], %s308
        %p310 = pneg %p84
        %p311 = pneg %p81
        %s312 = smul.u32 2, %s20
        %p313 = scmp.lt.s32.totalorder %s312, 3
        %s314 = scalar_select %p313, %s312, 3
        %s315 = scalar_lea.vmem %s2, %s314
        %p316 = pneg %p110
        %p317 = pneg %p107
        %p318 = pneg %p138
        %p319 = pneg %p135
        %s320 = sand.u32 %s125, 1
        %s321 = sand.u32 %s125, 1
        %s322 = smul.addr %s321, 128
        %s323 = scalar_lea.vmem [#allocation4], %s322
        %s324 = smul.u32 8, %s19
        %p325 = scmp.lt.s32.totalorder %s324, 7
        %s326 = scalar_select %p325, %s324, 7
        %p327 = scmp.lt.s32.totalorder %s21, 0
        %s328 = scalar_select %p327, %s21, 0
        %s329 = sadd.s32 %s328, %s326
        %s330 = smul.addr %s329, 4
        %s331 = scalar_lea.vmem %s0, %s330
        %s332 = smul.u32 8, %s19
        %s333 = smul.u32 16, %s21
        %s334 = smul.u32 2, %s20
        %s335 = smul.u32 2, %s20
        %p336 = scmp.lt.s32.totalorder %s335, 3
        %s337 = scalar_select %p336, %s335, 3
        %s338 = scalar_lea.vmem %s2, %s337
        %s339 = smul.u32 2, %s20
        %s340 = smul.u32 8, %s19
        %s341 = smul.u32 2, %s20
        %p343 = scmp.eq.s32.totalorder %s21, 0
        // Predicated region
        $region71: #{tmgnn_forward.40} parent=65 // pred_check
          %p344 = pneg %p343
        $region72: #{tmgnn_forward.40} parent=65 // pred_check_branch
          %346 = sbr.rel (%p344) target = $region74
        $region73: #{tmgnn_forward.40} parent=65 // pred_region
          %347 = vst [vmem:[#allocation2] sm:$0xff] 0.0
          %348 = vst [vmem:[#allocation2 + $0x8] sm:$0xff] 0.0
          %349 = vst [vmem:[#allocation2 + $0x10] sm:$0xff] 0.0
          %350 = vst [vmem:[#allocation2 + $0x18] sm:$0xff] 0.0
          %351 = vst [vmem:[#allocation2 + $0x20] sm:$0xff] 0.0
          %352 = vst [vmem:[#allocation2 + $0x28] sm:$0xff] 0.0
          %353 = vst [vmem:[#allocation2 + $0x30] sm:$0xff] 0.0
          %354 = vst [vmem:[#allocation2 + $0x38] sm:$0xff] 0.0
          %355 = vst [vmem:[#allocation2 + $0x40] sm:$0xff] 0.0
          %356 = vst [vmem:[#allocation2 + $0x48] sm:$0xff] 0.0
          %357 = vst [vmem:[#allocation2 + $0x50] sm:$0xff] 0.0
          %358 = vst [vmem:[#allocation2 + $0x58] sm:$0xff] 0.0
          %359 = vst [vmem:[#allocation2 + $0x60] sm:$0xff] 0.0
          %360 = vst [vmem:[#allocation2 + $0x68] sm:$0xff] 0.0
          %361 = vst [vmem:[#allocation2 + $0x70] sm:$0xff] 0.0
          %362 = vst [vmem:[#allocation2 + $0x78] sm:$0xff] 0.0
        $region74: #{tmgnn_forward.40} parent=65 // pred_fallthru
          _
        %v363 = vld [vmem:[#allocation2] sm:$0xff]
        %v364 = vld [vmem:[#allocation2 + $0x8] sm:$0xff]
        %v365 = vld [vmem:[#allocation2 + $0x10] sm:$0xff]
        %v366 = vld [vmem:[#allocation2 + $0x18] sm:$0xff]
        %v367 = vld [vmem:[#allocation2 + $0x20] sm:$0xff]
        %v368 = vld [vmem:[#allocation2 + $0x28] sm:$0xff]
        %v369 = vld [vmem:[#allocation2 + $0x30] sm:$0xff]
        %v370 = vld [vmem:[#allocation2 + $0x38] sm:$0xff]
        %v371 = vld [vmem:[#allocation2 + $0x40] sm:$0xff]
        %v372 = vld [vmem:[#allocation2 + $0x48] sm:$0xff]
        %v373 = vld [vmem:[#allocation2 + $0x50] sm:$0xff]
        %v374 = vld [vmem:[#allocation2 + $0x58] sm:$0xff]
        %v375 = vld [vmem:[#allocation2 + $0x60] sm:$0xff]
        %v376 = vld [vmem:[#allocation2 + $0x68] sm:$0xff]
        %v377 = vld [vmem:[#allocation2 + $0x70] sm:$0xff]
        %v378 = vld [vmem:[#allocation2 + $0x78] sm:$0xff]
        %v379 = vld [vmem:[%s331] sm:$0xf]
        %v380 = vld [vmem:[%s331 + $0x4] sm:$0xf]
        %v381 = vld [vmem:[%s331 + $0x8] sm:$0xf]
        %v382 = vld [vmem:[%s331 + $0xc] sm:$0xf]
        %v383 = vld [vmem:[%s331 + $0x10] sm:$0xf]
        %v384 = vld [vmem:[%s331 + $0x14] sm:$0xf]
        %v385 = vld [vmem:[%s331 + $0x18] sm:$0xf]
        %v386 = vld [vmem:[%s331 + $0x1c] sm:$0xf]
        %v387 = vld [vmem:[%s292] sm:$0xff]
        %v388 = vld [vmem:[%s292 + $0x8] sm:$0xff]
        %v389 = vld [vmem:[%s292 + $0x10] sm:$0xff]
        %v390 = vld [vmem:[%s292 + $0x18] sm:$0xff]
        %v391 = vld [vmem:[%s292 + $0x20] sm:$0xff]
        %v392 = vld [vmem:[%s292 + $0x28] sm:$0xff]
        %v393 = vld [vmem:[%s292 + $0x30] sm:$0xff]
        %v394 = vld [vmem:[%s292 + $0x38] sm:$0xff]
        %v395 = vld [vmem:[%s292 + $0x40] sm:$0xff]
        %v396 = vld [vmem:[%s292 + $0x48] sm:$0xff]
        %v397 = vld [vmem:[%s292 + $0x50] sm:$0xff]
        %v398 = vld [vmem:[%s292 + $0x58] sm:$0xff]
        %v399 = vld [vmem:[%s292 + $0x60] sm:$0xff]
        %v400 = vld [vmem:[%s292 + $0x68] sm:$0xff]
        %v401 = vld [vmem:[%s292 + $0x70] sm:$0xff]
        %v402 = vld [vmem:[%s292 + $0x78] sm:$0xff]
        %v411 = vunpack.c.l.b16 %v379
        %v412 = vunpack.c.l.b16 %v380
        %v413 = vunpack.c.l.b16 %v381
        %v414 = vunpack.c.l.b16 %v382
        %v415 = vunpack.c.l.b16 %v383
        %v416 = vunpack.c.l.b16 %v384
        %v417 = vunpack.c.l.b16 %v385
        %v418 = vunpack.c.l.b16 %v386
        %v419 = vpack.c.b16 %v412, %v411
        %v420 = vpack.c.b16 %v414, %v413
        %v421 = vpack.c.b16 %v416, %v415
        %v422 = vpack.c.b16 %v418, %v417
        %v443 = vunpack.c.l.b16 %v387
        %v444 = vunpack.c.h.b16 %v387
        %v445 = vunpack.c.l.b16 %v388
        %v446 = vunpack.c.h.b16 %v388
        %v447 = vunpack.c.l.b16 %v389
        %v448 = vunpack.c.h.b16 %v389
        %v449 = vunpack.c.l.b16 %v390
        %v450 = vunpack.c.h.b16 %v390
        %v451 = vunpack.c.l.b16 %v391
        %v452 = vunpack.c.h.b16 %v391
        %v453 = vunpack.c.l.b16 %v392
        %v454 = vunpack.c.h.b16 %v392
        %v455 = vunpack.c.l.b16 %v393
        %v456 = vunpack.c.h.b16 %v393
        %v457 = vunpack.c.l.b16 %v394
        %v458 = vunpack.c.h.b16 %v394
        %v459 = vunpack.c.l.b16 %v395
        %v460 = vunpack.c.h.b16 %v395
        %v461 = vunpack.c.l.b16 %v396
        %v462 = vunpack.c.h.b16 %v396
        %v463 = vunpack.c.l.b16 %v397
        %v464 = vunpack.c.h.b16 %v397
        %v465 = vunpack.c.l.b16 %v398
        %v466 = vunpack.c.h.b16 %v398
        %v467 = vunpack.c.l.b16 %v399
        %v468 = vunpack.c.h.b16 %v399
        %v469 = vunpack.c.l.b16 %v400
        %v470 = vunpack.c.h.b16 %v400
        %v471 = vunpack.c.l.b16 %v401
        %v472 = vunpack.c.h.b16 %v401
        %v473 = vunpack.c.l.b16 %v402
        %v474 = vunpack.c.h.b16 %v402
        %v475 = vpack.c.b16 %v445, %v443
        %v476 = vpack.c.b16 %v446, %v444
        %v477 = vpack.c.b16 %v449, %v447
        %v478 = vpack.c.b16 %v450, %v448
        %v479 = vpack.c.b16 %v453, %v451
        %v480 = vpack.c.b16 %v454, %v452
        %v481 = vpack.c.b16 %v457, %v455
        %v482 = vpack.c.b16 %v458, %v456
        %v483 = vpack.c.b16 %v461, %v459
        %v484 = vpack.c.b16 %v462, %v460
        %v485 = vpack.c.b16 %v465, %v463
        %v486 = vpack.c.b16 %v466, %v464
        %v487 = vpack.c.b16 %v469, %v467
        %v488 = vpack.c.b16 %v470, %v468
        %v489 = vpack.c.b16 %v473, %v471
        %v490 = vpack.c.b16 %v474, %v472
        %507 = vmatprep.subr.bf16.mxu0 %v476
        %508 = vmatpush1.bf16.msra.mxu0 %v475
        %509 = vmatprep.subr.bf16.mxu0 %v478
        %510 = vmatpush1.bf16.msra.mxu0 %v477
        %511 = vmatprep.subr.bf16.mxu0 %v480
        %512 = vmatpush1.bf16.msra.mxu0 %v479
        %513 = vmatprep.subr.bf16.mxu0 %v482
        %514 = vmatpush1.bf16.msra.mxu0 %v481
        %515 = vmatprep.subr.bf16.mxu0 %v484
        %516 = vmatpush1.bf16.msra.mxu0 %v483
        %517 = vmatprep.subr.bf16.mxu0 %v486
        %518 = vmatpush1.bf16.msra.mxu0 %v485
        %519 = vmatprep.subr.bf16.mxu0 %v488
        %520 = vmatpush1.bf16.msra.mxu0 %v487
        %521 = vmatprep.subr.bf16.mxu0 %v490
        %522 = vmatpush1.bf16.msra.mxu0 %v489
        %523 = vmatprep.subr.bf16.mxu0 0
        %524 = vmatpush1.bf16.msra.mxu0 0
        %525 = vmatprep.subr.bf16.mxu0 0
        %526 = vmatpush1.bf16.msra.mxu0 0
        %527 = vmatprep.subr.bf16.mxu0 0
        %528 = vmatpush1.bf16.msra.mxu0 0
        %529 = vmatprep.subr.bf16.mxu0 0
        %530 = vmatpush1.bf16.msra.mxu0 0
        %531 = vmatprep.subr.bf16.mxu0 0
        %532 = vmatpush1.bf16.msra.mxu0 0
        %533 = vmatprep.subr.bf16.mxu0 0
        %534 = vmatpush1.bf16.msra.mxu0 0
        %535 = vmatprep.subr.bf16.mxu0 0
        %536 = vmatpush1.bf16.msra.mxu0 0
        %537 = vmatprep.subr.bf16.mxu0 0
        %538 = vmatpush1.bf16.msra.mxu0 0
        %539 = vmatprep.mubr.bf16.mxu0 0
        %540 = vmatmul.mubr.bf16.gmra.mrb[0].mxu0 %v419
        %v541 = vpop.f32.mrb[0].mxu0
        %v542 = vadd.f32 0.0, %v541
        %v543 = vpop.f32.mrb[0].mxu0
        %v544 = vadd.f32 0.0, %v543
        %v545 = vpop.f32.mrb[0].mxu0
        %v546 = vadd.f32 0.0, %v545
        %v547 = vpop.f32.mrb[0].mxu0
        %v548 = vadd.f32 0.0, %v547
        %549 = vmatprep.mubr.bf16.mxu0 0
        %550 = vmatmul.mubr.bf16.gmra.mrb[0].mxu0 %v420
        %v551 = vpop.f32.mrb[0].mxu0
        %v552 = vadd.f32 0.0, %v551
        %v553 = vpop.f32.mrb[0].mxu0
        %v554 = vadd.f32 0.0, %v553
        %v555 = vpop.f32.mrb[0].mxu0
        %v556 = vadd.f32 0.0, %v555
        %v557 = vpop.f32.mrb[0].mxu0
        %v558 = vadd.f32 0.0, %v557
        %559 = vmatprep.mubr.bf16.mxu0 0
        %560 = vmatmul.mubr.bf16.gmra.mrb[0].mxu0 %v421
        %v561 = vpop.f32.mrb[0].mxu0
        %v562 = vadd.f32 0.0, %v561
        %v563 = vpop.f32.mrb[0].mxu0
        %v564 = vadd.f32 0.0, %v563
        %v565 = vpop.f32.mrb[0].mxu0
        %v566 = vadd.f32 0.0, %v565
        %v567 = vpop.f32.mrb[0].mxu0
        %v568 = vadd.f32 0.0, %v567
        %569 = vmatprep.mubr.bf16.mxu0 0
        %570 = vmatmul.mubr.bf16.gmra.mrb[0].mxu0 %v422
        %v571 = vpop.f32.mrb[0].mxu0
        %v572 = vadd.f32 0.0, %v571
        %v573 = vpop.f32.mrb[0].mxu0
        %v574 = vadd.f32 0.0, %v573
        %v575 = vpop.f32.mrb[0].mxu0
        %v576 = vadd.f32 0.0, %v575
        %v577 = vpop.f32.mrb[0].mxu0
        %v578 = vadd.f32 0.0, %v577
        %579 = vdwg.mxu0
        %v580 = vadd.f32 %v363, %v542
        %v581 = vadd.f32 %v364, %v544
        %v582 = vadd.f32 %v365, %v546
        %v583 = vadd.f32 %v366, %v548
        %v584 = vadd.f32 %v367, %v552
        %v585 = vadd.f32 %v368, %v554
        %v586 = vadd.f32 %v369, %v556
        %v587 = vadd.f32 %v370, %v558
        %v588 = vadd.f32 %v371, %v562
        %v589 = vadd.f32 %v372, %v564
        %v590 = vadd.f32 %v373, %v566
        %v591 = vadd.f32 %v374, %v568
        %v592 = vadd.f32 %v375, %v572
        %v593 = vadd.f32 %v376, %v574
        %v594 = vadd.f32 %v377, %v576
        %v595 = vadd.f32 %v378, %v578
        %596 = vst [vmem:[#allocation2] sm:$0xff] %v580
        %597 = vst [vmem:[#allocation2 + $0x8] sm:$0xff] %v581
        %598 = vst [vmem:[#allocation2 + $0x10] sm:$0xff] %v582
        %599 = vst [vmem:[#allocation2 + $0x18] sm:$0xff] %v583
        %600 = vst [vmem:[#allocation2 + $0x20] sm:$0xff] %v584
        %601 = vst [vmem:[#allocation2 + $0x28] sm:$0xff] %v585
        %602 = vst [vmem:[#allocation2 + $0x30] sm:$0xff] %v586
        %603 = vst [vmem:[#allocation2 + $0x38] sm:$0xff] %v587
        %604 = vst [vmem:[#allocation2 + $0x40] sm:$0xff] %v588
        %605 = vst [vmem:[#allocation2 + $0x48] sm:$0xff] %v589
        %606 = vst [vmem:[#allocation2 + $0x50] sm:$0xff] %v590
        %607 = vst [vmem:[#allocation2 + $0x58] sm:$0xff] %v591
        %608 = vst [vmem:[#allocation2 + $0x60] sm:$0xff] %v592
        %609 = vst [vmem:[#allocation2 + $0x68] sm:$0xff] %v593
        %610 = vst [vmem:[#allocation2 + $0x70] sm:$0xff] %v594
        %611 = vst [vmem:[#allocation2 + $0x78] sm:$0xff] %v595
        // Predicated region
        $region75: #{tmgnn_forward.40} parent=65 // pred_check
          %p612 = pneg %p343
        $region76: #{tmgnn_forward.40} parent=65 // pred_check_branch
          %614 = sbr.rel (%p612) target = $region78
        $region77: #{tmgnn_forward.40} parent=65 // pred_region
          %v615 = vld [vmem:[#allocation2] sm:$0xff]
          %v616 = vld [vmem:[#allocation2 + $0x8] sm:$0xff]
          %v617 = vld [vmem:[#allocation2 + $0x10] sm:$0xff]
          %v618 = vld [vmem:[#allocation2 + $0x18] sm:$0xff]
          %v619 = vld [vmem:[#allocation2 + $0x20] sm:$0xff]
          %v620 = vld [vmem:[#allocation2 + $0x28] sm:$0xff]
          %v621 = vld [vmem:[#allocation2 + $0x30] sm:$0xff]
          %v622 = vld [vmem:[#allocation2 + $0x38] sm:$0xff]
          %v623 = vld [vmem:[#allocation2 + $0x40] sm:$0xff]
          %v624 = vld [vmem:[#allocation2 + $0x48] sm:$0xff]
          %v625 = vld [vmem:[#allocation2 + $0x50] sm:$0xff]
          %v626 = vld [vmem:[#allocation2 + $0x58] sm:$0xff]
          %v627 = vld [vmem:[#allocation2 + $0x60] sm:$0xff]
          %v628 = vld [vmem:[#allocation2 + $0x68] sm:$0xff]
          %v629 = vld [vmem:[#allocation2 + $0x70] sm:$0xff]
          %v630 = vld [vmem:[#allocation2 + $0x78] sm:$0xff]
          %v631 = vld [vmem:[%s338] sm:$0x3]
          %v633 = vlaneseq
          %v634 = vshrl.u32 %v633, 7
          %v635 = vsub.s32 0, %v634
          %v636 = vrot.slane %v631, %v635
          %v637 = vlaneseq
          %v638 = vshrl.u32 %v637, 7
          %v639 = vsub.s32 1, %v638
          %v640 = vrot.slane %v631, %v639
          %v643 = vadd.f32 %v615, %v636
          %v644 = vadd.f32 %v616, %v640
          %v645 = vadd.f32 %v617, %v636
          %v646 = vadd.f32 %v618, %v640
          %v647 = vadd.f32 %v619, %v636
          %v648 = vadd.f32 %v620, %v640
          %v649 = vadd.f32 %v621, %v636
          %v650 = vadd.f32 %v622, %v640
          %v651 = vadd.f32 %v623, %v636
          %v652 = vadd.f32 %v624, %v640
          %v653 = vadd.f32 %v625, %v636
          %v654 = vadd.f32 %v626, %v640
          %v655 = vadd.f32 %v627, %v636
          %v656 = vadd.f32 %v628, %v640
          %v657 = vadd.f32 %v629, %v636
          %v658 = vadd.f32 %v630, %v640
          %659 = vst [vmem:[%s323] sm:$0xff] %v643
          %660 = vst [vmem:[%s323 + $0x8] sm:$0xff] %v644
          %661 = vst [vmem:[%s323 + $0x10] sm:$0xff] %v645
          %662 = vst [vmem:[%s323 + $0x18] sm:$0xff] %v646
          %663 = vst [vmem:[%s323 + $0x20] sm:$0xff] %v647
          %664 = vst [vmem:[%s323 + $0x28] sm:$0xff] %v648
          %665 = vst [vmem:[%s323 + $0x30] sm:$0xff] %v649
          %666 = vst [vmem:[%s323 + $0x38] sm:$0xff] %v650
          %667 = vst [vmem:[%s323 + $0x40] sm:$0xff] %v651
          %668 = vst [vmem:[%s323 + $0x48] sm:$0xff] %v652
          %669 = vst [vmem:[%s323 + $0x50] sm:$0xff] %v653
          %670 = vst [vmem:[%s323 + $0x58] sm:$0xff] %v654
          %671 = vst [vmem:[%s323 + $0x60] sm:$0xff] %v655
          %672 = vst [vmem:[%s323 + $0x68] sm:$0xff] %v656
          %673 = vst [vmem:[%s323 + $0x70] sm:$0xff] %v657
          %674 = vst [vmem:[%s323 + $0x78] sm:$0xff] %v658
        $region78: #{tmgnn_forward.40} parent=65 // pred_fallthru
          _
        %s675 = sand.u32 %s125, 1
        %s676 = sand.u32 %s125, 1
        %s677 = smul.addr %s676, 128
        %s678 = scalar_lea.vmem [#allocation4], %s677
        // Predicated region
        $region79: #{tmgnn_forward.40} parent=65 // pred_check
          %p679 = pneg %p135
        $region80: #{tmgnn_forward.40} parent=65 // pred_check_branch
          %681 = sbr.rel (%p679) target = $region82
        $region81: #{tmgnn_forward.40} parent=65 // pred_region
          %s682 = smul.u32 8, %s19
          %s683 = smul.u32 2, %s20
          %s684 = smul.addr %s682, 4
          %s685 = sadd.s32 %s683, %s684
          %s686 = smul.addr %s685, 8
          %s687 = scalar_lea.vmem %s3, %s686
          // Predicated region
          $region83: #{tmgnn_forward.40} parent=81 // pred_check
            _
          $region84: #{tmgnn_forward.40} parent=81 // pred_check_branch
            %689 = sbr.rel (0) target = $region86
          $region85: #{tmgnn_forward.40} parent=81 // pred_region
            // Predicated region
            $region87: #{tmgnn_forward.40} parent=85 // pred_check
              _
            $region88: #{tmgnn_forward.40} parent=85 // pred_check_branch
              %691 = sbr.rel (0) target = $region90
            $region89: #{tmgnn_forward.40} parent=85 // pred_region
              loop: start=0, step=1, limit=1
              $region91: #{tmgnn_forward.40} parent=89 // loop_pre_header
                _
              $region92: #{tmgnn_forward.40} parent=89 // loop_header
                %s693 = sphi 0, %s697
                %p694 = scmp.ge.s32.totalorder %s693, 1
                %s698 = sphi %s678, %s678
                %s699 = sphi %s687, %s687
              $region93: #{tmgnn_forward.40} parent=89 // loop_header_branch
                %696 = sbr.rel (%p694) target = $region97
              $region94: #{tmgnn_forward.40} parent=89 // loop_body
                %v700 = vld [vmem:[%s698] sm:$0xff]
                %701 = vst [vmem:[%s699] sm:$0xff] %v700
                %v702 = vld [vmem:[%s698 + $0x8] sm:$0xff]
                %703 = vst [vmem:[%s699 + $0x8] sm:$0xff] %v702
                %v704 = vld [vmem:[%s698 + $0x10] sm:$0xff]
                %705 = vst [vmem:[%s699 + $0x20] sm:$0xff] %v704
                %v706 = vld [vmem:[%s698 + $0x18] sm:$0xff]
                %707 = vst [vmem:[%s699 + $0x28] sm:$0xff] %v706
                %v708 = vld [vmem:[%s698 + $0x20] sm:$0xff]
                %709 = vst [vmem:[%s699 + $0x40] sm:$0xff] %v708
                %v710 = vld [vmem:[%s698 + $0x28] sm:$0xff]
                %711 = vst [vmem:[%s699 + $0x48] sm:$0xff] %v710
                %v712 = vld [vmem:[%s698 + $0x30] sm:$0xff]
                %713 = vst [vmem:[%s699 + $0x60] sm:$0xff] %v712
                %v714 = vld [vmem:[%s698 + $0x38] sm:$0xff]
                %715 = vst [vmem:[%s699 + $0x68] sm:$0xff] %v714
                %v716 = vld [vmem:[%s698 + $0x40] sm:$0xff]
                %717 = vst [vmem:[%s699 + $0x80] sm:$0xff] %v716
                %v718 = vld [vmem:[%s698 + $0x48] sm:$0xff]
                %719 = vst [vmem:[%s699 + $0x88] sm:$0xff] %v718
                %v720 = vld [vmem:[%s698 + $0x50] sm:$0xff]
                %721 = vst [vmem:[%s699 + $0xa0] sm:$0xff] %v720
                %v722 = vld [vmem:[%s698 + $0x58] sm:$0xff]
                %723 = vst [vmem:[%s699 + $0xa8] sm:$0xff] %v722
                %v724 = vld [vmem:[%s698 + $0x60] sm:$0xff]
                %725 = vst [vmem:[%s699 + $0xc0] sm:$0xff] %v724
                %v726 = vld [vmem:[%s698 + $0x68] sm:$0xff]
                %727 = vst [vmem:[%s699 + $0xc8] sm:$0xff] %v726
                %v728 = vld [vmem:[%s698 + $0x70] sm:$0xff]
                %729 = vst [vmem:[%s699 + $0xe0] sm:$0xff] %v728
                %v730 = vld [vmem:[%s698 + $0x78] sm:$0xff]
                %731 = vst [vmem:[%s699 + $0xe8] sm:$0xff] %v730
              $region95: #{tmgnn_forward.40} parent=89 // loop_footer
                %s697 = sadd.s32 1, %s693
              $region96: #{tmgnn_forward.40} parent=89 // loop_footer_branch
                %692 = sbr.rel target = $region92
              $region97: #{tmgnn_forward.40} parent=89 // loop_exit
                _
            $region90: #{tmgnn_forward.40} parent=85 // pred_fallthru
              _
            // Predicated region
            $region98: #{tmgnn_forward.40} parent=85 // pred_check
              _
            $region99: #{tmgnn_forward.40} parent=85 // pred_check_branch
              %733 = sbr.rel target = $region101
            $region100: #{tmgnn_forward.40} parent=85 // pred_region
              _
            $region101: #{tmgnn_forward.40} parent=85 // pred_fallthru
              _
          $region86: #{tmgnn_forward.40} parent=81 // pred_fallthru
            _
          %734 = vnop
        $region82: #{tmgnn_forward.40} parent=65 // pred_fallthru
          _
      $region66: #{tmgnn_forward.40} parent=5 // pred_fallthru
        _
      %p735 = scmp.le.s32.totalorder 2, %s9
      // Predicated region
      $region102: #{tmgnn_forward.40} parent=5 // pred_check
        %p736 = pneg %p735
      $region103: #{tmgnn_forward.40} parent=5 // pred_check_branch
        %738 = sbr.rel (%p736) target = $region105
      $region104: #{tmgnn_forward.40} parent=5 // pred_region
        %s739 = ssub.s32 %s9, 2
        // Predicated region
        $region106: #{tmgnn_forward.40} parent=104 // pred_check
          %p740 = pneg %p141
        $region107: #{tmgnn_forward.40} parent=104 // pred_check_branch
          %742 = sbr.rel (%p740) target = $region109
        $region108: #{tmgnn_forward.40} parent=104 // pred_region
          %s743 = sand.u32 %s126, 1
          %s744 = sand.u32 %s126, 1
          %s745 = smul.addr %s744, 128
          %s746 = scalar_lea.vmem [#allocation4], %s745
        $region109: #{tmgnn_forward.40} parent=104 // pred_fallthru
          _
      $region105: #{tmgnn_forward.40} parent=5 // pred_fallthru
        _
    $region6: #{tmgnn_forward.40} parent=1 // loop_footer
      %s13 = sadd.s32 1, %s9
    $region7: #{tmgnn_forward.40} parent=1 // loop_footer_branch
      %8 = sbr.rel target = $region3
    $region8: #{tmgnn_forward.40} parent=1 // loop_exit
      _

// kernel: tmgnn_forward.42
$region0: #{tmgnn_forward.42}
  #allocation0 [shape = 'u32[]', space=smem, size = 0x4, offset = 0x4, fixed_abs, tag = 'smem constant byte address 0x4 - core index']
  #allocation1 [shape = 'u32[144,128]{1,0:T(1,128)}', space=vmem, size = 0x12000, scoped, tag = 'internal scratch']
  %s0 = inlined_call_operand.vmem [shape: bf16[16,128], index: 0, kind: input, shape index: {}]
  %s1 = inlined_call_operand.vmem [shape: bf16[16,128], index: 1, kind: input, shape index: {}]
  %s2 = inlined_call_operand.vmem [shape: bf16[16,128], index: 2, kind: input, shape index: {}]
  %s3 = inlined_call_operand.vmem [shape: bf16[128,128], index: 3, kind: input, shape index: {}]
  %s4 = inlined_call_operand.vmem [shape: bf16[128,128], index: 4, kind: input, shape index: {}]
  %s5 = inlined_call_operand.vmem [shape: bf16[128,128], index: 5, kind: input, shape index: {}]
  %s6 = inlined_call_operand.vmem [shape: f32[1,128], index: 6, kind: input, shape index: {}]
  %s7 = inlined_call_operand.vmem [shape: f32[16,128], index: 7, kind: output, shape index: {}]
  %s8 = sld [smem:[#allocation0]]
  $region38: #{tmgnn_forward.42} parent=0
    _
  %s10 = ssub.s32 1, %s8
  %s11 = scalar_select 0, %s10, %s8
  // Predicated region
  $region2: #{tmgnn_forward.42} parent=0 // pred_check
    _
  $region3: #{tmgnn_forward.42} parent=0 // pred_check_branch
    %13 = sbr.rel (0) target = $region5
  $region4: #{tmgnn_forward.42} parent=0 // pred_region
    _
  $region5: #{tmgnn_forward.42} parent=0 // pred_fallthru
    _
  // Predicated region
  $region6: #{tmgnn_forward.42} parent=0 // pred_check
    _
  $region7: #{tmgnn_forward.42} parent=0 // pred_check_branch
    %15 = sbr.rel (0) target = $region9
  $region8: #{tmgnn_forward.42} parent=0 // pred_region
    _
  $region9: #{tmgnn_forward.42} parent=0 // pred_fallthru
    _
  // Predicated region
  $region10: #{tmgnn_forward.42} parent=0 // pred_check
    _
  $region11: #{tmgnn_forward.42} parent=0 // pred_check_branch
    %17 = sbr.rel (0) target = $region13
  $region12: #{tmgnn_forward.42} parent=0 // pred_region
    _
  $region13: #{tmgnn_forward.42} parent=0 // pred_fallthru
    _
  // Predicated region
  $region14: #{tmgnn_forward.42} parent=0 // pred_check
    _
  $region15: #{tmgnn_forward.42} parent=0 // pred_check_branch
    %19 = sbr.rel (0) target = $region17
  $region16: #{tmgnn_forward.42} parent=0 // pred_region
    _
  $region17: #{tmgnn_forward.42} parent=0 // pred_fallthru
    _
  // Predicated region
  $region18: #{tmgnn_forward.42} parent=0 // pred_check
    _
  $region19: #{tmgnn_forward.42} parent=0 // pred_check_branch
    %21 = sbr.rel (0) target = $region21
  $region20: #{tmgnn_forward.42} parent=0 // pred_region
    _
  $region21: #{tmgnn_forward.42} parent=0 // pred_fallthru
    _
  // Predicated region
  $region22: #{tmgnn_forward.42} parent=0 // pred_check
    _
  $region23: #{tmgnn_forward.42} parent=0 // pred_check_branch
    %23 = sbr.rel (0) target = $region25
  $region24: #{tmgnn_forward.42} parent=0 // pred_region
    _
  $region25: #{tmgnn_forward.42} parent=0 // pred_fallthru
    _
  // Predicated region
  $region26: #{tmgnn_forward.42} parent=0 // pred_check
    _
  $region27: #{tmgnn_forward.42} parent=0 // pred_check_branch
    %25 = sbr.rel (0) target = $region29
  $region28: #{tmgnn_forward.42} parent=0 // pred_region
    _
  $region29: #{tmgnn_forward.42} parent=0 // pred_fallthru
    _
  %v27 = vld [vmem:[%s0] sm:$0xf]
  %v28 = vld [vmem:[%s0 + $0x4] sm:$0xf]
  %v29 = vld [vmem:[%s3] sm:$0xf]
  %v30 = vld [vmem:[%s3 + $0x4] sm:$0xf]
  %v31 = vld [vmem:[%s3 + $0x8] sm:$0xf]
  %v32 = vld [vmem:[%s3 + $0xc] sm:$0xf]
  %v33 = vld [vmem:[%s3 + $0x10] sm:$0xf]
  %v34 = vld [vmem:[%s3 + $0x14] sm:$0xf]
  %v35 = vld [vmem:[%s3 + $0x18] sm:$0xf]
  %v36 = vld [vmem:[%s3 + $0x1c] sm:$0xf]
  %v37 = vld [vmem:[%s3 + $0x20] sm:$0xf]
  %v38 = vld [vmem:[%s3 + $0x24] sm:$0xf]
  %v39 = vld [vmem:[%s3 + $0x28] sm:$0xf]
  %v40 = vld [vmem:[%s3 + $0x2c] sm:$0xf]
  %v41 = vld [vmem:[%s3 + $0x30] sm:$0xf]
  %v42 = vld [vmem:[%s3 + $0x34] sm:$0xf]
  %v43 = vld [vmem:[%s3 + $0x38] sm:$0xf]
  %v44 = vld [vmem:[%s3 + $0x3c] sm:$0xf]
  %v45 = vld [vmem:[%s1] sm:$0xf]
  %v46 = vld [vmem:[%s1 + $0x4] sm:$0xf]
  %v47 = vld [vmem:[%s4] sm:$0xf]
  %v48 = vld [vmem:[%s4 + $0x4] sm:$0xf]
  %v49 = vld [vmem:[%s4 + $0x8] sm:$0xf]
  %v50 = vld [vmem:[%s4 + $0xc] sm:$0xf]
  %v51 = vld [vmem:[%s4 + $0x10] sm:$0xf]
  %v52 = vld [vmem:[%s4 + $0x14] sm:$0xf]
  %v53 = vld [vmem:[%s4 + $0x18] sm:$0xf]
  %v54 = vld [vmem:[%s4 + $0x1c] sm:$0xf]
  %v55 = vld [vmem:[%s4 + $0x20] sm:$0xf]
  %v56 = vld [vmem:[%s4 + $0x24] sm:$0xf]
  %v57 = vld [vmem:[%s4 + $0x28] sm:$0xf]
  %v58 = vld [vmem:[%s4 + $0x2c] sm:$0xf]
  %v59 = vld [vmem:[%s4 + $0x30] sm:$0xf]
  %v60 = vld [vmem:[%s4 + $0x34] sm:$0xf]
  %v61 = vld [vmem:[%s4 + $0x38] sm:$0xf]
  %v62 = vld [vmem:[%s4 + $0x3c] sm:$0xf]
  %v65 = vunpack.c.l.b16 %v45
  %v66 = vunpack.c.l.b16 %v46
  %v67 = vpack.c.b16 %v66, %v65
  %v85 = vunpack.c.l.b16 %v47
  %v86 = vunpack.c.l.b16 %v48
  %v87 = vunpack.c.l.b16 %v49
  %v88 = vunpack.c.l.b16 %v50
  %v89 = vunpack.c.l.b16 %v51
  %v90 = vunpack.c.l.b16 %v52
  %v91 = vunpack.c.l.b16 %v53
  %v92 = vunpack.c.l.b16 %v54
  %v93 = vunpack.c.l.b16 %v55
  %v94 = vunpack.c.l.b16 %v56
  %v95 = vunpack.c.l.b16 %v57
  %v96 = vunpack.c.l.b16 %v58
  %v97 = vunpack.c.l.b16 %v59
  %v98 = vunpack.c.l.b16 %v60
  %v99 = vunpack.c.l.b16 %v61
  %v100 = vunpack.c.l.b16 %v62
  %v101 = vpack.c.b16 %v86, %v85
  %v102 = vpack.c.b16 %v88, %v87
  %v103 = vpack.c.b16 %v90, %v89
  %v104 = vpack.c.b16 %v92, %v91
  %v105 = vpack.c.b16 %v94, %v93
  %v106 = vpack.c.b16 %v96, %v95
  %v107 = vpack.c.b16 %v98, %v97
  %v108 = vpack.c.b16 %v100, %v99
  %117 = vmatprep.subr.bf16.mxu0 0
  %118 = vmatpush1.bf16.msra.mxu0 %v101
  %119 = vmatprep.subr.bf16.mxu0 0
  %120 = vmatpush1.bf16.msra.mxu0 %v102
  %121 = vmatprep.subr.bf16.mxu0 0
  %122 = vmatpush1.bf16.msra.mxu0 %v103
  %123 = vmatprep.subr.bf16.mxu0 0
  %124 = vmatpush1.bf16.msra.mxu0 %v104
  %125 = vmatprep.subr.bf16.mxu0 0
  %126 = vmatpush1.bf16.msra.mxu0 %v105
  %127 = vmatprep.subr.bf16.mxu0 0
  %128 = vmatpush1.bf16.msra.mxu0 %v106
  %129 = vmatprep.subr.bf16.mxu0 0
  %130 = vmatpush1.bf16.msra.mxu0 %v107
  %131 = vmatprep.subr.bf16.mxu0 0
  %132 = vmatpush1.bf16.msra.mxu0 %v108
  %133 = vmatprep.subr.bf16.mxu0 0
  %134 = vmatpush1.bf16.msra.mxu0 0
  %135 = vmatprep.subr.bf16.mxu0 0
  %136 = vmatpush1.bf16.msra.mxu0 0
  %137 = vmatprep.subr.bf16.mxu0 0
  %138 = vmatpush1.bf16.msra.mxu0 0
  %139 = vmatprep.subr.bf16.mxu0 0
  %140 = vmatpush1.bf16.msra.mxu0 0
  %141 = vmatprep.subr.bf16.mxu0 0
  %142 = vmatpush1.bf16.msra.mxu0 0
  %143 = vmatprep.subr.bf16.mxu0 0
  %144 = vmatpush1.bf16.msra.mxu0 0
  %145 = vmatprep.subr.bf16.mxu0 0
  %146 = vmatpush1.bf16.msra.mxu0 0
  %147 = vmatprep.subr.bf16.mxu0 0
  %148 = vmatpush1.bf16.msra.mxu0 0
  %149 = vmatprep.mubr.bf16.mxu0 0
  %150 = vmatmul.mubr.bf16.gmra.mrb[0].mxu0 %v67
  %v151 = vpop.f32.mrb[0].mxu0
  %v152 = vadd.f32 0.0, %v151
  %v153 = vpop.f32.mrb[0].mxu0
  %v154 = vpop.f32.mrb[0].mxu0
  %v155 = vadd.f32 0.0, %v154
  %v156 = vpop.f32.mrb[0].mxu0
  %157 = vdwg.mxu0
  %v160 = vunpack.c.l.b16 %v27
  %v161 = vunpack.c.l.b16 %v28
  %v162 = vpack.c.b16 %v161, %v160
  %v180 = vunpack.c.l.b16 %v29
  %v181 = vunpack.c.l.b16 %v30
  %v182 = vunpack.c.l.b16 %v31
  %v183 = vunpack.c.l.b16 %v32
  %v184 = vunpack.c.l.b16 %v33
  %v185 = vunpack.c.l.b16 %v34
  %v186 = vunpack.c.l.b16 %v35
  %v187 = vunpack.c.l.b16 %v36
  %v188 = vunpack.c.l.b16 %v37
  %v189 = vunpack.c.l.b16 %v38
  %v190 = vunpack.c.l.b16 %v39
  %v191 = vunpack.c.l.b16 %v40
  %v192 = vunpack.c.l.b16 %v41
  %v193 = vunpack.c.l.b16 %v42
  %v194 = vunpack.c.l.b16 %v43
  %v195 = vunpack.c.l.b16 %v44
  %v196 = vpack.c.b16 %v181, %v180
  %v197 = vpack.c.b16 %v183, %v182
  %v198 = vpack.c.b16 %v185, %v184
  %v199 = vpack.c.b16 %v187, %v186
  %v200 = vpack.c.b16 %v189, %v188
  %v201 = vpack.c.b16 %v191, %v190
  %v202 = vpack.c.b16 %v193, %v192
  %v203 = vpack.c.b16 %v195, %v194
  %212 = vmatprep.subr.bf16.mxu0 0
  %213 = vmatpush1.bf16.msra.mxu0 %v196
  %214 = vmatprep.subr.bf16.mxu0 0
  %215 = vmatpush1.bf16.msra.mxu0 %v197
  %216 = vmatprep.subr.bf16.mxu0 0
  %217 = vmatpush1.bf16.msra.mxu0 %v198
  %218 = vmatprep.subr.bf16.mxu0 0
  %219 = vmatpush1.bf16.msra.mxu0 %v199
  %220 = vmatprep.subr.bf16.mxu0 0
  %221 = vmatpush1.bf16.msra.mxu0 %v200
  %222 = vmatprep.subr.bf16.mxu0 0
  %223 = vmatpush1.bf16.msra.mxu0 %v201
  %224 = vmatprep.subr.bf16.mxu0 0
  %225 = vmatpush1.bf16.msra.mxu0 %v202
  %226 = vmatprep.subr.bf16.mxu0 0
  %227 = vmatpush1.bf16.msra.mxu0 %v203
  %228 = vmatprep.subr.bf16.mxu0 0
  %229 = vmatpush1.bf16.msra.mxu0 0
  %230 = vmatprep.subr.bf16.mxu0 0
  %231 = vmatpush1.bf16.msra.mxu0 0
  %232 = vmatprep.subr.bf16.mxu0 0
  %233 = vmatpush1.bf16.msra.mxu0 0
  %234 = vmatprep.subr.bf16.mxu0 0
  %235 = vmatpush1.bf16.msra.mxu0 0
  %236 = vmatprep.subr.bf16.mxu0 0
  %237 = vmatpush1.bf16.msra.mxu0 0
  %238 = vmatprep.subr.bf16.mxu0 0
  %239 = vmatpush1.bf16.msra.mxu0 0
  %240 = vmatprep.subr.bf16.mxu0 0
  %241 = vmatpush1.bf16.msra.mxu0 0
  %242 = vmatprep.subr.bf16.mxu0 0
  %243 = vmatpush1.bf16.msra.mxu0 0
  %244 = vmatprep.mubr.bf16.mxu0 0
  %245 = vmatmul.mubr.bf16.gmra.mrb[0].mxu0 %v162
  %v246 = vpop.f32.mrb[0].mxu0
  %v247 = vadd.f32 %v152, %v246
  %v248 = vpop.f32.mrb[0].mxu0
  %v249 = vpop.f32.mrb[0].mxu0
  %v250 = vadd.f32 %v155, %v249
  %v251 = vpop.f32.mrb[0].mxu0
  %252 = vdwg.mxu0
  %v253 = vld [vmem:[%s2] sm:$0xf]
  %v254 = vld [vmem:[%s2 + $0x4] sm:$0xf]
  %v255 = vld [vmem:[%s5] sm:$0xf]
  %v256 = vld [vmem:[%s5 + $0x4] sm:$0xf]
  %v257 = vld [vmem:[%s5 + $0x8] sm:$0xf]
  %v258 = vld [vmem:[%s5 + $0xc] sm:$0xf]
  %v259 = vld [vmem:[%s5 + $0x10] sm:$0xf]
  %v260 = vld [vmem:[%s5 + $0x14] sm:$0xf]
  %v261 = vld [vmem:[%s5 + $0x18] sm:$0xf]
  %v262 = vld [vmem:[%s5 + $0x1c] sm:$0xf]
  %v263 = vld [vmem:[%s5 + $0x20] sm:$0xf]
  %v264 = vld [vmem:[%s5 + $0x24] sm:$0xf]
  %v265 = vld [vmem:[%s5 + $0x28] sm:$0xf]
  %v266 = vld [vmem:[%s5 + $0x2c] sm:$0xf]
  %v267 = vld [vmem:[%s5 + $0x30] sm:$0xf]
  %v268 = vld [vmem:[%s5 + $0x34] sm:$0xf]
  %v269 = vld [vmem:[%s5 + $0x38] sm:$0xf]
  %v270 = vld [vmem:[%s5 + $0x3c] sm:$0xf]
  %v273 = vunpack.c.l.b16 %v253
  %v274 = vunpack.c.l.b16 %v254
  %v275 = vpack.c.b16 %v274, %v273
  %v293 = vunpack.c.l.b16 %v255
  %v294 = vunpack.c.l.b16 %v256
  %v295 = vunpack.c.l.b16 %v257
  %v296 = vunpack.c.l.b16 %v258
  %v297 = vunpack.c.l.b16 %v259
  %v298 = vunpack.c.l.b16 %v260
  %v299 = vunpack.c.l.b16 %v261
  %v300 = vunpack.c.l.b16 %v262
  %v301 = vunpack.c.l.b16 %v263
  %v302 = vunpack.c.l.b16 %v264
  %v303 = vunpack.c.l.b16 %v265
  %v304 = vunpack.c.l.b16 %v266
  %v305 = vunpack.c.l.b16 %v267
  %v306 = vunpack.c.l.b16 %v268
  %v307 = vunpack.c.l.b16 %v269
  %v308 = vunpack.c.l.b16 %v270
  %v309 = vpack.c.b16 %v294, %v293
  %v310 = vpack.c.b16 %v296, %v295
  %v311 = vpack.c.b16 %v298, %v297
  %v312 = vpack.c.b16 %v300, %v299
  %v313 = vpack.c.b16 %v302, %v301
  %v314 = vpack.c.b16 %v304, %v303
  %v315 = vpack.c.b16 %v306, %v305
  %v316 = vpack.c.b16 %v308, %v307
  %325 = vmatprep.subr.bf16.mxu0 0
  %326 = vmatpush1.bf16.msra.mxu0 %v309
  %327 = vmatprep.subr.bf16.mxu0 0
  %328 = vmatpush1.bf16.msra.mxu0 %v310
  %329 = vmatprep.subr.bf16.mxu0 0
  %330 = vmatpush1.bf16.msra.mxu0 %v311
  %331 = vmatprep.subr.bf16.mxu0 0
  %332 = vmatpush1.bf16.msra.mxu0 %v312
  %333 = vmatprep.subr.bf16.mxu0 0
  %334 = vmatpush1.bf16.msra.mxu0 %v313
  %335 = vmatprep.subr.bf16.mxu0 0
  %336 = vmatpush1.bf16.msra.mxu0 %v314
  %337 = vmatprep.subr.bf16.mxu0 0
  %338 = vmatpush1.bf16.msra.mxu0 %v315
  %339 = vmatprep.subr.bf16.mxu0 0
  %340 = vmatpush1.bf16.msra.mxu0 %v316
  %341 = vmatprep.subr.bf16.mxu0 0
  %342 = vmatpush1.bf16.msra.mxu0 0
  %343 = vmatprep.subr.bf16.mxu0 0
  %344 = vmatpush1.bf16.msra.mxu0 0
  %345 = vmatprep.subr.bf16.mxu0 0
  %346 = vmatpush1.bf16.msra.mxu0 0
  %347 = vmatprep.subr.bf16.mxu0 0
  %348 = vmatpush1.bf16.msra.mxu0 0
  %349 = vmatprep.subr.bf16.mxu0 0
  %350 = vmatpush1.bf16.msra.mxu0 0
  %351 = vmatprep.subr.bf16.mxu0 0
  %352 = vmatpush1.bf16.msra.mxu0 0
  %353 = vmatprep.subr.bf16.mxu0 0
  %354 = vmatpush1.bf16.msra.mxu0 0
  %355 = vmatprep.subr.bf16.mxu0 0
  %356 = vmatpush1.bf16.msra.mxu0 0
  %357 = vmatprep.mubr.bf16.mxu0 0
  %358 = vmatmul.mubr.bf16.gmra.mrb[0].mxu0 %v275
  %v359 = vpop.f32.mrb[0].mxu0
  %v360 = vadd.f32 0.0, %v359
  %v361 = vpop.f32.mrb[0].mxu0
  %v362 = vpop.f32.mrb[0].mxu0
  %v363 = vadd.f32 0.0, %v362
  %v364 = vpop.f32.mrb[0].mxu0
  %365 = vdwg.mxu0
  %v366 = vadd.f32 %v247, %v360
  %v367 = vadd.f32 %v250, %v363
  %v368 = vld [vmem:[%s6] sm:$0x1]
  %v370 = vlaneseq
  %v371 = vshrl.u32 %v370, 7
  %v372 = vsub.s32 0, %v371
  %v373 = vrot.slane %v368, %v372
  %v375 = vadd.f32 %v366, %v373
  %v376 = vadd.f32 %v367, %v373
  %v377 = vmax.f32 %v375, 0.0
  %v378 = vmax.f32 %v376, 0.0
  %379 = vst [vmem:[%s7] sm:$0xff] %v377
  %380 = vst [vmem:[%s7 + $0x8] sm:$0xff] %v378
  // Predicated region
  $region30: #{tmgnn_forward.42} parent=0 // pred_check
    _
  $region31: #{tmgnn_forward.42} parent=0 // pred_check_branch
    %382 = sbr.rel (0) target = $region33
  $region32: #{tmgnn_forward.42} parent=0 // pred_region
    _
  $region33: #{tmgnn_forward.42} parent=0 // pred_fallthru
    _
  // Predicated region
  $region34: #{tmgnn_forward.42} parent=0 // pred_check
    _
  $region35: #{tmgnn_forward.42} parent=0 // pred_check_branch
    %384 = sbr.rel (0) target = $region37
  $region36: #{tmgnn_forward.42} parent=0 // pred_region
    _
  $region37: #{tmgnn_forward.42} parent=0 // pred_fallthru
    _

// kernel: tmgnn_forward.43
$region0: #{tmgnn_forward.43}
  #allocation0 [shape = 'u32[]', space=smem, size = 0x4, offset = 0x4, fixed_abs, tag = 'smem constant byte address 0x4 - core index']
  #allocation1 [shape = 'u32[144,128]{1,0:T(1,128)}', space=vmem, size = 0x12000, scoped, tag = 'internal scratch']
  #allocation2 [shape = 'f32[16,128]{1,0:T(8,128)}', space=vmem, size = 0x2000, scoped, tag = 'scratch operand']
  %s0 = inlined_call_operand.vmem [shape: bf16[16,128], index: 0, kind: input, shape index: {}]
  %s1 = inlined_call_operand.vmem [shape: bf16[128,128], index: 1, kind: input, shape index: {}]
  %s2 = inlined_call_operand.vmem [shape: f32[1,128], index: 2, kind: input, shape index: {}]
  %s3 = inlined_call_operand.vmem [shape: f32[16,128], index: 3, kind: output, shape index: {}]
  %s4 = sld [smem:[#allocation0]]
  $region30: #{tmgnn_forward.43} parent=0
    _
  %s6 = ssub.s32 1, %s4
  %s7 = scalar_select 0, %s6, %s4
  // Predicated region
  $region2: #{tmgnn_forward.43} parent=0 // pred_check
    _
  $region3: #{tmgnn_forward.43} parent=0 // pred_check_branch
    %9 = sbr.rel (0) target = $region5
  $region4: #{tmgnn_forward.43} parent=0 // pred_region
    _
  $region5: #{tmgnn_forward.43} parent=0 // pred_fallthru
    _
  // Predicated region
  $region6: #{tmgnn_forward.43} parent=0 // pred_check
    _
  $region7: #{tmgnn_forward.43} parent=0 // pred_check_branch
    %11 = sbr.rel (0) target = $region9
  $region8: #{tmgnn_forward.43} parent=0 // pred_region
    _
  $region9: #{tmgnn_forward.43} parent=0 // pred_fallthru
    _
  // Predicated region
  $region10: #{tmgnn_forward.43} parent=0 // pred_check
    _
  $region11: #{tmgnn_forward.43} parent=0 // pred_check_branch
    %13 = sbr.rel (0) target = $region13
  $region12: #{tmgnn_forward.43} parent=0 // pred_region
    _
  $region13: #{tmgnn_forward.43} parent=0 // pred_fallthru
    _
  %p15 = scmp.eq.s32.totalorder 0, 0
  // Predicated region
  $region14: #{tmgnn_forward.43} parent=0 // pred_check
    %p16 = pneg %p15
  $region15: #{tmgnn_forward.43} parent=0 // pred_check_branch
    %18 = sbr.rel (%p16) target = $region17
  $region16: #{tmgnn_forward.43} parent=0 // pred_region
    %19 = vst [vmem:[#allocation2] sm:$0xff] 0.0
    %20 = vst [vmem:[#allocation2 + $0x8] sm:$0xff] 0.0
  $region17: #{tmgnn_forward.43} parent=0 // pred_fallthru
    _
  %v21 = vld [vmem:[#allocation2] sm:$0xff]
  %v22 = vld [vmem:[#allocation2 + $0x8] sm:$0xff]
  %v23 = vld [vmem:[%s0] sm:$0xf]
  %v24 = vld [vmem:[%s0 + $0x4] sm:$0xf]
  %v25 = vld [vmem:[%s1] sm:$0xf]
  %v26 = vld [vmem:[%s1 + $0x4] sm:$0xf]
  %v27 = vld [vmem:[%s1 + $0x8] sm:$0xf]
  %v28 = vld [vmem:[%s1 + $0xc] sm:$0xf]
  %v29 = vld [vmem:[%s1 + $0x10] sm:$0xf]
  %v30 = vld [vmem:[%s1 + $0x14] sm:$0xf]
  %v31 = vld [vmem:[%s1 + $0x18] sm:$0xf]
  %v32 = vld [vmem:[%s1 + $0x1c] sm:$0xf]
  %v33 = vld [vmem:[%s1 + $0x20] sm:$0xf]
  %v34 = vld [vmem:[%s1 + $0x24] sm:$0xf]
  %v35 = vld [vmem:[%s1 + $0x28] sm:$0xf]
  %v36 = vld [vmem:[%s1 + $0x2c] sm:$0xf]
  %v37 = vld [vmem:[%s1 + $0x30] sm:$0xf]
  %v38 = vld [vmem:[%s1 + $0x34] sm:$0xf]
  %v39 = vld [vmem:[%s1 + $0x38] sm:$0xf]
  %v40 = vld [vmem:[%s1 + $0x3c] sm:$0xf]
  %v43 = vunpack.c.l.b16 %v23
  %v44 = vunpack.c.l.b16 %v24
  %v45 = vpack.c.b16 %v44, %v43
  %v63 = vunpack.c.l.b16 %v25
  %v64 = vunpack.c.l.b16 %v26
  %v65 = vunpack.c.l.b16 %v27
  %v66 = vunpack.c.l.b16 %v28
  %v67 = vunpack.c.l.b16 %v29
  %v68 = vunpack.c.l.b16 %v30
  %v69 = vunpack.c.l.b16 %v31
  %v70 = vunpack.c.l.b16 %v32
  %v71 = vunpack.c.l.b16 %v33
  %v72 = vunpack.c.l.b16 %v34
  %v73 = vunpack.c.l.b16 %v35
  %v74 = vunpack.c.l.b16 %v36
  %v75 = vunpack.c.l.b16 %v37
  %v76 = vunpack.c.l.b16 %v38
  %v77 = vunpack.c.l.b16 %v39
  %v78 = vunpack.c.l.b16 %v40
  %v79 = vpack.c.b16 %v64, %v63
  %v80 = vpack.c.b16 %v66, %v65
  %v81 = vpack.c.b16 %v68, %v67
  %v82 = vpack.c.b16 %v70, %v69
  %v83 = vpack.c.b16 %v72, %v71
  %v84 = vpack.c.b16 %v74, %v73
  %v85 = vpack.c.b16 %v76, %v75
  %v86 = vpack.c.b16 %v78, %v77
  %95 = vmatprep.subr.bf16.mxu0 0
  %96 = vmatpush1.bf16.msra.mxu0 %v79
  %97 = vmatprep.subr.bf16.mxu0 0
  %98 = vmatpush1.bf16.msra.mxu0 %v80
  %99 = vmatprep.subr.bf16.mxu0 0
  %100 = vmatpush1.bf16.msra.mxu0 %v81
  %101 = vmatprep.subr.bf16.mxu0 0
  %102 = vmatpush1.bf16.msra.mxu0 %v82
  %103 = vmatprep.subr.bf16.mxu0 0
  %104 = vmatpush1.bf16.msra.mxu0 %v83
  %105 = vmatprep.subr.bf16.mxu0 0
  %106 = vmatpush1.bf16.msra.mxu0 %v84
  %107 = vmatprep.subr.bf16.mxu0 0
  %108 = vmatpush1.bf16.msra.mxu0 %v85
  %109 = vmatprep.subr.bf16.mxu0 0
  %110 = vmatpush1.bf16.msra.mxu0 %v86
  %111 = vmatprep.subr.bf16.mxu0 0
  %112 = vmatpush1.bf16.msra.mxu0 0
  %113 = vmatprep.subr.bf16.mxu0 0
  %114 = vmatpush1.bf16.msra.mxu0 0
  %115 = vmatprep.subr.bf16.mxu0 0
  %116 = vmatpush1.bf16.msra.mxu0 0
  %117 = vmatprep.subr.bf16.mxu0 0
  %118 = vmatpush1.bf16.msra.mxu0 0
  %119 = vmatprep.subr.bf16.mxu0 0
  %120 = vmatpush1.bf16.msra.mxu0 0
  %121 = vmatprep.subr.bf16.mxu0 0
  %122 = vmatpush1.bf16.msra.mxu0 0
  %123 = vmatprep.subr.bf16.mxu0 0
  %124 = vmatpush1.bf16.msra.mxu0 0
  %125 = vmatprep.subr.bf16.mxu0 0
  %126 = vmatpush1.bf16.msra.mxu0 0
  %127 = vmatprep.mubr.bf16.mxu0 0
  %128 = vmatmul.mubr.bf16.gmra.mrb[0].mxu0 %v45
  %v129 = vpop.f32.mrb[0].mxu0
  %v130 = vadd.f32 0.0, %v129
  %v131 = vpop.f32.mrb[0].mxu0
  %v132 = vpop.f32.mrb[0].mxu0
  %v133 = vadd.f32 0.0, %v132
  %v134 = vpop.f32.mrb[0].mxu0
  %135 = vdwg.mxu0
  %v136 = vadd.f32 %v21, %v130
  %v137 = vadd.f32 %v22, %v133
  %138 = vst [vmem:[#allocation2] sm:$0xff] %v136
  %139 = vst [vmem:[#allocation2 + $0x8] sm:$0xff] %v137
  // Predicated region
  $region18: #{tmgnn_forward.43} parent=0 // pred_check
    %p140 = pneg %p15
  $region19: #{tmgnn_forward.43} parent=0 // pred_check_branch
    %142 = sbr.rel (%p140) target = $region21
  $region20: #{tmgnn_forward.43} parent=0 // pred_region
    %v143 = vld [vmem:[#allocation2] sm:$0xff]
    %v144 = vld [vmem:[#allocation2 + $0x8] sm:$0xff]
    %v145 = vld [vmem:[%s2] sm:$0x1]
    %v147 = vlaneseq
    %v148 = vshrl.u32 %v147, 7
    %v149 = vsub.s32 0, %v148
    %v150 = vrot.slane %v145, %v149
    %v152 = vadd.f32 %v143, %v150
    %v153 = vadd.f32 %v144, %v150
    %v154 = vmax.f32 %v152, 0.0
    %v155 = vmax.f32 %v153, 0.0
    %156 = vst [vmem:[%s3] sm:$0xff] %v154
    %157 = vst [vmem:[%s3 + $0x8] sm:$0xff] %v155
  $region21: #{tmgnn_forward.43} parent=0 // pred_fallthru
    _
  // Predicated region
  $region22: #{tmgnn_forward.43} parent=0 // pred_check
    _
  $region23: #{tmgnn_forward.43} parent=0 // pred_check_branch
    %159 = sbr.rel (0) target = $region25
  $region24: #{tmgnn_forward.43} parent=0 // pred_region
    _
  $region25: #{tmgnn_forward.43} parent=0 // pred_fallthru
    _
  // Predicated region
  $region26: #{tmgnn_forward.43} parent=0 // pred_check
    _
  $region27: #{tmgnn_forward.43} parent=0 // pred_check_branch
    %161 = sbr.rel (0) target = $region29
  $region28: #{tmgnn_forward.43} parent=0 // pred_region
    _
  $region29: #{tmgnn_forward.43} parent=0 // pred_fallthru
    _

// kernel: tmgnn_forward.41
$region0: #{tmgnn_forward.41}
  #allocation0 [shape = 'u32[]', space=smem, size = 0x4, offset = 0x4, fixed_abs, tag = 'smem constant byte address 0x4 - core index']
  #allocation1 [shape = 'u32[144,128]{1,0:T(1,128)}', space=vmem, size = 0x12000, scoped, tag = 'internal scratch']
  #allocation2 [shape = 'f32[16,128]{1,0:T(8,128)}', space=vmem, size = 0x2000, scoped, tag = 'scratch operand']
  #allocation3 [shape = 'f32[16,128]{1,0:T(8,128)}', space=vmem, size = 0x2000, scoped, tag = 'scratch operand']
  #allocation4 [shape = 'f32[16,128]{1,0:T(8,128)}', space=vmem, size = 0x2000, scoped, tag = 'scratch operand']
  #allocation5 [shape = 'f32[16,128]{1,0:T(8,128)}', space=vmem, size = 0x2000, scoped, tag = 'scratch operand']
  %s0 = inlined_call_operand.vmem [shape: f32[4,16,512], index: 0, kind: input, shape index: {}]
  %s1 = inlined_call_operand.vmem [shape: bf16[128,512], index: 1, kind: input, shape index: {}]
  %s2 = inlined_call_operand.vmem [shape: bf16[128,512], index: 2, kind: input, shape index: {}]
  %s3 = inlined_call_operand.vmem [shape: bf16[128,512], index: 3, kind: input, shape index: {}]
  %s4 = inlined_call_operand.vmem [shape: f32[1,512], index: 4, kind: input, shape index: {}]
  %s5 = inlined_call_operand.vmem [shape: f32[16,128], index: 5, kind: output, shape index: {0}]
  %s6 = inlined_call_operand.vmem [shape: f32[16,128], index: 6, kind: output, shape index: {1}]
  %7 = xla_tuple %s5, %s6
  %s8 = sld [smem:[#allocation0]]
  $region69: #{tmgnn_forward.41} parent=0
    _
  %s10 = ssub.s32 1, %s8
  %s11 = scalar_select 0, %s10, %s8
  loop: start=0, step=1, limit=6
  $region2: #{tmgnn_forward.41} parent=0 // loop_pre_header
    _
  $region3: #{tmgnn_forward.41} parent=0 // loop_header
    %s13 = sphi 0, %s17
    %p14 = scmp.ge.s32.totalorder %s13, 6
    %s23 = sphi 0, %s25
    %s26 = sphi 0, %s23
    %s27 = sphi 0, %s26
    %s43 = sphi 0, %s27
    %s47 = sphi 0, %s47
    %s49 = sphi 0, %s47
    %s50 = sphi 0, %s49
    %s64 = sphi 0, %s50
    %s68 = sphi 0, %s68
    %s70 = sphi 0, %s68
    %s71 = sphi 0, %s70
    %s85 = sphi 0, %s71
    %s89 = sphi 0, %s89
    %s91 = sphi 0, %s89
    %s92 = sphi 0, %s91
    %s106 = sphi 0, %s92
    %s110 = sphi 0, %s110
    %s112 = sphi 0, %s110
    %s113 = sphi 0, %s112
    %s127 = sphi 0, %s113
    %s131 = sphi 0, %s131
    %s133 = sphi 0, %s131
    %s134 = sphi 0, %s133
    %s148 = sphi 0, %s134
    %s152 = sphi 0, %s152
    %s154 = sphi 0, %s152
    %s155 = sphi 0, %s154
    %s169 = sphi 0, %s155
  $region4: #{tmgnn_forward.41} parent=0 // loop_header_branch
    %16 = sbr.rel (%p14) target = $region8
  $region5: #{tmgnn_forward.41} parent=0 // loop_body
    %s18 = ssub.s32 %s13, 1
    %s19 = ssub.s32 %s13, 2
    %s20 = sadd.s32 %s13, 1
    %s21 = ssub.s32 %s13, %s20
    %p22 = scmp.eq.s32.totalorder %s21, 0
    %s24 = sadd.s32 %s23, 1
    %s25 = scalar_select %p22, %s23, %s24
    %p28 = pneg %p22
    %p29 = scmp.eq.s32.totalorder %s13, 3
    %p30 = por %p28, %p29
    %p31 = scmp.ne.s32.totalorder %s23, %s26
    %p32 = scmp.eq.s32.totalorder %s13, 0
    %p33 = por %p31, %p32
    %p34 = scmp.ne.s32.totalorder %s23, %s26
    %p35 = scmp.eq.s32.totalorder %s18, 3
    %p36 = por %p34, %p35
    %p37 = scmp.ne.s32.totalorder %s26, %s27
    %p38 = scmp.eq.s32.totalorder %s18, 0
    %p39 = por %p37, %p38
    %p40 = scmp.ne.s32.totalorder %s26, %s27
    %p41 = scmp.eq.s32.totalorder %s19, 3
    %p42 = por %p40, %p41
    %p44 = scmp.ne.s32.totalorder %s27, %s43
    %p45 = scmp.eq.s32.totalorder %s19, 0
    %p46 = por %p44, %p45
    %s48 = sadd.s32 %s47, 1
    %p51 = scmp.eq.s32.totalorder %s13, 3
    %p52 = scmp.ne.s32.totalorder %s47, %s49
    %p53 = scmp.eq.s32.totalorder %s13, 0
    %p54 = por %p52, %p53
    %p55 = scmp.ne.s32.totalorder %s47, %s49
    %p56 = scmp.eq.s32.totalorder %s18, 3
    %p57 = por %p55, %p56
    %p58 = scmp.ne.s32.totalorder %s49, %s50
    %p59 = scmp.eq.s32.totalorder %s18, 0
    %p60 = por %p58, %p59
    %p61 = scmp.ne.s32.totalorder %s49, %s50
    %p62 = scmp.eq.s32.totalorder %s19, 3
    %p63 = por %p61, %p62
    %p65 = scmp.ne.s32.totalorder %s50, %s64
    %p66 = scmp.eq.s32.totalorder %s19, 0
    %p67 = por %p65, %p66
    %s69 = sadd.s32 %s68, 1
    %p72 = scmp.eq.s32.totalorder %s13, 3
    %p73 = scmp.ne.s32.totalorder %s68, %s70
    %p74 = scmp.eq.s32.totalorder %s13, 0
    %p75 = por %p73, %p74
    %p76 = scmp.ne.s32.totalorder %s68, %s70
    %p77 = scmp.eq.s32.totalorder %s18, 3
    %p78 = por %p76, %p77
    %p79 = scmp.ne.s32.totalorder %s70, %s71
    %p80 = scmp.eq.s32.totalorder %s18, 0
    %p81 = por %p79, %p80
    %p82 = scmp.ne.s32.totalorder %s70, %s71
    %p83 = scmp.eq.s32.totalorder %s19, 3
    %p84 = por %p82, %p83
    %p86 = scmp.ne.s32.totalorder %s71, %s85
    %p87 = scmp.eq.s32.totalorder %s19, 0
    %p88 = por %p86, %p87
    %s90 = sadd.s32 %s89, 1
    %p93 = scmp.eq.s32.totalorder %s13, 3
    %p94 = scmp.ne.s32.totalorder %s89, %s91
    %p95 = scmp.eq.s32.totalorder %s13, 0
    %p96 = por %p94, %p95
    %p97 = scmp.ne.s32.totalorder %s89, %s91
    %p98 = scmp.eq.s32.totalorder %s18, 3
    %p99 = por %p97, %p98
    %p100 = scmp.ne.s32.totalorder %s91, %s92
    %p101 = scmp.eq.s32.totalorder %s18, 0
    %p102 = por %p100, %p101
    %p103 = scmp.ne.s32.totalorder %s91, %s92
    %p104 = scmp.eq.s32.totalorder %s19, 3
    %p105 = por %p103, %p104
    %p107 = scmp.ne.s32.totalorder %s92, %s106
    %p108 = scmp.eq.s32.totalorder %s19, 0
    %p109 = por %p107, %p108
    %s111 = sadd.s32 %s110, 1
    %p114 = scmp.eq.s32.totalorder %s13, 3
    %p115 = scmp.ne.s32.totalorder %s110, %s112
    %p116 = scmp.eq.s32.totalorder %s13, 0
    %p117 = por %p115, %p116
    %p118 = scmp.ne.s32.totalorder %s110, %s112
    %p119 = scmp.eq.s32.totalorder %s18, 3
    %p120 = por %p118, %p119
    %p121 = scmp.ne.s32.totalorder %s112, %s113
    %p122 = scmp.eq.s32.totalorder %s18, 0
    %p123 = por %p121, %p122
    %p124 = scmp.ne.s32.totalorder %s112, %s113
    %p125 = scmp.eq.s32.totalorder %s19, 3
    %p126 = por %p124, %p125
    %p128 = scmp.ne.s32.totalorder %s113, %s127
    %p129 = scmp.eq.s32.totalorder %s19, 0
    %p130 = por %p128, %p129
    %s132 = sadd.s32 %s131, 1
    %p135 = scmp.eq.s32.totalorder %s13, 3
    %p136 = scmp.ne.s32.totalorder %s131, %s133
    %p137 = scmp.eq.s32.totalorder %s13, 0
    %p138 = por %p136, %p137
    %p139 = scmp.ne.s32.totalorder %s131, %s133
    %p140 = scmp.eq.s32.totalorder %s18, 3
    %p141 = por %p139, %p140
    %p142 = scmp.ne.s32.totalorder %s133, %s134
    %p143 = scmp.eq.s32.totalorder %s18, 0
    %p144 = por %p142, %p143
    %p145 = scmp.ne.s32.totalorder %s133, %s134
    %p146 = scmp.eq.s32.totalorder %s19, 3
    %p147 = por %p145, %p146
    %p149 = scmp.ne.s32.totalorder %s134, %s148
    %p150 = scmp.eq.s32.totalorder %s19, 0
    %p151 = por %p149, %p150
    %s153 = sadd.s32 %s152, 1
    %p156 = scmp.eq.s32.totalorder %s13, 3
    %p157 = scmp.ne.s32.totalorder %s152, %s154
    %p158 = scmp.eq.s32.totalorder %s13, 0
    %p159 = por %p157, %p158
    %p160 = scmp.ne.s32.totalorder %s152, %s154
    %p161 = scmp.eq.s32.totalorder %s18, 3
    %p162 = por %p160, %p161
    %p163 = scmp.ne.s32.totalorder %s154, %s155
    %p164 = scmp.eq.s32.totalorder %s18, 0
    %p165 = por %p163, %p164
    %p166 = scmp.ne.s32.totalorder %s154, %s155
    %p167 = scmp.eq.s32.totalorder %s19, 3
    %p168 = por %p166, %p167
    %p170 = scmp.ne.s32.totalorder %s155, %s169
    %p171 = scmp.eq.s32.totalorder %s19, 0
    %p172 = por %p170, %p171
    %p173 = scmp.le.s32.totalorder 1, %s13
    %p174 = scmp.lt.s32.totalorder %s13, 5
    %p175 = pnand %p173, %p174
    %p176 = pneg %p175
    // Predicated region
    $region9: #{tmgnn_forward.41} parent=5 // pred_check
      _
    $region10: #{tmgnn_forward.41} parent=5 // pred_check_branch
      %178 = sbr.rel (%p175) target = $region12
    $region11: #{tmgnn_forward.41} parent=5 // pred_region
      %s179 = ssub.s32 %s13, 1
      // Predicated region
      $region13: #{tmgnn_forward.41} parent=11 // pred_check
        %p180 = pneg %p60
      $region14: #{tmgnn_forward.41} parent=11 // pred_check_branch
        %182 = sbr.rel (%p180) target = $region16
      $region15: #{tmgnn_forward.41} parent=11 // pred_region
        _
      $region16: #{tmgnn_forward.41} parent=11 // pred_fallthru
        _
      // Predicated region
      $region17: #{tmgnn_forward.41} parent=11 // pred_check
        %p183 = pneg %p81
      $region18: #{tmgnn_forward.41} parent=11 // pred_check_branch
        %185 = sbr.rel (%p183) target = $region20
      $region19: #{tmgnn_forward.41} parent=11 // pred_region
        _
      $region20: #{tmgnn_forward.41} parent=11 // pred_fallthru
        _
      // Predicated region
      $region21: #{tmgnn_forward.41} parent=11 // pred_check
        %p186 = pneg %p102
      $region22: #{tmgnn_forward.41} parent=11 // pred_check_branch
        %188 = sbr.rel (%p186) target = $region24
      $region23: #{tmgnn_forward.41} parent=11 // pred_region
        _
      $region24: #{tmgnn_forward.41} parent=11 // pred_fallthru
        _
      // Predicated region
      $region25: #{tmgnn_forward.41} parent=11 // pred_check
        %p189 = pneg %p123
      $region26: #{tmgnn_forward.41} parent=11 // pred_check_branch
        %191 = sbr.rel (%p189) target = $region28
      $region27: #{tmgnn_forward.41} parent=11 // pred_region
        _
      $region28: #{tmgnn_forward.41} parent=11 // pred_fallthru
        _
    $region12: #{tmgnn_forward.41} parent=5 // pred_fallthru
      _
    %p192 = scmp.lt.s32.totalorder %s13, 4
    // Predicated region
    $region29: #{tmgnn_forward.41} parent=5 // pred_check
      %p193 = pneg %p192
    $region30: #{tmgnn_forward.41} parent=5 // pred_check_branch
      %195 = sbr.rel (%p193) target = $region32
    $region31: #{tmgnn_forward.41} parent=5 // pred_region
      // Predicated region
      $region33: #{tmgnn_forward.41} parent=31 // pred_check
        %p196 = pneg %p33
      $region34: #{tmgnn_forward.41} parent=31 // pred_check_branch
        %198 = sbr.rel (%p196) target = $region36
      $region35: #{tmgnn_forward.41} parent=31 // pred_region
        %p199 = scmp.lt.s32.totalorder %s13, 3
        %s200 = scalar_select %p199, %s13, 3
        %s201 = smul.addr %s200, 8
        %s202 = smul.addr %s201, 8
        %s203 = scalar_lea.vmem %s0, %s202
      $region36: #{tmgnn_forward.41} parent=31 // pred_fallthru
        _
    $region32: #{tmgnn_forward.41} parent=5 // pred_fallthru
      _
    %p204 = scmp.le.s32.totalorder 1, %s13
    %p205 = scmp.lt.s32.totalorder %s13, 5
    %p206 = pnand %p204, %p205
    %p207 = pneg %p206
    // Predicated region
    $region37: #{tmgnn_forward.41} parent=5 // pred_check
      _
    $region38: #{tmgnn_forward.41} parent=5 // pred_check_branch
      %209 = sbr.rel (%p206) target = $region40
    $region39: #{tmgnn_forward.41} parent=5 // pred_region
      %s210 = ssub.s32 %s13, 1
      %p211 = scmp.lt.s32.totalorder %s18, 3
      %s212 = scalar_select %p211, %s18, 3
      %s213 = smul.addr %s212, 8
      %s214 = smul.addr %s213, 8
      %s215 = scalar_lea.vmem %s0, %s214
      %p216 = pneg %p39
      %p217 = pneg %p36
      %p218 = pneg %p60
      %p219 = pneg %p57
      %p220 = pneg %p81
      %p221 = pneg %p78
      %p222 = pneg %p102
      %p223 = pneg %p99
      %p224 = pneg %p123
      %p225 = pneg %p120
      %p226 = pneg %p144
      %p227 = pneg %p141
      %p228 = pneg %p165
      %p229 = pneg %p162
      %p230 = scmp.lt.s32.totalorder %s18, 3
      %s231 = scalar_select %p230, %s18, 3
      %s232 = smul.addr %s231, 8
      %s233 = smul.addr %s232, 8
      %s234 = scalar_lea.vmem %s0, %s233
      %p236 = scmp.eq.s32.totalorder %s18, 0
      // Predicated region
      $region41: #{tmgnn_forward.41} parent=39 // pred_check
        %p237 = pneg %p236
      $region42: #{tmgnn_forward.41} parent=39 // pred_check_branch
        %239 = sbr.rel (%p237) target = $region44
      $region43: #{tmgnn_forward.41} parent=39 // pred_region
        %240 = vst [vmem:[#allocation2] sm:$0xff] 0.0
        %241 = vst [vmem:[#allocation2 + $0x8] sm:$0xff] 0.0
        %242 = vst [vmem:[#allocation3] sm:$0xff] 0.0
        %243 = vst [vmem:[#allocation3 + $0x8] sm:$0xff] 0.0
        %244 = vst [vmem:[#allocation4] sm:$0xff] 0.0
        %245 = vst [vmem:[#allocation4 + $0x8] sm:$0xff] 0.0
        %246 = vst [vmem:[#allocation5] sm:$0xff] 0.0
        %247 = vst [vmem:[#allocation5 + $0x8] sm:$0xff] 0.0
      $region44: #{tmgnn_forward.41} parent=39 // pred_fallthru
        _
      %v248 = vld [vmem:[%s234] sm:$0xff]
      %v249 = vld [vmem:[%s234 + $0x8] sm:$0xff]
      %v250 = vld [vmem:[%s234 + $0x10] sm:$0xff]
      %v251 = vld [vmem:[%s234 + $0x18] sm:$0xff]
      %v252 = vld [vmem:[%s234 + $0x20] sm:$0xff]
      %v253 = vld [vmem:[%s234 + $0x28] sm:$0xff]
      %v254 = vld [vmem:[%s234 + $0x30] sm:$0xff]
      %v255 = vld [vmem:[%s234 + $0x38] sm:$0xff]
      %v256 = vld [vmem:[#allocation2] sm:$0xff]
      %v257 = vld [vmem:[#allocation2 + $0x8] sm:$0xff]
      %v258 = vpack.c.bf16 %v257, %v256
      %v259 = vld [vmem:[%s1] sm:$0xff]
      %v260 = vld [vmem:[%s1 + $0x8] sm:$0xff]
      %v261 = vld [vmem:[%s1 + $0x10] sm:$0xff]
      %v262 = vld [vmem:[%s1 + $0x18] sm:$0xff]
      %v263 = vld [vmem:[%s1 + $0x20] sm:$0xff]
      %v264 = vld [vmem:[%s1 + $0x28] sm:$0xff]
      %v265 = vld [vmem:[%s1 + $0x30] sm:$0xff]
      %v266 = vld [vmem:[%s1 + $0x38] sm:$0xff]
      %v267 = vld [vmem:[%s1 + $0x40] sm:$0xff]
      %v268 = vld [vmem:[%s1 + $0x48] sm:$0xff]
      %v269 = vld [vmem:[%s1 + $0x50] sm:$0xff]
      %v270 = vld [vmem:[%s1 + $0x58] sm:$0xff]
      %v271 = vld [vmem:[%s1 + $0x60] sm:$0xff]
      %v272 = vld [vmem:[%s1 + $0x68] sm:$0xff]
      %v273 = vld [vmem:[%s1 + $0x70] sm:$0xff]
      %v274 = vld [vmem:[%s1 + $0x78] sm:$0xff]
      %v275 = vld [vmem:[%s1 + $0x80] sm:$0xff]
      %v276 = vld [vmem:[%s1 + $0x88] sm:$0xff]
      %v277 = vld [vmem:[%s1 + $0x90] sm:$0xff]
      %v278 = vld [vmem:[%s1 + $0x98] sm:$0xff]
      %v279 = vld [vmem:[%s1 + $0xa0] sm:$0xff]
      %v280 = vld [vmem:[%s1 + $0xa8] sm:$0xff]
      %v281 = vld [vmem:[%s1 + $0xb0] sm:$0xff]
      %v282 = vld [vmem:[%s1 + $0xb8] sm:$0xff]
      %v283 = vld [vmem:[%s1 + $0xc0] sm:$0xff]
      %v284 = vld [vmem:[%s1 + $0xc8] sm:$0xff]
      %v285 = vld [vmem:[%s1 + $0xd0] sm:$0xff]
      %v286 = vld [vmem:[%s1 + $0xd8] sm:$0xff]
      %v287 = vld [vmem:[%s1 + $0xe0] sm:$0xff]
      %v288 = vld [vmem:[%s1 + $0xe8] sm:$0xff]
      %v289 = vld [vmem:[%s1 + $0xf0] sm:$0xff]
      %v290 = vld [vmem:[%s1 + $0xf8] sm:$0xff]
      %v323 = vunpack.c.l.b16 %v259
      %v324 = vunpack.c.h.b16 %v259
      %v325 = vunpack.c.l.b16 %v260
      %v326 = vunpack.c.h.b16 %v260
      %v327 = vunpack.c.l.b16 %v261
      %v328 = vunpack.c.h.b16 %v261
      %v329 = vunpack.c.l.b16 %v262
      %v330 = vunpack.c.h.b16 %v262
      %v331 = vunpack.c.l.b16 %v263
      %v332 = vunpack.c.h.b16 %v263
      %v333 = vunpack.c.l.b16 %v264
      %v334 = vunpack.c.h.b16 %v264
      %v335 = vunpack.c.l.b16 %v265
      %v336 = vunpack.c.h.b16 %v265
      %v337 = vunpack.c.l.b16 %v266
      %v338 = vunpack.c.h.b16 %v266
      %v339 = vunpack.c.l.b16 %v267
      %v340 = vunpack.c.h.b16 %v267
      %v341 = vunpack.c.l.b16 %v268
      %v342 = vunpack.c.h.b16 %v268
      %v343 = vunpack.c.l.b16 %v269
      %v344 = vunpack.c.h.b16 %v269
      %v345 = vunpack.c.l.b16 %v270
      %v346 = vunpack.c.h.b16 %v270
      %v347 = vunpack.c.l.b16 %v271
      %v348 = vunpack.c.h.b16 %v271
      %v349 = vunpack.c.l.b16 %v272
      %v350 = vunpack.c.h.b16 %v272
      %v351 = vunpack.c.l.b16 %v273
      %v352 = vunpack.c.h.b16 %v273
      %v353 = vunpack.c.l.b16 %v274
      %v354 = vunpack.c.h.b16 %v274
      %v355 = vunpack.c.l.b16 %v275
      %v356 = vunpack.c.h.b16 %v275
      %v357 = vunpack.c.l.b16 %v276
      %v358 = vunpack.c.h.b16 %v276
      %v359 = vunpack.c.l.b16 %v277
      %v360 = vunpack.c.h.b16 %v277
      %v361 = vunpack.c.l.b16 %v278
      %v362 = vunpack.c.h.b16 %v278
      %v363 = vunpack.c.l.b16 %v279
      %v364 = vunpack.c.h.b16 %v279
      %v365 = vunpack.c.l.b16 %v280
      %v366 = vunpack.c.h.b16 %v280
      %v367 = vunpack.c.l.b16 %v281
      %v368 = vunpack.c.h.b16 %v281
      %v369 = vunpack.c.l.b16 %v282
      %v370 = vunpack.c.h.b16 %v282
      %v371 = vunpack.c.l.b16 %v283
      %v372 = vunpack.c.h.b16 %v283
      %v373 = vunpack.c.l.b16 %v284
      %v374 = vunpack.c.h.b16 %v284
      %v375 = vunpack.c.l.b16 %v285
      %v376 = vunpack.c.h.b16 %v285
      %v377 = vunpack.c.l.b16 %v286
      %v378 = vunpack.c.h.b16 %v286
      %v379 = vunpack.c.l.b16 %v287
      %v380 = vunpack.c.h.b16 %v287
      %v381 = vunpack.c.l.b16 %v288
      %v382 = vunpack.c.h.b16 %v288
      %v383 = vunpack.c.l.b16 %v289
      %v384 = vunpack.c.h.b16 %v289
      %v385 = vunpack.c.l.b16 %v290
      %v386 = vunpack.c.h.b16 %v290
      %v387 = vpack.c.b16 %v327, %v323
      %v388 = vpack.c.b16 %v328, %v324
      %v389 = vpack.c.b16 %v329, %v325
      %v390 = vpack.c.b16 %v330, %v326
      %v391 = vpack.c.b16 %v335, %v331
      %v392 = vpack.c.b16 %v336, %v332
      %v393 = vpack.c.b16 %v337, %v333
      %v394 = vpack.c.b16 %v338, %v334
      %v395 = vpack.c.b16 %v343, %v339
      %v396 = vpack.c.b16 %v344, %v340
      %v397 = vpack.c.b16 %v345, %v341
      %v398 = vpack.c.b16 %v346, %v342
      %v399 = vpack.c.b16 %v351, %v347
      %v400 = vpack.c.b16 %v352, %v348
      %v401 = vpack.c.b16 %v353, %v349
      %v402 = vpack.c.b16 %v354, %v350
      %v403 = vpack.c.b16 %v359, %v355
      %v404 = vpack.c.b16 %v360, %v356
      %v405 = vpack.c.b16 %v361, %v357
      %v406 = vpack.c.b16 %v362, %v358
      %v407 = vpack.c.b16 %v367, %v363
      %v408 = vpack.c.b16 %v368, %v364
      %v409 = vpack.c.b16 %v369, %v365
      %v410 = vpack.c.b16 %v370, %v366
      %v411 = vpack.c.b16 %v375, %v371
      %v412 = vpack.c.b16 %v376, %v372
      %v413 = vpack.c.b16 %v377, %v373
      %v414 = vpack.c.b16 %v378, %v374
      %v415 = vpack.c.b16 %v383, %v379
      %v416 = vpack.c.b16 %v384, %v380
      %v417 = vpack.c.b16 %v385, %v381
      %v418 = vpack.c.b16 %v386, %v382
      %451 = vmatprep.subr.bf16.mxu0 %v388
      %452 = vmatpush1.bf16.msra.mxu0 %v387
      %453 = vmatprep.subr.bf16.mxu0 %v392
      %454 = vmatpush1.bf16.msra.mxu0 %v391
      %455 = vmatprep.subr.bf16.mxu0 %v396
      %456 = vmatpush1.bf16.msra.mxu0 %v395
      %457 = vmatprep.subr.bf16.mxu0 %v400
      %458 = vmatpush1.bf16.msra.mxu0 %v399
      %459 = vmatprep.subr.bf16.mxu0 %v404
      %460 = vmatpush1.bf16.msra.mxu0 %v403
      %461 = vmatprep.subr.bf16.mxu0 %v408
      %462 = vmatpush1.bf16.msra.mxu0 %v407
      %463 = vmatprep.subr.bf16.mxu0 %v412
      %464 = vmatpush1.bf16.msra.mxu0 %v411
      %465 = vmatprep.subr.bf16.mxu0 %v416
      %466 = vmatpush1.bf16.msra.mxu0 %v415
      %467 = vmatprep.subr.bf16.mxu0 0
      %468 = vmatpush1.bf16.msra.mxu0 0
      %469 = vmatprep.subr.bf16.mxu0 0
      %470 = vmatpush1.bf16.msra.mxu0 0
      %471 = vmatprep.subr.bf16.mxu0 0
      %472 = vmatpush1.bf16.msra.mxu0 0
      %473 = vmatprep.subr.bf16.mxu0 0
      %474 = vmatpush1.bf16.msra.mxu0 0
      %475 = vmatprep.subr.bf16.mxu0 0
      %476 = vmatpush1.bf16.msra.mxu0 0
      %477 = vmatprep.subr.bf16.mxu0 0
      %478 = vmatpush1.bf16.msra.mxu0 0
      %479 = vmatprep.subr.bf16.mxu0 0
      %480 = vmatpush1.bf16.msra.mxu0 0
      %481 = vmatprep.subr.bf16.mxu0 0
      %482 = vmatpush1.bf16.msra.mxu0 0
      %483 = vmatprep.mubr.bf16.mxu0 0
      %484 = vmatmul.mubr.bf16.gmra.mrb[0].mxu0 %v258
      %v485 = vpop.f32.mrb[0].mxu0
      %v486 = vadd.f32 0.0, %v485
      %v487 = vpop.f32.mrb[0].mxu0
      %v488 = vadd.f32 0.0, %v487
      %v489 = vpop.f32.mrb[0].mxu0
      %v490 = vadd.f32 0.0, %v489
      %v491 = vpop.f32.mrb[0].mxu0
      %v492 = vadd.f32 0.0, %v491
      %493 = vdwg.mxu0
      %494 = vmatprep.subr.bf16.mxu0 %v390
      %495 = vmatpush1.bf16.msra.mxu0 %v389
      %496 = vmatprep.subr.bf16.mxu0 %v394
      %497 = vmatpush1.bf16.msra.mxu0 %v393
      %498 = vmatprep.subr.bf16.mxu0 %v398
      %499 = vmatpush1.bf16.msra.mxu0 %v397
      %500 = vmatprep.subr.bf16.mxu0 %v402
      %501 = vmatpush1.bf16.msra.mxu0 %v401
      %502 = vmatprep.subr.bf16.mxu0 %v406
      %503 = vmatpush1.bf16.msra.mxu0 %v405
      %504 = vmatprep.subr.bf16.mxu0 %v410
      %505 = vmatpush1.bf16.msra.mxu0 %v409
      %506 = vmatprep.subr.bf16.mxu0 %v414
      %507 = vmatpush1.bf16.msra.mxu0 %v413
      %508 = vmatprep.subr.bf16.mxu0 %v418
      %509 = vmatpush1.bf16.msra.mxu0 %v417
      %510 = vmatprep.subr.bf16.mxu0 0
      %511 = vmatpush1.bf16.msra.mxu0 0
      %512 = vmatprep.subr.bf16.mxu0 0
      %513 = vmatpush1.bf16.msra.mxu0 0
      %514 = vmatprep.subr.bf16.mxu0 0
      %515 = vmatpush1.bf16.msra.mxu0 0
      %516 = vmatprep.subr.bf16.mxu0 0
      %517 = vmatpush1.bf16.msra.mxu0 0
      %518 = vmatprep.subr.bf16.mxu0 0
      %519 = vmatpush1.bf16.msra.mxu0 0
      %520 = vmatprep.subr.bf16.mxu0 0
      %521 = vmatpush1.bf16.msra.mxu0 0
      %522 = vmatprep.subr.bf16.mxu0 0
      %523 = vmatpush1.bf16.msra.mxu0 0
      %524 = vmatprep.subr.bf16.mxu0 0
      %525 = vmatpush1.bf16.msra.mxu0 0
      %526 = vmatprep.mubr.bf16.mxu0 0
      %527 = vmatmul.mubr.bf16.gmra.mrb[0].mxu0 %v258
      %v528 = vpop.f32.mrb[0].mxu0
      %v529 = vadd.f32 0.0, %v528
      %v530 = vpop.f32.mrb[0].mxu0
      %v531 = vadd.f32 0.0, %v530
      %v532 = vpop.f32.mrb[0].mxu0
      %v533 = vadd.f32 0.0, %v532
      %v534 = vpop.f32.mrb[0].mxu0
      %v535 = vadd.f32 0.0, %v534
      %536 = vdwg.mxu0
      %v537 = vadd.f32 %v248, %v486
      %v538 = vadd.f32 %v249, %v488
      %v539 = vadd.f32 %v250, %v529
      %v540 = vadd.f32 %v251, %v531
      %v541 = vadd.f32 %v252, %v490
      %v542 = vadd.f32 %v253, %v492
      %v543 = vadd.f32 %v254, %v533
      %v544 = vadd.f32 %v255, %v535
      %v545 = vld [vmem:[#allocation3] sm:$0xff]
      %v546 = vld [vmem:[#allocation3 + $0x8] sm:$0xff]
      %v547 = vxor.u32 %v537, 2147483648
      %v548 = vxor.u32 %v541, 2147483648
      %v549 = vmul.f32 %v547, 1.442695
      %v550 = vpow.pop %v549
      %v551 = vmul.f32 %v548, 1.442695
      %v552 = vpow.pop %v551
      %v553 = vadd.f32 %v550, 1.0
      %v554 = vadd.f32 %v552, 1.0
      %v555 = vrcp.pop %v553
      %v556 = vmul.f32 1.0, %v555
      %v557 = vrcp.pop %v554
      %v558 = vmul.f32 1.0, %v557
      %v559 = vxor.u32 %v538, 2147483648
      %v560 = vxor.u32 %v542, 2147483648
      %v561 = vmul.f32 %v559, 1.442695
      %v562 = vpow.pop %v561
      %v563 = vmul.f32 %v560, 1.442695
      %v564 = vpow.pop %v563
      %v565 = vadd.f32 %v562, 1.0
      %v566 = vadd.f32 %v564, 1.0
      %v567 = vrcp.pop %v565
      %v568 = vmul.f32 1.0, %v567
      %v569 = vrcp.pop %v566
      %v570 = vmul.f32 1.0, %v569
      %v571 = vtanh.pop %v539
      %v572 = vtanh.pop %v543
      %v573 = vxor.u32 %v540, 2147483648
      %v574 = vxor.u32 %v544, 2147483648
      %v575 = vmul.f32 %v573, 1.442695
      %v576 = vpow.pop %v575
      %v577 = vmul.f32 %v574, 1.442695
      %v578 = vpow.pop %v577
      %v579 = vadd.f32 %v576, 1.0
      %v580 = vadd.f32 %v578, 1.0
      %v581 = vrcp.pop %v579
      %v582 = vmul.f32 1.0, %v581
      %v583 = vrcp.pop %v580
      %v584 = vmul.f32 1.0, %v583
      %v585 = vmul.f32 %v568, %v545
      %v586 = vmul.f32 %v570, %v546
      %v587 = vmul.f32 %v556, %v571
      %v588 = vmul.f32 %v558, %v572
      %v589 = vadd.f32 %v585, %v587
      %v590 = vadd.f32 %v586, %v588
      %v591 = vtanh.pop %v589
      %v592 = vtanh.pop %v590
      %v593 = vmul.f32 %v582, %v591
      %v594 = vmul.f32 %v584, %v592
      %595 = vst [vmem:[#allocation2] sm:$0xff] %v593
      %596 = vst [vmem:[#allocation2 + $0x8] sm:$0xff] %v594
      %597 = vst [vmem:[#allocation3] sm:$0xff] %v589
      %598 = vst [vmem:[#allocation3 + $0x8] sm:$0xff] %v590
      %v599 = vpack.c.bf16 %v594, %v593
      %v600 = vld [vmem:[%s2] sm:$0xff]
      %v601 = vld [vmem:[%s2 + $0x8] sm:$0xff]
      %v602 = vld [vmem:[%s2 + $0x10] sm:$0xff]
      %v603 = vld [vmem:[%s2 + $0x18] sm:$0xff]
      %v604 = vld [vmem:[%s2 + $0x20] sm:$0xff]
      %v605 = vld [vmem:[%s2 + $0x28] sm:$0xff]
      %v606 = vld [vmem:[%s2 + $0x30] sm:$0xff]
      %v607 = vld [vmem:[%s2 + $0x38] sm:$0xff]
      %v608 = vld [vmem:[%s2 + $0x40] sm:$0xff]
      %v609 = vld [vmem:[%s2 + $0x48] sm:$0xff]
      %v610 = vld [vmem:[%s2 + $0x50] sm:$0xff]
      %v611 = vld [vmem:[%s2 + $0x58] sm:$0xff]
      %v612 = vld [vmem:[%s2 + $0x60] sm:$0xff]
      %v613 = vld [vmem:[%s2 + $0x68] sm:$0xff]
      %v614 = vld [vmem:[%s2 + $0x70] sm:$0xff]
      %v615 = vld [vmem:[%s2 + $0x78] sm:$0xff]
      %v616 = vld [vmem:[%s2 + $0x80] sm:$0xff]
      %v617 = vld [vmem:[%s2 + $0x88] sm:$0xff]
      %v618 = vld [vmem:[%s2 + $0x90] sm:$0xff]
      %v619 = vld [vmem:[%s2 + $0x98] sm:$0xff]
      %v620 = vld [vmem:[%s2 + $0xa0] sm:$0xff]
      %v621 = vld [vmem:[%s2 + $0xa8] sm:$0xff]
      %v622 = vld [vmem:[%s2 + $0xb0] sm:$0xff]
      %v623 = vld [vmem:[%s2 + $0xb8] sm:$0xff]
      %v624 = vld [vmem:[%s2 + $0xc0] sm:$0xff]
      %v625 = vld [vmem:[%s2 + $0xc8] sm:$0xff]
      %v626 = vld [vmem:[%s2 + $0xd0] sm:$0xff]
      %v627 = vld [vmem:[%s2 + $0xd8] sm:$0xff]
      %v628 = vld [vmem:[%s2 + $0xe0] sm:$0xff]
      %v629 = vld [vmem:[%s2 + $0xe8] sm:$0xff]
      %v630 = vld [vmem:[%s2 + $0xf0] sm:$0xff]
      %v631 = vld [vmem:[%s2 + $0xf8] sm:$0xff]
      %v632 = vld [vmem:[#allocation4] sm:$0xff]
      %v633 = vld [vmem:[#allocation4 + $0x8] sm:$0xff]
      %v634 = vpack.c.bf16 %v633, %v632
      %v635 = vld [vmem:[%s3] sm:$0xff]
      %v636 = vld [vmem:[%s3 + $0x8] sm:$0xff]
      %v637 = vld [vmem:[%s3 + $0x10] sm:$0xff]
      %v638 = vld [vmem:[%s3 + $0x18] sm:$0xff]
      %v639 = vld [vmem:[%s3 + $0x20] sm:$0xff]
      %v640 = vld [vmem:[%s3 + $0x28] sm:$0xff]
      %v641 = vld [vmem:[%s3 + $0x30] sm:$0xff]
      %v642 = vld [vmem:[%s3 + $0x38] sm:$0xff]
      %v643 = vld [vmem:[%s3 + $0x40] sm:$0xff]
      %v644 = vld [vmem:[%s3 + $0x48] sm:$0xff]
      %v645 = vld [vmem:[%s3 + $0x50] sm:$0xff]
      %v646 = vld [vmem:[%s3 + $0x58] sm:$0xff]
      %v647 = vld [vmem:[%s3 + $0x60] sm:$0xff]
      %v648 = vld [vmem:[%s3 + $0x68] sm:$0xff]
      %v649 = vld [vmem:[%s3 + $0x70] sm:$0xff]
      %v650 = vld [vmem:[%s3 + $0x78] sm:$0xff]
      %v651 = vld [vmem:[%s3 + $0x80] sm:$0xff]
      %v652 = vld [vmem:[%s3 + $0x88] sm:$0xff]
      %v653 = vld [vmem:[%s3 + $0x90] sm:$0xff]
      %v654 = vld [vmem:[%s3 + $0x98] sm:$0xff]
      %v655 = vld [vmem:[%s3 + $0xa0] sm:$0xff]
      %v656 = vld [vmem:[%s3 + $0xa8] sm:$0xff]
      %v657 = vld [vmem:[%s3 + $0xb0] sm:$0xff]
      %v658 = vld [vmem:[%s3 + $0xb8] sm:$0xff]
      %v659 = vld [vmem:[%s3 + $0xc0] sm:$0xff]
      %v660 = vld [vmem:[%s3 + $0xc8] sm:$0xff]
      %v661 = vld [vmem:[%s3 + $0xd0] sm:$0xff]
      %v662 = vld [vmem:[%s3 + $0xd8] sm:$0xff]
      %v663 = vld [vmem:[%s3 + $0xe0] sm:$0xff]
      %v664 = vld [vmem:[%s3 + $0xe8] sm:$0xff]
      %v665 = vld [vmem:[%s3 + $0xf0] sm:$0xff]
      %v666 = vld [vmem:[%s3 + $0xf8] sm:$0xff]
      %v699 = vunpack.c.l.b16 %v635
      %v700 = vunpack.c.h.b16 %v635
      %v701 = vunpack.c.l.b16 %v636
      %v702 = vunpack.c.h.b16 %v636
      %v703 = vunpack.c.l.b16 %v637
      %v704 = vunpack.c.h.b16 %v637
      %v705 = vunpack.c.l.b16 %v638
      %v706 = vunpack.c.h.b16 %v638
      %v707 = vunpack.c.l.b16 %v639
      %v708 = vunpack.c.h.b16 %v639
      %v709 = vunpack.c.l.b16 %v640
      %v710 = vunpack.c.h.b16 %v640
      %v711 = vunpack.c.l.b16 %v641
      %v712 = vunpack.c.h.b16 %v641
      %v713 = vunpack.c.l.b16 %v642
      %v714 = vunpack.c.h.b16 %v642
      %v715 = vunpack.c.l.b16 %v643
      %v716 = vunpack.c.h.b16 %v643
      %v717 = vunpack.c.l.b16 %v644
      %v718 = vunpack.c.h.b16 %v644
      %v719 = vunpack.c.l.b16 %v645
      %v720 = vunpack.c.h.b16 %v645
      %v721 = vunpack.c.l.b16 %v646
      %v722 = vunpack.c.h.b16 %v646
      %v723 = vunpack.c.l.b16 %v647
      %v724 = vunpack.c.h.b16 %v647
      %v725 = vunpack.c.l.b16 %v648
      %v726 = vunpack.c.h.b16 %v648
      %v727 = vunpack.c.l.b16 %v649
      %v728 = vunpack.c.h.b16 %v649
      %v729 = vunpack.c.l.b16 %v650
      %v730 = vunpack.c.h.b16 %v650
      %v731 = vunpack.c.l.b16 %v651
      %v732 = vunpack.c.h.b16 %v651
      %v733 = vunpack.c.l.b16 %v652
      %v734 = vunpack.c.h.b16 %v652
      %v735 = vunpack.c.l.b16 %v653
      %v736 = vunpack.c.h.b16 %v653
      %v737 = vunpack.c.l.b16 %v654
      %v738 = vunpack.c.h.b16 %v654
      %v739 = vunpack.c.l.b16 %v655
      %v740 = vunpack.c.h.b16 %v655
      %v741 = vunpack.c.l.b16 %v656
      %v742 = vunpack.c.h.b16 %v656
      %v743 = vunpack.c.l.b16 %v657
      %v744 = vunpack.c.h.b16 %v657
      %v745 = vunpack.c.l.b16 %v658
      %v746 = vunpack.c.h.b16 %v658
      %v747 = vunpack.c.l.b16 %v659
      %v748 = vunpack.c.h.b16 %v659
      %v749 = vunpack.c.l.b16 %v660
      %v750 = vunpack.c.h.b16 %v660
      %v751 = vunpack.c.l.b16 %v661
      %v752 = vunpack.c.h.b16 %v661
      %v753 = vunpack.c.l.b16 %v662
      %v754 = vunpack.c.h.b16 %v662
      %v755 = vunpack.c.l.b16 %v663
      %v756 = vunpack.c.h.b16 %v663
      %v757 = vunpack.c.l.b16 %v664
      %v758 = vunpack.c.h.b16 %v664
      %v759 = vunpack.c.l.b16 %v665
      %v760 = vunpack.c.h.b16 %v665
      %v761 = vunpack.c.l.b16 %v666
      %v762 = vunpack.c.h.b16 %v666
      %v763 = vpack.c.b16 %v703, %v699
      %v764 = vpack.c.b16 %v704, %v700
      %v765 = vpack.c.b16 %v705, %v701
      %v766 = vpack.c.b16 %v706, %v702
      %v767 = vpack.c.b16 %v711, %v707
      %v768 = vpack.c.b16 %v712, %v708
      %v769 = vpack.c.b16 %v713, %v709
      %v770 = vpack.c.b16 %v714, %v710
      %v771 = vpack.c.b16 %v719, %v715
      %v772 = vpack.c.b16 %v720, %v716
      %v773 = vpack.c.b16 %v721, %v717
      %v774 = vpack.c.b16 %v722, %v718
      %v775 = vpack.c.b16 %v727, %v723
      %v776 = vpack.c.b16 %v728, %v724
      %v777 = vpack.c.b16 %v729, %v725
      %v778 = vpack.c.b16 %v730, %v726
      %v779 = vpack.c.b16 %v735, %v731
      %v780 = vpack.c.b16 %v736, %v732
      %v781 = vpack.c.b16 %v737, %v733
      %v782 = vpack.c.b16 %v738, %v734
      %v783 = vpack.c.b16 %v743, %v739
      %v784 = vpack.c.b16 %v744, %v740
      %v785 = vpack.c.b16 %v745, %v741
      %v786 = vpack.c.b16 %v746, %v742
      %v787 = vpack.c.b16 %v751, %v747
      %v788 = vpack.c.b16 %v752, %v748
      %v789 = vpack.c.b16 %v753, %v749
      %v790 = vpack.c.b16 %v754, %v750
      %v791 = vpack.c.b16 %v759, %v755
      %v792 = vpack.c.b16 %v760, %v756
      %v793 = vpack.c.b16 %v761, %v757
      %v794 = vpack.c.b16 %v762, %v758
      %827 = vmatprep.subr.bf16.mxu0 %v764
      %828 = vmatpush1.bf16.msra.mxu0 %v763
      %829 = vmatprep.subr.bf16.mxu0 %v768
      %830 = vmatpush1.bf16.msra.mxu0 %v767
      %831 = vmatprep.subr.bf16.mxu0 %v772
      %832 = vmatpush1.bf16.msra.mxu0 %v771
      %833 = vmatprep.subr.bf16.mxu0 %v776
      %834 = vmatpush1.bf16.msra.mxu0 %v775
      %835 = vmatprep.subr.bf16.mxu0 %v780
      %836 = vmatpush1.bf16.msra.mxu0 %v779
      %837 = vmatprep.subr.bf16.mxu0 %v784
      %838 = vmatpush1.bf16.msra.mxu0 %v783
      %839 = vmatprep.subr.bf16.mxu0 %v788
      %840 = vmatpush1.bf16.msra.mxu0 %v787
      %841 = vmatprep.subr.bf16.mxu0 %v792
      %842 = vmatpush1.bf16.msra.mxu0 %v791
      %843 = vmatprep.subr.bf16.mxu0 0
      %844 = vmatpush1.bf16.msra.mxu0 0
      %845 = vmatprep.subr.bf16.mxu0 0
      %846 = vmatpush1.bf16.msra.mxu0 0
      %847 = vmatprep.subr.bf16.mxu0 0
      %848 = vmatpush1.bf16.msra.mxu0 0
      %849 = vmatprep.subr.bf16.mxu0 0
      %850 = vmatpush1.bf16.msra.mxu0 0
      %851 = vmatprep.subr.bf16.mxu0 0
      %852 = vmatpush1.bf16.msra.mxu0 0
      %853 = vmatprep.subr.bf16.mxu0 0
      %854 = vmatpush1.bf16.msra.mxu0 0
      %855 = vmatprep.subr.bf16.mxu0 0
      %856 = vmatpush1.bf16.msra.mxu0 0
      %857 = vmatprep.subr.bf16.mxu0 0
      %858 = vmatpush1.bf16.msra.mxu0 0
      %859 = vmatprep.mubr.bf16.mxu0 0
      %860 = vmatmul.mubr.bf16.gmra.mrb[0].mxu0 %v634
      %v861 = vpop.f32.mrb[0].mxu0
      %v862 = vadd.f32 0.0, %v861
      %v863 = vpop.f32.mrb[0].mxu0
      %v864 = vadd.f32 0.0, %v863
      %v865 = vpop.f32.mrb[0].mxu0
      %v866 = vadd.f32 0.0, %v865
      %v867 = vpop.f32.mrb[0].mxu0
      %v868 = vadd.f32 0.0, %v867
      %869 = vdwg.mxu0
      %870 = vmatprep.subr.bf16.mxu0 %v766
      %871 = vmatpush1.bf16.msra.mxu0 %v765
      %872 = vmatprep.subr.bf16.mxu0 %v770
      %873 = vmatpush1.bf16.msra.mxu0 %v769
      %874 = vmatprep.subr.bf16.mxu0 %v774
      %875 = vmatpush1.bf16.msra.mxu0 %v773
      %876 = vmatprep.subr.bf16.mxu0 %v778
      %877 = vmatpush1.bf16.msra.mxu0 %v777
      %878 = vmatprep.subr.bf16.mxu0 %v782
      %879 = vmatpush1.bf16.msra.mxu0 %v781
      %880 = vmatprep.subr.bf16.mxu0 %v786
      %881 = vmatpush1.bf16.msra.mxu0 %v785
      %882 = vmatprep.subr.bf16.mxu0 %v790
      %883 = vmatpush1.bf16.msra.mxu0 %v789
      %884 = vmatprep.subr.bf16.mxu0 %v794
      %885 = vmatpush1.bf16.msra.mxu0 %v793
      %886 = vmatprep.subr.bf16.mxu0 0
      %887 = vmatpush1.bf16.msra.mxu0 0
      %888 = vmatprep.subr.bf16.mxu0 0
      %889 = vmatpush1.bf16.msra.mxu0 0
      %890 = vmatprep.subr.bf16.mxu0 0
      %891 = vmatpush1.bf16.msra.mxu0 0
      %892 = vmatprep.subr.bf16.mxu0 0
      %893 = vmatpush1.bf16.msra.mxu0 0
      %894 = vmatprep.subr.bf16.mxu0 0
      %895 = vmatpush1.bf16.msra.mxu0 0
      %896 = vmatprep.subr.bf16.mxu0 0
      %897 = vmatpush1.bf16.msra.mxu0 0
      %898 = vmatprep.subr.bf16.mxu0 0
      %899 = vmatpush1.bf16.msra.mxu0 0
      %900 = vmatprep.subr.bf16.mxu0 0
      %901 = vmatpush1.bf16.msra.mxu0 0
      %902 = vmatprep.mubr.bf16.mxu0 0
      %903 = vmatmul.mubr.bf16.gmra.mrb[0].mxu0 %v634
      %v904 = vpop.f32.mrb[0].mxu0
      %v905 = vadd.f32 0.0, %v904
      %v906 = vpop.f32.mrb[0].mxu0
      %v907 = vadd.f32 0.0, %v906
      %v908 = vpop.f32.mrb[0].mxu0
      %v909 = vadd.f32 0.0, %v908
      %v910 = vpop.f32.mrb[0].mxu0
      %v911 = vadd.f32 0.0, %v910
      %912 = vdwg.mxu0
      %v945 = vunpack.c.l.b16 %v600
      %v946 = vunpack.c.h.b16 %v600
      %v947 = vunpack.c.l.b16 %v601
      %v948 = vunpack.c.h.b16 %v601
      %v949 = vunpack.c.l.b16 %v602
      %v950 = vunpack.c.h.b16 %v602
      %v951 = vunpack.c.l.b16 %v603
      %v952 = vunpack.c.h.b16 %v603
      %v953 = vunpack.c.l.b16 %v604
      %v954 = vunpack.c.h.b16 %v604
      %v955 = vunpack.c.l.b16 %v605
      %v956 = vunpack.c.h.b16 %v605
      %v957 = vunpack.c.l.b16 %v606
      %v958 = vunpack.c.h.b16 %v606
      %v959 = vunpack.c.l.b16 %v607
      %v960 = vunpack.c.h.b16 %v607
      %v961 = vunpack.c.l.b16 %v608
      %v962 = vunpack.c.h.b16 %v608
      %v963 = vunpack.c.l.b16 %v609
      %v964 = vunpack.c.h.b16 %v609
      %v965 = vunpack.c.l.b16 %v610
      %v966 = vunpack.c.h.b16 %v610
      %v967 = vunpack.c.l.b16 %v611
      %v968 = vunpack.c.h.b16 %v611
      %v969 = vunpack.c.l.b16 %v612
      %v970 = vunpack.c.h.b16 %v612
      %v971 = vunpack.c.l.b16 %v613
      %v972 = vunpack.c.h.b16 %v613
      %v973 = vunpack.c.l.b16 %v614
      %v974 = vunpack.c.h.b16 %v614
      %v975 = vunpack.c.l.b16 %v615
      %v976 = vunpack.c.h.b16 %v615
      %v977 = vunpack.c.l.b16 %v616
      %v978 = vunpack.c.h.b16 %v616
      %v979 = vunpack.c.l.b16 %v617
      %v980 = vunpack.c.h.b16 %v617
      %v981 = vunpack.c.l.b16 %v618
      %v982 = vunpack.c.h.b16 %v618
      %v983 = vunpack.c.l.b16 %v619
      %v984 = vunpack.c.h.b16 %v619
      %v985 = vunpack.c.l.b16 %v620
      %v986 = vunpack.c.h.b16 %v620
      %v987 = vunpack.c.l.b16 %v621
      %v988 = vunpack.c.h.b16 %v621
      %v989 = vunpack.c.l.b16 %v622
      %v990 = vunpack.c.h.b16 %v622
      %v991 = vunpack.c.l.b16 %v623
      %v992 = vunpack.c.h.b16 %v623
      %v993 = vunpack.c.l.b16 %v624
      %v994 = vunpack.c.h.b16 %v624
      %v995 = vunpack.c.l.b16 %v625
      %v996 = vunpack.c.h.b16 %v625
      %v997 = vunpack.c.l.b16 %v626
      %v998 = vunpack.c.h.b16 %v626
      %v999 = vunpack.c.l.b16 %v627
      %v1000 = vunpack.c.h.b16 %v627
      %v1001 = vunpack.c.l.b16 %v628
      %v1002 = vunpack.c.h.b16 %v628
      %v1003 = vunpack.c.l.b16 %v629
      %v1004 = vunpack.c.h.b16 %v629
      %v1005 = vunpack.c.l.b16 %v630
      %v1006 = vunpack.c.h.b16 %v630
      %v1007 = vunpack.c.l.b16 %v631
      %v1008 = vunpack.c.h.b16 %v631
      %v1009 = vpack.c.b16 %v949, %v945
      %v1010 = vpack.c.b16 %v950, %v946
      %v1011 = vpack.c.b16 %v951, %v947
      %v1012 = vpack.c.b16 %v952, %v948
      %v1013 = vpack.c.b16 %v957, %v953
      %v1014 = vpack.c.b16 %v958, %v954
      %v1015 = vpack.c.b16 %v959, %v955
      %v1016 = vpack.c.b16 %v960, %v956
      %v1017 = vpack.c.b16 %v965, %v961
      %v1018 = vpack.c.b16 %v966, %v962
      %v1019 = vpack.c.b16 %v967, %v963
      %v1020 = vpack.c.b16 %v968, %v964
      %v1021 = vpack.c.b16 %v973, %v969
      %v1022 = vpack.c.b16 %v974, %v970
      %v1023 = vpack.c.b16 %v975, %v971
      %v1024 = vpack.c.b16 %v976, %v972
      %v1025 = vpack.c.b16 %v981, %v977
      %v1026 = vpack.c.b16 %v982, %v978
      %v1027 = vpack.c.b16 %v983, %v979
      %v1028 = vpack.c.b16 %v984, %v980
      %v1029 = vpack.c.b16 %v989, %v985
      %v1030 = vpack.c.b16 %v990, %v986
      %v1031 = vpack.c.b16 %v991, %v987
      %v1032 = vpack.c.b16 %v992, %v988
      %v1033 = vpack.c.b16 %v997, %v993
      %v1034 = vpack.c.b16 %v998, %v994
      %v1035 = vpack.c.b16 %v999, %v995
      %v1036 = vpack.c.b16 %v1000, %v996
      %v1037 = vpack.c.b16 %v1005, %v1001
      %v1038 = vpack.c.b16 %v1006, %v1002
      %v1039 = vpack.c.b16 %v1007, %v1003
      %v1040 = vpack.c.b16 %v1008, %v1004
      %1073 = vmatprep.subr.bf16.mxu0 %v1010
      %1074 = vmatpush1.bf16.msra.mxu0 %v1009
      %1075 = vmatprep.subr.bf16.mxu0 %v1014
      %1076 = vmatpush1.bf16.msra.mxu0 %v1013
      %1077 = vmatprep.subr.bf16.mxu0 %v1018
      %1078 = vmatpush1.bf16.msra.mxu0 %v1017
      %1079 = vmatprep.subr.bf16.mxu0 %v1022
      %1080 = vmatpush1.bf16.msra.mxu0 %v1021
      %1081 = vmatprep.subr.bf16.mxu0 %v1026
      %1082 = vmatpush1.bf16.msra.mxu0 %v1025
      %1083 = vmatprep.subr.bf16.mxu0 %v1030
      %1084 = vmatpush1.bf16.msra.mxu0 %v1029
      %1085 = vmatprep.subr.bf16.mxu0 %v1034
      %1086 = vmatpush1.bf16.msra.mxu0 %v1033
      %1087 = vmatprep.subr.bf16.mxu0 %v1038
      %1088 = vmatpush1.bf16.msra.mxu0 %v1037
      %1089 = vmatprep.subr.bf16.mxu0 0
      %1090 = vmatpush1.bf16.msra.mxu0 0
      %1091 = vmatprep.subr.bf16.mxu0 0
      %1092 = vmatpush1.bf16.msra.mxu0 0
      %1093 = vmatprep.subr.bf16.mxu0 0
      %1094 = vmatpush1.bf16.msra.mxu0 0
      %1095 = vmatprep.subr.bf16.mxu0 0
      %1096 = vmatpush1.bf16.msra.mxu0 0
      %1097 = vmatprep.subr.bf16.mxu0 0
      %1098 = vmatpush1.bf16.msra.mxu0 0
      %1099 = vmatprep.subr.bf16.mxu0 0
      %1100 = vmatpush1.bf16.msra.mxu0 0
      %1101 = vmatprep.subr.bf16.mxu0 0
      %1102 = vmatpush1.bf16.msra.mxu0 0
      %1103 = vmatprep.subr.bf16.mxu0 0
      %1104 = vmatpush1.bf16.msra.mxu0 0
      %1105 = vmatprep.mubr.bf16.mxu0 0
      %1106 = vmatmul.mubr.bf16.gmra.mrb[0].mxu0 %v599
      %v1107 = vpop.f32.mrb[0].mxu0
      %v1108 = vadd.f32 %v862, %v1107
      %v1109 = vpop.f32.mrb[0].mxu0
      %v1110 = vadd.f32 %v864, %v1109
      %v1111 = vpop.f32.mrb[0].mxu0
      %v1112 = vadd.f32 %v866, %v1111
      %v1113 = vpop.f32.mrb[0].mxu0
      %v1114 = vadd.f32 %v868, %v1113
      %1115 = vdwg.mxu0
      %1116 = vmatprep.subr.bf16.mxu0 %v1012
      %1117 = vmatpush1.bf16.msra.mxu0 %v1011
      %1118 = vmatprep.subr.bf16.mxu0 %v1016
      %1119 = vmatpush1.bf16.msra.mxu0 %v1015
      %1120 = vmatprep.subr.bf16.mxu0 %v1020
      %1121 = vmatpush1.bf16.msra.mxu0 %v1019
      %1122 = vmatprep.subr.bf16.mxu0 %v1024
      %1123 = vmatpush1.bf16.msra.mxu0 %v1023
      %1124 = vmatprep.subr.bf16.mxu0 %v1028
      %1125 = vmatpush1.bf16.msra.mxu0 %v1027
      %1126 = vmatprep.subr.bf16.mxu0 %v1032
      %1127 = vmatpush1.bf16.msra.mxu0 %v1031
      %1128 = vmatprep.subr.bf16.mxu0 %v1036
      %1129 = vmatpush1.bf16.msra.mxu0 %v1035
      %1130 = vmatprep.subr.bf16.mxu0 %v1040
      %1131 = vmatpush1.bf16.msra.mxu0 %v1039
      %1132 = vmatprep.subr.bf16.mxu0 0
      %1133 = vmatpush1.bf16.msra.mxu0 0
      %1134 = vmatprep.subr.bf16.mxu0 0
      %1135 = vmatpush1.bf16.msra.mxu0 0
      %1136 = vmatprep.subr.bf16.mxu0 0
      %1137 = vmatpush1.bf16.msra.mxu0 0
      %1138 = vmatprep.subr.bf16.mxu0 0
      %1139 = vmatpush1.bf16.msra.mxu0 0
      %1140 = vmatprep.subr.bf16.mxu0 0
      %1141 = vmatpush1.bf16.msra.mxu0 0
      %1142 = vmatprep.subr.bf16.mxu0 0
      %1143 = vmatpush1.bf16.msra.mxu0 0
      %1144 = vmatprep.subr.bf16.mxu0 0
      %1145 = vmatpush1.bf16.msra.mxu0 0
      %1146 = vmatprep.subr.bf16.mxu0 0
      %1147 = vmatpush1.bf16.msra.mxu0 0
      %1148 = vmatprep.mubr.bf16.mxu0 0
      %1149 = vmatmul.mubr.bf16.gmra.mrb[0].mxu0 %v599
      %v1150 = vpop.f32.mrb[0].mxu0
      %v1151 = vadd.f32 %v905, %v1150
      %v1152 = vpop.f32.mrb[0].mxu0
      %v1153 = vadd.f32 %v907, %v1152
      %v1154 = vpop.f32.mrb[0].mxu0
      %v1155 = vadd.f32 %v909, %v1154
      %v1156 = vpop.f32.mrb[0].mxu0
      %v1157 = vadd.f32 %v911, %v1156
      %1158 = vdwg.mxu0
      %v1159 = vld [vmem:[%s4] sm:$0xf]
      %v1161 = vlaneseq
      %v1162 = vshrl.u32 %v1161, 7
      %v1163 = vsub.s32 0, %v1162
      %v1164 = vrot.slane %v1159, %v1163
      %v1165 = vlaneseq
      %v1166 = vshrl.u32 %v1165, 7
      %v1167 = vsub.s32 1, %v1166
      %v1168 = vrot.slane %v1159, %v1167
      %v1169 = vlaneseq
      %v1170 = vshrl.u32 %v1169, 7
      %v1171 = vsub.s32 2, %v1170
      %v1172 = vrot.slane %v1159, %v1171
      %v1173 = vlaneseq
      %v1174 = vshrl.u32 %v1173, 7
      %v1175 = vsub.s32 3, %v1174
      %v1176 = vrot.slane %v1159, %v1175
      %v1181 = vadd.f32 %v1108, %v1164
      %v1182 = vadd.f32 %v1110, %v1168
      %v1183 = vadd.f32 %v1151, %v1172
      %v1184 = vadd.f32 %v1153, %v1176
      %v1185 = vadd.f32 %v1112, %v1164
      %v1186 = vadd.f32 %v1114, %v1168
      %v1187 = vadd.f32 %v1155, %v1172
      %v1188 = vadd.f32 %v1157, %v1176
      %v1189 = vld [vmem:[#allocation5] sm:$0xff]
      %v1190 = vld [vmem:[#allocation5 + $0x8] sm:$0xff]
      %v1191 = vxor.u32 %v1181, 2147483648
      %v1192 = vxor.u32 %v1185, 2147483648
      %v1193 = vmul.f32 %v1191, 1.442695
      %v1194 = vpow.pop %v1193
      %v1195 = vmul.f32 %v1192, 1.442695
      %v1196 = vpow.pop %v1195
      %v1197 = vadd.f32 %v1194, 1.0
      %v1198 = vadd.f32 %v1196, 1.0
      %v1199 = vrcp.pop %v1197
      %v1200 = vmul.f32 1.0, %v1199
      %v1201 = vrcp.pop %v1198
      %v1202 = vmul.f32 1.0, %v1201
      %v1203 = vxor.u32 %v1182, 2147483648
      %v1204 = vxor.u32 %v1186, 2147483648
      %v1205 = vmul.f32 %v1203, 1.442695
      %v1206 = vpow.pop %v1205
      %v1207 = vmul.f32 %v1204, 1.442695
      %v1208 = vpow.pop %v1207
      %v1209 = vadd.f32 %v1206, 1.0
      %v1210 = vadd.f32 %v1208, 1.0
      %v1211 = vrcp.pop %v1209
      %v1212 = vmul.f32 1.0, %v1211
      %v1213 = vrcp.pop %v1210
      %v1214 = vmul.f32 1.0, %v1213
      %v1215 = vtanh.pop %v1183
      %v1216 = vtanh.pop %v1187
      %v1217 = vxor.u32 %v1184, 2147483648
      %v1218 = vxor.u32 %v1188, 2147483648
      %v1219 = vmul.f32 %v1217, 1.442695
      %v1220 = vpow.pop %v1219
      %v1221 = vmul.f32 %v1218, 1.442695
      %v1222 = vpow.pop %v1221
      %v1223 = vadd.f32 %v1220, 1.0
      %v1224 = vadd.f32 %v1222, 1.0
      %v1225 = vrcp.pop %v1223
      %v1226 = vmul.f32 1.0, %v1225
      %v1227 = vrcp.pop %v1224
      %v1228 = vmul.f32 1.0, %v1227
      %v1229 = vmul.f32 %v1212, %v1189
      %v1230 = vmul.f32 %v1214, %v1190
      %v1231 = vmul.f32 %v1200, %v1215
      %v1232 = vmul.f32 %v1202, %v1216
      %v1233 = vadd.f32 %v1229, %v1231
      %v1234 = vadd.f32 %v1230, %v1232
      %v1235 = vtanh.pop %v1233
      %v1236 = vtanh.pop %v1234
      %v1237 = vmul.f32 %v1226, %v1235
      %v1238 = vmul.f32 %v1228, %v1236
      %1239 = vst [vmem:[#allocation4] sm:$0xff] %v1237
      %1240 = vst [vmem:[#allocation4 + $0x8] sm:$0xff] %v1238
      %1241 = vst [vmem:[#allocation5] sm:$0xff] %v1233
      %1242 = vst [vmem:[#allocation5 + $0x8] sm:$0xff] %v1234
      %p1243 = scmp.eq.s32.totalorder %s18, 3
      // Predicated region
      $region45: #{tmgnn_forward.41} parent=39 // pred_check
        %p1244 = pneg %p1243
      $region46: #{tmgnn_forward.41} parent=39 // pred_check_branch
        %1246 = sbr.rel (%p1244) target = $region48
      $region47: #{tmgnn_forward.41} parent=39 // pred_region
        %1247 = vst [vmem:[%s5] sm:$0xff] %v593
        %1248 = vst [vmem:[%s5 + $0x8] sm:$0xff] %v594
        %1249 = vst [vmem:[%s6] sm:$0xff] %v1237
        %1250 = vst [vmem:[%s6 + $0x8] sm:$0xff] %v1238
      $region48: #{tmgnn_forward.41} parent=39 // pred_fallthru
        _
      // Predicated region
      $region49: #{tmgnn_forward.41} parent=39 // pred_check
        %p1251 = pneg %p141
      $region50: #{tmgnn_forward.41} parent=39 // pred_check_branch
        %1253 = sbr.rel (%p1251) target = $region52
      $region51: #{tmgnn_forward.41} parent=39 // pred_region
        _
      $region52: #{tmgnn_forward.41} parent=39 // pred_fallthru
        _
      // Predicated region
      $region53: #{tmgnn_forward.41} parent=39 // pred_check
        %p1254 = pneg %p162
      $region54: #{tmgnn_forward.41} parent=39 // pred_check_branch
        %1256 = sbr.rel (%p1254) target = $region56
      $region55: #{tmgnn_forward.41} parent=39 // pred_region
        _
      $region56: #{tmgnn_forward.41} parent=39 // pred_fallthru
        _
      // Predicated region
      $region57: #{tmgnn_forward.41} parent=39 // pred_check
        %p1257 = pneg %p141
      $region58: #{tmgnn_forward.41} parent=39 // pred_check_branch
        %1259 = sbr.rel (%p1257) target = $region60
      $region59: #{tmgnn_forward.41} parent=39 // pred_region
        _
      $region60: #{tmgnn_forward.41} parent=39 // pred_fallthru
        _
      // Predicated region
      $region61: #{tmgnn_forward.41} parent=39 // pred_check
        %p1260 = pneg %p162
      $region62: #{tmgnn_forward.41} parent=39 // pred_check_branch
        %1262 = sbr.rel (%p1260) target = $region64
      $region63: #{tmgnn_forward.41} parent=39 // pred_region
        _
      $region64: #{tmgnn_forward.41} parent=39 // pred_fallthru
        _
    $region40: #{tmgnn_forward.41} parent=5 // pred_fallthru
      _
    %p1263 = scmp.le.s32.totalorder 2, %s13
    // Predicated region
    $region65: #{tmgnn_forward.41} parent=5 // pred_check
      %p1264 = pneg %p1263
    $region66: #{tmgnn_forward.41} parent=5 // pred_check_branch
      %1266 = sbr.rel (%p1264) target = $region68
    $region67: #{tmgnn_forward.41} parent=5 // pred_region
      %s1267 = ssub.s32 %s13, 2
    $region68: #{tmgnn_forward.41} parent=5 // pred_fallthru
      _
  $region6: #{tmgnn_forward.41} parent=0 // loop_footer
    %s17 = sadd.s32 1, %s13
  $region7: #{tmgnn_forward.41} parent=0 // loop_footer_branch
    %12 = sbr.rel target = $region3
  $region8: #{tmgnn_forward.41} parent=0 // loop_exit
    _

</llo_original>
